<compile_context>
chip_gen: v5e
topology: v5e:2x2
jax: 0.10.0
libtpu: 0.0.40
codegen_flags: <defaults>
</compile_context>

<pallas_src>
import math

import jax
import jax.numpy as jnp
from jax.experimental import pallas as pl
from jax.experimental.pallas import tpu as pltpu

# ----------------------------------------------------------------------------
# Small DistilBERT-style config (real model: H=768, NH=12, FFN=3072, L=6).
# BS = B*S = 128 so every token-dim matmul fully fills the MXU rows.
# ----------------------------------------------------------------------------
B = 2                 # batch
S = 64                # sequence length
BS = B * S            # flattened tokens = 128
H = 128               # hidden size
NH = 4                # attention heads
HD = H // NH          # head dim = 32
FFN = 4 * H           # FFN inner dim = 512
LAYERS = 2            # transformer blocks
VOCAB = 256
MAX_POS = 64
EPS = 1e-12           # DistilBERT LayerNorm eps
NEG = 1e9             # additive mask magnitude


# ----------------------------------------------------------------------------
# In-kernel helpers (f32 statistics)
# ----------------------------------------------------------------------------
def _layernorm(x, g, b):
    mu = jnp.mean(x, axis=-1, keepdims=True)
    var = jnp.mean(jnp.square(x - mu), axis=-1, keepdims=True)
    return (x - mu) * jax.lax.rsqrt(var + EPS) * g + b


def _gelu(x):
    # TODO(synk): exact erf-GELU in HF DistilBERT; tanh approximation here.
    return jax.nn.gelu(x, approximate=True)


# ----------------------------------------------------------------------------
# One grid step == one encoder layer (plus embeddings at l==0, head at l==last)
# ----------------------------------------------------------------------------
def distilbert_layer_kernel(ids_ref, mask_ref, wemb_ref, pos_ref, eg_ref, eb_ref,
                            wqkv_ref, bqkv_ref, wo_ref, bo_ref,
                            ln1g_ref, ln1b_ref, w1_ref, b1_ref, w2_ref, b2_ref,
                            ln2g_ref, ln2b_ref, pw_ref, pb_ref,
                            out_ref, x_ref, ctx_ref):
    l = pl.program_id(0)

    # ---- embeddings: one-hot gather on the MXU + positions + LayerNorm ----
    @pl.when(l == 0)
    def _():
        ids = ids_ref[...]                                          # (BS, 1) int32
        vocab_iota = jax.lax.broadcasted_iota(jnp.int32, (BS, VOCAB), 1)
        onehot = (ids == vocab_iota).astype(jnp.bfloat16)           # (BS, VOCAB)
        emb = jnp.dot(onehot, wemb_ref[...],
                      preferred_element_type=jnp.float32)           # (BS, H)
        x_ref[...] = _layernorm(emb + pos_ref[...], eg_ref[...], eb_ref[...])

    x = x_ref[...]                                                  # (BS, H) f32
    xb = x.astype(jnp.bfloat16)
    addmask = mask_ref[...]                                         # (BS, BS) f32, hoisted

    # ---- merged QKV: one MXU pass, N = 3H (1/sqrt(HD) folded into W_q) ----
    qkv = jnp.dot(xb, wqkv_ref[...],
                  preferred_element_type=jnp.float32) + bqkv_ref[...]   # (BS, 3H)

    # ---- multi-head self-attention on the full flattened token grid -------
    # Cross-sequence pairs are killed by the block-diagonal additive mask, so
    # every matmul keeps M = N = BS = 128 (full MXU rows/lanes).
    for h in range(NH):
        qh = qkv[:, h * HD:(h + 1) * HD].astype(jnp.bfloat16)           # (BS, HD)
        kh = qkv[:, H + h * HD:H + (h + 1) * HD].astype(jnp.bfloat16)
        vh = qkv[:, 2 * H + h * HD:2 * H + (h + 1) * HD].astype(jnp.bfloat16)

        s = jax.lax.dot_general(qh, kh, (((1,), (1,)), ((), ())),
                                preferred_element_type=jnp.float32)     # (BS, BS)
        s = s + addmask
        m = jnp.max(s, axis=-1, keepdims=True)
        e = jnp.exp(s - m)
        r = pl.reciprocal(jnp.sum(e, axis=-1, keepdims=True), approx=True)
        p = (e * r).astype(jnp.bfloat16)

        ctx_h = jnp.dot(p, vh, preferred_element_type=jnp.float32)      # (BS, HD)
        # Mosaic-safe lane-merge of the per-head contexts (bf16 staging).
        ctx_ref[:, h * HD:(h + 1) * HD] = ctx_h.astype(jnp.bfloat16)

    # ---- fused output projection: ONE K=H=128 matmul over all heads -------
    ctx = ctx_ref[...]                                              # (BS, H) bf16
    attn = jnp.dot(ctx, wo_ref[...],
                   preferred_element_type=jnp.float32) + bo_ref[...]
    h1 = _layernorm(x + attn, ln1g_ref[...], ln1b_ref[...])

    # ---- FFN on the flattened tokens ---------------------------------------
    f = _gelu(jnp.dot(h1.astype(jnp.bfloat16), w1_ref[...],
                      preferred_element_type=jnp.float32) + b1_ref[...])
    f = jnp.dot(f.astype(jnp.bfloat16), w2_ref[...],
                preferred_element_type=jnp.float32) + b2_ref[...]
    x_new = _layernorm(h1 + f, ln2g_ref[...], ln2b_ref[...])
    x_ref[...] = x_new

    # ---- CLS pooling via static row slices + prediction head + sigmoid ----
    @pl.when(l == LAYERS - 1)
    def _():
        pw = pw_ref[...]                                            # (H, 1) f32
        pb = pb_ref[...]                                            # (1, 1) f32
        for b in range(B):
            cls_b = x_new[b * S:b * S + 1, :]                       # (1, H)
            logit = jnp.dot(cls_b, pw,
                            preferred_element_type=jnp.float32) + pb
            out_ref[b:b + 1, :] = jax.nn.sigmoid(logit)             # (1, 1)


# ----------------------------------------------------------------------------
# Wrapper
# ----------------------------------------------------------------------------
def _const_spec(shape):
    nd = len(shape)
    return pl.BlockSpec(tuple(shape), lambda l, _nd=nd: (0,) * _nd)


def _layer_spec(shape):
    nd = len(shape)
    return pl.BlockSpec((None,) + tuple(shape),
                        lambda l, _nd=nd: (l,) + (0,) * _nd)


def _build_additive_mask(attention_mask):
    # (B, S) {0,1} -> (BS, BS): 0.0 where query/key are in the same sequence
    # and the key is not padding, -1e9 otherwise (block-diagonal).
    seq_id = jnp.repeat(jnp.arange(B, dtype=jnp.int32), S)          # (BS,)
    key_ok = attention_mask.reshape(BS).astype(jnp.bool_)           # (BS,)
    allowed = (seq_id[:, None] == seq_id[None, :]) & key_ok[None, :]
    return jnp.where(allowed, 0.0, -NEG).astype(jnp.float32)


def custom_distilbert_forward(input_ids, attention_mask, params):
    ids = input_ids.reshape(BS, 1).astype(jnp.int32)
    addmask = _build_additive_mask(attention_mask)                  # (BS, BS) f32

    in_specs = [
        _const_spec((BS, 1)),        # ids
        _const_spec((BS, BS)),       # additive attention mask (precomputed)
        _const_spec((VOCAB, H)),     # word embeddings (bf16)
        _const_spec((BS, H)),        # tiled positional embeddings
        _const_spec((1, H)),         # emb LN gamma
        _const_spec((1, H)),         # emb LN beta
        _layer_spec((H, 3 * H)),     # merged Wqkv (per layer, streamed)
        _layer_spec((1, 3 * H)),     # bqkv
        _layer_spec((H, H)),         # Wo
        _layer_spec((1, H)),         # bo
        _layer_spec((1, H)),         # LN1 gamma
        _layer_spec((1, H)),         # LN1 beta
        _layer_spec((H, FFN)),       # W1
        _layer_spec((1, FFN)),       # b1
        _layer_spec((FFN, H)),       # W2
        _layer_spec((1, H)),         # b2
        _layer_spec((1, H)),         # LN2 gamma
        _layer_spec((1, H)),         # LN2 beta
        _const_spec((H, 1)),         # pred weight
        _const_spec((1, 1)),         # pred bias
    ]

    out = pl.pallas_call(
        distilbert_layer_kernel,
        out_shape=jax.ShapeDtypeStruct((B, 1), jnp.float32),
        grid=(LAYERS,),
        in_specs=in_specs,
        out_specs=pl.BlockSpec((B, 1), lambda l: (0, 0)),
        scratch_shapes=[
            pltpu.VMEM((BS, H), jnp.float32),    # carried hidden state
            pltpu.VMEM((BS, H), jnp.bfloat16),   # per-head context staging
        ],
        compiler_params=pltpu.CompilerParams(
            dimension_semantics=("arbitrary",)),
    )(ids, addmask,
      params["word_emb"], params["pos_tiled"], params["emb_g"], params["emb_b"],
      params["wqkv"], params["bqkv"], params["wo"], params["bo"],
      params["ln1g"], params["ln1b"], params["w1"], params["b1"],
      params["w2"], params["b2"], params["ln2g"], params["ln2b"],
      params["pred_w"], params["pred_b"])
    return out.reshape(-1)                      # shape [batch], like the module


# ----------------------------------------------------------------------------
# Parameters (deterministic synthetic init; the real module loads a checkpoint)
# ----------------------------------------------------------------------------
def init_params(seed=0):
    key = jax.random.PRNGKey(seed)

    def nrm(k, shape, scale=0.02):
        return scale * jax.random.normal(k, shape, jnp.float32)

    keys = iter(jax.random.split(key, 3 + 6 * LAYERS))
    word_emb = nrm(next(keys), (VOCAB, H))
    pos_emb = nrm(next(keys), (MAX_POS, H))
    pred_w = nrm(next(keys), (H, 1))

    q_scale = 1.0 / math.sqrt(HD)
    wqkv, wo, w1, w2 = [], [], [], []
    for _ in range(LAYERS):
        wq = nrm(next(keys), (H, H)) * q_scale        # fold 1/sqrt(HD) into W_q
        wk = nrm(next(keys), (H, H))
        wv = nrm(next(keys), (H, H))
        wqkv.append(jnp.concatenate([wq, wk, wv], axis=1))        # (H, 3H)
        wo.append(nrm(next(keys), (H, H)))   # rows head-major (h*HD + d), matches ctx cols
        w1.append(nrm(next(keys), (H, FFN)))
        w2.append(nrm(next(keys), (FFN, H)))

    return {
        # weights in bf16 (native MXU input); biases / LN params in f32
        "word_emb": word_emb.astype(jnp.bfloat16),
        "pos_tiled": jnp.tile(pos_emb[:S], (B, 1)),               # (BS, H) f32
        "emb_g": jnp.ones((1, H), jnp.float32),
        "emb_b": jnp.zeros((1, H), jnp.float32),
        "wqkv": jnp.stack(wqkv).astype(jnp.bfloat16),             # (L, H, 3H)
        # NOTE: with a real checkpoint, the q-slice of this bias must also be
        # scaled by 1/sqrt(HD) (zero here, so it is a no-op).
        "bqkv": jnp.zeros((LAYERS, 1, 3 * H), jnp.float32),
        "wo": jnp.stack(wo).astype(jnp.bfloat16),                 # (L, H, H)
        "bo": jnp.zeros((LAYERS, 1, H), jnp.float32),
        "ln1g": jnp.ones((LAYERS, 1, H), jnp.float32),
        "ln1b": jnp.zeros((LAYERS, 1, H), jnp.float32),
        "w1": jnp.stack(w1).astype(jnp.bfloat16),                 # (L, H, FFN)
        "b1": jnp.zeros((LAYERS, 1, FFN), jnp.float32),
        "w2": jnp.stack(w2).astype(jnp.bfloat16),                 # (L, FFN, H)
        "b2": jnp.zeros((LAYERS, 1, H), jnp.float32),
        "ln2g": jnp.ones((LAYERS, 1, H), jnp.float32),
        "ln2b": jnp.zeros((LAYERS, 1, H), jnp.float32),
        "pred_w": pred_w,                                         # (H, 1) f32
        "pred_b": jnp.zeros((1, 1), jnp.float32),
    }


# NOTE: tokenizer / Adam optimizer / BCELoss from the PyTorch module are
# host-side training utilities, not part of the forward compute.

if __name__ == "__main__":
    key = jax.random.PRNGKey(0)
    k_ids, _ = jax.random.split(key)

    params = init_params(seed=0)

    input_ids = jax.random.randint(k_ids, (B, S), 0, VOCAB, dtype=jnp.int32)
    # second sequence has 9 padding tokens at the end
    lengths = jnp.array([S, S - 9], dtype=jnp.int32)
    attention_mask = (jnp.arange(S)[None, :] < lengths[:, None]).astype(jnp.int32)

    fwd = jax.jit(lambda ids, m: custom_distilbert_forward(ids, m, params))
    out = jax.block_until_ready(fwd(input_ids, attention_mask))

    assert out.shape == (B,), out.shape
    assert bool(jnp.all(jnp.isfinite(out)))
    assert bool(jnp.all((out >= 0.0) & (out <= 1.0)))
    print("KERNEL_OK")
</pallas_src>

<mosaic_0001>
module attributes {stable_mosaic.version = 11 : i64} {
  func.func @distilbert_layer_kernel(%arg0: i32, %arg1: memref<128x1xi32, #tpu.memory_space<vmem>>, %arg2: memref<128x128xf32, #tpu.memory_space<vmem>>, %arg3: memref<256x128xbf16, #tpu.memory_space<vmem>>, %arg4: memref<128x128xf32, #tpu.memory_space<vmem>>, %arg5: memref<1x128xf32, #tpu.memory_space<vmem>>, %arg6: memref<1x128xf32, #tpu.memory_space<vmem>>, %arg7: memref<1x128x384xbf16, #tpu.memory_space<vmem>>, %arg8: memref<1x1x384xf32, #tpu.memory_space<vmem>>, %arg9: memref<1x128x128xbf16, #tpu.memory_space<vmem>>, %arg10: memref<1x1x128xf32, #tpu.memory_space<vmem>>, %arg11: memref<1x1x128xf32, #tpu.memory_space<vmem>>, %arg12: memref<1x1x128xf32, #tpu.memory_space<vmem>>, %arg13: memref<1x128x512xbf16, #tpu.memory_space<vmem>>, %arg14: memref<1x1x512xf32, #tpu.memory_space<vmem>>, %arg15: memref<1x512x128xbf16, #tpu.memory_space<vmem>>, %arg16: memref<1x1x128xf32, #tpu.memory_space<vmem>>, %arg17: memref<1x1x128xf32, #tpu.memory_space<vmem>>, %arg18: memref<1x1x128xf32, #tpu.memory_space<vmem>>, %arg19: memref<128x1xf32, #tpu.memory_space<vmem>>, %arg20: memref<1x1xf32, #tpu.memory_space<vmem>>, %arg21: memref<2x1xf32, #tpu.memory_space<vmem>>, %arg22: memref<128x128xf32, #tpu.memory_space<vmem>>, %arg23: memref<128x128xbf16, #tpu.memory_space<vmem>>) attributes {dimension_semantics = [#tpu.dimension_semantics<arbitrary>], iteration_bounds = array<i64: 2>, scalar_prefetch = 0 : i64, scratch_operands = 2 : i64, tpu.core_type = #tpu.core_type<tc>, window_params = [{pipeline_mode = #tpu.pipeline_mode<synchronous>, transform_indices = @transform_0, window_bounds = array<i64: 128, 1>}, {pipeline_mode = #tpu.pipeline_mode<synchronous>, transform_indices = @transform_1, window_bounds = array<i64: 128, 128>}, {pipeline_mode = #tpu.pipeline_mode<synchronous>, transform_indices = @transform_2, window_bounds = array<i64: 256, 128>}, {pipeline_mode = #tpu.pipeline_mode<synchronous>, transform_indices = @transform_3, window_bounds = array<i64: 128, 128>}, {pipeline_mode = #tpu.pipeline_mode<synchronous>, transform_indices = @transform_4, window_bounds = array<i64: 1, 128>}, {pipeline_mode = #tpu.pipeline_mode<synchronous>, transform_indices = @transform_5, window_bounds = array<i64: 1, 128>}, {transform_indices = @transform_6, window_bounds = array<i64: 1, 128, 384>}, {transform_indices = @transform_7, window_bounds = array<i64: 1, 1, 384>}, {transform_indices = @transform_8, window_bounds = array<i64: 1, 128, 128>}, {transform_indices = @transform_9, window_bounds = array<i64: 1, 1, 128>}, {transform_indices = @transform_10, window_bounds = array<i64: 1, 1, 128>}, {transform_indices = @transform_11, window_bounds = array<i64: 1, 1, 128>}, {transform_indices = @transform_12, window_bounds = array<i64: 1, 128, 512>}, {transform_indices = @transform_13, window_bounds = array<i64: 1, 1, 512>}, {transform_indices = @transform_14, window_bounds = array<i64: 1, 512, 128>}, {transform_indices = @transform_15, window_bounds = array<i64: 1, 1, 128>}, {transform_indices = @transform_16, window_bounds = array<i64: 1, 1, 128>}, {transform_indices = @transform_17, window_bounds = array<i64: 1, 1, 128>}, {pipeline_mode = #tpu.pipeline_mode<synchronous>, transform_indices = @transform_18, window_bounds = array<i64: 128, 1>}, {pipeline_mode = #tpu.pipeline_mode<synchronous>, transform_indices = @transform_19, window_bounds = array<i64: 1, 1>}, {pipeline_mode = #tpu.pipeline_mode<synchronous>, transform_indices = @transform_20, window_bounds = array<i64: 2, 1>}]} {
    %c0_i32 = arith.constant 0 : i32
    %0 = arith.cmpi eq, %arg0, %c0_i32 : i32
    %1 = arith.extui %0 : i1 to i32
    %c0_i32_0 = arith.constant 0 : i32
    %2 = arith.cmpi ne, %1, %c0_i32_0 : i32
    scf.if %2 {
      %c0_83 = arith.constant 0 : index
      %c0_84 = arith.constant 0 : index
      %196 = vector.load %arg1[%c0_83, %c0_84] : memref<128x1xi32, #tpu.memory_space<vmem>>, vector<128x1xi32>
      %197 = tpu.iota {dimensions = array<i32: 1>} : vector<128x256xi32>
      %198 = vector.broadcast %196 : vector<128x1xi32> to vector<128x256xi32>
      %199 = arith.cmpi eq, %198, %197 : vector<128x256xi32>
      %200 = arith.extui %199 : vector<128x256xi1> to vector<128x256xi32>
      %201 = arith.sitofp %200 : vector<128x256xi32> to vector<128x256xf32>
      %202 = arith.truncf %201 : vector<128x256xf32> to vector<128x256xbf16>
      %c0_85 = arith.constant 0 : index
      %c0_86 = arith.constant 0 : index
      %203 = vector.load %arg3[%c0_85, %c0_86] : memref<256x128xbf16, #tpu.memory_space<vmem>>, vector<256x128xbf16>
      %cst_87 = arith.constant dense<0.000000e+00> : vector<128x128xf32>
      %204 = tpu.matmul %202, %203, %cst_87 {dimension_numbers = #tpu.dot_dimension_numbers<[1], [0], [0], [1], [0, 0, 1, 1], [], []>} : vector<128x256xbf16>, vector<256x128xbf16>, vector<128x128xf32> -> vector<128x128xf32>
      %c0_88 = arith.constant 0 : index
      %c0_89 = arith.constant 0 : index
      %205 = vector.load %arg4[%c0_88, %c0_89] : memref<128x128xf32, #tpu.memory_space<vmem>>, vector<128x128xf32>
      %206 = arith.addf %204, %205 : vector<128x128xf32>
      %c0_90 = arith.constant 0 : index
      %c0_91 = arith.constant 0 : index
      %207 = vector.load %arg5[%c0_90, %c0_91] : memref<1x128xf32, #tpu.memory_space<vmem>>, vector<1x128xf32>
      %c0_92 = arith.constant 0 : index
      %c0_93 = arith.constant 0 : index
      %208 = vector.load %arg6[%c0_92, %c0_93] : memref<1x128xf32, #tpu.memory_space<vmem>>, vector<1x128xf32>
      %cst_94 = arith.constant dense<0.000000e+00> : vector<128xf32>
      %209 = vector.multi_reduction <add>, %206, %cst_94 [1] : vector<128x128xf32> to vector<128xf32>
      %210 = vector.shape_cast %209 : vector<128xf32> to vector<128x1xf32>
      %cst_95 = arith.constant 1.280000e+02 : f32
      %211 = vector.broadcast %cst_95 : f32 to vector<128x1xf32>
      %212 = arith.divf %210, %211 : vector<128x1xf32>
      %213 = vector.broadcast %212 : vector<128x1xf32> to vector<128x128xf32>
      %214 = arith.subf %206, %213 : vector<128x128xf32>
      %215 = arith.mulf %214, %214 : vector<128x128xf32>
      %cst_96 = arith.constant dense<0.000000e+00> : vector<128xf32>
      %216 = vector.multi_reduction <add>, %215, %cst_96 [1] : vector<128x128xf32> to vector<128xf32>
      %217 = vector.shape_cast %216 : vector<128xf32> to vector<128x1xf32>
      %cst_97 = arith.constant 1.280000e+02 : f32
      %218 = vector.broadcast %cst_97 : f32 to vector<128x1xf32>
      %219 = arith.divf %217, %218 : vector<128x1xf32>
      %220 = vector.broadcast %212 : vector<128x1xf32> to vector<128x128xf32>
      %221 = arith.subf %206, %220 : vector<128x128xf32>
      %cst_98 = arith.constant 9.99999996E-13 : f32
      %222 = vector.broadcast %cst_98 : f32 to vector<128x1xf32>
      %223 = arith.addf %219, %222 : vector<128x1xf32>
      %224 = math.rsqrt %223 : vector<128x1xf32>
      %225 = vector.broadcast %224 : vector<128x1xf32> to vector<128x128xf32>
      %226 = arith.mulf %221, %225 : vector<128x128xf32>
      %227 = vector.broadcast %207 : vector<1x128xf32> to vector<128x128xf32>
      %228 = arith.mulf %226, %227 : vector<128x128xf32>
      %229 = vector.broadcast %208 : vector<1x128xf32> to vector<128x128xf32>
      %230 = arith.addf %228, %229 : vector<128x128xf32>
      %c0_99 = arith.constant 0 : index
      %c0_100 = arith.constant 0 : index
      %231 = vector.load %arg22[%c0_99, %c0_100] : memref<128x128xf32, #tpu.memory_space<vmem>>, vector<128x128xf32>
      tpu.vector_store %arg22[%c0_99, %c0_100], %230 {strides = array<i32>} : memref<128x128xf32, #tpu.memory_space<vmem>>, vector<128x128xf32>,
    } else {
    }
    %c0 = arith.constant 0 : index
    %c0_1 = arith.constant 0 : index
    %3 = vector.load %arg22[%c0, %c0_1] : memref<128x128xf32, #tpu.memory_space<vmem>>, vector<128x128xf32>
    %4 = arith.truncf %3 : vector<128x128xf32> to vector<128x128xbf16>
    %c0_2 = arith.constant 0 : index
    %c0_3 = arith.constant 0 : index
    %5 = vector.load %arg2[%c0_2, %c0_3] : memref<128x128xf32, #tpu.memory_space<vmem>>, vector<128x128xf32>
    %c0_4 = arith.constant 0 : index
    %c0_5 = arith.constant 0 : index
    %c0_6 = arith.constant 0 : index
    %6 = vector.load %arg7[%c0_4, %c0_5, %c0_6] : memref<1x128x384xbf16, #tpu.memory_space<vmem>>, vector<1x128x384xbf16>
    %7 = vector.shape_cast %6 : vector<1x128x384xbf16> to vector<128x384xbf16>
    %cst = arith.constant dense<0.000000e+00> : vector<128x384xf32>
    %8 = tpu.matmul %4, %7, %cst {dimension_numbers = #tpu.dot_dimension_numbers<[1], [0], [0], [1], [0, 0, 1, 1], [], []>} : vector<128x128xbf16>, vector<128x384xbf16>, vector<128x384xf32> -> vector<128x384xf32>
    %c0_7 = arith.constant 0 : index
    %c0_8 = arith.constant 0 : index
    %c0_9 = arith.constant 0 : index
    %9 = vector.load %arg8[%c0_7, %c0_8, %c0_9] : memref<1x1x384xf32, #tpu.memory_space<vmem>>, vector<1x1x384xf32>
    %10 = vector.shape_cast %9 : vector<1x1x384xf32> to vector<1x384xf32>
    %11 = vector.broadcast %10 : vector<1x384xf32> to vector<128x384xf32>
    %12 = arith.addf %8, %11 : vector<128x384xf32>
    %13 = vector.extract_strided_slice %12 {offsets = [0, 0], sizes = [128, 32], strides = [1, 1]} : vector<128x384xf32> to vector<128x32xf32>
    %14 = arith.truncf %13 : vector<128x32xf32> to vector<128x32xbf16>
    %15 = vector.extract_strided_slice %12 {offsets = [0, 128], sizes = [128, 32], strides = [1, 1]} : vector<128x384xf32> to vector<128x32xf32>
    %16 = arith.truncf %15 : vector<128x32xf32> to vector<128x32xbf16>
    %17 = vector.extract_strided_slice %12 {offsets = [0, 256], sizes = [128, 32], strides = [1, 1]} : vector<128x384xf32> to vector<128x32xf32>
    %18 = arith.truncf %17 : vector<128x32xf32> to vector<128x32xbf16>
    %cst_10 = arith.constant dense<0.000000e+00> : vector<128x128xf32>
    %19 = tpu.matmul %14, %16, %cst_10 {dimension_numbers = #tpu.dot_dimension_numbers<[1], [1], [0], [0], [0, 0, 1, 0], [], []>} : vector<128x32xbf16>, vector<128x32xbf16>, vector<128x128xf32> -> vector<128x128xf32>
    %20 = arith.addf %19, %5 : vector<128x128xf32>
    %cst_11 = arith.constant dense<0xFF800000> : vector<128xf32>
    %21 = vector.multi_reduction <maximumf>, %20, %cst_11 [1] : vector<128x128xf32> to vector<128xf32>
    %22 = vector.shape_cast %21 : vector<128xf32> to vector<128x1xf32>
    %23 = vector.broadcast %22 : vector<128x1xf32> to vector<128x128xf32>
    %24 = arith.subf %20, %23 : vector<128x128xf32>
    %25 = math.exp %24 : vector<128x128xf32>
    %cst_12 = arith.constant dense<0.000000e+00> : vector<128xf32>
    %26 = vector.multi_reduction <add>, %25, %cst_12 [1] : vector<128x128xf32> to vector<128xf32>
    %27 = vector.shape_cast %26 : vector<128xf32> to vector<128x1xf32>
    %28 = tpu.reciprocal %27 {approx = true} : vector<128x1xf32> -> vector<128x1xf32>
    %29 = vector.broadcast %28 : vector<128x1xf32> to vector<128x128xf32>
    %30 = arith.mulf %25, %29 : vector<128x128xf32>
    %31 = arith.truncf %30 : vector<128x128xf32> to vector<128x128xbf16>
    %cst_13 = arith.constant dense<0.000000e+00> : vector<128x32xf32>
    %32 = tpu.matmul %31, %18, %cst_13 {dimension_numbers = #tpu.dot_dimension_numbers<[1], [0], [0], [1], [0, 0, 1, 1], [], []>} : vector<128x128xbf16>, vector<128x32xbf16>, vector<128x32xf32> -> vector<128x32xf32>
    %33 = arith.truncf %32 : vector<128x32xf32> to vector<128x32xbf16>
    %c0_14 = arith.constant 0 : index
    %c0_15 = arith.constant 0 : index
    %34 = vector.load %arg23[%c0_14, %c0_15] : memref<128x128xbf16, #tpu.memory_space<vmem>>, vector<128x32xbf16>
    tpu.vector_store %arg23[%c0_14, %c0_15], %33 {strides = array<i32>} : memref<128x128xbf16, #tpu.memory_space<vmem>>, vector<128x32xbf16>,
    %35 = vector.extract_strided_slice %12 {offsets = [0, 32], sizes = [128, 32], strides = [1, 1]} : vector<128x384xf32> to vector<128x32xf32>
    %36 = arith.truncf %35 : vector<128x32xf32> to vector<128x32xbf16>
    %37 = vector.extract_strided_slice %12 {offsets = [0, 160], sizes = [128, 32], strides = [1, 1]} : vector<128x384xf32> to vector<128x32xf32>
    %38 = arith.truncf %37 : vector<128x32xf32> to vector<128x32xbf16>
    %39 = vector.extract_strided_slice %12 {offsets = [0, 288], sizes = [128, 32], strides = [1, 1]} : vector<128x384xf32> to vector<128x32xf32>
    %40 = arith.truncf %39 : vector<128x32xf32> to vector<128x32xbf16>
    %cst_16 = arith.constant dense<0.000000e+00> : vector<128x128xf32>
    %41 = tpu.matmul %36, %38, %cst_16 {dimension_numbers = #tpu.dot_dimension_numbers<[1], [1], [0], [0], [0, 0, 1, 0], [], []>} : vector<128x32xbf16>, vector<128x32xbf16>, vector<128x128xf32> -> vector<128x128xf32>
    %42 = arith.addf %41, %5 : vector<128x128xf32>
    %cst_17 = arith.constant dense<0xFF800000> : vector<128xf32>
    %43 = vector.multi_reduction <maximumf>, %42, %cst_17 [1] : vector<128x128xf32> to vector<128xf32>
    %44 = vector.shape_cast %43 : vector<128xf32> to vector<128x1xf32>
    %45 = vector.broadcast %44 : vector<128x1xf32> to vector<128x128xf32>
    %46 = arith.subf %42, %45 : vector<128x128xf32>
    %47 = math.exp %46 : vector<128x128xf32>
    %cst_18 = arith.constant dense<0.000000e+00> : vector<128xf32>
    %48 = vector.multi_reduction <add>, %47, %cst_18 [1] : vector<128x128xf32> to vector<128xf32>
    %49 = vector.shape_cast %48 : vector<128xf32> to vector<128x1xf32>
    %50 = tpu.reciprocal %49 {approx = true} : vector<128x1xf32> -> vector<128x1xf32>
    %51 = vector.broadcast %50 : vector<128x1xf32> to vector<128x128xf32>
    %52 = arith.mulf %47, %51 : vector<128x128xf32>
    %53 = arith.truncf %52 : vector<128x128xf32> to vector<128x128xbf16>
    %cst_19 = arith.constant dense<0.000000e+00> : vector<128x32xf32>
    %54 = tpu.matmul %53, %40, %cst_19 {dimension_numbers = #tpu.dot_dimension_numbers<[1], [0], [0], [1], [0, 0, 1, 1], [], []>} : vector<128x128xbf16>, vector<128x32xbf16>, vector<128x32xf32> -> vector<128x32xf32>
    %55 = arith.truncf %54 : vector<128x32xf32> to vector<128x32xbf16>
    %c0_20 = arith.constant 0 : index
    %c32 = arith.constant 32 : index
    %56 = vector.load %arg23[%c0_20, %c32] : memref<128x128xbf16, #tpu.memory_space<vmem>>, vector<128x32xbf16>
    tpu.vector_store %arg23[%c0_20, %c32], %55 {strides = array<i32>} : memref<128x128xbf16, #tpu.memory_space<vmem>>, vector<128x32xbf16>,
    %57 = vector.extract_strided_slice %12 {offsets = [0, 64], sizes = [128, 32], strides = [1, 1]} : vector<128x384xf32> to vector<128x32xf32>
    %58 = arith.truncf %57 : vector<128x32xf32> to vector<128x32xbf16>
    %59 = vector.extract_strided_slice %12 {offsets = [0, 192], sizes = [128, 32], strides = [1, 1]} : vector<128x384xf32> to vector<128x32xf32>
    %60 = arith.truncf %59 : vector<128x32xf32> to vector<128x32xbf16>
    %61 = vector.extract_strided_slice %12 {offsets = [0, 320], sizes = [128, 32], strides = [1, 1]} : vector<128x384xf32> to vector<128x32xf32>
    %62 = arith.truncf %61 : vector<128x32xf32> to vector<128x32xbf16>
    %cst_21 = arith.constant dense<0.000000e+00> : vector<128x128xf32>
    %63 = tpu.matmul %58, %60, %cst_21 {dimension_numbers = #tpu.dot_dimension_numbers<[1], [1], [0], [0], [0, 0, 1, 0], [], []>} : vector<128x32xbf16>, vector<128x32xbf16>, vector<128x128xf32> -> vector<128x128xf32>
    %64 = arith.addf %63, %5 : vector<128x128xf32>
    %cst_22 = arith.constant dense<0xFF800000> : vector<128xf32>
    %65 = vector.multi_reduction <maximumf>, %64, %cst_22 [1] : vector<128x128xf32> to vector<128xf32>
    %66 = vector.shape_cast %65 : vector<128xf32> to vector<128x1xf32>
    %67 = vector.broadcast %66 : vector<128x1xf32> to vector<128x128xf32>
    %68 = arith.subf %64, %67 : vector<128x128xf32>
    %69 = math.exp %68 : vector<128x128xf32>
    %cst_23 = arith.constant dense<0.000000e+00> : vector<128xf32>
    %70 = vector.multi_reduction <add>, %69, %cst_23 [1] : vector<128x128xf32> to vector<128xf32>
    %71 = vector.shape_cast %70 : vector<128xf32> to vector<128x1xf32>
    %72 = tpu.reciprocal %71 {approx = true} : vector<128x1xf32> -> vector<128x1xf32>
    %73 = vector.broadcast %72 : vector<128x1xf32> to vector<128x128xf32>
    %74 = arith.mulf %69, %73 : vector<128x128xf32>
    %75 = arith.truncf %74 : vector<128x128xf32> to vector<128x128xbf16>
    %cst_24 = arith.constant dense<0.000000e+00> : vector<128x32xf32>
    %76 = tpu.matmul %75, %62, %cst_24 {dimension_numbers = #tpu.dot_dimension_numbers<[1], [0], [0], [1], [0, 0, 1, 1], [], []>} : vector<128x128xbf16>, vector<128x32xbf16>, vector<128x32xf32> -> vector<128x32xf32>
    %77 = arith.truncf %76 : vector<128x32xf32> to vector<128x32xbf16>
    %c0_25 = arith.constant 0 : index
    %c64 = arith.constant 64 : index
    %78 = vector.load %arg23[%c0_25, %c64] : memref<128x128xbf16, #tpu.memory_space<vmem>>, vector<128x32xbf16>
    tpu.vector_store %arg23[%c0_25, %c64], %77 {strides = array<i32>} : memref<128x128xbf16, #tpu.memory_space<vmem>>, vector<128x32xbf16>,
    %79 = vector.extract_strided_slice %12 {offsets = [0, 96], sizes = [128, 32], strides = [1, 1]} : vector<128x384xf32> to vector<128x32xf32>
    %80 = arith.truncf %79 : vector<128x32xf32> to vector<128x32xbf16>
    %81 = vector.extract_strided_slice %12 {offsets = [0, 224], sizes = [128, 32], strides = [1, 1]} : vector<128x384xf32> to vector<128x32xf32>
    %82 = arith.truncf %81 : vector<128x32xf32> to vector<128x32xbf16>
    %83 = vector.extract_strided_slice %12 {offsets = [0, 352], sizes = [128, 32], strides = [1, 1]} : vector<128x384xf32> to vector<128x32xf32>
    %84 = arith.truncf %83 : vector<128x32xf32> to vector<128x32xbf16>
    %cst_26 = arith.constant dense<0.000000e+00> : vector<128x128xf32>
    %85 = tpu.matmul %80, %82, %cst_26 {dimension_numbers = #tpu.dot_dimension_numbers<[1], [1], [0], [0], [0, 0, 1, 0], [], []>} : vector<128x32xbf16>, vector<128x32xbf16>, vector<128x128xf32> -> vector<128x128xf32>
    %86 = arith.addf %85, %5 : vector<128x128xf32>
    %cst_27 = arith.constant dense<0xFF800000> : vector<128xf32>
    %87 = vector.multi_reduction <maximumf>, %86, %cst_27 [1] : vector<128x128xf32> to vector<128xf32>
    %88 = vector.shape_cast %87 : vector<128xf32> to vector<128x1xf32>
    %89 = vector.broadcast %88 : vector<128x1xf32> to vector<128x128xf32>
    %90 = arith.subf %86, %89 : vector<128x128xf32>
    %91 = math.exp %90 : vector<128x128xf32>
    %cst_28 = arith.constant dense<0.000000e+00> : vector<128xf32>
    %92 = vector.multi_reduction <add>, %91, %cst_28 [1] : vector<128x128xf32> to vector<128xf32>
    %93 = vector.shape_cast %92 : vector<128xf32> to vector<128x1xf32>
    %94 = tpu.reciprocal %93 {approx = true} : vector<128x1xf32> -> vector<128x1xf32>
    %95 = vector.broadcast %94 : vector<128x1xf32> to vector<128x128xf32>
    %96 = arith.mulf %91, %95 : vector<128x128xf32>
    %97 = arith.truncf %96 : vector<128x128xf32> to vector<128x128xbf16>
    %cst_29 = arith.constant dense<0.000000e+00> : vector<128x32xf32>
    %98 = tpu.matmul %97, %84, %cst_29 {dimension_numbers = #tpu.dot_dimension_numbers<[1], [0], [0], [1], [0, 0, 1, 1], [], []>} : vector<128x128xbf16>, vector<128x32xbf16>, vector<128x32xf32> -> vector<128x32xf32>
    %99 = arith.truncf %98 : vector<128x32xf32> to vector<128x32xbf16>
    %c0_30 = arith.constant 0 : index
    %c96 = arith.constant 96 : index
    %100 = vector.load %arg23[%c0_30, %c96] : memref<128x128xbf16, #tpu.memory_space<vmem>>, vector<128x32xbf16>
    tpu.vector_store %arg23[%c0_30, %c96], %99 {strides = array<i32>} : memref<128x128xbf16, #tpu.memory_space<vmem>>, vector<128x32xbf16>,
    %c0_31 = arith.constant 0 : index
    %c0_32 = arith.constant 0 : index
    %101 = vector.load %arg23[%c0_31, %c0_32] : memref<128x128xbf16, #tpu.memory_space<vmem>>, vector<128x128xbf16>
    %c0_33 = arith.constant 0 : index
    %c0_34 = arith.constant 0 : index
    %c0_35 = arith.constant 0 : index
    %102 = vector.load %arg9[%c0_33, %c0_34, %c0_35] : memref<1x128x128xbf16, #tpu.memory_space<vmem>>, vector<1x128x128xbf16>
    %103 = vector.shape_cast %102 : vector<1x128x128xbf16> to vector<128x128xbf16>
    %cst_36 = arith.constant dense<0.000000e+00> : vector<128x128xf32>
    %104 = tpu.matmul %101, %103, %cst_36 {dimension_numbers = #tpu.dot_dimension_numbers<[1], [0], [0], [1], [0, 0, 1, 1], [], []>} : vector<128x128xbf16>, vector<128x128xbf16>, vector<128x128xf32> -> vector<128x128xf32>
    %c0_37 = arith.constant 0 : index
    %c0_38 = arith.constant 0 : index
    %c0_39 = arith.constant 0 : index
    %105 = vector.load %arg10[%c0_37, %c0_38, %c0_39] : memref<1x1x128xf32, #tpu.memory_space<vmem>>, vector<1x1x128xf32>
    %106 = vector.shape_cast %105 : vector<1x1x128xf32> to vector<1x128xf32>
    %107 = vector.broadcast %106 : vector<1x128xf32> to vector<128x128xf32>
    %108 = arith.addf %104, %107 : vector<128x128xf32>
    %109 = arith.addf %3, %108 : vector<128x128xf32>
    %c0_40 = arith.constant 0 : index
    %c0_41 = arith.constant 0 : index
    %c0_42 = arith.constant 0 : index
    %110 = vector.load %arg11[%c0_40, %c0_41, %c0_42] : memref<1x1x128xf32, #tpu.memory_space<vmem>>, vector<1x1x128xf32>
    %111 = vector.shape_cast %110 : vector<1x1x128xf32> to vector<1x128xf32>
    %c0_43 = arith.constant 0 : index
    %c0_44 = arith.constant 0 : index
    %c0_45 = arith.constant 0 : index
    %112 = vector.load %arg12[%c0_43, %c0_44, %c0_45] : memref<1x1x128xf32, #tpu.memory_space<vmem>>, vector<1x1x128xf32>
    %113 = vector.shape_cast %112 : vector<1x1x128xf32> to vector<1x128xf32>
    %cst_46 = arith.constant dense<0.000000e+00> : vector<128xf32>
    %114 = vector.multi_reduction <add>, %109, %cst_46 [1] : vector<128x128xf32> to vector<128xf32>
    %115 = vector.shape_cast %114 : vector<128xf32> to vector<128x1xf32>
    %cst_47 = arith.constant 1.280000e+02 : f32
    %116 = vector.broadcast %cst_47 : f32 to vector<128x1xf32>
    %117 = arith.divf %115, %116 : vector<128x1xf32>
    %118 = vector.broadcast %117 : vector<128x1xf32> to vector<128x128xf32>
    %119 = arith.subf %109, %118 : vector<128x128xf32>
    %120 = arith.mulf %119, %119 : vector<128x128xf32>
    %cst_48 = arith.constant dense<0.000000e+00> : vector<128xf32>
    %121 = vector.multi_reduction <add>, %120, %cst_48 [1] : vector<128x128xf32> to vector<128xf32>
    %122 = vector.shape_cast %121 : vector<128xf32> to vector<128x1xf32>
    %cst_49 = arith.constant 1.280000e+02 : f32
    %123 = vector.broadcast %cst_49 : f32 to vector<128x1xf32>
    %124 = arith.divf %122, %123 : vector<128x1xf32>
    %125 = vector.broadcast %117 : vector<128x1xf32> to vector<128x128xf32>
    %126 = arith.subf %109, %125 : vector<128x128xf32>
    %cst_50 = arith.constant 9.99999996E-13 : f32
    %127 = vector.broadcast %cst_50 : f32 to vector<128x1xf32>
    %128 = arith.addf %124, %127 : vector<128x1xf32>
    %129 = math.rsqrt %128 : vector<128x1xf32>
    %130 = vector.broadcast %129 : vector<128x1xf32> to vector<128x128xf32>
    %131 = arith.mulf %126, %130 : vector<128x128xf32>
    %132 = vector.broadcast %111 : vector<1x128xf32> to vector<128x128xf32>
    %133 = arith.mulf %131, %132 : vector<128x128xf32>
    %134 = vector.broadcast %113 : vector<1x128xf32> to vector<128x128xf32>
    %135 = arith.addf %133, %134 : vector<128x128xf32>
    %136 = arith.truncf %135 : vector<128x128xf32> to vector<128x128xbf16>
    %c0_51 = arith.constant 0 : index
    %c0_52 = arith.constant 0 : index
    %c0_53 = arith.constant 0 : index
    %137 = vector.load %arg13[%c0_51, %c0_52, %c0_53] : memref<1x128x512xbf16, #tpu.memory_space<vmem>>, vector<1x128x512xbf16>
    %138 = vector.shape_cast %137 : vector<1x128x512xbf16> to vector<128x512xbf16>
    %cst_54 = arith.constant dense<0.000000e+00> : vector<128x512xf32>
    %139 = tpu.matmul %136, %138, %cst_54 {dimension_numbers = #tpu.dot_dimension_numbers<[1], [0], [0], [1], [0, 0, 1, 1], [], []>} : vector<128x128xbf16>, vector<128x512xbf16>, vector<128x512xf32> -> vector<128x512xf32>
    %c0_55 = arith.constant 0 : index
    %c0_56 = arith.constant 0 : index
    %c0_57 = arith.constant 0 : index
    %140 = vector.load %arg14[%c0_55, %c0_56, %c0_57] : memref<1x1x512xf32, #tpu.memory_space<vmem>>, vector<1x1x512xf32>
    %141 = vector.shape_cast %140 : vector<1x1x512xf32> to vector<1x512xf32>
    %142 = vector.broadcast %141 : vector<1x512xf32> to vector<128x512xf32>
    %143 = arith.addf %139, %142 : vector<128x512xf32>
    %144 = arith.mulf %143, %143 : vector<128x512xf32>
    %145 = arith.mulf %143, %144 : vector<128x512xf32>
    %cst_58 = arith.constant 4.471500e-02 : f32
    %146 = vector.broadcast %cst_58 : f32 to vector<128x512xf32>
    %147 = arith.mulf %146, %145 : vector<128x512xf32>
    %148 = arith.addf %143, %147 : vector<128x512xf32>
    %cst_59 = arith.constant 0.797884583 : f32
    %149 = vector.broadcast %cst_59 : f32 to vector<128x512xf32>
    %150 = arith.mulf %149, %148 : vector<128x512xf32>
    %151 = math.tanh %150 : vector<128x512xf32>
    %cst_60 = arith.constant 1.000000e+00 : f32
    %152 = vector.broadcast %cst_60 : f32 to vector<128x512xf32>
    %153 = arith.addf %152, %151 : vector<128x512xf32>
    %cst_61 = arith.constant 5.000000e-01 : f32
    %154 = vector.broadcast %cst_61 : f32 to vector<128x512xf32>
    %155 = arith.mulf %154, %153 : vector<128x512xf32>
    %156 = arith.mulf %143, %155 : vector<128x512xf32>
    %157 = arith.truncf %156 : vector<128x512xf32> to vector<128x512xbf16>
    %c0_62 = arith.constant 0 : index
    %c0_63 = arith.constant 0 : index
    %c0_64 = arith.constant 0 : index
    %158 = vector.load %arg15[%c0_62, %c0_63, %c0_64] : memref<1x512x128xbf16, #tpu.memory_space<vmem>>, vector<1x512x128xbf16>
    %159 = vector.shape_cast %158 : vector<1x512x128xbf16> to vector<512x128xbf16>
    %cst_65 = arith.constant dense<0.000000e+00> : vector<128x128xf32>
    %160 = tpu.matmul %157, %159, %cst_65 {dimension_numbers = #tpu.dot_dimension_numbers<[1], [0], [0], [1], [0, 0, 1, 1], [], []>} : vector<128x512xbf16>, vector<512x128xbf16>, vector<128x128xf32> -> vector<128x128xf32>
    %c0_66 = arith.constant 0 : index
    %c0_67 = arith.constant 0 : index
    %c0_68 = arith.constant 0 : index
    %161 = vector.load %arg16[%c0_66, %c0_67, %c0_68] : memref<1x1x128xf32, #tpu.memory_space<vmem>>, vector<1x1x128xf32>
    %162 = vector.shape_cast %161 : vector<1x1x128xf32> to vector<1x128xf32>
    %163 = vector.broadcast %162 : vector<1x128xf32> to vector<128x128xf32>
    %164 = arith.addf %160, %163 : vector<128x128xf32>
    %165 = arith.addf %135, %164 : vector<128x128xf32>
    %c0_69 = arith.constant 0 : index
    %c0_70 = arith.constant 0 : index
    %c0_71 = arith.constant 0 : index
    %166 = vector.load %arg17[%c0_69, %c0_70, %c0_71] : memref<1x1x128xf32, #tpu.memory_space<vmem>>, vector<1x1x128xf32>
    %167 = vector.shape_cast %166 : vector<1x1x128xf32> to vector<1x128xf32>
    %c0_72 = arith.constant 0 : index
    %c0_73 = arith.constant 0 : index
    %c0_74 = arith.constant 0 : index
    %168 = vector.load %arg18[%c0_72, %c0_73, %c0_74] : memref<1x1x128xf32, #tpu.memory_space<vmem>>, vector<1x1x128xf32>
    %169 = vector.shape_cast %168 : vector<1x1x128xf32> to vector<1x128xf32>
    %cst_75 = arith.constant dense<0.000000e+00> : vector<128xf32>
    %170 = vector.multi_reduction <add>, %165, %cst_75 [1] : vector<128x128xf32> to vector<128xf32>
    %171 = vector.shape_cast %170 : vector<128xf32> to vector<128x1xf32>
    %cst_76 = arith.constant 1.280000e+02 : f32
    %172 = vector.broadcast %cst_76 : f32 to vector<128x1xf32>
    %173 = arith.divf %171, %172 : vector<128x1xf32>
    %174 = vector.broadcast %173 : vector<128x1xf32> to vector<128x128xf32>
    %175 = arith.subf %165, %174 : vector<128x128xf32>
    %176 = arith.mulf %175, %175 : vector<128x128xf32>
    %cst_77 = arith.constant dense<0.000000e+00> : vector<128xf32>
    %177 = vector.multi_reduction <add>, %176, %cst_77 [1] : vector<128x128xf32> to vector<128xf32>
    %178 = vector.shape_cast %177 : vector<128xf32> to vector<128x1xf32>
    %cst_78 = arith.constant 1.280000e+02 : f32
    %179 = vector.broadcast %cst_78 : f32 to vector<128x1xf32>
    %180 = arith.divf %178, %179 : vector<128x1xf32>
    %181 = vector.broadcast %173 : vector<128x1xf32> to vector<128x128xf32>
    %182 = arith.subf %165, %181 : vector<128x128xf32>
    %cst_79 = arith.constant 9.99999996E-13 : f32
    %183 = vector.broadcast %cst_79 : f32 to vector<128x1xf32>
    %184 = arith.addf %180, %183 : vector<128x1xf32>
    %185 = math.rsqrt %184 : vector<128x1xf32>
    %186 = vector.broadcast %185 : vector<128x1xf32> to vector<128x128xf32>
    %187 = arith.mulf %182, %186 : vector<128x128xf32>
    %188 = vector.broadcast %167 : vector<1x128xf32> to vector<128x128xf32>
    %189 = arith.mulf %187, %188 : vector<128x128xf32>
    %190 = vector.broadcast %169 : vector<1x128xf32> to vector<128x128xf32>
    %191 = arith.addf %189, %190 : vector<128x128xf32>
    %c0_80 = arith.constant 0 : index
    %c0_81 = arith.constant 0 : index
    %192 = vector.load %arg22[%c0_80, %c0_81] : memref<128x128xf32, #tpu.memory_space<vmem>>, vector<128x128xf32>
    tpu.vector_store %arg22[%c0_80, %c0_81], %191 {strides = array<i32>} : memref<128x128xf32, #tpu.memory_space<vmem>>, vector<128x128xf32>,
    %c1_i32 = arith.constant 1 : i32
    %193 = arith.cmpi eq, %arg0, %c1_i32 : i32
    %194 = arith.extui %193 : i1 to i32
    %c0_i32_82 = arith.constant 0 : i32
    %195 = arith.cmpi ne, %194, %c0_i32_82 : i32
    scf.if %195 {
      %c0_83 = arith.constant 0 : index
      %c0_84 = arith.constant 0 : index
      %196 = vector.load %arg19[%c0_83, %c0_84] : memref<128x1xf32, #tpu.memory_space<vmem>>, vector<128x1xf32>
      %c0_85 = arith.constant 0 : index
      %c0_86 = arith.constant 0 : index
      %197 = vector.load %arg20[%c0_85, %c0_86] : memref<1x1xf32, #tpu.memory_space<vmem>>, vector<1x1xf32>
      %198 = vector.extract_strided_slice %191 {offsets = [0, 0], sizes = [1, 128], strides = [1, 1]} : vector<128x128xf32> to vector<1x128xf32>
      %cst_87 = arith.constant dense<0.000000e+00> : vector<1x1xf32>
      %199 = tpu.matmul %198, %196, %cst_87 {dimension_numbers = #tpu.dot_dimension_numbers<[1], [0], [0], [1], [0, 0, 1, 1], [], []>} : vector<1x128xf32>, vector<128x1xf32>, vector<1x1xf32> -> vector<1x1xf32>
      %200 = arith.addf %199, %197 : vector<1x1xf32>
      %201 = arith.negf %200 : vector<1x1xf32>
      %202 = math.exp %201 : vector<1x1xf32>
      %cst_88 = arith.constant 1.000000e+00 : f32
      %203 = vector.broadcast %cst_88 : f32 to vector<1x1xf32>
      %204 = arith.addf %203, %202 : vector<1x1xf32>
      %205 = arith.divf %203, %204 : vector<1x1xf32>
      %c0_89 = arith.constant 0 : index
      %c0_90 = arith.constant 0 : index
      %206 = vector.load %arg21[%c0_89, %c0_90] : memref<2x1xf32, #tpu.memory_space<vmem>>, vector<1x1xf32>
      tpu.vector_store %arg21[%c0_89, %c0_90], %205 {strides = array<i32>} : memref<2x1xf32, #tpu.memory_space<vmem>>, vector<1x1xf32>,
      %207 = vector.extract_strided_slice %191 {offsets = [64, 0], sizes = [1, 128], strides = [1, 1]} : vector<128x128xf32> to vector<1x128xf32>
      %cst_91 = arith.constant dense<0.000000e+00> : vector<1x1xf32>
      %208 = tpu.matmul %207, %196, %cst_91 {dimension_numbers = #tpu.dot_dimension_numbers<[1], [0], [0], [1], [0, 0, 1, 1], [], []>} : vector<1x128xf32>, vector<128x1xf32>, vector<1x1xf32> -> vector<1x1xf32>
      %209 = arith.addf %208, %197 : vector<1x1xf32>
      %210 = arith.negf %209 : vector<1x1xf32>
      %211 = math.exp %210 : vector<1x1xf32>
      %cst_92 = arith.constant 1.000000e+00 : f32
      %212 = vector.broadcast %cst_92 : f32 to vector<1x1xf32>
      %213 = arith.addf %212, %211 : vector<1x1xf32>
      %214 = arith.divf %212, %213 : vector<1x1xf32>
      %c1 = arith.constant 1 : index
      %c0_93 = arith.constant 0 : index
      %215 = vector.load %arg21[%c1, %c0_93] : memref<2x1xf32, #tpu.memory_space<vmem>>, vector<1x1xf32>
      tpu.vector_store %arg21[%c1, %c0_93], %214 {strides = array<i32>} : memref<2x1xf32, #tpu.memory_space<vmem>>, vector<1x1xf32>,
    } else {
    }
    return
  }
  func.func @transform_0(%arg0: i32) -> (i32, i32) {
    %c0_i32 = arith.constant 0 : i32
    %c0_i32_0 = arith.constant 0 : i32
    %c0_i32_1 = arith.constant 0 : i32
    return %c0_i32, %c0_i32_0 : i32, i32
  }
  func.func @transform_1(%arg0: i32) -> (i32, i32) {
    %c0_i32 = arith.constant 0 : i32
    %c0_i32_0 = arith.constant 0 : i32
    %c0_i32_1 = arith.constant 0 : i32
    return %c0_i32, %c0_i32_0 : i32, i32
  }
  func.func @transform_2(%arg0: i32) -> (i32, i32) {
    %c0_i32 = arith.constant 0 : i32
    %c0_i32_0 = arith.constant 0 : i32
    %c0_i32_1 = arith.constant 0 : i32
    return %c0_i32, %c0_i32_0 : i32, i32
  }
  func.func @transform_3(%arg0: i32) -> (i32, i32) {
    %c0_i32 = arith.constant 0 : i32
    %c0_i32_0 = arith.constant 0 : i32
    %c0_i32_1 = arith.constant 0 : i32
    return %c0_i32, %c0_i32_0 : i32, i32
  }
  func.func @transform_4(%arg0: i32) -> (i32, i32) {
    %c0_i32 = arith.constant 0 : i32
    %c0_i32_0 = arith.constant 0 : i32
    %c0_i32_1 = arith.constant 0 : i32
    return %c0_i32, %c0_i32_0 : i32, i32
  }
  func.func @transform_5(%arg0: i32) -> (i32, i32) {
    %c0_i32 = arith.constant 0 : i32
    %c0_i32_0 = arith.constant 0 : i32
    %c0_i32_1 = arith.constant 0 : i32
    return %c0_i32, %c0_i32_0 : i32, i32
  }
  func.func @transform_6(%arg0: i32) -> (i32, i32, i32) {
    %c0_i32 = arith.constant 0 : i32
    %c0_i32_0 = arith.constant 0 : i32
    %c0_i32_1 = arith.constant 0 : i32
    return %arg0, %c0_i32, %c0_i32_0 : i32, i32, i32
  }
  func.func @transform_7(%arg0: i32) -> (i32, i32, i32) {
    %c0_i32 = arith.constant 0 : i32
    %c0_i32_0 = arith.constant 0 : i32
    %c0_i32_1 = arith.constant 0 : i32
    return %arg0, %c0_i32, %c0_i32_0 : i32, i32, i32
  }
  func.func @transform_8(%arg0: i32) -> (i32, i32, i32) {
    %c0_i32 = arith.constant 0 : i32
    %c0_i32_0 = arith.constant 0 : i32
    %c0_i32_1 = arith.constant 0 : i32
    return %arg0, %c0_i32, %c0_i32_0 : i32, i32, i32
  }
  func.func @transform_9(%arg0: i32) -> (i32, i32, i32) {
    %c0_i32 = arith.constant 0 : i32
    %c0_i32_0 = arith.constant 0 : i32
    %c0_i32_1 = arith.constant 0 : i32
    return %arg0, %c0_i32, %c0_i32_0 : i32, i32, i32
  }
  func.func @transform_10(%arg0: i32) -> (i32, i32, i32) {
    %c0_i32 = arith.constant 0 : i32
    %c0_i32_0 = arith.constant 0 : i32
    %c0_i32_1 = arith.constant 0 : i32
    return %arg0, %c0_i32, %c0_i32_0 : i32, i32, i32
  }
  func.func @transform_11(%arg0: i32) -> (i32, i32, i32) {
    %c0_i32 = arith.constant 0 : i32
    %c0_i32_0 = arith.constant 0 : i32
    %c0_i32_1 = arith.constant 0 : i32
    return %arg0, %c0_i32, %c0_i32_0 : i32, i32, i32
  }
  func.func @transform_12(%arg0: i32) -> (i32, i32, i32) {
    %c0_i32 = arith.constant 0 : i32
    %c0_i32_0 = arith.constant 0 : i32
    %c0_i32_1 = arith.constant 0 : i32
    return %arg0, %c0_i32, %c0_i32_0 : i32, i32, i32
  }
  func.func @transform_13(%arg0: i32) -> (i32, i32, i32) {
    %c0_i32 = arith.constant 0 : i32
    %c0_i32_0 = arith.constant 0 : i32
    %c0_i32_1 = arith.constant 0 : i32
    return %arg0, %c0_i32, %c0_i32_0 : i32, i32, i32
  }
  func.func @transform_14(%arg0: i32) -> (i32, i32, i32) {
    %c0_i32 = arith.constant 0 : i32
    %c0_i32_0 = arith.constant 0 : i32
    %c0_i32_1 = arith.constant 0 : i32
    return %arg0, %c0_i32, %c0_i32_0 : i32, i32, i32
  }
  func.func @transform_15(%arg0: i32) -> (i32, i32, i32) {
    %c0_i32 = arith.constant 0 : i32
    %c0_i32_0 = arith.constant 0 : i32
    %c0_i32_1 = arith.constant 0 : i32
    return %arg0, %c0_i32, %c0_i32_0 : i32, i32, i32
  }
  func.func @transform_16(%arg0: i32) -> (i32, i32, i32) {
    %c0_i32 = arith.constant 0 : i32
    %c0_i32_0 = arith.constant 0 : i32
    %c0_i32_1 = arith.constant 0 : i32
    return %arg0, %c0_i32, %c0_i32_0 : i32, i32, i32
  }
  func.func @transform_17(%arg0: i32) -> (i32, i32, i32) {
    %c0_i32 = arith.constant 0 : i32
    %c0_i32_0 = arith.constant 0 : i32
    %c0_i32_1 = arith.constant 0 : i32
    return %arg0, %c0_i32, %c0_i32_0 : i32, i32, i32
  }
  func.func @transform_18(%arg0: i32) -> (i32, i32) {
    %c0_i32 = arith.constant 0 : i32
    %c0_i32_0 = arith.constant 0 : i32
    %c0_i32_1 = arith.constant 0 : i32
    return %c0_i32, %c0_i32_0 : i32, i32
  }
  func.func @transform_19(%arg0: i32) -> (i32, i32) {
    %c0_i32 = arith.constant 0 : i32
    %c0_i32_0 = arith.constant 0 : i32
    %c0_i32_1 = arith.constant 0 : i32
    return %c0_i32, %c0_i32_0 : i32, i32
  }
  func.func @transform_20(%arg0: i32) -> (i32, i32) {
    %c0_i32 = arith.constant 0 : i32
    %c0_i32_0 = arith.constant 0 : i32
    %c0_i32_1 = arith.constant 0 : i32
    return %c0_i32, %c0_i32_0 : i32, i32
  }
}

</mosaic_0001>

<llo_original>
// kernel: eq.8
$region0: #{eq.8}
  %s0 = inlined_call_operand.vmem [shape: s32[2,64], index: 0, kind: input, shape index: {}]
  %s1 = inlined_call_operand.vmem [shape: s32[128], index: 1, kind: output, shape index: {}]
  $region1: #{eq.8} parent=0
    #allocation0 [shape = 'u8[4096]{0}', space=vmem, size = 0x1000, scoped, tag = 'scoped mem for output reshape']
    #allocation1 [shape = 'u8[4096]{0}', space=vmem, size = 0x1000, scoped, tag = 'scoped mem for input reshape']
    %s3 = ssub.s32 4, 1
    %v4 = vld [vmem:[%s0] sm:%s3]
    %5 = vst [vmem:[#allocation1] sm:%s3] %v4
    %v6 = vld [vmem:[#allocation1] sm:$0x1]
    %vm7 = vcmask 523264
    %8 = vst.msk [vmem:[#allocation0] sm:$0x1] %vm7, %v6
    %s9 = scalar_lea.vmem [#allocation1], 1
    %v10 = vld [vmem:[%s9] sm:$0x1]
    %11 = vrot.lane.b32.xlu0 %v10, 64
    %v12 = vpop.permute.xlu0 %11
    %vm13 = vcmask 1048064
    %14 = vst.msk [vmem:[#allocation0] sm:$0x1] %vm13, %v12
    %s16 = ssub.s32 2, 1
    %v17 = vld [vmem:[#allocation0] sm:%s16]
    %s19 = ssub.s32 2, 1
    %20 = vst [vmem:[%s1] sm:%s19] %v17

// kernel: _lambda_.1
$region0: #{_lambda_.1}
  #allocation0 [shape = 'u32[]', space=smem, size = 0x4, offset = 0x4, fixed_abs, tag = 'smem constant byte address 0x4 - core index']
  #allocation1 [shape = 'u32[72,128]{1,0:T(1,128)}', space=vmem, size = 0x9000, scoped, tag = 'internal scratch']
  #allocation2 [shape = 'f32[128,128]{1,0:T(8,128)}', space=vmem, size = 0x10000, scoped, tag = 'scratch operand']
  #allocation3 [shape = 'bf16[128,128]{1,0:T(8,128)(2,1)}', space=vmem, size = 0x8000, scoped, tag = 'scratch operand']
  #allocation4 [shape = 'f32[1,1]{1,0:T(1,128)S(1)}', space=vmem, size = 0x200, scoped, tag = 'scoped memory for _lambda_.1']
  %s0 = inlined_call_operand.vmem [shape: s32[128,1], index: 0, kind: input, shape index: {}]
  %s1 = inlined_call_operand.vmem [shape: f32[128,128], index: 1, kind: input, shape index: {}]
  %s2 = inlined_call_operand.hbm [shape: bf16[256,128], index: 2, kind: input, shape index: {}]
  %s3 = inlined_call_operand.hbm [shape: f32[128,128], index: 3, kind: input, shape index: {}]
  %s4 = inlined_call_operand.vmem [shape: f32[1,128], index: 4, kind: input, shape index: {}]
  %s5 = inlined_call_operand.vmem [shape: f32[1,128], index: 5, kind: input, shape index: {}]
  %s6 = inlined_call_operand.hbm [shape: bf16[2,128,384], index: 6, kind: input, shape index: {}]
  %s7 = inlined_call_operand.vmem [shape: f32[2,1,384], index: 7, kind: input, shape index: {}]
  %s8 = inlined_call_operand.vmem [shape: bf16[2,128,128], index: 8, kind: input, shape index: {}]
  %s9 = inlined_call_operand.vmem [shape: f32[2,1,128], index: 9, kind: input, shape index: {}, may-alias: {9,11,15,17}]
  %s10 = inlined_call_operand.vmem [shape: f32[2,1,128], index: 10, kind: input, shape index: {}, may-alias: {10,16}]
  %s11 = inlined_call_operand.vmem [shape: f32[2,1,128], index: 11, kind: input, shape index: {}, may-alias: {9,11,15,17}]
  %s12 = inlined_call_operand.hbm [shape: bf16[2,128,512], index: 12, kind: input, shape index: {}]
  %s13 = inlined_call_operand.vmem [shape: f32[2,1,512], index: 13, kind: input, shape index: {}]
  %s14 = inlined_call_operand.hbm [shape: bf16[2,512,128], index: 14, kind: input, shape index: {}]
  %s15 = inlined_call_operand.vmem [shape: f32[2,1,128], index: 15, kind: input, shape index: {}, may-alias: {9,11,15,17}]
  %s16 = inlined_call_operand.vmem [shape: f32[2,1,128], index: 16, kind: input, shape index: {}, may-alias: {10,16}]
  %s17 = inlined_call_operand.vmem [shape: f32[2,1,128], index: 17, kind: input, shape index: {}, may-alias: {9,11,15,17}]
  %s18 = inlined_call_operand.vmem [shape: f32[128,1], index: 18, kind: input, shape index: {}]
  %s19 = inlined_call_operand.<no memory space> [shape: f32[1,1], index: 19, kind: input, shape index: {}]
  %s20 = inlined_call_operand.vmem [shape: f32[2,1], index: 20, kind: output, shape index: {}]
  %s21 = sld [smem:[#allocation0]]
  $region141: #{_lambda_.1} parent=0
    _
  %s23 = ssub.s32 1, %s21
  %s24 = scalar_select 0, %s23, %s21
  %v25 = vstv %s19
  %26 = vst [vmem:[#allocation4] sm:$0x1] %v25
  $region1: #{_lambda_.1} parent=0
    #allocation5 [shape = 'u8[65536]{0}', space=vmem, size = 0x10000, scoped, tag = 'input window, operand 2, single buffered']
    #allocation6 [shape = 's32[2]{0}', space=sflag, size = 0x8, scoped, tag = 'scoped memory for _lambda_.1']
    #allocation7 [shape = 'u8[65536]{0}', space=vmem, size = 0x10000, scoped, tag = 'input window, operand 3, single buffered']
    #allocation8 [shape = 's32[1]{0}', space=sflag, size = 0x4, scoped, tag = 'scoped memory for _lambda_.1']
    #allocation9 [shape = 'u8[196608]{0}', space=vmem, size = 0x30000, scoped, tag = 'input window, operand 6']
    #allocation10 [shape = 'u8[262144]{0}', space=vmem, size = 0x40000, scoped, tag = 'input window, operand 12']
    #allocation11 [shape = 'u8[262144]{0}', space=vmem, size = 0x40000, scoped, tag = 'input window, operand 14']
    %27 = vsyncpa [#allocation6], 0
    %28 = vsyncpa [#allocation8], 0
    loop: start=0, step=1, limit=4
    $region2: #{_lambda_.1} parent=1 // loop_pre_header
      _
    $region3: #{_lambda_.1} parent=1 // loop_header
      %s30 = sphi 0, %s34
      %p31 = scmp.ge.s32.totalorder %s30, 4
      %s38 = sphi 0, %s38
      %s40 = sphi 0, %s38
      %s41 = sphi 0, %s40
      %s55 = sphi 0, %s41
      %s59 = sphi 0, %s59
      %s61 = sphi 0, %s59
      %s62 = sphi 0, %s61
      %s76 = sphi 0, %s62
      %s80 = sphi 0, %s80
      %s82 = sphi 0, %s80
      %s83 = sphi 0, %s82
      %s97 = sphi 0, %s83
      %s101 = sphi 0, %s101
      %s103 = sphi 0, %s101
      %s104 = sphi 0, %s103
      %s118 = sphi 0, %s104
      %s122 = sphi 0, %s122
      %s124 = sphi 0, %s122
      %s125 = sphi 0, %s124
      %s139 = sphi 0, %s125
      %s143 = sphi 0, %s143
      %s145 = sphi 0, %s143
      %s146 = sphi 0, %s145
      %s160 = sphi 0, %s146
      %s166 = sphi 0, %s168
      %s169 = sphi 0, %s166
      %s170 = sphi 0, %s169
      %s186 = sphi 0, %s170
      %s192 = sphi 0, %s194
      %s195 = sphi 0, %s192
      %s196 = sphi 0, %s195
      %s212 = sphi 0, %s196
      %s218 = sphi 0, %s220
      %s221 = sphi 0, %s218
      %s222 = sphi 0, %s221
      %s238 = sphi 0, %s222
      %s244 = sphi 0, %s246
      %s247 = sphi 0, %s244
      %s248 = sphi 0, %s247
      %s264 = sphi 0, %s248
      %s270 = sphi 0, %s272
      %s273 = sphi 0, %s270
      %s274 = sphi 0, %s273
      %s290 = sphi 0, %s274
      %s296 = sphi 0, %s298
      %s299 = sphi 0, %s296
      %s300 = sphi 0, %s299
      %s316 = sphi 0, %s300
      %s322 = sphi 0, %s324
      %s325 = sphi 0, %s322
      %s326 = sphi 0, %s325
      %s342 = sphi 0, %s326
      %s348 = sphi 0, %s350
      %s351 = sphi 0, %s348
      %s352 = sphi 0, %s351
      %s368 = sphi 0, %s352
      %s374 = sphi 0, %s376
      %s377 = sphi 0, %s374
      %s378 = sphi 0, %s377
      %s394 = sphi 0, %s378
      %s400 = sphi 0, %s402
      %s403 = sphi 0, %s400
      %s404 = sphi 0, %s403
      %s420 = sphi 0, %s404
      %s426 = sphi 0, %s428
      %s429 = sphi 0, %s426
      %s430 = sphi 0, %s429
      %s446 = sphi 0, %s430
      %s452 = sphi 0, %s454
      %s455 = sphi 0, %s452
      %s456 = sphi 0, %s455
      %s472 = sphi 0, %s456
      %s476 = sphi 0, %s476
      %s478 = sphi 0, %s476
      %s479 = sphi 0, %s478
      %s493 = sphi 0, %s479
      %s497 = sphi 0, %s497
      %s499 = sphi 0, %s497
      %s500 = sphi 0, %s499
      %s514 = sphi 0, %s500
      %s518 = sphi 0, %s518
      %s520 = sphi 0, %s518
      %s521 = sphi 0, %s520
      %s535 = sphi 0, %s521
    $region4: #{_lambda_.1} parent=1 // loop_header_branch
      %33 = sbr.rel (%p31) target = $region8
    $region5: #{_lambda_.1} parent=1 // loop_body
      %s35 = ssub.s32 %s30, 1
      %s36 = ssub.s32 %s30, 2
      %s37 = sadd.s32 %s30, 1
      %s39 = sadd.s32 %s38, 1
      %p42 = scmp.eq.s32.totalorder %s30, 1
      %p43 = scmp.ne.s32.totalorder %s38, %s40
      %p44 = scmp.eq.s32.totalorder %s30, 0
      %p45 = por %p43, %p44
      %p46 = scmp.ne.s32.totalorder %s38, %s40
      %p47 = scmp.eq.s32.totalorder %s35, 1
      %p48 = por %p46, %p47
      %p49 = scmp.ne.s32.totalorder %s40, %s41
      %p50 = scmp.eq.s32.totalorder %s35, 0
      %p51 = por %p49, %p50
      %p52 = scmp.ne.s32.totalorder %s40, %s41
      %p53 = scmp.eq.s32.totalorder %s36, 1
      %p54 = por %p52, %p53
      %p56 = scmp.ne.s32.totalorder %s41, %s55
      %p57 = scmp.eq.s32.totalorder %s36, 0
      %p58 = por %p56, %p57
      %s60 = sadd.s32 %s59, 1
      %p63 = scmp.eq.s32.totalorder %s30, 1
      %p64 = scmp.ne.s32.totalorder %s59, %s61
      %p65 = scmp.eq.s32.totalorder %s30, 0
      %p66 = por %p64, %p65
      %p67 = scmp.ne.s32.totalorder %s59, %s61
      %p68 = scmp.eq.s32.totalorder %s35, 1
      %p69 = por %p67, %p68
      %p70 = scmp.ne.s32.totalorder %s61, %s62
      %p71 = scmp.eq.s32.totalorder %s35, 0
      %p72 = por %p70, %p71
      %p73 = scmp.ne.s32.totalorder %s61, %s62
      %p74 = scmp.eq.s32.totalorder %s36, 1
      %p75 = por %p73, %p74
      %p77 = scmp.ne.s32.totalorder %s62, %s76
      %p78 = scmp.eq.s32.totalorder %s36, 0
      %p79 = por %p77, %p78
      %s81 = sadd.s32 %s80, 1
      %p84 = scmp.eq.s32.totalorder %s30, 1
      %p85 = scmp.ne.s32.totalorder %s80, %s82
      %p86 = scmp.eq.s32.totalorder %s30, 0
      %p87 = por %p85, %p86
      %p88 = scmp.ne.s32.totalorder %s80, %s82
      %p89 = scmp.eq.s32.totalorder %s35, 1
      %p90 = por %p88, %p89
      %p91 = scmp.ne.s32.totalorder %s82, %s83
      %p92 = scmp.eq.s32.totalorder %s35, 0
      %p93 = por %p91, %p92
      %p94 = scmp.ne.s32.totalorder %s82, %s83
      %p95 = scmp.eq.s32.totalorder %s36, 1
      %p96 = por %p94, %p95
      %p98 = scmp.ne.s32.totalorder %s83, %s97
      %p99 = scmp.eq.s32.totalorder %s36, 0
      %p100 = por %p98, %p99
      %s102 = sadd.s32 %s101, 1
      %p105 = scmp.eq.s32.totalorder %s30, 1
      %p106 = scmp.ne.s32.totalorder %s101, %s103
      %p107 = scmp.eq.s32.totalorder %s30, 0
      %p108 = por %p106, %p107
      %p109 = scmp.ne.s32.totalorder %s101, %s103
      %p110 = scmp.eq.s32.totalorder %s35, 1
      %p111 = por %p109, %p110
      %p112 = scmp.ne.s32.totalorder %s103, %s104
      %p113 = scmp.eq.s32.totalorder %s35, 0
      %p114 = por %p112, %p113
      %p115 = scmp.ne.s32.totalorder %s103, %s104
      %p116 = scmp.eq.s32.totalorder %s36, 1
      %p117 = por %p115, %p116
      %p119 = scmp.ne.s32.totalorder %s104, %s118
      %p120 = scmp.eq.s32.totalorder %s36, 0
      %p121 = por %p119, %p120
      %s123 = sadd.s32 %s122, 1
      %p126 = scmp.eq.s32.totalorder %s30, 1
      %p127 = scmp.ne.s32.totalorder %s122, %s124
      %p128 = scmp.eq.s32.totalorder %s30, 0
      %p129 = por %p127, %p128
      %p130 = scmp.ne.s32.totalorder %s122, %s124
      %p131 = scmp.eq.s32.totalorder %s35, 1
      %p132 = por %p130, %p131
      %p133 = scmp.ne.s32.totalorder %s124, %s125
      %p134 = scmp.eq.s32.totalorder %s35, 0
      %p135 = por %p133, %p134
      %p136 = scmp.ne.s32.totalorder %s124, %s125
      %p137 = scmp.eq.s32.totalorder %s36, 1
      %p138 = por %p136, %p137
      %p140 = scmp.ne.s32.totalorder %s125, %s139
      %p141 = scmp.eq.s32.totalorder %s36, 0
      %p142 = por %p140, %p141
      %s144 = sadd.s32 %s143, 1
      %p147 = scmp.eq.s32.totalorder %s30, 1
      %p148 = scmp.ne.s32.totalorder %s143, %s145
      %p149 = scmp.eq.s32.totalorder %s30, 0
      %p150 = por %p148, %p149
      %p151 = scmp.ne.s32.totalorder %s143, %s145
      %p152 = scmp.eq.s32.totalorder %s35, 1
      %p153 = por %p151, %p152
      %p154 = scmp.ne.s32.totalorder %s145, %s146
      %p155 = scmp.eq.s32.totalorder %s35, 0
      %p156 = por %p154, %p155
      %p157 = scmp.ne.s32.totalorder %s145, %s146
      %p158 = scmp.eq.s32.totalorder %s36, 1
      %p159 = por %p157, %p158
      %p161 = scmp.ne.s32.totalorder %s146, %s160
      %p162 = scmp.eq.s32.totalorder %s36, 0
      %p163 = por %p161, %p162
      %s164 = ssub.s32 %s30, %s37
      %p165 = scmp.eq.s32.totalorder %s164, 0
      %s167 = sadd.s32 %s166, 1
      %s168 = scalar_select %p165, %s166, %s167
      %p171 = pneg %p165
      %p172 = scmp.eq.s32.totalorder %s30, 1
      %p173 = por %p171, %p172
      %p174 = scmp.ne.s32.totalorder %s166, %s169
      %p175 = scmp.eq.s32.totalorder %s30, 0
      %p176 = por %p174, %p175
      %p177 = scmp.ne.s32.totalorder %s166, %s169
      %p178 = scmp.eq.s32.totalorder %s35, 1
      %p179 = por %p177, %p178
      %p180 = scmp.ne.s32.totalorder %s169, %s170
      %p181 = scmp.eq.s32.totalorder %s35, 0
      %p182 = por %p180, %p181
      %p183 = scmp.ne.s32.totalorder %s169, %s170
      %p184 = scmp.eq.s32.totalorder %s36, 1
      %p185 = por %p183, %p184
      %p187 = scmp.ne.s32.totalorder %s170, %s186
      %p188 = scmp.eq.s32.totalorder %s36, 0
      %p189 = por %p187, %p188
      %s190 = ssub.s32 %s30, %s37
      %p191 = scmp.eq.s32.totalorder %s190, 0
      %s193 = sadd.s32 %s192, 1
      %s194 = scalar_select %p191, %s192, %s193
      %p197 = pneg %p191
      %p198 = scmp.eq.s32.totalorder %s30, 1
      %p199 = por %p197, %p198
      %p200 = scmp.ne.s32.totalorder %s192, %s195
      %p201 = scmp.eq.s32.totalorder %s30, 0
      %p202 = por %p200, %p201
      %p203 = scmp.ne.s32.totalorder %s192, %s195
      %p204 = scmp.eq.s32.totalorder %s35, 1
      %p205 = por %p203, %p204
      %p206 = scmp.ne.s32.totalorder %s195, %s196
      %p207 = scmp.eq.s32.totalorder %s35, 0
      %p208 = por %p206, %p207
      %p209 = scmp.ne.s32.totalorder %s195, %s196
      %p210 = scmp.eq.s32.totalorder %s36, 1
      %p211 = por %p209, %p210
      %p213 = scmp.ne.s32.totalorder %s196, %s212
      %p214 = scmp.eq.s32.totalorder %s36, 0
      %p215 = por %p213, %p214
      %s216 = ssub.s32 %s30, %s37
      %p217 = scmp.eq.s32.totalorder %s216, 0
      %s219 = sadd.s32 %s218, 1
      %s220 = scalar_select %p217, %s218, %s219
      %p223 = pneg %p217
      %p224 = scmp.eq.s32.totalorder %s30, 1
      %p225 = por %p223, %p224
      %p226 = scmp.ne.s32.totalorder %s218, %s221
      %p227 = scmp.eq.s32.totalorder %s30, 0
      %p228 = por %p226, %p227
      %p229 = scmp.ne.s32.totalorder %s218, %s221
      %p230 = scmp.eq.s32.totalorder %s35, 1
      %p231 = por %p229, %p230
      %p232 = scmp.ne.s32.totalorder %s221, %s222
      %p233 = scmp.eq.s32.totalorder %s35, 0
      %p234 = por %p232, %p233
      %p235 = scmp.ne.s32.totalorder %s221, %s222
      %p236 = scmp.eq.s32.totalorder %s36, 1
      %p237 = por %p235, %p236
      %p239 = scmp.ne.s32.totalorder %s222, %s238
      %p240 = scmp.eq.s32.totalorder %s36, 0
      %p241 = por %p239, %p240
      %s242 = ssub.s32 %s30, %s37
      %p243 = scmp.eq.s32.totalorder %s242, 0
      %s245 = sadd.s32 %s244, 1
      %s246 = scalar_select %p243, %s244, %s245
      %p249 = pneg %p243
      %p250 = scmp.eq.s32.totalorder %s30, 1
      %p251 = por %p249, %p250
      %p252 = scmp.ne.s32.totalorder %s244, %s247
      %p253 = scmp.eq.s32.totalorder %s30, 0
      %p254 = por %p252, %p253
      %p255 = scmp.ne.s32.totalorder %s244, %s247
      %p256 = scmp.eq.s32.totalorder %s35, 1
      %p257 = por %p255, %p256
      %p258 = scmp.ne.s32.totalorder %s247, %s248
      %p259 = scmp.eq.s32.totalorder %s35, 0
      %p260 = por %p258, %p259
      %p261 = scmp.ne.s32.totalorder %s247, %s248
      %p262 = scmp.eq.s32.totalorder %s36, 1
      %p263 = por %p261, %p262
      %p265 = scmp.ne.s32.totalorder %s248, %s264
      %p266 = scmp.eq.s32.totalorder %s36, 0
      %p267 = por %p265, %p266
      %s268 = ssub.s32 %s30, %s37
      %p269 = scmp.eq.s32.totalorder %s268, 0
      %s271 = sadd.s32 %s270, 1
      %s272 = scalar_select %p269, %s270, %s271
      %p275 = pneg %p269
      %p276 = scmp.eq.s32.totalorder %s30, 1
      %p277 = por %p275, %p276
      %p278 = scmp.ne.s32.totalorder %s270, %s273
      %p279 = scmp.eq.s32.totalorder %s30, 0
      %p280 = por %p278, %p279
      %p281 = scmp.ne.s32.totalorder %s270, %s273
      %p282 = scmp.eq.s32.totalorder %s35, 1
      %p283 = por %p281, %p282
      %p284 = scmp.ne.s32.totalorder %s273, %s274
      %p285 = scmp.eq.s32.totalorder %s35, 0
      %p286 = por %p284, %p285
      %p287 = scmp.ne.s32.totalorder %s273, %s274
      %p288 = scmp.eq.s32.totalorder %s36, 1
      %p289 = por %p287, %p288
      %p291 = scmp.ne.s32.totalorder %s274, %s290
      %p292 = scmp.eq.s32.totalorder %s36, 0
      %p293 = por %p291, %p292
      %s294 = ssub.s32 %s30, %s37
      %p295 = scmp.eq.s32.totalorder %s294, 0
      %s297 = sadd.s32 %s296, 1
      %s298 = scalar_select %p295, %s296, %s297
      %p301 = pneg %p295
      %p302 = scmp.eq.s32.totalorder %s30, 1
      %p303 = por %p301, %p302
      %p304 = scmp.ne.s32.totalorder %s296, %s299
      %p305 = scmp.eq.s32.totalorder %s30, 0
      %p306 = por %p304, %p305
      %p307 = scmp.ne.s32.totalorder %s296, %s299
      %p308 = scmp.eq.s32.totalorder %s35, 1
      %p309 = por %p307, %p308
      %p310 = scmp.ne.s32.totalorder %s299, %s300
      %p311 = scmp.eq.s32.totalorder %s35, 0
      %p312 = por %p310, %p311
      %p313 = scmp.ne.s32.totalorder %s299, %s300
      %p314 = scmp.eq.s32.totalorder %s36, 1
      %p315 = por %p313, %p314
      %p317 = scmp.ne.s32.totalorder %s300, %s316
      %p318 = scmp.eq.s32.totalorder %s36, 0
      %p319 = por %p317, %p318
      %s320 = ssub.s32 %s30, %s37
      %p321 = scmp.eq.s32.totalorder %s320, 0
      %s323 = sadd.s32 %s322, 1
      %s324 = scalar_select %p321, %s322, %s323
      %p327 = pneg %p321
      %p328 = scmp.eq.s32.totalorder %s30, 1
      %p329 = por %p327, %p328
      %p330 = scmp.ne.s32.totalorder %s322, %s325
      %p331 = scmp.eq.s32.totalorder %s30, 0
      %p332 = por %p330, %p331
      %p333 = scmp.ne.s32.totalorder %s322, %s325
      %p334 = scmp.eq.s32.totalorder %s35, 1
      %p335 = por %p333, %p334
      %p336 = scmp.ne.s32.totalorder %s325, %s326
      %p337 = scmp.eq.s32.totalorder %s35, 0
      %p338 = por %p336, %p337
      %p339 = scmp.ne.s32.totalorder %s325, %s326
      %p340 = scmp.eq.s32.totalorder %s36, 1
      %p341 = por %p339, %p340
      %p343 = scmp.ne.s32.totalorder %s326, %s342
      %p344 = scmp.eq.s32.totalorder %s36, 0
      %p345 = por %p343, %p344
      %s346 = ssub.s32 %s30, %s37
      %p347 = scmp.eq.s32.totalorder %s346, 0
      %s349 = sadd.s32 %s348, 1
      %s350 = scalar_select %p347, %s348, %s349
      %p353 = pneg %p347
      %p354 = scmp.eq.s32.totalorder %s30, 1
      %p355 = por %p353, %p354
      %p356 = scmp.ne.s32.totalorder %s348, %s351
      %p357 = scmp.eq.s32.totalorder %s30, 0
      %p358 = por %p356, %p357
      %p359 = scmp.ne.s32.totalorder %s348, %s351
      %p360 = scmp.eq.s32.totalorder %s35, 1
      %p361 = por %p359, %p360
      %p362 = scmp.ne.s32.totalorder %s351, %s352
      %p363 = scmp.eq.s32.totalorder %s35, 0
      %p364 = por %p362, %p363
      %p365 = scmp.ne.s32.totalorder %s351, %s352
      %p366 = scmp.eq.s32.totalorder %s36, 1
      %p367 = por %p365, %p366
      %p369 = scmp.ne.s32.totalorder %s352, %s368
      %p370 = scmp.eq.s32.totalorder %s36, 0
      %p371 = por %p369, %p370
      %s372 = ssub.s32 %s30, %s37
      %p373 = scmp.eq.s32.totalorder %s372, 0
      %s375 = sadd.s32 %s374, 1
      %s376 = scalar_select %p373, %s374, %s375
      %p379 = pneg %p373
      %p380 = scmp.eq.s32.totalorder %s30, 1
      %p381 = por %p379, %p380
      %p382 = scmp.ne.s32.totalorder %s374, %s377
      %p383 = scmp.eq.s32.totalorder %s30, 0
      %p384 = por %p382, %p383
      %p385 = scmp.ne.s32.totalorder %s374, %s377
      %p386 = scmp.eq.s32.totalorder %s35, 1
      %p387 = por %p385, %p386
      %p388 = scmp.ne.s32.totalorder %s377, %s378
      %p389 = scmp.eq.s32.totalorder %s35, 0
      %p390 = por %p388, %p389
      %p391 = scmp.ne.s32.totalorder %s377, %s378
      %p392 = scmp.eq.s32.totalorder %s36, 1
      %p393 = por %p391, %p392
      %p395 = scmp.ne.s32.totalorder %s378, %s394
      %p396 = scmp.eq.s32.totalorder %s36, 0
      %p397 = por %p395, %p396
      %s398 = ssub.s32 %s30, %s37
      %p399 = scmp.eq.s32.totalorder %s398, 0
      %s401 = sadd.s32 %s400, 1
      %s402 = scalar_select %p399, %s400, %s401
      %p405 = pneg %p399
      %p406 = scmp.eq.s32.totalorder %s30, 1
      %p407 = por %p405, %p406
      %p408 = scmp.ne.s32.totalorder %s400, %s403
      %p409 = scmp.eq.s32.totalorder %s30, 0
      %p410 = por %p408, %p409
      %p411 = scmp.ne.s32.totalorder %s400, %s403
      %p412 = scmp.eq.s32.totalorder %s35, 1
      %p413 = por %p411, %p412
      %p414 = scmp.ne.s32.totalorder %s403, %s404
      %p415 = scmp.eq.s32.totalorder %s35, 0
      %p416 = por %p414, %p415
      %p417 = scmp.ne.s32.totalorder %s403, %s404
      %p418 = scmp.eq.s32.totalorder %s36, 1
      %p419 = por %p417, %p418
      %p421 = scmp.ne.s32.totalorder %s404, %s420
      %p422 = scmp.eq.s32.totalorder %s36, 0
      %p423 = por %p421, %p422
      %s424 = ssub.s32 %s30, %s37
      %p425 = scmp.eq.s32.totalorder %s424, 0
      %s427 = sadd.s32 %s426, 1
      %s428 = scalar_select %p425, %s426, %s427
      %p431 = pneg %p425
      %p432 = scmp.eq.s32.totalorder %s30, 1
      %p433 = por %p431, %p432
      %p434 = scmp.ne.s32.totalorder %s426, %s429
      %p435 = scmp.eq.s32.totalorder %s30, 0
      %p436 = por %p434, %p435
      %p437 = scmp.ne.s32.totalorder %s426, %s429
      %p438 = scmp.eq.s32.totalorder %s35, 1
      %p439 = por %p437, %p438
      %p440 = scmp.ne.s32.totalorder %s429, %s430
      %p441 = scmp.eq.s32.totalorder %s35, 0
      %p442 = por %p440, %p441
      %p443 = scmp.ne.s32.totalorder %s429, %s430
      %p444 = scmp.eq.s32.totalorder %s36, 1
      %p445 = por %p443, %p444
      %p447 = scmp.ne.s32.totalorder %s430, %s446
      %p448 = scmp.eq.s32.totalorder %s36, 0
      %p449 = por %p447, %p448
      %s450 = ssub.s32 %s30, %s37
      %p451 = scmp.eq.s32.totalorder %s450, 0
      %s453 = sadd.s32 %s452, 1
      %s454 = scalar_select %p451, %s452, %s453
      %p457 = pneg %p451
      %p458 = scmp.eq.s32.totalorder %s30, 1
      %p459 = por %p457, %p458
      %p460 = scmp.ne.s32.totalorder %s452, %s455
      %p461 = scmp.eq.s32.totalorder %s30, 0
      %p462 = por %p460, %p461
      %p463 = scmp.ne.s32.totalorder %s452, %s455
      %p464 = scmp.eq.s32.totalorder %s35, 1
      %p465 = por %p463, %p464
      %p466 = scmp.ne.s32.totalorder %s455, %s456
      %p467 = scmp.eq.s32.totalorder %s35, 0
      %p468 = por %p466, %p467
      %p469 = scmp.ne.s32.totalorder %s455, %s456
      %p470 = scmp.eq.s32.totalorder %s36, 1
      %p471 = por %p469, %p470
      %p473 = scmp.ne.s32.totalorder %s456, %s472
      %p474 = scmp.eq.s32.totalorder %s36, 0
      %p475 = por %p473, %p474
      %s477 = sadd.s32 %s476, 1
      %p480 = scmp.eq.s32.totalorder %s30, 1
      %p481 = scmp.ne.s32.totalorder %s476, %s478
      %p482 = scmp.eq.s32.totalorder %s30, 0
      %p483 = por %p481, %p482
      %p484 = scmp.ne.s32.totalorder %s476, %s478
      %p485 = scmp.eq.s32.totalorder %s35, 1
      %p486 = por %p484, %p485
      %p487 = scmp.ne.s32.totalorder %s478, %s479
      %p488 = scmp.eq.s32.totalorder %s35, 0
      %p489 = por %p487, %p488
      %p490 = scmp.ne.s32.totalorder %s478, %s479
      %p491 = scmp.eq.s32.totalorder %s36, 1
      %p492 = por %p490, %p491
      %p494 = scmp.ne.s32.totalorder %s479, %s493
      %p495 = scmp.eq.s32.totalorder %s36, 0
      %p496 = por %p494, %p495
      %s498 = sadd.s32 %s497, 1
      %p501 = scmp.eq.s32.totalorder %s30, 1
      %p502 = scmp.ne.s32.totalorder %s497, %s499
      %p503 = scmp.eq.s32.totalorder %s30, 0
      %p504 = por %p502, %p503
      %p505 = scmp.ne.s32.totalorder %s497, %s499
      %p506 = scmp.eq.s32.totalorder %s35, 1
      %p507 = por %p505, %p506
      %p508 = scmp.ne.s32.totalorder %s499, %s500
      %p509 = scmp.eq.s32.totalorder %s35, 0
      %p510 = por %p508, %p509
      %p511 = scmp.ne.s32.totalorder %s499, %s500
      %p512 = scmp.eq.s32.totalorder %s36, 1
      %p513 = por %p511, %p512
      %p515 = scmp.ne.s32.totalorder %s500, %s514
      %p516 = scmp.eq.s32.totalorder %s36, 0
      %p517 = por %p515, %p516
      %s519 = sadd.s32 %s518, 1
      %p522 = scmp.eq.s32.totalorder %s30, 1
      %p523 = scmp.ne.s32.totalorder %s518, %s520
      %p524 = scmp.eq.s32.totalorder %s30, 0
      %p525 = por %p523, %p524
      %p526 = scmp.ne.s32.totalorder %s518, %s520
      %p527 = scmp.eq.s32.totalorder %s35, 1
      %p528 = por %p526, %p527
      %p529 = scmp.ne.s32.totalorder %s520, %s521
      %p530 = scmp.eq.s32.totalorder %s35, 0
      %p531 = por %p529, %p530
      %p532 = scmp.ne.s32.totalorder %s520, %s521
      %p533 = scmp.eq.s32.totalorder %s36, 1
      %p534 = por %p532, %p533
      %p536 = scmp.ne.s32.totalorder %s521, %s535
      %p537 = scmp.eq.s32.totalorder %s36, 0
      %p538 = por %p536, %p537
      %p539 = scmp.le.s32.totalorder 1, %s30
      %p540 = scmp.lt.s32.totalorder %s30, 3
      %p541 = pnand %p539, %p540
      %p542 = pneg %p541
      // Predicated region
      $region9: #{_lambda_.1} parent=5 // pred_check
        _
      $region10: #{_lambda_.1} parent=5 // pred_check_branch
        %544 = sbr.rel (%p541) target = $region12
      $region11: #{_lambda_.1} parent=5 // pred_region
        %s545 = ssub.s32 %s30, 1
        // Predicated region
        $region13: #{_lambda_.1} parent=11 // pred_check
          %p546 = pneg %p51
        $region14: #{_lambda_.1} parent=11 // pred_check_branch
          %548 = sbr.rel (%p546) target = $region16
        $region15: #{_lambda_.1} parent=11 // pred_region
          _
        $region16: #{_lambda_.1} parent=11 // pred_fallthru
          _
        // Predicated region
        $region17: #{_lambda_.1} parent=11 // pred_check
          %p549 = pneg %p72
        $region18: #{_lambda_.1} parent=11 // pred_check_branch
          %551 = sbr.rel (%p549) target = $region20
        $region19: #{_lambda_.1} parent=11 // pred_region
          _
        $region20: #{_lambda_.1} parent=11 // pred_fallthru
          _
        // Predicated region
        $region21: #{_lambda_.1} parent=11 // pred_check
          %p552 = pneg %p93
        $region22: #{_lambda_.1} parent=11 // pred_check_branch
          %554 = sbr.rel (%p552) target = $region24
        $region23: #{_lambda_.1} parent=11 // pred_region
          %556 = vsyncadd [#allocation6], 0
          %s557 = sshll.u32 %s2, 4
          %s558 = int_to_ptr.hbm [resolvable:$true] %s557
          %s559 = sshll.u32 [#allocation5], 4
          %s560 = int_to_ptr.vmem [resolvable:$true] %s559
          %565 = dma.hbm_to_vmem [thread:$0]  %s558, 2048, %s560, [#allocation6], 64, 64, 4
        $region24: #{_lambda_.1} parent=11 // pred_fallthru
          _
        // Predicated region
        $region25: #{_lambda_.1} parent=11 // pred_check
          %p566 = pneg %p114
        $region26: #{_lambda_.1} parent=11 // pred_check_branch
          %568 = sbr.rel (%p566) target = $region28
        $region27: #{_lambda_.1} parent=11 // pred_region
          %570 = vsyncadd [#allocation8], 0
          %s571 = sshll.u32 %s3, 4
          %s572 = int_to_ptr.hbm [resolvable:$true] %s571
          %s573 = sshll.u32 [#allocation7], 4
          %s574 = int_to_ptr.vmem [resolvable:$true] %s573
          %579 = dma.hbm_to_vmem [thread:$0]  %s572, 2048, %s574, [#allocation8], 128, 128, 8
        $region28: #{_lambda_.1} parent=11 // pred_fallthru
          _
        // Predicated region
        $region29: #{_lambda_.1} parent=11 // pred_check
          %p580 = pneg %p135
        $region30: #{_lambda_.1} parent=11 // pred_check_branch
          %582 = sbr.rel (%p580) target = $region32
        $region31: #{_lambda_.1} parent=11 // pred_region
          _
        $region32: #{_lambda_.1} parent=11 // pred_fallthru
          _
        // Predicated region
        $region33: #{_lambda_.1} parent=11 // pred_check
          %p583 = pneg %p156
        $region34: #{_lambda_.1} parent=11 // pred_check_branch
          %585 = sbr.rel (%p583) target = $region36
        $region35: #{_lambda_.1} parent=11 // pred_region
          _
        $region36: #{_lambda_.1} parent=11 // pred_fallthru
          _
        // Predicated region
        $region37: #{_lambda_.1} parent=11 // pred_check
          %p586 = pneg %p489
        $region38: #{_lambda_.1} parent=11 // pred_check_branch
          %588 = sbr.rel (%p586) target = $region40
        $region39: #{_lambda_.1} parent=11 // pred_region
          _
        $region40: #{_lambda_.1} parent=11 // pred_fallthru
          _
        // Predicated region
        $region41: #{_lambda_.1} parent=11 // pred_check
          %p589 = pneg %p510
        $region42: #{_lambda_.1} parent=11 // pred_check_branch
          %591 = sbr.rel (%p589) target = $region44
        $region43: #{_lambda_.1} parent=11 // pred_region
          _
        $region44: #{_lambda_.1} parent=11 // pred_fallthru
          _
      $region12: #{_lambda_.1} parent=5 // pred_fallthru
        _
      %p592 = scmp.lt.s32.totalorder %s30, 2
      // Predicated region
      $region45: #{_lambda_.1} parent=5 // pred_check
        %p593 = pneg %p592
      $region46: #{_lambda_.1} parent=5 // pred_check_branch
        %595 = sbr.rel (%p593) target = $region48
      $region47: #{_lambda_.1} parent=5 // pred_region
        // Predicated region
        $region49: #{_lambda_.1} parent=47 // pred_check
          %p596 = pneg %p176
        $region50: #{_lambda_.1} parent=47 // pred_check_branch
          %598 = sbr.rel (%p596) target = $region52
        $region51: #{_lambda_.1} parent=47 // pred_region
          %s599 = sand.u32 %s30, 1
          %s600 = scalar_lea.sflag [#allocation6], %s599
          %s601 = sand.u32 %s166, 1
          %s602 = smul.addr %s601, 192
          %s603 = scalar_lea.vmem [#allocation9], %s602
          %605 = vsyncadd %s600, 0
          %s606 = smul.addr %s30, 48
          %s607 = smul.addr %s606, 4
          %s608 = scalar_lea.hbm %s6, %s607
          %s609 = sshll.u32 %s608, 4
          %s610 = int_to_ptr.hbm [resolvable:$true] %s609
          %s611 = sshll.u32 %s603, 4
          %s612 = int_to_ptr.vmem [resolvable:$true] %s611
          %617 = dma.hbm_to_vmem [thread:$0]  %s610, 3072, %s612, %s600, 192, 192, 12
        $region52: #{_lambda_.1} parent=47 // pred_fallthru
          _
        // Predicated region
        $region53: #{_lambda_.1} parent=47 // pred_check
          %p618 = pneg %p202
        $region54: #{_lambda_.1} parent=47 // pred_check_branch
          %620 = sbr.rel (%p618) target = $region56
        $region55: #{_lambda_.1} parent=47 // pred_region
          %p621 = scmp.lt.s32.totalorder %s30, 1
          %s622 = scalar_select %p621, %s30, 1
          %s623 = smul.addr %s622, 3
          %s624 = scalar_lea.vmem %s7, %s623
        $region56: #{_lambda_.1} parent=47 // pred_fallthru
          _
        // Predicated region
        $region57: #{_lambda_.1} parent=47 // pred_check
          %p625 = pneg %p228
        $region58: #{_lambda_.1} parent=47 // pred_check_branch
          %627 = sbr.rel (%p625) target = $region60
        $region59: #{_lambda_.1} parent=47 // pred_region
          %p628 = scmp.lt.s32.totalorder %s30, 1
          %s629 = scalar_select %p628, %s30, 1
          %s630 = smul.addr %s629, 16
          %s631 = smul.addr %s630, 4
          %s632 = scalar_lea.vmem %s8, %s631
        $region60: #{_lambda_.1} parent=47 // pred_fallthru
          _
        // Predicated region
        $region61: #{_lambda_.1} parent=47 // pred_check
          %p633 = pneg %p254
        $region62: #{_lambda_.1} parent=47 // pred_check_branch
          %635 = sbr.rel (%p633) target = $region64
        $region63: #{_lambda_.1} parent=47 // pred_region
          %p636 = scmp.lt.s32.totalorder %s30, 1
          %s637 = scalar_select %p636, %s30, 1
          %s638 = scalar_lea.vmem %s9, %s637
        $region64: #{_lambda_.1} parent=47 // pred_fallthru
          _
        // Predicated region
        $region65: #{_lambda_.1} parent=47 // pred_check
          %p639 = pneg %p280
        $region66: #{_lambda_.1} parent=47 // pred_check_branch
          %641 = sbr.rel (%p639) target = $region68
        $region67: #{_lambda_.1} parent=47 // pred_region
          %p642 = scmp.lt.s32.totalorder %s30, 1
          %s643 = scalar_select %p642, %s30, 1
          %s644 = scalar_lea.vmem %s10, %s643
        $region68: #{_lambda_.1} parent=47 // pred_fallthru
          _
        // Predicated region
        $region69: #{_lambda_.1} parent=47 // pred_check
          %p645 = pneg %p306
        $region70: #{_lambda_.1} parent=47 // pred_check_branch
          %647 = sbr.rel (%p645) target = $region72
        $region71: #{_lambda_.1} parent=47 // pred_region
          %p648 = scmp.lt.s32.totalorder %s30, 1
          %s649 = scalar_select %p648, %s30, 1
          %s650 = scalar_lea.vmem %s11, %s649
        $region72: #{_lambda_.1} parent=47 // pred_fallthru
          _
        // Predicated region
        $region73: #{_lambda_.1} parent=47 // pred_check
          %p651 = pneg %p332
        $region74: #{_lambda_.1} parent=47 // pred_check_branch
          %653 = sbr.rel (%p651) target = $region76
        $region75: #{_lambda_.1} parent=47 // pred_region
          %s654 = sand.u32 %s30, 1
          %s655 = scalar_lea.sflag [#allocation6], %s654
          %s656 = sand.u32 %s322, 1
          %s657 = smul.addr %s656, 256
          %s658 = scalar_lea.vmem [#allocation10], %s657
          %660 = vsyncadd %s655, 0
          %s661 = smul.addr %s30, 64
          %s662 = smul.addr %s661, 4
          %s663 = scalar_lea.hbm %s12, %s662
          %s664 = sshll.u32 %s663, 4
          %s665 = int_to_ptr.hbm [resolvable:$true] %s664
          %s666 = sshll.u32 %s658, 4
          %s667 = int_to_ptr.vmem [resolvable:$true] %s666
          %672 = dma.hbm_to_vmem [thread:$0]  %s665, 4096, %s667, %s655, 256, 256, 16
        $region76: #{_lambda_.1} parent=47 // pred_fallthru
          _
        // Predicated region
        $region77: #{_lambda_.1} parent=47 // pred_check
          %p673 = pneg %p358
        $region78: #{_lambda_.1} parent=47 // pred_check_branch
          %675 = sbr.rel (%p673) target = $region80
        $region79: #{_lambda_.1} parent=47 // pred_region
          %p676 = scmp.lt.s32.totalorder %s30, 1
          %s677 = scalar_select %p676, %s30, 1
          %s678 = smul.addr %s677, 4
          %s679 = scalar_lea.vmem %s13, %s678
        $region80: #{_lambda_.1} parent=47 // pred_fallthru
          _
        // Predicated region
        $region81: #{_lambda_.1} parent=47 // pred_check
          %p680 = pneg %p384
        $region82: #{_lambda_.1} parent=47 // pred_check_branch
          %682 = sbr.rel (%p680) target = $region84
        $region83: #{_lambda_.1} parent=47 // pred_region
          %s683 = sand.u32 %s30, 1
          %s684 = scalar_lea.sflag [#allocation6], %s683
          %s685 = sand.u32 %s374, 1
          %s686 = smul.addr %s685, 256
          %s687 = scalar_lea.vmem [#allocation11], %s686
          %689 = vsyncadd %s684, 0
          %s690 = smul.addr %s30, 64
          %s691 = smul.addr %s690, 4
          %s692 = scalar_lea.hbm %s14, %s691
          %s693 = sshll.u32 %s692, 4
          %s694 = int_to_ptr.hbm [resolvable:$true] %s693
          %s695 = sshll.u32 %s687, 4
          %s696 = int_to_ptr.vmem [resolvable:$true] %s695
          %701 = dma.hbm_to_vmem [thread:$0]  %s694, 4096, %s696, %s684, 64, 64, 4
        $region84: #{_lambda_.1} parent=47 // pred_fallthru
          _
        // Predicated region
        $region85: #{_lambda_.1} parent=47 // pred_check
          %p702 = pneg %p410
        $region86: #{_lambda_.1} parent=47 // pred_check_branch
          %704 = sbr.rel (%p702) target = $region88
        $region87: #{_lambda_.1} parent=47 // pred_region
          %p705 = scmp.lt.s32.totalorder %s30, 1
          %s706 = scalar_select %p705, %s30, 1
          %s707 = scalar_lea.vmem %s15, %s706
        $region88: #{_lambda_.1} parent=47 // pred_fallthru
          _
        // Predicated region
        $region89: #{_lambda_.1} parent=47 // pred_check
          %p708 = pneg %p436
        $region90: #{_lambda_.1} parent=47 // pred_check_branch
          %710 = sbr.rel (%p708) target = $region92
        $region91: #{_lambda_.1} parent=47 // pred_region
          %p711 = scmp.lt.s32.totalorder %s30, 1
          %s712 = scalar_select %p711, %s30, 1
          %s713 = scalar_lea.vmem %s16, %s712
        $region92: #{_lambda_.1} parent=47 // pred_fallthru
          _
        // Predicated region
        $region93: #{_lambda_.1} parent=47 // pred_check
          %p714 = pneg %p462
        $region94: #{_lambda_.1} parent=47 // pred_check_branch
          %716 = sbr.rel (%p714) target = $region96
        $region95: #{_lambda_.1} parent=47 // pred_region
          %p717 = scmp.lt.s32.totalorder %s30, 1
          %s718 = scalar_select %p717, %s30, 1
          %s719 = scalar_lea.vmem %s17, %s718
        $region96: #{_lambda_.1} parent=47 // pred_fallthru
          _
      $region48: #{_lambda_.1} parent=5 // pred_fallthru
        _
      %p720 = scmp.le.s32.totalorder 1, %s30
      %p721 = scmp.lt.s32.totalorder %s30, 3
      %p722 = pnand %p720, %p721
      %p723 = pneg %p722
      // Predicated region
      $region97: #{_lambda_.1} parent=5 // pred_check
        _
      $region98: #{_lambda_.1} parent=5 // pred_check_branch
        %725 = sbr.rel (%p722) target = $region100
      $region99: #{_lambda_.1} parent=5 // pred_region
        %s726 = ssub.s32 %s30, 1
        // Predicated region
        $region101: #{_lambda_.1} parent=99 // pred_check
          %p727 = pneg %p93
        $region102: #{_lambda_.1} parent=99 // pred_check_branch
          %729 = sbr.rel (%p727) target = $region104
        $region103: #{_lambda_.1} parent=99 // pred_region
          %731 = dma.done [#allocation6], 2048
        $region104: #{_lambda_.1} parent=99 // pred_fallthru
          _
        // Predicated region
        $region105: #{_lambda_.1} parent=99 // pred_check
          %p732 = pneg %p114
        $region106: #{_lambda_.1} parent=99 // pred_check_branch
          %734 = sbr.rel (%p732) target = $region108
        $region107: #{_lambda_.1} parent=99 // pred_region
          %736 = dma.done [#allocation8], 2048
        $region108: #{_lambda_.1} parent=99 // pred_fallthru
          _
        %s737 = sand.u32 %s35, 1
        %s738 = scalar_lea.sflag [#allocation6], %s737
        %s739 = sand.u32 %s169, 1
        %s740 = smul.addr %s739, 192
        %s741 = scalar_lea.vmem [#allocation9], %s740
        // Predicated region
        $region109: #{_lambda_.1} parent=99 // pred_check
          %p742 = pneg %p182
        $region110: #{_lambda_.1} parent=99 // pred_check_branch
          %744 = sbr.rel (%p742) target = $region112
        $region111: #{_lambda_.1} parent=99 // pred_region
          %746 = dma.done %s738, 3072
        $region112: #{_lambda_.1} parent=99 // pred_fallthru
          _
        %s747 = sand.u32 %s35, 1
        %s748 = scalar_lea.sflag [#allocation6], %s747
        %s749 = sand.u32 %s325, 1
        %s750 = smul.addr %s749, 256
        %s751 = scalar_lea.vmem [#allocation10], %s750
        // Predicated region
        $region113: #{_lambda_.1} parent=99 // pred_check
          %p752 = pneg %p338
        $region114: #{_lambda_.1} parent=99 // pred_check_branch
          %754 = sbr.rel (%p752) target = $region116
        $region115: #{_lambda_.1} parent=99 // pred_region
          %756 = dma.done %s748, 4096
        $region116: #{_lambda_.1} parent=99 // pred_fallthru
          _
        %s757 = sand.u32 %s35, 1
        %s758 = scalar_lea.sflag [#allocation6], %s757
        %s759 = sand.u32 %s377, 1
        %s760 = smul.addr %s759, 256
        %s761 = scalar_lea.vmem [#allocation11], %s760
        // Predicated region
        $region117: #{_lambda_.1} parent=99 // pred_check
          %p762 = pneg %p390
        $region118: #{_lambda_.1} parent=99 // pred_check_branch
          %764 = sbr.rel (%p762) target = $region120
        $region119: #{_lambda_.1} parent=99 // pred_region
          %766 = dma.done %s758, 4096
        $region120: #{_lambda_.1} parent=99 // pred_fallthru
          _
        %p767 = pneg %p51
        %p768 = pneg %p48
        %p769 = pneg %p72
        %p770 = pneg %p69
        %p771 = pneg %p93
        %p772 = pneg %p90
        %p773 = pneg %p114
        %p774 = pneg %p111
        %p775 = pneg %p135
        %p776 = pneg %p132
        %p777 = pneg %p156
        %p778 = pneg %p153
        %s779 = sand.u32 %s35, 1
        %s780 = scalar_lea.sflag [#allocation6], %s779
        %s781 = sand.u32 %s169, 1
        %s782 = smul.addr %s781, 192
        %s783 = scalar_lea.vmem [#allocation9], %s782
        %p784 = pneg %p182
        %p785 = pneg %p179
        %p786 = scmp.lt.s32.totalorder %s35, 1
        %s787 = scalar_select %p786, %s35, 1
        %s788 = smul.addr %s787, 3
        %s789 = scalar_lea.vmem %s7, %s788
        %p790 = pneg %p208
        %p791 = pneg %p205
        %p792 = scmp.lt.s32.totalorder %s35, 1
        %s793 = scalar_select %p792, %s35, 1
        %s794 = smul.addr %s793, 16
        %s795 = smul.addr %s794, 4
        %s796 = scalar_lea.vmem %s8, %s795
        %p797 = pneg %p234
        %p798 = pneg %p231
        %p799 = scmp.lt.s32.totalorder %s35, 1
        %s800 = scalar_select %p799, %s35, 1
        %s801 = scalar_lea.vmem %s9, %s800
        %p802 = pneg %p260
        %p803 = pneg %p257
        %p804 = scmp.lt.s32.totalorder %s35, 1
        %s805 = scalar_select %p804, %s35, 1
        %s806 = scalar_lea.vmem %s10, %s805
        %p807 = pneg %p286
        %p808 = pneg %p283
        %p809 = scmp.lt.s32.totalorder %s35, 1
        %s810 = scalar_select %p809, %s35, 1
        %s811 = scalar_lea.vmem %s11, %s810
        %p812 = pneg %p312
        %p813 = pneg %p309
        %s814 = sand.u32 %s35, 1
        %s815 = scalar_lea.sflag [#allocation6], %s814
        %s816 = sand.u32 %s325, 1
        %s817 = smul.addr %s816, 256
        %s818 = scalar_lea.vmem [#allocation10], %s817
        %p819 = pneg %p338
        %p820 = pneg %p335
        %p821 = scmp.lt.s32.totalorder %s35, 1
        %s822 = scalar_select %p821, %s35, 1
        %s823 = smul.addr %s822, 4
        %s824 = scalar_lea.vmem %s13, %s823
        %p825 = pneg %p364
        %p826 = pneg %p361
        %s827 = sand.u32 %s35, 1
        %s828 = scalar_lea.sflag [#allocation6], %s827
        %s829 = sand.u32 %s377, 1
        %s830 = smul.addr %s829, 256
        %s831 = scalar_lea.vmem [#allocation11], %s830
        %p832 = pneg %p390
        %p833 = pneg %p387
        %p834 = scmp.lt.s32.totalorder %s35, 1
        %s835 = scalar_select %p834, %s35, 1
        %s836 = scalar_lea.vmem %s15, %s835
        %p837 = pneg %p416
        %p838 = pneg %p413
        %p839 = scmp.lt.s32.totalorder %s35, 1
        %s840 = scalar_select %p839, %s35, 1
        %s841 = scalar_lea.vmem %s16, %s840
        %p842 = pneg %p442
        %p843 = pneg %p439
        %p844 = scmp.lt.s32.totalorder %s35, 1
        %s845 = scalar_select %p844, %s35, 1
        %s846 = scalar_lea.vmem %s17, %s845
        %p847 = pneg %p468
        %p848 = pneg %p465
        %p849 = pneg %p489
        %p850 = pneg %p486
        %p851 = pneg %p510
        %p852 = pneg %p507
        %p853 = pneg %p531
        %p854 = pneg %p528
        %p855 = scmp.lt.s32.totalorder %s35, 1
        %s856 = scalar_select %p855, %s35, 1
        %s857 = smul.addr %s856, 3
        %s858 = scalar_lea.vmem %s7, %s857
        %p859 = scmp.lt.s32.totalorder %s35, 1
        %s860 = scalar_select %p859, %s35, 1
        %s861 = smul.addr %s860, 16
        %s862 = smul.addr %s861, 4
        %s863 = scalar_lea.vmem %s8, %s862
        %p864 = scmp.lt.s32.totalorder %s35, 1
        %s865 = scalar_select %p864, %s35, 1
        %s866 = scalar_lea.vmem %s9, %s865
        %p867 = scmp.lt.s32.totalorder %s35, 1
        %s868 = scalar_select %p867, %s35, 1
        %s869 = scalar_lea.vmem %s10, %s868
        %p870 = scmp.lt.s32.totalorder %s35, 1
        %s871 = scalar_select %p870, %s35, 1
        %s872 = scalar_lea.vmem %s11, %s871
        %p873 = scmp.lt.s32.totalorder %s35, 1
        %s874 = scalar_select %p873, %s35, 1
        %s875 = smul.addr %s874, 4
        %s876 = scalar_lea.vmem %s13, %s875
        %p877 = scmp.lt.s32.totalorder %s35, 1
        %s878 = scalar_select %p877, %s35, 1
        %s879 = scalar_lea.vmem %s15, %s878
        %p880 = scmp.lt.s32.totalorder %s35, 1
        %s881 = scalar_select %p880, %s35, 1
        %s882 = scalar_lea.vmem %s16, %s881
        %p883 = scmp.lt.s32.totalorder %s35, 1
        %s884 = scalar_select %p883, %s35, 1
        %s885 = scalar_lea.vmem %s17, %s884
        %p886 = scmp.eq.s32.totalorder %s35, 0
        // Predicated region
        $region121: #{_lambda_.1} parent=99 // pred_check
          %p887 = pneg %p886
        $region122: #{_lambda_.1} parent=99 // pred_check_branch
          %889 = sbr.rel (%p887) target = $region124
        $region123: #{_lambda_.1} parent=99 // pred_region
          %v890 = vld [vmem:[%s0] sm:$0xff]
          %v891 = vld [vmem:[%s0 + $0x8] sm:$0xff]
          %v892 = vld [vmem:[%s0 + $0x10] sm:$0xff]
          %v893 = vld [vmem:[%s0 + $0x18] sm:$0xff]
          %v894 = vld [vmem:[%s0 + $0x20] sm:$0xff]
          %v895 = vld [vmem:[%s0 + $0x28] sm:$0xff]
          %v896 = vld [vmem:[%s0 + $0x30] sm:$0xff]
          %v897 = vld [vmem:[%s0 + $0x38] sm:$0xff]
          %v898 = vld [vmem:[%s0 + $0x40] sm:$0xff]
          %v899 = vld [vmem:[%s0 + $0x48] sm:$0xff]
          %v900 = vld [vmem:[%s0 + $0x50] sm:$0xff]
          %v901 = vld [vmem:[%s0 + $0x58] sm:$0xff]
          %v902 = vld [vmem:[%s0 + $0x60] sm:$0xff]
          %v903 = vld [vmem:[%s0 + $0x68] sm:$0xff]
          %v904 = vld [vmem:[%s0 + $0x70] sm:$0xff]
          %v905 = vld [vmem:[%s0 + $0x78] sm:$0xff]
          %v906 = vlaneseq
          %v907 = vand.u32 %v906, 127
          %v908 = vadd.s32 %v907, 128
          %909 = vset.pattern.permute.xlu0 0
          %910 = vperm.xlu0 %909, %v890
          %v911 = vpop.permute.xlu0 %910
          %912 = vset.pattern.permute.xlu0 0
          %913 = vperm.xlu0 %912, %v891
          %v914 = vpop.permute.xlu0 %913
          %915 = vset.pattern.permute.xlu0 0
          %916 = vperm.xlu0 %915, %v892
          %v917 = vpop.permute.xlu0 %916
          %918 = vset.pattern.permute.xlu0 0
          %919 = vperm.xlu0 %918, %v893
          %v920 = vpop.permute.xlu0 %919
          %921 = vset.pattern.permute.xlu0 0
          %922 = vperm.xlu0 %921, %v894
          %v923 = vpop.permute.xlu0 %922
          %924 = vset.pattern.permute.xlu0 0
          %925 = vperm.xlu0 %924, %v895
          %v926 = vpop.permute.xlu0 %925
          %927 = vset.pattern.permute.xlu0 0
          %928 = vperm.xlu0 %927, %v896
          %v929 = vpop.permute.xlu0 %928
          %930 = vset.pattern.permute.xlu0 0
          %931 = vperm.xlu0 %930, %v897
          %v932 = vpop.permute.xlu0 %931
          %933 = vset.pattern.permute.xlu0 0
          %934 = vperm.xlu0 %933, %v898
          %v935 = vpop.permute.xlu0 %934
          %936 = vset.pattern.permute.xlu0 0
          %937 = vperm.xlu0 %936, %v899
          %v938 = vpop.permute.xlu0 %937
          %939 = vset.pattern.permute.xlu0 0
          %940 = vperm.xlu0 %939, %v900
          %v941 = vpop.permute.xlu0 %940
          %942 = vset.pattern.permute.xlu0 0
          %943 = vperm.xlu0 %942, %v901
          %v944 = vpop.permute.xlu0 %943
          %945 = vset.pattern.permute.xlu0 0
          %946 = vperm.xlu0 %945, %v902
          %v947 = vpop.permute.xlu0 %946
          %948 = vset.pattern.permute.xlu0 0
          %949 = vperm.xlu0 %948, %v903
          %v950 = vpop.permute.xlu0 %949
          %951 = vset.pattern.permute.xlu0 0
          %952 = vperm.xlu0 %951, %v904
          %v953 = vpop.permute.xlu0 %952
          %954 = vset.pattern.permute.xlu0 0
          %955 = vperm.xlu0 %954, %v905
          %v956 = vpop.permute.xlu0 %955
          %vm957 = vcmp.eq.s32.totalorder %v911, %v907
          %vm958 = vcmp.eq.s32.totalorder %v911, %v908
          %vm959 = vcmp.eq.s32.totalorder %v914, %v907
          %vm960 = vcmp.eq.s32.totalorder %v914, %v908
          %vm961 = vcmp.eq.s32.totalorder %v917, %v907
          %vm962 = vcmp.eq.s32.totalorder %v917, %v908
          %vm963 = vcmp.eq.s32.totalorder %v920, %v907
          %vm964 = vcmp.eq.s32.totalorder %v920, %v908
          %vm965 = vcmp.eq.s32.totalorder %v923, %v907
          %vm966 = vcmp.eq.s32.totalorder %v923, %v908
          %vm967 = vcmp.eq.s32.totalorder %v926, %v907
          %vm968 = vcmp.eq.s32.totalorder %v926, %v908
          %vm969 = vcmp.eq.s32.totalorder %v929, %v907
          %vm970 = vcmp.eq.s32.totalorder %v929, %v908
          %vm971 = vcmp.eq.s32.totalorder %v932, %v907
          %vm972 = vcmp.eq.s32.totalorder %v932, %v908
          %vm973 = vcmp.eq.s32.totalorder %v935, %v907
          %vm974 = vcmp.eq.s32.totalorder %v935, %v908
          %vm975 = vcmp.eq.s32.totalorder %v938, %v907
          %vm976 = vcmp.eq.s32.totalorder %v938, %v908
          %vm977 = vcmp.eq.s32.totalorder %v941, %v907
          %vm978 = vcmp.eq.s32.totalorder %v941, %v908
          %vm979 = vcmp.eq.s32.totalorder %v944, %v907
          %vm980 = vcmp.eq.s32.totalorder %v944, %v908
          %vm981 = vcmp.eq.s32.totalorder %v947, %v907
          %vm982 = vcmp.eq.s32.totalorder %v947, %v908
          %vm983 = vcmp.eq.s32.totalorder %v950, %v907
          %vm984 = vcmp.eq.s32.totalorder %v950, %v908
          %vm985 = vcmp.eq.s32.totalorder %v953, %v907
          %vm986 = vcmp.eq.s32.totalorder %v953, %v908
          %vm987 = vcmp.eq.s32.totalorder %v956, %v907
          %vm988 = vcmp.eq.s32.totalorder %v956, %v908
          %v989 = vsel %vm957, 1, 0
          %v990 = vsel %vm958, 1, 0
          %v991 = vsel %vm959, 1, 0
          %v992 = vsel %vm960, 1, 0
          %v993 = vsel %vm961, 1, 0
          %v994 = vsel %vm962, 1, 0
          %v995 = vsel %vm963, 1, 0
          %v996 = vsel %vm964, 1, 0
          %v997 = vsel %vm965, 1, 0
          %v998 = vsel %vm966, 1, 0
          %v999 = vsel %vm967, 1, 0
          %v1000 = vsel %vm968, 1, 0
          %v1001 = vsel %vm969, 1, 0
          %v1002 = vsel %vm970, 1, 0
          %v1003 = vsel %vm971, 1, 0
          %v1004 = vsel %vm972, 1, 0
          %v1005 = vsel %vm973, 1, 0
          %v1006 = vsel %vm974, 1, 0
          %v1007 = vsel %vm975, 1, 0
          %v1008 = vsel %vm976, 1, 0
          %v1009 = vsel %vm977, 1, 0
          %v1010 = vsel %vm978, 1, 0
          %v1011 = vsel %vm979, 1, 0
          %v1012 = vsel %vm980, 1, 0
          %v1013 = vsel %vm981, 1, 0
          %v1014 = vsel %vm982, 1, 0
          %v1015 = vsel %vm983, 1, 0
          %v1016 = vsel %vm984, 1, 0
          %v1017 = vsel %vm985, 1, 0
          %v1018 = vsel %vm986, 1, 0
          %v1019 = vsel %vm987, 1, 0
          %v1020 = vsel %vm988, 1, 0
          %v1021 = vcvt.s32.f32 %v989
          %v1022 = vcvt.s32.f32 %v990
          %v1023 = vcvt.s32.f32 %v991
          %v1024 = vcvt.s32.f32 %v992
          %v1025 = vcvt.s32.f32 %v993
          %v1026 = vcvt.s32.f32 %v994
          %v1027 = vcvt.s32.f32 %v995
          %v1028 = vcvt.s32.f32 %v996
          %v1029 = vcvt.s32.f32 %v997
          %v1030 = vcvt.s32.f32 %v998
          %v1031 = vcvt.s32.f32 %v999
          %v1032 = vcvt.s32.f32 %v1000
          %v1033 = vcvt.s32.f32 %v1001
          %v1034 = vcvt.s32.f32 %v1002
          %v1035 = vcvt.s32.f32 %v1003
          %v1036 = vcvt.s32.f32 %v1004
          %v1037 = vcvt.s32.f32 %v1005
          %v1038 = vcvt.s32.f32 %v1006
          %v1039 = vcvt.s32.f32 %v1007
          %v1040 = vcvt.s32.f32 %v1008
          %v1041 = vcvt.s32.f32 %v1009
          %v1042 = vcvt.s32.f32 %v1010
          %v1043 = vcvt.s32.f32 %v1011
          %v1044 = vcvt.s32.f32 %v1012
          %v1045 = vcvt.s32.f32 %v1013
          %v1046 = vcvt.s32.f32 %v1014
          %v1047 = vcvt.s32.f32 %v1015
          %v1048 = vcvt.s32.f32 %v1016
          %v1049 = vcvt.s32.f32 %v1017
          %v1050 = vcvt.s32.f32 %v1018
          %v1051 = vcvt.s32.f32 %v1019
          %v1052 = vcvt.s32.f32 %v1020
          %v1053 = vpack.c.bf16 %v1023, %v1021
          %v1054 = vpack.c.bf16 %v1024, %v1022
          %v1055 = vpack.c.bf16 %v1027, %v1025
          %v1056 = vpack.c.bf16 %v1028, %v1026
          %v1057 = vpack.c.bf16 %v1031, %v1029
          %v1058 = vpack.c.bf16 %v1032, %v1030
          %v1059 = vpack.c.bf16 %v1035, %v1033
          %v1060 = vpack.c.bf16 %v1036, %v1034
          %v1061 = vpack.c.bf16 %v1039, %v1037
          %v1062 = vpack.c.bf16 %v1040, %v1038
          %v1063 = vpack.c.bf16 %v1043, %v1041
          %v1064 = vpack.c.bf16 %v1044, %v1042
          %v1065 = vpack.c.bf16 %v1047, %v1045
          %v1066 = vpack.c.bf16 %v1048, %v1046
          %v1067 = vpack.c.bf16 %v1051, %v1049
          %v1068 = vpack.c.bf16 %v1052, %v1050
          %v1069 = vld [vmem:[#allocation5] sm:$0xf]
          %v1070 = vld [vmem:[#allocation5 + $0x4] sm:$0xf]
          %v1071 = vld [vmem:[#allocation5 + $0x8] sm:$0xf]
          %v1072 = vld [vmem:[#allocation5 + $0xc] sm:$0xf]
          %v1073 = vld [vmem:[#allocation5 + $0x10] sm:$0xf]
          %v1074 = vld [vmem:[#allocation5 + $0x14] sm:$0xf]
          %v1075 = vld [vmem:[#allocation5 + $0x18] sm:$0xf]
          %v1076 = vld [vmem:[#allocation5 + $0x1c] sm:$0xf]
          %v1077 = vld [vmem:[#allocation5 + $0x20] sm:$0xf]
          %v1078 = vld [vmem:[#allocation5 + $0x24] sm:$0xf]
          %v1079 = vld [vmem:[#allocation5 + $0x28] sm:$0xf]
          %v1080 = vld [vmem:[#allocation5 + $0x2c] sm:$0xf]
          %v1081 = vld [vmem:[#allocation5 + $0x30] sm:$0xf]
          %v1082 = vld [vmem:[#allocation5 + $0x34] sm:$0xf]
          %v1083 = vld [vmem:[#allocation5 + $0x38] sm:$0xf]
          %v1084 = vld [vmem:[#allocation5 + $0x3c] sm:$0xf]
          %v1085 = vld [vmem:[#allocation5 + $0x40] sm:$0xf]
          %v1086 = vld [vmem:[#allocation5 + $0x44] sm:$0xf]
          %v1087 = vld [vmem:[#allocation5 + $0x48] sm:$0xf]
          %v1088 = vld [vmem:[#allocation5 + $0x4c] sm:$0xf]
          %v1089 = vld [vmem:[#allocation5 + $0x50] sm:$0xf]
          %v1090 = vld [vmem:[#allocation5 + $0x54] sm:$0xf]
          %v1091 = vld [vmem:[#allocation5 + $0x58] sm:$0xf]
          %v1092 = vld [vmem:[#allocation5 + $0x5c] sm:$0xf]
          %v1093 = vld [vmem:[#allocation5 + $0x60] sm:$0xf]
          %v1094 = vld [vmem:[#allocation5 + $0x64] sm:$0xf]
          %v1095 = vld [vmem:[#allocation5 + $0x68] sm:$0xf]
          %v1096 = vld [vmem:[#allocation5 + $0x6c] sm:$0xf]
          %v1097 = vld [vmem:[#allocation5 + $0x70] sm:$0xf]
          %v1098 = vld [vmem:[#allocation5 + $0x74] sm:$0xf]
          %v1099 = vld [vmem:[#allocation5 + $0x78] sm:$0xf]
          %v1100 = vld [vmem:[#allocation5 + $0x7c] sm:$0xf]
          %v1101 = vld [vmem:[#allocation7] sm:$0xff]
          %v1102 = vld [vmem:[#allocation7 + $0x8] sm:$0xff]
          %v1103 = vld [vmem:[#allocation7 + $0x10] sm:$0xff]
          %v1104 = vld [vmem:[#allocation7 + $0x18] sm:$0xff]
          %v1105 = vld [vmem:[#allocation7 + $0x20] sm:$0xff]
          %v1106 = vld [vmem:[#allocation7 + $0x28] sm:$0xff]
          %v1107 = vld [vmem:[#allocation7 + $0x30] sm:$0xff]
          %v1108 = vld [vmem:[#allocation7 + $0x38] sm:$0xff]
          %v1109 = vld [vmem:[#allocation7 + $0x40] sm:$0xff]
          %v1110 = vld [vmem:[#allocation7 + $0x48] sm:$0xff]
          %v1111 = vld [vmem:[#allocation7 + $0x50] sm:$0xff]
          %v1112 = vld [vmem:[#allocation7 + $0x58] sm:$0xff]
          %v1113 = vld [vmem:[#allocation7 + $0x60] sm:$0xff]
          %v1114 = vld [vmem:[#allocation7 + $0x68] sm:$0xff]
          %v1115 = vld [vmem:[#allocation7 + $0x70] sm:$0xff]
          %v1116 = vld [vmem:[#allocation7 + $0x78] sm:$0xff]
          %v1149 = vunpack.c.l.b16 %v1069
          %v1150 = vunpack.c.l.b16 %v1070
          %v1151 = vunpack.c.l.b16 %v1071
          %v1152 = vunpack.c.l.b16 %v1072
          %v1153 = vunpack.c.l.b16 %v1073
          %v1154 = vunpack.c.l.b16 %v1074
          %v1155 = vunpack.c.l.b16 %v1075
          %v1156 = vunpack.c.l.b16 %v1076
          %v1157 = vunpack.c.l.b16 %v1077
          %v1158 = vunpack.c.l.b16 %v1078
          %v1159 = vunpack.c.l.b16 %v1079
          %v1160 = vunpack.c.l.b16 %v1080
          %v1161 = vunpack.c.l.b16 %v1081
          %v1162 = vunpack.c.l.b16 %v1082
          %v1163 = vunpack.c.l.b16 %v1083
          %v1164 = vunpack.c.l.b16 %v1084
          %v1165 = vunpack.c.l.b16 %v1085
          %v1166 = vunpack.c.l.b16 %v1086
          %v1167 = vunpack.c.l.b16 %v1087
          %v1168 = vunpack.c.l.b16 %v1088
          %v1169 = vunpack.c.l.b16 %v1089
          %v1170 = vunpack.c.l.b16 %v1090
          %v1171 = vunpack.c.l.b16 %v1091
          %v1172 = vunpack.c.l.b16 %v1092
          %v1173 = vunpack.c.l.b16 %v1093
          %v1174 = vunpack.c.l.b16 %v1094
          %v1175 = vunpack.c.l.b16 %v1095
          %v1176 = vunpack.c.l.b16 %v1096
          %v1177 = vunpack.c.l.b16 %v1097
          %v1178 = vunpack.c.l.b16 %v1098
          %v1179 = vunpack.c.l.b16 %v1099
          %v1180 = vunpack.c.l.b16 %v1100
          %v1181 = vpack.c.b16 %v1150, %v1149
          %v1182 = vpack.c.b16 %v1152, %v1151
          %v1183 = vpack.c.b16 %v1154, %v1153
          %v1184 = vpack.c.b16 %v1156, %v1155
          %v1185 = vpack.c.b16 %v1158, %v1157
          %v1186 = vpack.c.b16 %v1160, %v1159
          %v1187 = vpack.c.b16 %v1162, %v1161
          %v1188 = vpack.c.b16 %v1164, %v1163
          %v1189 = vpack.c.b16 %v1166, %v1165
          %v1190 = vpack.c.b16 %v1168, %v1167
          %v1191 = vpack.c.b16 %v1170, %v1169
          %v1192 = vpack.c.b16 %v1172, %v1171
          %v1193 = vpack.c.b16 %v1174, %v1173
          %v1194 = vpack.c.b16 %v1176, %v1175
          %v1195 = vpack.c.b16 %v1178, %v1177
          %v1196 = vpack.c.b16 %v1180, %v1179
          %1213 = vmatpush.bf16.msra.mxu0 %v1188
          %1214 = vmatpush.bf16.msra.mxu0 %v1187
          %1215 = vmatpush.bf16.msra.mxu0 %v1186
          %1216 = vmatpush.bf16.msra.mxu0 %v1185
          %1217 = vmatpush.bf16.msra.mxu0 %v1184
          %1218 = vmatpush.bf16.msra.mxu0 %v1183
          %1219 = vmatpush.bf16.msra.mxu0 %v1182
          %1220 = vmatpush.bf16.msra.mxu0 %v1181
          %1221 = vmatmul.bf16.gmra.mxu0 %v1053
          %v1222 = vpop.f32.mrf.mxu0
          %v1223 = vadd.f32 %v1101, %v1222
          %v1224 = vpop.f32.mrf.mxu0
          %v1225 = vadd.f32 %v1102, %v1224
          %1226 = vmatmul.bf16.gmra.mxu0 %v1055
          %v1227 = vpop.f32.mrf.mxu0
          %v1228 = vadd.f32 %v1103, %v1227
          %v1229 = vpop.f32.mrf.mxu0
          %v1230 = vadd.f32 %v1104, %v1229
          %1231 = vmatmul.bf16.gmra.mxu0 %v1057
          %v1232 = vpop.f32.mrf.mxu0
          %v1233 = vadd.f32 %v1105, %v1232
          %v1234 = vpop.f32.mrf.mxu0
          %v1235 = vadd.f32 %v1106, %v1234
          %1236 = vmatmul.bf16.gmra.mxu0 %v1059
          %v1237 = vpop.f32.mrf.mxu0
          %v1238 = vadd.f32 %v1107, %v1237
          %v1239 = vpop.f32.mrf.mxu0
          %v1240 = vadd.f32 %v1108, %v1239
          %1241 = vmatmul.bf16.gmra.mxu0 %v1061
          %v1242 = vpop.f32.mrf.mxu0
          %v1243 = vadd.f32 %v1109, %v1242
          %v1244 = vpop.f32.mrf.mxu0
          %v1245 = vadd.f32 %v1110, %v1244
          %1246 = vmatmul.bf16.gmra.mxu0 %v1063
          %v1247 = vpop.f32.mrf.mxu0
          %v1248 = vadd.f32 %v1111, %v1247
          %v1249 = vpop.f32.mrf.mxu0
          %v1250 = vadd.f32 %v1112, %v1249
          %1251 = vmatmul.bf16.gmra.mxu0 %v1065
          %v1252 = vpop.f32.mrf.mxu0
          %v1253 = vadd.f32 %v1113, %v1252
          %v1254 = vpop.f32.mrf.mxu0
          %v1255 = vadd.f32 %v1114, %v1254
          %1256 = vmatmul.bf16.gmra.mxu0 %v1067
          %v1257 = vpop.f32.mrf.mxu0
          %v1258 = vadd.f32 %v1115, %v1257
          %v1259 = vpop.f32.mrf.mxu0
          %v1260 = vadd.f32 %v1116, %v1259
          %1261 = vdwg.mxu0
          %1262 = vmatpush.bf16.msra.mxu0 %v1196
          %1263 = vmatpush.bf16.msra.mxu0 %v1195
          %1264 = vmatpush.bf16.msra.mxu0 %v1194
          %1265 = vmatpush.bf16.msra.mxu0 %v1193
          %1266 = vmatpush.bf16.msra.mxu0 %v1192
          %1267 = vmatpush.bf16.msra.mxu0 %v1191
          %1268 = vmatpush.bf16.msra.mxu0 %v1190
          %1269 = vmatpush.bf16.msra.mxu0 %v1189
          %1270 = vmatmul.bf16.gmra.mxu0 %v1054
          %v1271 = vpop.f32.mrf.mxu0
          %v1272 = vadd.f32 %v1223, %v1271
          %v1273 = vpop.f32.mrf.mxu0
          %v1274 = vadd.f32 %v1225, %v1273
          %1275 = vmatmul.bf16.gmra.mxu0 %v1056
          %v1276 = vpop.f32.mrf.mxu0
          %v1277 = vadd.f32 %v1228, %v1276
          %v1278 = vpop.f32.mrf.mxu0
          %v1279 = vadd.f32 %v1230, %v1278
          %1280 = vmatmul.bf16.gmra.mxu0 %v1058
          %v1281 = vpop.f32.mrf.mxu0
          %v1282 = vadd.f32 %v1233, %v1281
          %v1283 = vpop.f32.mrf.mxu0
          %v1284 = vadd.f32 %v1235, %v1283
          %1285 = vmatmul.bf16.gmra.mxu0 %v1060
          %v1286 = vpop.f32.mrf.mxu0
          %v1287 = vadd.f32 %v1238, %v1286
          %v1288 = vpop.f32.mrf.mxu0
          %v1289 = vadd.f32 %v1240, %v1288
          %1290 = vmatmul.bf16.gmra.mxu0 %v1062
          %v1291 = vpop.f32.mrf.mxu0
          %v1292 = vadd.f32 %v1243, %v1291
          %v1293 = vpop.f32.mrf.mxu0
          %v1294 = vadd.f32 %v1245, %v1293
          %1295 = vmatmul.bf16.gmra.mxu0 %v1064
          %v1296 = vpop.f32.mrf.mxu0
          %v1297 = vadd.f32 %v1248, %v1296
          %v1298 = vpop.f32.mrf.mxu0
          %v1299 = vadd.f32 %v1250, %v1298
          %1300 = vmatmul.bf16.gmra.mxu0 %v1066
          %v1301 = vpop.f32.mrf.mxu0
          %v1302 = vadd.f32 %v1253, %v1301
          %v1303 = vpop.f32.mrf.mxu0
          %v1304 = vadd.f32 %v1255, %v1303
          %1305 = vmatmul.bf16.gmra.mxu0 %v1068
          %v1306 = vpop.f32.mrf.mxu0
          %v1307 = vadd.f32 %v1258, %v1306
          %v1308 = vpop.f32.mrf.mxu0
          %v1309 = vadd.f32 %v1260, %v1308
          %1310 = vdwg.mxu0
          %v1311 = vld [vmem:[%s4] sm:$0x1]
          %v1312 = vld [vmem:[%s5] sm:$0x1]
          %1313 = vadd.xlane.f32.xlu0 %v1272
          %v1314 = vpop.xlane.xlu0 %1313
          %1315 = vadd.xlane.f32.xlu0 %v1274
          %v1316 = vpop.xlane.xlu0 %1315
          %1317 = vadd.xlane.f32.xlu0 %v1277
          %v1318 = vpop.xlane.xlu0 %1317
          %1319 = vadd.xlane.f32.xlu0 %v1279
          %v1320 = vpop.xlane.xlu0 %1319
          %1321 = vadd.xlane.f32.xlu0 %v1282
          %v1322 = vpop.xlane.xlu0 %1321
          %1323 = vadd.xlane.f32.xlu0 %v1284
          %v1324 = vpop.xlane.xlu0 %1323
          %1325 = vadd.xlane.f32.xlu0 %v1287
          %v1326 = vpop.xlane.xlu0 %1325
          %1327 = vadd.xlane.f32.xlu0 %v1289
          %v1328 = vpop.xlane.xlu0 %1327
          %1329 = vadd.xlane.f32.xlu0 %v1292
          %v1330 = vpop.xlane.xlu0 %1329
          %1331 = vadd.xlane.f32.xlu0 %v1294
          %v1332 = vpop.xlane.xlu0 %1331
          %1333 = vadd.xlane.f32.xlu0 %v1297
          %v1334 = vpop.xlane.xlu0 %1333
          %1335 = vadd.xlane.f32.xlu0 %v1299
          %v1336 = vpop.xlane.xlu0 %1335
          %1337 = vadd.xlane.f32.xlu0 %v1302
          %v1338 = vpop.xlane.xlu0 %1337
          %1339 = vadd.xlane.f32.xlu0 %v1304
          %v1340 = vpop.xlane.xlu0 %1339
          %1341 = vadd.xlane.f32.xlu0 %v1307
          %v1342 = vpop.xlane.xlu0 %1341
          %1343 = vadd.xlane.f32.xlu0 %v1309
          %v1344 = vpop.xlane.xlu0 %1343
          %v1345 = vrcp.pop 128.0
          %v1346 = vmul.f32 128.0, %v1345
          %v1347 = vsub.f32 1.0, %v1346
          %v1348 = vmul.f32 %v1345, %v1347
          %v1349 = vadd.f32 %v1345, %v1348
          %vm1350 = vweird.f32 %v1345
          %v1351 = vsel %vm1350, %v1345, %v1349
          %v1352 = vmul.f32 %v1314, %v1351
          %v1353 = vmul.f32 %v1316, %v1351
          %v1354 = vmul.f32 %v1318, %v1351
          %v1355 = vmul.f32 %v1320, %v1351
          %v1356 = vmul.f32 %v1322, %v1351
          %v1357 = vmul.f32 %v1324, %v1351
          %v1358 = vmul.f32 %v1326, %v1351
          %v1359 = vmul.f32 %v1328, %v1351
          %v1360 = vmul.f32 %v1330, %v1351
          %v1361 = vmul.f32 %v1332, %v1351
          %v1362 = vmul.f32 %v1334, %v1351
          %v1363 = vmul.f32 %v1336, %v1351
          %v1364 = vmul.f32 %v1338, %v1351
          %v1365 = vmul.f32 %v1340, %v1351
          %v1366 = vmul.f32 %v1342, %v1351
          %v1367 = vmul.f32 %v1344, %v1351
          %v1368 = vsub.f32 %v1272, %v1352
          %v1369 = vsub.f32 %v1274, %v1353
          %v1370 = vsub.f32 %v1277, %v1354
          %v1371 = vsub.f32 %v1279, %v1355
          %v1372 = vsub.f32 %v1282, %v1356
          %v1373 = vsub.f32 %v1284, %v1357
          %v1374 = vsub.f32 %v1287, %v1358
          %v1375 = vsub.f32 %v1289, %v1359
          %v1376 = vsub.f32 %v1292, %v1360
          %v1377 = vsub.f32 %v1294, %v1361
          %v1378 = vsub.f32 %v1297, %v1362
          %v1379 = vsub.f32 %v1299, %v1363
          %v1380 = vsub.f32 %v1302, %v1364
          %v1381 = vsub.f32 %v1304, %v1365
          %v1382 = vsub.f32 %v1307, %v1366
          %v1383 = vsub.f32 %v1309, %v1367
          %v1384 = vmul.f32 %v1368, %v1368
          %v1385 = vmul.f32 %v1369, %v1369
          %v1386 = vmul.f32 %v1370, %v1370
          %v1387 = vmul.f32 %v1371, %v1371
          %v1388 = vmul.f32 %v1372, %v1372
          %v1389 = vmul.f32 %v1373, %v1373
          %v1390 = vmul.f32 %v1374, %v1374
          %v1391 = vmul.f32 %v1375, %v1375
          %v1392 = vmul.f32 %v1376, %v1376
          %v1393 = vmul.f32 %v1377, %v1377
          %v1394 = vmul.f32 %v1378, %v1378
          %v1395 = vmul.f32 %v1379, %v1379
          %v1396 = vmul.f32 %v1380, %v1380
          %v1397 = vmul.f32 %v1381, %v1381
          %v1398 = vmul.f32 %v1382, %v1382
          %v1399 = vmul.f32 %v1383, %v1383
          %1400 = vadd.xlane.f32.xlu0 %v1384
          %v1401 = vpop.xlane.xlu0 %1400
          %1402 = vadd.xlane.f32.xlu0 %v1385
          %v1403 = vpop.xlane.xlu0 %1402
          %1404 = vadd.xlane.f32.xlu0 %v1386
          %v1405 = vpop.xlane.xlu0 %1404
          %1406 = vadd.xlane.f32.xlu0 %v1387
          %v1407 = vpop.xlane.xlu0 %1406
          %1408 = vadd.xlane.f32.xlu0 %v1388
          %v1409 = vpop.xlane.xlu0 %1408
          %1410 = vadd.xlane.f32.xlu0 %v1389
          %v1411 = vpop.xlane.xlu0 %1410
          %1412 = vadd.xlane.f32.xlu0 %v1390
          %v1413 = vpop.xlane.xlu0 %1412
          %1414 = vadd.xlane.f32.xlu0 %v1391
          %v1415 = vpop.xlane.xlu0 %1414
          %1416 = vadd.xlane.f32.xlu0 %v1392
          %v1417 = vpop.xlane.xlu0 %1416
          %1418 = vadd.xlane.f32.xlu0 %v1393
          %v1419 = vpop.xlane.xlu0 %1418
          %1420 = vadd.xlane.f32.xlu0 %v1394
          %v1421 = vpop.xlane.xlu0 %1420
          %1422 = vadd.xlane.f32.xlu0 %v1395
          %v1423 = vpop.xlane.xlu0 %1422
          %1424 = vadd.xlane.f32.xlu0 %v1396
          %v1425 = vpop.xlane.xlu0 %1424
          %1426 = vadd.xlane.f32.xlu0 %v1397
          %v1427 = vpop.xlane.xlu0 %1426
          %1428 = vadd.xlane.f32.xlu0 %v1398
          %v1429 = vpop.xlane.xlu0 %1428
          %1430 = vadd.xlane.f32.xlu0 %v1399
          %v1431 = vpop.xlane.xlu0 %1430
          %v1432 = vmul.f32 %v1401, %v1351
          %v1433 = vmul.f32 %v1403, %v1351
          %v1434 = vmul.f32 %v1405, %v1351
          %v1435 = vmul.f32 %v1407, %v1351
          %v1436 = vmul.f32 %v1409, %v1351
          %v1437 = vmul.f32 %v1411, %v1351
          %v1438 = vmul.f32 %v1413, %v1351
          %v1439 = vmul.f32 %v1415, %v1351
          %v1440 = vmul.f32 %v1417, %v1351
          %v1441 = vmul.f32 %v1419, %v1351
          %v1442 = vmul.f32 %v1421, %v1351
          %v1443 = vmul.f32 %v1423, %v1351
          %v1444 = vmul.f32 %v1425, %v1351
          %v1445 = vmul.f32 %v1427, %v1351
          %v1446 = vmul.f32 %v1429, %v1351
          %v1447 = vmul.f32 %v1431, %v1351
          %v1448 = vadd.f32 %v1432, 1e-12
          %v1449 = vadd.f32 %v1433, 1e-12
          %v1450 = vadd.f32 %v1434, 1e-12
          %v1451 = vadd.f32 %v1435, 1e-12
          %v1452 = vadd.f32 %v1436, 1e-12
          %v1453 = vadd.f32 %v1437, 1e-12
          %v1454 = vadd.f32 %v1438, 1e-12
          %v1455 = vadd.f32 %v1439, 1e-12
          %v1456 = vadd.f32 %v1440, 1e-12
          %v1457 = vadd.f32 %v1441, 1e-12
          %v1458 = vadd.f32 %v1442, 1e-12
          %v1459 = vadd.f32 %v1443, 1e-12
          %v1460 = vadd.f32 %v1444, 1e-12
          %v1461 = vadd.f32 %v1445, 1e-12
          %v1462 = vadd.f32 %v1446, 1e-12
          %v1463 = vadd.f32 %v1447, 1e-12
          %v1464 = vrsqrt.pop %v1448
          %v1465 = vmul.f32 %v1464, %v1448
          %v1466 = vmul.f32 %v1465, %v1464
          %v1467 = vmul.f32 0.5, %v1466
          %v1468 = vsub.f32 1.5, %v1467
          %v1469 = vmul.f32 %v1464, %v1468
          %vm1470 = vweird.f32 %v1448
          %vm1471 = vweird.f32 %v1464
          %vm1472 = vmor %vm1470, %vm1471
          %v1473 = vsel %vm1472, %v1464, %v1469
          %v1474 = vrsqrt.pop %v1449
          %v1475 = vmul.f32 %v1474, %v1449
          %v1476 = vmul.f32 %v1475, %v1474
          %v1477 = vmul.f32 0.5, %v1476
          %v1478 = vsub.f32 1.5, %v1477
          %v1479 = vmul.f32 %v1474, %v1478
          %vm1480 = vweird.f32 %v1449
          %vm1481 = vweird.f32 %v1474
          %vm1482 = vmor %vm1480, %vm1481
          %v1483 = vsel %vm1482, %v1474, %v1479
          %v1484 = vrsqrt.pop %v1450
          %v1485 = vmul.f32 %v1484, %v1450
          %v1486 = vmul.f32 %v1485, %v1484
          %v1487 = vmul.f32 0.5, %v1486
          %v1488 = vsub.f32 1.5, %v1487
          %v1489 = vmul.f32 %v1484, %v1488
          %vm1490 = vweird.f32 %v1450
          %vm1491 = vweird.f32 %v1484
          %vm1492 = vmor %vm1490, %vm1491
          %v1493 = vsel %vm1492, %v1484, %v1489
          %v1494 = vrsqrt.pop %v1451
          %v1495 = vmul.f32 %v1494, %v1451
          %v1496 = vmul.f32 %v1495, %v1494
          %v1497 = vmul.f32 0.5, %v1496
          %v1498 = vsub.f32 1.5, %v1497
          %v1499 = vmul.f32 %v1494, %v1498
          %vm1500 = vweird.f32 %v1451
          %vm1501 = vweird.f32 %v1494
          %vm1502 = vmor %vm1500, %vm1501
          %v1503 = vsel %vm1502, %v1494, %v1499
          %v1504 = vrsqrt.pop %v1452
          %v1505 = vmul.f32 %v1504, %v1452
          %v1506 = vmul.f32 %v1505, %v1504
          %v1507 = vmul.f32 0.5, %v1506
          %v1508 = vsub.f32 1.5, %v1507
          %v1509 = vmul.f32 %v1504, %v1508
          %vm1510 = vweird.f32 %v1452
          %vm1511 = vweird.f32 %v1504
          %vm1512 = vmor %vm1510, %vm1511
          %v1513 = vsel %vm1512, %v1504, %v1509
          %v1514 = vrsqrt.pop %v1453
          %v1515 = vmul.f32 %v1514, %v1453
          %v1516 = vmul.f32 %v1515, %v1514
          %v1517 = vmul.f32 0.5, %v1516
          %v1518 = vsub.f32 1.5, %v1517
          %v1519 = vmul.f32 %v1514, %v1518
          %vm1520 = vweird.f32 %v1453
          %vm1521 = vweird.f32 %v1514
          %vm1522 = vmor %vm1520, %vm1521
          %v1523 = vsel %vm1522, %v1514, %v1519
          %v1524 = vrsqrt.pop %v1454
          %v1525 = vmul.f32 %v1524, %v1454
          %v1526 = vmul.f32 %v1525, %v1524
          %v1527 = vmul.f32 0.5, %v1526
          %v1528 = vsub.f32 1.5, %v1527
          %v1529 = vmul.f32 %v1524, %v1528
          %vm1530 = vweird.f32 %v1454
          %vm1531 = vweird.f32 %v1524
          %vm1532 = vmor %vm1530, %vm1531
          %v1533 = vsel %vm1532, %v1524, %v1529
          %v1534 = vrsqrt.pop %v1455
          %v1535 = vmul.f32 %v1534, %v1455
          %v1536 = vmul.f32 %v1535, %v1534
          %v1537 = vmul.f32 0.5, %v1536
          %v1538 = vsub.f32 1.5, %v1537
          %v1539 = vmul.f32 %v1534, %v1538
          %vm1540 = vweird.f32 %v1455
          %vm1541 = vweird.f32 %v1534
          %vm1542 = vmor %vm1540, %vm1541
          %v1543 = vsel %vm1542, %v1534, %v1539
          %v1544 = vrsqrt.pop %v1456
          %v1545 = vmul.f32 %v1544, %v1456
          %v1546 = vmul.f32 %v1545, %v1544
          %v1547 = vmul.f32 0.5, %v1546
          %v1548 = vsub.f32 1.5, %v1547
          %v1549 = vmul.f32 %v1544, %v1548
          %vm1550 = vweird.f32 %v1456
          %vm1551 = vweird.f32 %v1544
          %vm1552 = vmor %vm1550, %vm1551
          %v1553 = vsel %vm1552, %v1544, %v1549
          %v1554 = vrsqrt.pop %v1457
          %v1555 = vmul.f32 %v1554, %v1457
          %v1556 = vmul.f32 %v1555, %v1554
          %v1557 = vmul.f32 0.5, %v1556
          %v1558 = vsub.f32 1.5, %v1557
          %v1559 = vmul.f32 %v1554, %v1558
          %vm1560 = vweird.f32 %v1457
          %vm1561 = vweird.f32 %v1554
          %vm1562 = vmor %vm1560, %vm1561
          %v1563 = vsel %vm1562, %v1554, %v1559
          %v1564 = vrsqrt.pop %v1458
          %v1565 = vmul.f32 %v1564, %v1458
          %v1566 = vmul.f32 %v1565, %v1564
          %v1567 = vmul.f32 0.5, %v1566
          %v1568 = vsub.f32 1.5, %v1567
          %v1569 = vmul.f32 %v1564, %v1568
          %vm1570 = vweird.f32 %v1458
          %vm1571 = vweird.f32 %v1564
          %vm1572 = vmor %vm1570, %vm1571
          %v1573 = vsel %vm1572, %v1564, %v1569
          %v1574 = vrsqrt.pop %v1459
          %v1575 = vmul.f32 %v1574, %v1459
          %v1576 = vmul.f32 %v1575, %v1574
          %v1577 = vmul.f32 0.5, %v1576
          %v1578 = vsub.f32 1.5, %v1577
          %v1579 = vmul.f32 %v1574, %v1578
          %vm1580 = vweird.f32 %v1459
          %vm1581 = vweird.f32 %v1574
          %vm1582 = vmor %vm1580, %vm1581
          %v1583 = vsel %vm1582, %v1574, %v1579
          %v1584 = vrsqrt.pop %v1460
          %v1585 = vmul.f32 %v1584, %v1460
          %v1586 = vmul.f32 %v1585, %v1584
          %v1587 = vmul.f32 0.5, %v1586
          %v1588 = vsub.f32 1.5, %v1587
          %v1589 = vmul.f32 %v1584, %v1588
          %vm1590 = vweird.f32 %v1460
          %vm1591 = vweird.f32 %v1584
          %vm1592 = vmor %vm1590, %vm1591
          %v1593 = vsel %vm1592, %v1584, %v1589
          %v1594 = vrsqrt.pop %v1461
          %v1595 = vmul.f32 %v1594, %v1461
          %v1596 = vmul.f32 %v1595, %v1594
          %v1597 = vmul.f32 0.5, %v1596
          %v1598 = vsub.f32 1.5, %v1597
          %v1599 = vmul.f32 %v1594, %v1598
          %vm1600 = vweird.f32 %v1461
          %vm1601 = vweird.f32 %v1594
          %vm1602 = vmor %vm1600, %vm1601
          %v1603 = vsel %vm1602, %v1594, %v1599
          %v1604 = vrsqrt.pop %v1462
          %v1605 = vmul.f32 %v1604, %v1462
          %v1606 = vmul.f32 %v1605, %v1604
          %v1607 = vmul.f32 0.5, %v1606
          %v1608 = vsub.f32 1.5, %v1607
          %v1609 = vmul.f32 %v1604, %v1608
          %vm1610 = vweird.f32 %v1462
          %vm1611 = vweird.f32 %v1604
          %vm1612 = vmor %vm1610, %vm1611
          %v1613 = vsel %vm1612, %v1604, %v1609
          %v1614 = vrsqrt.pop %v1463
          %v1615 = vmul.f32 %v1614, %v1463
          %v1616 = vmul.f32 %v1615, %v1614
          %v1617 = vmul.f32 0.5, %v1616
          %v1618 = vsub.f32 1.5, %v1617
          %v1619 = vmul.f32 %v1614, %v1618
          %vm1620 = vweird.f32 %v1463
          %vm1621 = vweird.f32 %v1614
          %vm1622 = vmor %vm1620, %vm1621
          %v1623 = vsel %vm1622, %v1614, %v1619
          %v1624 = vmul.f32 %v1368, %v1473
          %v1625 = vmul.f32 %v1369, %v1483
          %v1626 = vmul.f32 %v1370, %v1493
          %v1627 = vmul.f32 %v1371, %v1503
          %v1628 = vmul.f32 %v1372, %v1513
          %v1629 = vmul.f32 %v1373, %v1523
          %v1630 = vmul.f32 %v1374, %v1533
          %v1631 = vmul.f32 %v1375, %v1543
          %v1632 = vmul.f32 %v1376, %v1553
          %v1633 = vmul.f32 %v1377, %v1563
          %v1634 = vmul.f32 %v1378, %v1573
          %v1635 = vmul.f32 %v1379, %v1583
          %v1636 = vmul.f32 %v1380, %v1593
          %v1637 = vmul.f32 %v1381, %v1603
          %v1638 = vmul.f32 %v1382, %v1613
          %v1639 = vmul.f32 %v1383, %v1623
          %v1641 = vperm.slane %v1311, 0
          %v1643 = vmul.f32 %v1624, %v1641
          %v1644 = vmul.f32 %v1625, %v1641
          %v1645 = vmul.f32 %v1626, %v1641
          %v1646 = vmul.f32 %v1627, %v1641
          %v1647 = vmul.f32 %v1628, %v1641
          %v1648 = vmul.f32 %v1629, %v1641
          %v1649 = vmul.f32 %v1630, %v1641
          %v1650 = vmul.f32 %v1631, %v1641
          %v1651 = vmul.f32 %v1632, %v1641
          %v1652 = vmul.f32 %v1633, %v1641
          %v1653 = vmul.f32 %v1634, %v1641
          %v1654 = vmul.f32 %v1635, %v1641
          %v1655 = vmul.f32 %v1636, %v1641
          %v1656 = vmul.f32 %v1637, %v1641
          %v1657 = vmul.f32 %v1638, %v1641
          %v1658 = vmul.f32 %v1639, %v1641
          %v1660 = vperm.slane %v1312, 0
          %v1662 = vadd.f32 %v1643, %v1660
          %v1663 = vadd.f32 %v1644, %v1660
          %v1664 = vadd.f32 %v1645, %v1660
          %v1665 = vadd.f32 %v1646, %v1660
          %v1666 = vadd.f32 %v1647, %v1660
          %v1667 = vadd.f32 %v1648, %v1660
          %v1668 = vadd.f32 %v1649, %v1660
          %v1669 = vadd.f32 %v1650, %v1660
          %v1670 = vadd.f32 %v1651, %v1660
          %v1671 = vadd.f32 %v1652, %v1660
          %v1672 = vadd.f32 %v1653, %v1660
          %v1673 = vadd.f32 %v1654, %v1660
          %v1674 = vadd.f32 %v1655, %v1660
          %v1675 = vadd.f32 %v1656, %v1660
          %v1676 = vadd.f32 %v1657, %v1660
          %v1677 = vadd.f32 %v1658, %v1660
          %1678 = vst [vmem:[#allocation2] sm:$0xff] %v1662
          %1679 = vst [vmem:[#allocation2 + $0x8] sm:$0xff] %v1663
          %1680 = vst [vmem:[#allocation2 + $0x10] sm:$0xff] %v1664
          %1681 = vst [vmem:[#allocation2 + $0x18] sm:$0xff] %v1665
          %1682 = vst [vmem:[#allocation2 + $0x20] sm:$0xff] %v1666
          %1683 = vst [vmem:[#allocation2 + $0x28] sm:$0xff] %v1667
          %1684 = vst [vmem:[#allocation2 + $0x30] sm:$0xff] %v1668
          %1685 = vst [vmem:[#allocation2 + $0x38] sm:$0xff] %v1669
          %1686 = vst [vmem:[#allocation2 + $0x40] sm:$0xff] %v1670
          %1687 = vst [vmem:[#allocation2 + $0x48] sm:$0xff] %v1671
          %1688 = vst [vmem:[#allocation2 + $0x50] sm:$0xff] %v1672
          %1689 = vst [vmem:[#allocation2 + $0x58] sm:$0xff] %v1673
          %1690 = vst [vmem:[#allocation2 + $0x60] sm:$0xff] %v1674
          %1691 = vst [vmem:[#allocation2 + $0x68] sm:$0xff] %v1675
          %1692 = vst [vmem:[#allocation2 + $0x70] sm:$0xff] %v1676
          %1693 = vst [vmem:[#allocation2 + $0x78] sm:$0xff] %v1677
        $region124: #{_lambda_.1} parent=99 // pred_fallthru
          _
        %v1694 = vld [vmem:[#allocation2] sm:$0xff]
        %v1695 = vld [vmem:[#allocation2 + $0x8] sm:$0xff]
        %v1696 = vld [vmem:[#allocation2 + $0x10] sm:$0xff]
        %v1697 = vld [vmem:[#allocation2 + $0x18] sm:$0xff]
        %v1698 = vld [vmem:[#allocation2 + $0x20] sm:$0xff]
        %v1699 = vld [vmem:[#allocation2 + $0x28] sm:$0xff]
        %v1700 = vld [vmem:[#allocation2 + $0x30] sm:$0xff]
        %v1701 = vld [vmem:[#allocation2 + $0x38] sm:$0xff]
        %v1702 = vld [vmem:[#allocation2 + $0x40] sm:$0xff]
        %v1703 = vld [vmem:[#allocation2 + $0x48] sm:$0xff]
        %v1704 = vld [vmem:[#allocation2 + $0x50] sm:$0xff]
        %v1705 = vld [vmem:[#allocation2 + $0x58] sm:$0xff]
        %v1706 = vld [vmem:[#allocation2 + $0x60] sm:$0xff]
        %v1707 = vld [vmem:[#allocation2 + $0x68] sm:$0xff]
        %v1708 = vld [vmem:[#allocation2 + $0x70] sm:$0xff]
        %v1709 = vld [vmem:[#allocation2 + $0x78] sm:$0xff]
        %v1710 = vpack.c.bf16 %v1695, %v1694
        %v1711 = vpack.c.bf16 %v1697, %v1696
        %v1712 = vpack.c.bf16 %v1699, %v1698
        %v1713 = vpack.c.bf16 %v1701, %v1700
        %v1714 = vpack.c.bf16 %v1703, %v1702
        %v1715 = vpack.c.bf16 %v1705, %v1704
        %v1716 = vpack.c.bf16 %v1707, %v1706
        %v1717 = vpack.c.bf16 %v1709, %v1708
        %v1718 = vld [vmem:[%s1] sm:$0xff]
        %v1719 = vld [vmem:[%s1 + $0x8] sm:$0xff]
        %v1720 = vld [vmem:[%s1 + $0x10] sm:$0xff]
        %v1721 = vld [vmem:[%s1 + $0x18] sm:$0xff]
        %v1722 = vld [vmem:[%s1 + $0x20] sm:$0xff]
        %v1723 = vld [vmem:[%s1 + $0x28] sm:$0xff]
        %v1724 = vld [vmem:[%s1 + $0x30] sm:$0xff]
        %v1725 = vld [vmem:[%s1 + $0x38] sm:$0xff]
        %v1726 = vld [vmem:[%s1 + $0x40] sm:$0xff]
        %v1727 = vld [vmem:[%s1 + $0x48] sm:$0xff]
        %v1728 = vld [vmem:[%s1 + $0x50] sm:$0xff]
        %v1729 = vld [vmem:[%s1 + $0x58] sm:$0xff]
        %v1730 = vld [vmem:[%s1 + $0x60] sm:$0xff]
        %v1731 = vld [vmem:[%s1 + $0x68] sm:$0xff]
        %v1732 = vld [vmem:[%s1 + $0x70] sm:$0xff]
        %v1733 = vld [vmem:[%s1 + $0x78] sm:$0xff]
        %v1734 = vld [vmem:[%s741] sm:$0xff]
        %v1735 = vld [vmem:[%s741 + $0x8] sm:$0xf]
        %v1736 = vld [vmem:[%s741 + $0xc] sm:$0xff]
        %v1737 = vld [vmem:[%s741 + $0x14] sm:$0xf]
        %v1738 = vld [vmem:[%s741 + $0x18] sm:$0xff]
        %v1739 = vld [vmem:[%s741 + $0x20] sm:$0xf]
        %v1740 = vld [vmem:[%s741 + $0x24] sm:$0xff]
        %v1741 = vld [vmem:[%s741 + $0x2c] sm:$0xf]
        %v1742 = vld [vmem:[%s741 + $0x30] sm:$0xff]
        %v1743 = vld [vmem:[%s741 + $0x38] sm:$0xf]
        %v1744 = vld [vmem:[%s741 + $0x3c] sm:$0xff]
        %v1745 = vld [vmem:[%s741 + $0x44] sm:$0xf]
        %v1746 = vld [vmem:[%s741 + $0x48] sm:$0xff]
        %v1747 = vld [vmem:[%s741 + $0x50] sm:$0xf]
        %v1748 = vld [vmem:[%s741 + $0x54] sm:$0xff]
        %v1749 = vld [vmem:[%s741 + $0x5c] sm:$0xf]
        %v1750 = vld [vmem:[%s741 + $0x60] sm:$0xff]
        %v1751 = vld [vmem:[%s741 + $0x68] sm:$0xf]
        %v1752 = vld [vmem:[%s741 + $0x6c] sm:$0xff]
        %v1753 = vld [vmem:[%s741 + $0x74] sm:$0xf]
        %v1754 = vld [vmem:[%s741 + $0x78] sm:$0xff]
        %v1755 = vld [vmem:[%s741 + $0x80] sm:$0xf]
        %v1756 = vld [vmem:[%s741 + $0x84] sm:$0xff]
        %v1757 = vld [vmem:[%s741 + $0x8c] sm:$0xf]
        %v1758 = vld [vmem:[%s741 + $0x90] sm:$0xff]
        %v1759 = vld [vmem:[%s741 + $0x98] sm:$0xf]
        %v1760 = vld [vmem:[%s741 + $0x9c] sm:$0xff]
        %v1761 = vld [vmem:[%s741 + $0xa4] sm:$0xf]
        %v1762 = vld [vmem:[%s741 + $0xa8] sm:$0xff]
        %v1763 = vld [vmem:[%s741 + $0xb0] sm:$0xf]
        %v1764 = vld [vmem:[%s741 + $0xb4] sm:$0xff]
        %v1765 = vld [vmem:[%s741 + $0xbc] sm:$0xf]
        %v1766 = vld [vmem:[%s858] sm:$0x7]
        %v1768 = vperm.slane %v1766, 0
        %v1769 = vperm.slane %v1766, 1
        %v1770 = vperm.slane %v1766, 2
        %v1806 = vunpack.c.l.b16 %v1734
        %v1807 = vunpack.c.h.b16 %v1734
        %v1808 = vunpack.c.l.b16 %v1735
        %v1809 = vunpack.c.l.b16 %v1736
        %v1810 = vunpack.c.h.b16 %v1736
        %v1811 = vunpack.c.l.b16 %v1737
        %v1812 = vunpack.c.l.b16 %v1738
        %v1813 = vunpack.c.h.b16 %v1738
        %v1814 = vunpack.c.l.b16 %v1739
        %v1815 = vunpack.c.l.b16 %v1740
        %v1816 = vunpack.c.h.b16 %v1740
        %v1817 = vunpack.c.l.b16 %v1741
        %v1818 = vunpack.c.l.b16 %v1742
        %v1819 = vunpack.c.h.b16 %v1742
        %v1820 = vunpack.c.l.b16 %v1743
        %v1821 = vunpack.c.l.b16 %v1744
        %v1822 = vunpack.c.h.b16 %v1744
        %v1823 = vunpack.c.l.b16 %v1745
        %v1824 = vunpack.c.l.b16 %v1746
        %v1825 = vunpack.c.h.b16 %v1746
        %v1826 = vunpack.c.l.b16 %v1747
        %v1827 = vunpack.c.l.b16 %v1748
        %v1828 = vunpack.c.h.b16 %v1748
        %v1829 = vunpack.c.l.b16 %v1749
        %v1830 = vunpack.c.l.b16 %v1750
        %v1831 = vunpack.c.h.b16 %v1750
        %v1832 = vunpack.c.l.b16 %v1751
        %v1833 = vunpack.c.l.b16 %v1752
        %v1834 = vunpack.c.h.b16 %v1752
        %v1835 = vunpack.c.l.b16 %v1753
        %v1836 = vunpack.c.l.b16 %v1754
        %v1837 = vunpack.c.h.b16 %v1754
        %v1838 = vunpack.c.l.b16 %v1755
        %v1839 = vunpack.c.l.b16 %v1756
        %v1840 = vunpack.c.h.b16 %v1756
        %v1841 = vunpack.c.l.b16 %v1757
        %v1842 = vunpack.c.l.b16 %v1758
        %v1843 = vunpack.c.h.b16 %v1758
        %v1844 = vunpack.c.l.b16 %v1759
        %v1845 = vunpack.c.l.b16 %v1760
        %v1846 = vunpack.c.h.b16 %v1760
        %v1847 = vunpack.c.l.b16 %v1761
        %v1848 = vunpack.c.l.b16 %v1762
        %v1849 = vunpack.c.h.b16 %v1762
        %v1850 = vunpack.c.l.b16 %v1763
        %v1851 = vunpack.c.l.b16 %v1764
        %v1852 = vunpack.c.h.b16 %v1764
        %v1853 = vunpack.c.l.b16 %v1765
        %v1854 = vpack.c.b16 %v1809, %v1806
        %v1855 = vpack.c.b16 %v1810, %v1807
        %v1856 = vpack.c.b16 %v1811, %v1808
        %v1857 = vpack.c.b16 %v1815, %v1812
        %v1858 = vpack.c.b16 %v1816, %v1813
        %v1859 = vpack.c.b16 %v1817, %v1814
        %v1860 = vpack.c.b16 %v1821, %v1818
        %v1861 = vpack.c.b16 %v1822, %v1819
        %v1862 = vpack.c.b16 %v1823, %v1820
        %v1863 = vpack.c.b16 %v1827, %v1824
        %v1864 = vpack.c.b16 %v1828, %v1825
        %v1865 = vpack.c.b16 %v1829, %v1826
        %v1866 = vpack.c.b16 %v1833, %v1830
        %v1867 = vpack.c.b16 %v1834, %v1831
        %v1868 = vpack.c.b16 %v1835, %v1832
        %v1869 = vpack.c.b16 %v1839, %v1836
        %v1870 = vpack.c.b16 %v1840, %v1837
        %v1871 = vpack.c.b16 %v1841, %v1838
        %v1872 = vpack.c.b16 %v1845, %v1842
        %v1873 = vpack.c.b16 %v1846, %v1843
        %v1874 = vpack.c.b16 %v1847, %v1844
        %v1875 = vpack.c.b16 %v1851, %v1848
        %v1876 = vpack.c.b16 %v1852, %v1849
        %v1877 = vpack.c.b16 %v1853, %v1850
        %1902 = vmatpush.bf16.msra.mxu0 %v1875
        %1903 = vmatpush.bf16.msra.mxu0 %v1872
        %1904 = vmatpush.bf16.msra.mxu0 %v1869
        %1905 = vmatpush.bf16.msra.mxu0 %v1866
        %1906 = vmatpush.bf16.msra.mxu0 %v1863
        %1907 = vmatpush.bf16.msra.mxu0 %v1860
        %1908 = vmatpush.bf16.msra.mxu0 %v1857
        %1909 = vmatpush.bf16.msra.mxu0 %v1854
        %1910 = vmatmul.bf16.gmra.mxu0 %v1710
        %v1911 = vpop.f32.mrf.mxu0
        %v1912 = vadd.f32 %v1768, %v1911
        %v1913 = vpop.f32.mrf.mxu0
        %v1914 = vadd.f32 %v1768, %v1913
        %1915 = vmatmul.bf16.gmra.mxu0 %v1711
        %v1916 = vpop.f32.mrf.mxu0
        %v1917 = vadd.f32 %v1768, %v1916
        %v1918 = vpop.f32.mrf.mxu0
        %v1919 = vadd.f32 %v1768, %v1918
        %1920 = vmatmul.bf16.gmra.mxu0 %v1712
        %v1921 = vpop.f32.mrf.mxu0
        %v1922 = vadd.f32 %v1768, %v1921
        %v1923 = vpop.f32.mrf.mxu0
        %v1924 = vadd.f32 %v1768, %v1923
        %1925 = vmatmul.bf16.gmra.mxu0 %v1713
        %v1926 = vpop.f32.mrf.mxu0
        %v1927 = vadd.f32 %v1768, %v1926
        %v1928 = vpop.f32.mrf.mxu0
        %v1929 = vadd.f32 %v1768, %v1928
        %1930 = vmatmul.bf16.gmra.mxu0 %v1714
        %v1931 = vpop.f32.mrf.mxu0
        %v1932 = vadd.f32 %v1768, %v1931
        %v1933 = vpop.f32.mrf.mxu0
        %v1934 = vadd.f32 %v1768, %v1933
        %1935 = vmatmul.bf16.gmra.mxu0 %v1715
        %v1936 = vpop.f32.mrf.mxu0
        %v1937 = vadd.f32 %v1768, %v1936
        %v1938 = vpop.f32.mrf.mxu0
        %v1939 = vadd.f32 %v1768, %v1938
        %1940 = vmatmul.bf16.gmra.mxu0 %v1716
        %v1941 = vpop.f32.mrf.mxu0
        %v1942 = vadd.f32 %v1768, %v1941
        %v1943 = vpop.f32.mrf.mxu0
        %v1944 = vadd.f32 %v1768, %v1943
        %1945 = vmatmul.bf16.gmra.mxu0 %v1717
        %v1946 = vpop.f32.mrf.mxu0
        %v1947 = vadd.f32 %v1768, %v1946
        %v1948 = vpop.f32.mrf.mxu0
        %v1949 = vadd.f32 %v1768, %v1948
        %1950 = vdwg.mxu0
        %1951 = vmatpush.bf16.msra.mxu0 %v1876
        %1952 = vmatpush.bf16.msra.mxu0 %v1873
        %1953 = vmatpush.bf16.msra.mxu0 %v1870
        %1954 = vmatpush.bf16.msra.mxu0 %v1867
        %1955 = vmatpush.bf16.msra.mxu0 %v1864
        %1956 = vmatpush.bf16.msra.mxu0 %v1861
        %1957 = vmatpush.bf16.msra.mxu0 %v1858
        %1958 = vmatpush.bf16.msra.mxu0 %v1855
        %1959 = vmatmul.bf16.gmra.mxu0 %v1710
        %v1960 = vpop.f32.mrf.mxu0
        %v1961 = vadd.f32 %v1769, %v1960
        %v1962 = vpop.f32.mrf.mxu0
        %v1963 = vadd.f32 %v1769, %v1962
        %1964 = vmatmul.bf16.gmra.mxu0 %v1711
        %v1965 = vpop.f32.mrf.mxu0
        %v1966 = vadd.f32 %v1769, %v1965
        %v1967 = vpop.f32.mrf.mxu0
        %v1968 = vadd.f32 %v1769, %v1967
        %1969 = vmatmul.bf16.gmra.mxu0 %v1712
        %v1970 = vpop.f32.mrf.mxu0
        %v1971 = vadd.f32 %v1769, %v1970
        %v1972 = vpop.f32.mrf.mxu0
        %v1973 = vadd.f32 %v1769, %v1972
        %1974 = vmatmul.bf16.gmra.mxu0 %v1713
        %v1975 = vpop.f32.mrf.mxu0
        %v1976 = vadd.f32 %v1769, %v1975
        %v1977 = vpop.f32.mrf.mxu0
        %v1978 = vadd.f32 %v1769, %v1977
        %1979 = vmatmul.bf16.gmra.mxu0 %v1714
        %v1980 = vpop.f32.mrf.mxu0
        %v1981 = vadd.f32 %v1769, %v1980
        %v1982 = vpop.f32.mrf.mxu0
        %v1983 = vadd.f32 %v1769, %v1982
        %1984 = vmatmul.bf16.gmra.mxu0 %v1715
        %v1985 = vpop.f32.mrf.mxu0
        %v1986 = vadd.f32 %v1769, %v1985
        %v1987 = vpop.f32.mrf.mxu0
        %v1988 = vadd.f32 %v1769, %v1987
        %1989 = vmatmul.bf16.gmra.mxu0 %v1716
        %v1990 = vpop.f32.mrf.mxu0
        %v1991 = vadd.f32 %v1769, %v1990
        %v1992 = vpop.f32.mrf.mxu0
        %v1993 = vadd.f32 %v1769, %v1992
        %1994 = vmatmul.bf16.gmra.mxu0 %v1717
        %v1995 = vpop.f32.mrf.mxu0
        %v1996 = vadd.f32 %v1769, %v1995
        %v1997 = vpop.f32.mrf.mxu0
        %v1998 = vadd.f32 %v1769, %v1997
        %1999 = vdwg.mxu0
        %2000 = vmatpush.bf16.msra.mxu0 %v1877
        %2001 = vmatpush.bf16.msra.mxu0 %v1874
        %2002 = vmatpush.bf16.msra.mxu0 %v1871
        %2003 = vmatpush.bf16.msra.mxu0 %v1868
        %2004 = vmatpush.bf16.msra.mxu0 %v1865
        %2005 = vmatpush.bf16.msra.mxu0 %v1862
        %2006 = vmatpush.bf16.msra.mxu0 %v1859
        %2007 = vmatpush.bf16.msra.mxu0 %v1856
        %2008 = vmatmul.bf16.gmra.mxu0 %v1710
        %v2009 = vpop.f32.mrf.mxu0
        %v2010 = vadd.f32 %v1770, %v2009
        %v2011 = vpop.f32.mrf.mxu0
        %v2012 = vadd.f32 %v1770, %v2011
        %2013 = vmatmul.bf16.gmra.mxu0 %v1711
        %v2014 = vpop.f32.mrf.mxu0
        %v2015 = vadd.f32 %v1770, %v2014
        %v2016 = vpop.f32.mrf.mxu0
        %v2017 = vadd.f32 %v1770, %v2016
        %2018 = vmatmul.bf16.gmra.mxu0 %v1712
        %v2019 = vpop.f32.mrf.mxu0
        %v2020 = vadd.f32 %v1770, %v2019
        %v2021 = vpop.f32.mrf.mxu0
        %v2022 = vadd.f32 %v1770, %v2021
        %2023 = vmatmul.bf16.gmra.mxu0 %v1713
        %v2024 = vpop.f32.mrf.mxu0
        %v2025 = vadd.f32 %v1770, %v2024
        %v2026 = vpop.f32.mrf.mxu0
        %v2027 = vadd.f32 %v1770, %v2026
        %2028 = vmatmul.bf16.gmra.mxu0 %v1714
        %v2029 = vpop.f32.mrf.mxu0
        %v2030 = vadd.f32 %v1770, %v2029
        %v2031 = vpop.f32.mrf.mxu0
        %v2032 = vadd.f32 %v1770, %v2031
        %2033 = vmatmul.bf16.gmra.mxu0 %v1715
        %v2034 = vpop.f32.mrf.mxu0
        %v2035 = vadd.f32 %v1770, %v2034
        %v2036 = vpop.f32.mrf.mxu0
        %v2037 = vadd.f32 %v1770, %v2036
        %2038 = vmatmul.bf16.gmra.mxu0 %v1716
        %v2039 = vpop.f32.mrf.mxu0
        %v2040 = vadd.f32 %v1770, %v2039
        %v2041 = vpop.f32.mrf.mxu0
        %v2042 = vadd.f32 %v1770, %v2041
        %2043 = vmatmul.bf16.gmra.mxu0 %v1717
        %v2044 = vpop.f32.mrf.mxu0
        %v2045 = vadd.f32 %v1770, %v2044
        %v2046 = vpop.f32.mrf.mxu0
        %v2047 = vadd.f32 %v1770, %v2046
        %2048 = vdwg.mxu0
        %v2049 = vpack.c.bf16 %v1914, %v1912
        %v2050 = vpack.c.bf16 %v1919, %v1917
        %v2051 = vpack.c.bf16 %v1924, %v1922
        %v2052 = vpack.c.bf16 %v1929, %v1927
        %v2053 = vpack.c.bf16 %v1934, %v1932
        %v2054 = vpack.c.bf16 %v1939, %v1937
        %v2055 = vpack.c.bf16 %v1944, %v1942
        %v2056 = vpack.c.bf16 %v1949, %v1947
        %v2057 = vpack.c.bf16 %v1963, %v1961
        %v2058 = vpack.c.bf16 %v1968, %v1966
        %v2059 = vpack.c.bf16 %v1973, %v1971
        %v2060 = vpack.c.bf16 %v1978, %v1976
        %v2061 = vpack.c.bf16 %v1983, %v1981
        %v2062 = vpack.c.bf16 %v1988, %v1986
        %v2063 = vpack.c.bf16 %v1993, %v1991
        %v2064 = vpack.c.bf16 %v1998, %v1996
        %v2065 = vpack.c.bf16 %v2012, %v2010
        %v2066 = vpack.c.bf16 %v2017, %v2015
        %v2067 = vpack.c.bf16 %v2022, %v2020
        %v2068 = vpack.c.bf16 %v2027, %v2025
        %v2069 = vpack.c.bf16 %v2032, %v2030
        %v2070 = vpack.c.bf16 %v2037, %v2035
        %v2071 = vpack.c.bf16 %v2042, %v2040
        %v2072 = vpack.c.bf16 %v2047, %v2045
        %vm2073 = vcmask 261120
        %v2075 = vsel %vm2073, %v2049, 0
        %v2078 = vsel %vm2073, %v2050, 0
        %v2081 = vsel %vm2073, %v2051, 0
        %v2084 = vsel %vm2073, %v2052, 0
        %v2087 = vsel %vm2073, %v2053, 0
        %v2090 = vsel %vm2073, %v2054, 0
        %v2093 = vsel %vm2073, %v2055, 0
        %v2096 = vsel %vm2073, %v2056, 0
        %v2099 = vsel %vm2073, %v2057, 0
        %v2102 = vsel %vm2073, %v2058, 0
        %v2105 = vsel %vm2073, %v2059, 0
        %v2108 = vsel %vm2073, %v2060, 0
        %v2111 = vsel %vm2073, %v2061, 0
        %v2114 = vsel %vm2073, %v2062, 0
        %v2117 = vsel %vm2073, %v2063, 0
        %v2120 = vsel %vm2073, %v2064, 0
        %2122 = vmatpush.bf16.xpose.msra.mxu0 %v2120
        %2123 = vmatpush.bf16.xpose.msra.mxu0 %v2117
        %2124 = vmatpush.bf16.xpose.msra.mxu0 %v2114
        %2125 = vmatpush.bf16.xpose.msra.mxu0 %v2111
        %2126 = vmatpush.bf16.xpose.msra.mxu0 %v2108
        %2127 = vmatpush.bf16.xpose.msra.mxu0 %v2105
        %2128 = vmatpush.bf16.xpose.msra.mxu0 %v2102
        %2129 = vmatpush.bf16.xpose.msra.mxu0 %v2099
        %2130 = vmatmul.bf16.gmra.mxu0 %v2075
        %v2131 = vpop.f32.mrf.mxu0
        %v2132 = vadd.f32 %v1718, %v2131
        %v2133 = vpop.f32.mrf.mxu0
        %v2134 = vadd.f32 %v1719, %v2133
        %2135 = vmatmul.bf16.gmra.mxu0 %v2078
        %v2136 = vpop.f32.mrf.mxu0
        %v2137 = vadd.f32 %v1720, %v2136
        %v2138 = vpop.f32.mrf.mxu0
        %v2139 = vadd.f32 %v1721, %v2138
        %2140 = vmatmul.bf16.gmra.mxu0 %v2081
        %v2141 = vpop.f32.mrf.mxu0
        %v2142 = vadd.f32 %v1722, %v2141
        %v2143 = vpop.f32.mrf.mxu0
        %v2144 = vadd.f32 %v1723, %v2143
        %2145 = vmatmul.bf16.gmra.mxu0 %v2084
        %v2146 = vpop.f32.mrf.mxu0
        %v2147 = vadd.f32 %v1724, %v2146
        %v2148 = vpop.f32.mrf.mxu0
        %v2149 = vadd.f32 %v1725, %v2148
        %2150 = vmatmul.bf16.gmra.mxu0 %v2087
        %v2151 = vpop.f32.mrf.mxu0
        %v2152 = vadd.f32 %v1726, %v2151
        %v2153 = vpop.f32.mrf.mxu0
        %v2154 = vadd.f32 %v1727, %v2153
        %2155 = vmatmul.bf16.gmra.mxu0 %v2090
        %v2156 = vpop.f32.mrf.mxu0
        %v2157 = vadd.f32 %v1728, %v2156
        %v2158 = vpop.f32.mrf.mxu0
        %v2159 = vadd.f32 %v1729, %v2158
        %2160 = vmatmul.bf16.gmra.mxu0 %v2093
        %v2161 = vpop.f32.mrf.mxu0
        %v2162 = vadd.f32 %v1730, %v2161
        %v2163 = vpop.f32.mrf.mxu0
        %v2164 = vadd.f32 %v1731, %v2163
        %2165 = vmatmul.bf16.gmra.mxu0 %v2096
        %v2166 = vpop.f32.mrf.mxu0
        %v2167 = vadd.f32 %v1732, %v2166
        %v2168 = vpop.f32.mrf.mxu0
        %v2169 = vadd.f32 %v1733, %v2168
        %2170 = vdwg.mxu0
        %2171 = vmax.xlane.f32.xlu0 %v2132
        %v2172 = vpop.xlane.xlu0 %2171
        %2173 = vmax.xlane.f32.xlu0 %v2134
        %v2174 = vpop.xlane.xlu0 %2173
        %2175 = vmax.xlane.f32.xlu0 %v2137
        %v2176 = vpop.xlane.xlu0 %2175
        %2177 = vmax.xlane.f32.xlu0 %v2139
        %v2178 = vpop.xlane.xlu0 %2177
        %2179 = vmax.xlane.f32.xlu0 %v2142
        %v2180 = vpop.xlane.xlu0 %2179
        %2181 = vmax.xlane.f32.xlu0 %v2144
        %v2182 = vpop.xlane.xlu0 %2181
        %2183 = vmax.xlane.f32.xlu0 %v2147
        %v2184 = vpop.xlane.xlu0 %2183
        %2185 = vmax.xlane.f32.xlu0 %v2149
        %v2186 = vpop.xlane.xlu0 %2185
        %2187 = vmax.xlane.f32.xlu0 %v2152
        %v2188 = vpop.xlane.xlu0 %2187
        %2189 = vmax.xlane.f32.xlu0 %v2154
        %v2190 = vpop.xlane.xlu0 %2189
        %2191 = vmax.xlane.f32.xlu0 %v2157
        %v2192 = vpop.xlane.xlu0 %2191
        %2193 = vmax.xlane.f32.xlu0 %v2159
        %v2194 = vpop.xlane.xlu0 %2193
        %2195 = vmax.xlane.f32.xlu0 %v2162
        %v2196 = vpop.xlane.xlu0 %2195
        %2197 = vmax.xlane.f32.xlu0 %v2164
        %v2198 = vpop.xlane.xlu0 %2197
        %2199 = vmax.xlane.f32.xlu0 %v2167
        %v2200 = vpop.xlane.xlu0 %2199
        %2201 = vmax.xlane.f32.xlu0 %v2169
        %v2202 = vpop.xlane.xlu0 %2201
        %v2203 = vsub.f32 %v2132, %v2172
        %v2204 = vsub.f32 %v2134, %v2174
        %v2205 = vsub.f32 %v2137, %v2176
        %v2206 = vsub.f32 %v2139, %v2178
        %v2207 = vsub.f32 %v2142, %v2180
        %v2208 = vsub.f32 %v2144, %v2182
        %v2209 = vsub.f32 %v2147, %v2184
        %v2210 = vsub.f32 %v2149, %v2186
        %v2211 = vsub.f32 %v2152, %v2188
        %v2212 = vsub.f32 %v2154, %v2190
        %v2213 = vsub.f32 %v2157, %v2192
        %v2214 = vsub.f32 %v2159, %v2194
        %v2215 = vsub.f32 %v2162, %v2196
        %v2216 = vsub.f32 %v2164, %v2198
        %v2217 = vsub.f32 %v2167, %v2200
        %v2218 = vsub.f32 %v2169, %v2202
        %v2219 = vmul.f32 %v2203, 1.442695
        %v2220 = vpow.pop %v2219
        %v2221 = vmul.f32 %v2204, 1.442695
        %v2222 = vpow.pop %v2221
        %v2223 = vmul.f32 %v2205, 1.442695
        %v2224 = vpow.pop %v2223
        %v2225 = vmul.f32 %v2206, 1.442695
        %v2226 = vpow.pop %v2225
        %v2227 = vmul.f32 %v2207, 1.442695
        %v2228 = vpow.pop %v2227
        %v2229 = vmul.f32 %v2208, 1.442695
        %v2230 = vpow.pop %v2229
        %v2231 = vmul.f32 %v2209, 1.442695
        %v2232 = vpow.pop %v2231
        %v2233 = vmul.f32 %v2210, 1.442695
        %v2234 = vpow.pop %v2233
        %v2235 = vmul.f32 %v2211, 1.442695
        %v2236 = vpow.pop %v2235
        %v2237 = vmul.f32 %v2212, 1.442695
        %v2238 = vpow.pop %v2237
        %v2239 = vmul.f32 %v2213, 1.442695
        %v2240 = vpow.pop %v2239
        %v2241 = vmul.f32 %v2214, 1.442695
        %v2242 = vpow.pop %v2241
        %v2243 = vmul.f32 %v2215, 1.442695
        %v2244 = vpow.pop %v2243
        %v2245 = vmul.f32 %v2216, 1.442695
        %v2246 = vpow.pop %v2245
        %v2247 = vmul.f32 %v2217, 1.442695
        %v2248 = vpow.pop %v2247
        %v2249 = vmul.f32 %v2218, 1.442695
        %v2250 = vpow.pop %v2249
        %2251 = vadd.xlane.f32.xlu0 %v2220
        %v2252 = vpop.xlane.xlu0 %2251
        %2253 = vadd.xlane.f32.xlu0 %v2222
        %v2254 = vpop.xlane.xlu0 %2253
        %2255 = vadd.xlane.f32.xlu0 %v2224
        %v2256 = vpop.xlane.xlu0 %2255
        %2257 = vadd.xlane.f32.xlu0 %v2226
        %v2258 = vpop.xlane.xlu0 %2257
        %2259 = vadd.xlane.f32.xlu0 %v2228
        %v2260 = vpop.xlane.xlu0 %2259
        %2261 = vadd.xlane.f32.xlu0 %v2230
        %v2262 = vpop.xlane.xlu0 %2261
        %2263 = vadd.xlane.f32.xlu0 %v2232
        %v2264 = vpop.xlane.xlu0 %2263
        %2265 = vadd.xlane.f32.xlu0 %v2234
        %v2266 = vpop.xlane.xlu0 %2265
        %2267 = vadd.xlane.f32.xlu0 %v2236
        %v2268 = vpop.xlane.xlu0 %2267
        %2269 = vadd.xlane.f32.xlu0 %v2238
        %v2270 = vpop.xlane.xlu0 %2269
        %2271 = vadd.xlane.f32.xlu0 %v2240
        %v2272 = vpop.xlane.xlu0 %2271
        %2273 = vadd.xlane.f32.xlu0 %v2242
        %v2274 = vpop.xlane.xlu0 %2273
        %2275 = vadd.xlane.f32.xlu0 %v2244
        %v2276 = vpop.xlane.xlu0 %2275
        %2277 = vadd.xlane.f32.xlu0 %v2246
        %v2278 = vpop.xlane.xlu0 %2277
        %2279 = vadd.xlane.f32.xlu0 %v2248
        %v2280 = vpop.xlane.xlu0 %2279
        %2281 = vadd.xlane.f32.xlu0 %v2250
        %v2282 = vpop.xlane.xlu0 %2281
        %v2283 = vrcp.pop %v2252
        %v2284 = vrcp.pop %v2254
        %v2285 = vrcp.pop %v2256
        %v2286 = vrcp.pop %v2258
        %v2287 = vrcp.pop %v2260
        %v2288 = vrcp.pop %v2262
        %v2289 = vrcp.pop %v2264
        %v2290 = vrcp.pop %v2266
        %v2291 = vrcp.pop %v2268
        %v2292 = vrcp.pop %v2270
        %v2293 = vrcp.pop %v2272
        %v2294 = vrcp.pop %v2274
        %v2295 = vrcp.pop %v2276
        %v2296 = vrcp.pop %v2278
        %v2297 = vrcp.pop %v2280
        %v2298 = vrcp.pop %v2282
        %v2299 = vmul.f32 %v2220, %v2283
        %v2300 = vmul.f32 %v2222, %v2284
        %v2301 = vmul.f32 %v2224, %v2285
        %v2302 = vmul.f32 %v2226, %v2286
        %v2303 = vmul.f32 %v2228, %v2287
        %v2304 = vmul.f32 %v2230, %v2288
        %v2305 = vmul.f32 %v2232, %v2289
        %v2306 = vmul.f32 %v2234, %v2290
        %v2307 = vmul.f32 %v2236, %v2291
        %v2308 = vmul.f32 %v2238, %v2292
        %v2309 = vmul.f32 %v2240, %v2293
        %v2310 = vmul.f32 %v2242, %v2294
        %v2311 = vmul.f32 %v2244, %v2295
        %v2312 = vmul.f32 %v2246, %v2296
        %v2313 = vmul.f32 %v2248, %v2297
        %v2314 = vmul.f32 %v2250, %v2298
        %v2315 = vpack.c.bf16 %v2300, %v2299
        %v2316 = vpack.c.bf16 %v2302, %v2301
        %v2317 = vpack.c.bf16 %v2304, %v2303
        %v2318 = vpack.c.bf16 %v2306, %v2305
        %v2319 = vpack.c.bf16 %v2308, %v2307
        %v2320 = vpack.c.bf16 %v2310, %v2309
        %v2321 = vpack.c.bf16 %v2312, %v2311
        %v2322 = vpack.c.bf16 %v2314, %v2313
        %2323 = vmatpush.bf16.msra.mxu0 %v2072
        %2324 = vmatpush.bf16.msra.mxu0 %v2071
        %2325 = vmatpush.bf16.msra.mxu0 %v2070
        %2326 = vmatpush.bf16.msra.mxu0 %v2069
        %2327 = vmatpush.bf16.msra.mxu0 %v2068
        %2328 = vmatpush.bf16.msra.mxu0 %v2067
        %2329 = vmatpush.bf16.msra.mxu0 %v2066
        %2330 = vmatpush.bf16.msra.mxu0 %v2065
        %2331 = vmatmul.bf16.gmra.mxu0 %v2315
        %v2332 = vpop.f32.mrf.mxu0
        %v2333 = vadd.f32 0.0, %v2332
        %v2334 = vpop.f32.mrf.mxu0
        %v2335 = vadd.f32 0.0, %v2334
        %2336 = vmatmul.bf16.gmra.mxu0 %v2316
        %v2337 = vpop.f32.mrf.mxu0
        %v2338 = vadd.f32 0.0, %v2337
        %v2339 = vpop.f32.mrf.mxu0
        %v2340 = vadd.f32 0.0, %v2339
        %2341 = vmatmul.bf16.gmra.mxu0 %v2317
        %v2342 = vpop.f32.mrf.mxu0
        %v2343 = vadd.f32 0.0, %v2342
        %v2344 = vpop.f32.mrf.mxu0
        %v2345 = vadd.f32 0.0, %v2344
        %2346 = vmatmul.bf16.gmra.mxu0 %v2318
        %v2347 = vpop.f32.mrf.mxu0
        %v2348 = vadd.f32 0.0, %v2347
        %v2349 = vpop.f32.mrf.mxu0
        %v2350 = vadd.f32 0.0, %v2349
        %2351 = vmatmul.bf16.gmra.mxu0 %v2319
        %v2352 = vpop.f32.mrf.mxu0
        %v2353 = vadd.f32 0.0, %v2352
        %v2354 = vpop.f32.mrf.mxu0
        %v2355 = vadd.f32 0.0, %v2354
        %2356 = vmatmul.bf16.gmra.mxu0 %v2320
        %v2357 = vpop.f32.mrf.mxu0
        %v2358 = vadd.f32 0.0, %v2357
        %v2359 = vpop.f32.mrf.mxu0
        %v2360 = vadd.f32 0.0, %v2359
        %2361 = vmatmul.bf16.gmra.mxu0 %v2321
        %v2362 = vpop.f32.mrf.mxu0
        %v2363 = vadd.f32 0.0, %v2362
        %v2364 = vpop.f32.mrf.mxu0
        %v2365 = vadd.f32 0.0, %v2364
        %2366 = vmatmul.bf16.gmra.mxu0 %v2322
        %v2367 = vpop.f32.mrf.mxu0
        %v2368 = vadd.f32 0.0, %v2367
        %v2369 = vpop.f32.mrf.mxu0
        %v2370 = vadd.f32 0.0, %v2369
        %2371 = vdwg.mxu0
        %v2372 = vpack.c.bf16 %v2333, %v2333
        %v2373 = vpack.c.bf16 %v2335, %v2335
        %v2374 = vpack.c.bf16 %v2338, %v2338
        %v2375 = vpack.c.bf16 %v2340, %v2340
        %v2376 = vpack.c.bf16 %v2343, %v2343
        %v2377 = vpack.c.bf16 %v2345, %v2345
        %v2378 = vpack.c.bf16 %v2348, %v2348
        %v2379 = vpack.c.bf16 %v2350, %v2350
        %v2380 = vpack.c.bf16 %v2353, %v2353
        %v2381 = vpack.c.bf16 %v2355, %v2355
        %v2382 = vpack.c.bf16 %v2358, %v2358
        %v2383 = vpack.c.bf16 %v2360, %v2360
        %v2384 = vpack.c.bf16 %v2363, %v2363
        %v2385 = vpack.c.bf16 %v2365, %v2365
        %v2386 = vpack.c.bf16 %v2368, %v2368
        %v2387 = vpack.c.bf16 %v2370, %v2370
        %vm2388 = vcmask 257024
        %2389 = vst.msk [vmem:[#allocation3] sm:$0xf] %vm2388, %v2372
        %2390 = vst.msk [vmem:[#allocation3 + $0x4] sm:$0xf] %vm2388, %v2373
        %2391 = vst.msk [vmem:[#allocation3 + $0x8] sm:$0xf] %vm2388, %v2374
        %2392 = vst.msk [vmem:[#allocation3 + $0xc] sm:$0xf] %vm2388, %v2375
        %2393 = vst.msk [vmem:[#allocation3 + $0x10] sm:$0xf] %vm2388, %v2376
        %2394 = vst.msk [vmem:[#allocation3 + $0x14] sm:$0xf] %vm2388, %v2377
        %2395 = vst.msk [vmem:[#allocation3 + $0x18] sm:$0xf] %vm2388, %v2378
        %2396 = vst.msk [vmem:[#allocation3 + $0x1c] sm:$0xf] %vm2388, %v2379
        %2397 = vst.msk [vmem:[#allocation3 + $0x20] sm:$0xf] %vm2388, %v2380
        %2398 = vst.msk [vmem:[#allocation3 + $0x24] sm:$0xf] %vm2388, %v2381
        %2399 = vst.msk [vmem:[#allocation3 + $0x28] sm:$0xf] %vm2388, %v2382
        %2400 = vst.msk [vmem:[#allocation3 + $0x2c] sm:$0xf] %vm2388, %v2383
        %2401 = vst.msk [vmem:[#allocation3 + $0x30] sm:$0xf] %vm2388, %v2384
        %2402 = vst.msk [vmem:[#allocation3 + $0x34] sm:$0xf] %vm2388, %v2385
        %2403 = vst.msk [vmem:[#allocation3 + $0x38] sm:$0xf] %vm2388, %v2386
        %2404 = vst.msk [vmem:[#allocation3 + $0x3c] sm:$0xf] %vm2388, %v2387
        %2413 = vrot.lane.b32.xlu0 %v2049, 96
        %v2414 = vpop.permute.xlu0 %2413
        %2415 = vrot.lane.b32.xlu0 %v2050, 96
        %v2416 = vpop.permute.xlu0 %2415
        %2417 = vrot.lane.b32.xlu0 %v2051, 96
        %v2418 = vpop.permute.xlu0 %2417
        %2419 = vrot.lane.b32.xlu0 %v2052, 96
        %v2420 = vpop.permute.xlu0 %2419
        %2421 = vrot.lane.b32.xlu0 %v2053, 96
        %v2422 = vpop.permute.xlu0 %2421
        %2423 = vrot.lane.b32.xlu0 %v2054, 96
        %v2424 = vpop.permute.xlu0 %2423
        %2425 = vrot.lane.b32.xlu0 %v2055, 96
        %v2426 = vpop.permute.xlu0 %2425
        %2427 = vrot.lane.b32.xlu0 %v2056, 96
        %v2428 = vpop.permute.xlu0 %2427
        %2437 = vrot.lane.b32.xlu0 %v2057, 96
        %v2438 = vpop.permute.xlu0 %2437
        %2439 = vrot.lane.b32.xlu0 %v2058, 96
        %v2440 = vpop.permute.xlu0 %2439
        %2441 = vrot.lane.b32.xlu0 %v2059, 96
        %v2442 = vpop.permute.xlu0 %2441
        %2443 = vrot.lane.b32.xlu0 %v2060, 96
        %v2444 = vpop.permute.xlu0 %2443
        %2445 = vrot.lane.b32.xlu0 %v2061, 96
        %v2446 = vpop.permute.xlu0 %2445
        %2447 = vrot.lane.b32.xlu0 %v2062, 96
        %v2448 = vpop.permute.xlu0 %2447
        %2449 = vrot.lane.b32.xlu0 %v2063, 96
        %v2450 = vpop.permute.xlu0 %2449
        %2451 = vrot.lane.b32.xlu0 %v2064, 96
        %v2452 = vpop.permute.xlu0 %2451
        %v2454 = vsel %vm2073, %v2414, 0
        %v2457 = vsel %vm2073, %v2416, 0
        %v2460 = vsel %vm2073, %v2418, 0
        %v2463 = vsel %vm2073, %v2420, 0
        %v2466 = vsel %vm2073, %v2422, 0
        %v2469 = vsel %vm2073, %v2424, 0
        %v2472 = vsel %vm2073, %v2426, 0
        %v2475 = vsel %vm2073, %v2428, 0
        %v2478 = vsel %vm2073, %v2438, 0
        %v2481 = vsel %vm2073, %v2440, 0
        %v2484 = vsel %vm2073, %v2442, 0
        %v2487 = vsel %vm2073, %v2444, 0
        %v2490 = vsel %vm2073, %v2446, 0
        %v2493 = vsel %vm2073, %v2448, 0
        %v2496 = vsel %vm2073, %v2450, 0
        %v2499 = vsel %vm2073, %v2452, 0
        %2501 = vmatpush.bf16.xpose.msra.mxu0 %v2499
        %2502 = vmatpush.bf16.xpose.msra.mxu0 %v2496
        %2503 = vmatpush.bf16.xpose.msra.mxu0 %v2493
        %2504 = vmatpush.bf16.xpose.msra.mxu0 %v2490
        %2505 = vmatpush.bf16.xpose.msra.mxu0 %v2487
        %2506 = vmatpush.bf16.xpose.msra.mxu0 %v2484
        %2507 = vmatpush.bf16.xpose.msra.mxu0 %v2481
        %2508 = vmatpush.bf16.xpose.msra.mxu0 %v2478
        %2509 = vmatmul.bf16.gmra.mxu0 %v2454
        %v2510 = vpop.f32.mrf.mxu0
        %v2511 = vadd.f32 %v1718, %v2510
        %v2512 = vpop.f32.mrf.mxu0
        %v2513 = vadd.f32 %v1719, %v2512
        %2514 = vmatmul.bf16.gmra.mxu0 %v2457
        %v2515 = vpop.f32.mrf.mxu0
        %v2516 = vadd.f32 %v1720, %v2515
        %v2517 = vpop.f32.mrf.mxu0
        %v2518 = vadd.f32 %v1721, %v2517
        %2519 = vmatmul.bf16.gmra.mxu0 %v2460
        %v2520 = vpop.f32.mrf.mxu0
        %v2521 = vadd.f32 %v1722, %v2520
        %v2522 = vpop.f32.mrf.mxu0
        %v2523 = vadd.f32 %v1723, %v2522
        %2524 = vmatmul.bf16.gmra.mxu0 %v2463
        %v2525 = vpop.f32.mrf.mxu0
        %v2526 = vadd.f32 %v1724, %v2525
        %v2527 = vpop.f32.mrf.mxu0
        %v2528 = vadd.f32 %v1725, %v2527
        %2529 = vmatmul.bf16.gmra.mxu0 %v2466
        %v2530 = vpop.f32.mrf.mxu0
        %v2531 = vadd.f32 %v1726, %v2530
        %v2532 = vpop.f32.mrf.mxu0
        %v2533 = vadd.f32 %v1727, %v2532
        %2534 = vmatmul.bf16.gmra.mxu0 %v2469
        %v2535 = vpop.f32.mrf.mxu0
        %v2536 = vadd.f32 %v1728, %v2535
        %v2537 = vpop.f32.mrf.mxu0
        %v2538 = vadd.f32 %v1729, %v2537
        %2539 = vmatmul.bf16.gmra.mxu0 %v2472
        %v2540 = vpop.f32.mrf.mxu0
        %v2541 = vadd.f32 %v1730, %v2540
        %v2542 = vpop.f32.mrf.mxu0
        %v2543 = vadd.f32 %v1731, %v2542
        %2544 = vmatmul.bf16.gmra.mxu0 %v2475
        %v2545 = vpop.f32.mrf.mxu0
        %v2546 = vadd.f32 %v1732, %v2545
        %v2547 = vpop.f32.mrf.mxu0
        %v2548 = vadd.f32 %v1733, %v2547
        %2549 = vdwg.mxu0
        %2550 = vmax.xlane.f32.xlu0 %v2511
        %v2551 = vpop.xlane.xlu0 %2550
        %2552 = vmax.xlane.f32.xlu0 %v2513
        %v2553 = vpop.xlane.xlu0 %2552
        %2554 = vmax.xlane.f32.xlu0 %v2516
        %v2555 = vpop.xlane.xlu0 %2554
        %2556 = vmax.xlane.f32.xlu0 %v2518
        %v2557 = vpop.xlane.xlu0 %2556
        %2558 = vmax.xlane.f32.xlu0 %v2521
        %v2559 = vpop.xlane.xlu0 %2558
        %2560 = vmax.xlane.f32.xlu0 %v2523
        %v2561 = vpop.xlane.xlu0 %2560
        %2562 = vmax.xlane.f32.xlu0 %v2526
        %v2563 = vpop.xlane.xlu0 %2562
        %2564 = vmax.xlane.f32.xlu0 %v2528
        %v2565 = vpop.xlane.xlu0 %2564
        %2566 = vmax.xlane.f32.xlu0 %v2531
        %v2567 = vpop.xlane.xlu0 %2566
        %2568 = vmax.xlane.f32.xlu0 %v2533
        %v2569 = vpop.xlane.xlu0 %2568
        %2570 = vmax.xlane.f32.xlu0 %v2536
        %v2571 = vpop.xlane.xlu0 %2570
        %2572 = vmax.xlane.f32.xlu0 %v2538
        %v2573 = vpop.xlane.xlu0 %2572
        %2574 = vmax.xlane.f32.xlu0 %v2541
        %v2575 = vpop.xlane.xlu0 %2574
        %2576 = vmax.xlane.f32.xlu0 %v2543
        %v2577 = vpop.xlane.xlu0 %2576
        %2578 = vmax.xlane.f32.xlu0 %v2546
        %v2579 = vpop.xlane.xlu0 %2578
        %2580 = vmax.xlane.f32.xlu0 %v2548
        %v2581 = vpop.xlane.xlu0 %2580
        %v2582 = vsub.f32 %v2511, %v2551
        %v2583 = vsub.f32 %v2513, %v2553
        %v2584 = vsub.f32 %v2516, %v2555
        %v2585 = vsub.f32 %v2518, %v2557
        %v2586 = vsub.f32 %v2521, %v2559
        %v2587 = vsub.f32 %v2523, %v2561
        %v2588 = vsub.f32 %v2526, %v2563
        %v2589 = vsub.f32 %v2528, %v2565
        %v2590 = vsub.f32 %v2531, %v2567
        %v2591 = vsub.f32 %v2533, %v2569
        %v2592 = vsub.f32 %v2536, %v2571
        %v2593 = vsub.f32 %v2538, %v2573
        %v2594 = vsub.f32 %v2541, %v2575
        %v2595 = vsub.f32 %v2543, %v2577
        %v2596 = vsub.f32 %v2546, %v2579
        %v2597 = vsub.f32 %v2548, %v2581
        %v2598 = vmul.f32 %v2582, 1.442695
        %v2599 = vpow.pop %v2598
        %v2600 = vmul.f32 %v2583, 1.442695
        %v2601 = vpow.pop %v2600
        %v2602 = vmul.f32 %v2584, 1.442695
        %v2603 = vpow.pop %v2602
        %v2604 = vmul.f32 %v2585, 1.442695
        %v2605 = vpow.pop %v2604
        %v2606 = vmul.f32 %v2586, 1.442695
        %v2607 = vpow.pop %v2606
        %v2608 = vmul.f32 %v2587, 1.442695
        %v2609 = vpow.pop %v2608
        %v2610 = vmul.f32 %v2588, 1.442695
        %v2611 = vpow.pop %v2610
        %v2612 = vmul.f32 %v2589, 1.442695
        %v2613 = vpow.pop %v2612
        %v2614 = vmul.f32 %v2590, 1.442695
        %v2615 = vpow.pop %v2614
        %v2616 = vmul.f32 %v2591, 1.442695
        %v2617 = vpow.pop %v2616
        %v2618 = vmul.f32 %v2592, 1.442695
        %v2619 = vpow.pop %v2618
        %v2620 = vmul.f32 %v2593, 1.442695
        %v2621 = vpow.pop %v2620
        %v2622 = vmul.f32 %v2594, 1.442695
        %v2623 = vpow.pop %v2622
        %v2624 = vmul.f32 %v2595, 1.442695
        %v2625 = vpow.pop %v2624
        %v2626 = vmul.f32 %v2596, 1.442695
        %v2627 = vpow.pop %v2626
        %v2628 = vmul.f32 %v2597, 1.442695
        %v2629 = vpow.pop %v2628
        %2630 = vadd.xlane.f32.xlu0 %v2599
        %v2631 = vpop.xlane.xlu0 %2630
        %2632 = vadd.xlane.f32.xlu0 %v2601
        %v2633 = vpop.xlane.xlu0 %2632
        %2634 = vadd.xlane.f32.xlu0 %v2603
        %v2635 = vpop.xlane.xlu0 %2634
        %2636 = vadd.xlane.f32.xlu0 %v2605
        %v2637 = vpop.xlane.xlu0 %2636
        %2638 = vadd.xlane.f32.xlu0 %v2607
        %v2639 = vpop.xlane.xlu0 %2638
        %2640 = vadd.xlane.f32.xlu0 %v2609
        %v2641 = vpop.xlane.xlu0 %2640
        %2642 = vadd.xlane.f32.xlu0 %v2611
        %v2643 = vpop.xlane.xlu0 %2642
        %2644 = vadd.xlane.f32.xlu0 %v2613
        %v2645 = vpop.xlane.xlu0 %2644
        %2646 = vadd.xlane.f32.xlu0 %v2615
        %v2647 = vpop.xlane.xlu0 %2646
        %2648 = vadd.xlane.f32.xlu0 %v2617
        %v2649 = vpop.xlane.xlu0 %2648
        %2650 = vadd.xlane.f32.xlu0 %v2619
        %v2651 = vpop.xlane.xlu0 %2650
        %2652 = vadd.xlane.f32.xlu0 %v2621
        %v2653 = vpop.xlane.xlu0 %2652
        %2654 = vadd.xlane.f32.xlu0 %v2623
        %v2655 = vpop.xlane.xlu0 %2654
        %2656 = vadd.xlane.f32.xlu0 %v2625
        %v2657 = vpop.xlane.xlu0 %2656
        %2658 = vadd.xlane.f32.xlu0 %v2627
        %v2659 = vpop.xlane.xlu0 %2658
        %2660 = vadd.xlane.f32.xlu0 %v2629
        %v2661 = vpop.xlane.xlu0 %2660
        %v2662 = vrcp.pop %v2631
        %v2663 = vrcp.pop %v2633
        %v2664 = vrcp.pop %v2635
        %v2665 = vrcp.pop %v2637
        %v2666 = vrcp.pop %v2639
        %v2667 = vrcp.pop %v2641
        %v2668 = vrcp.pop %v2643
        %v2669 = vrcp.pop %v2645
        %v2670 = vrcp.pop %v2647
        %v2671 = vrcp.pop %v2649
        %v2672 = vrcp.pop %v2651
        %v2673 = vrcp.pop %v2653
        %v2674 = vrcp.pop %v2655
        %v2675 = vrcp.pop %v2657
        %v2676 = vrcp.pop %v2659
        %v2677 = vrcp.pop %v2661
        %v2678 = vmul.f32 %v2599, %v2662
        %v2679 = vmul.f32 %v2601, %v2663
        %v2680 = vmul.f32 %v2603, %v2664
        %v2681 = vmul.f32 %v2605, %v2665
        %v2682 = vmul.f32 %v2607, %v2666
        %v2683 = vmul.f32 %v2609, %v2667
        %v2684 = vmul.f32 %v2611, %v2668
        %v2685 = vmul.f32 %v2613, %v2669
        %v2686 = vmul.f32 %v2615, %v2670
        %v2687 = vmul.f32 %v2617, %v2671
        %v2688 = vmul.f32 %v2619, %v2672
        %v2689 = vmul.f32 %v2621, %v2673
        %v2690 = vmul.f32 %v2623, %v2674
        %v2691 = vmul.f32 %v2625, %v2675
        %v2692 = vmul.f32 %v2627, %v2676
        %v2693 = vmul.f32 %v2629, %v2677
        %v2694 = vpack.c.bf16 %v2679, %v2678
        %v2695 = vpack.c.bf16 %v2681, %v2680
        %v2696 = vpack.c.bf16 %v2683, %v2682
        %v2697 = vpack.c.bf16 %v2685, %v2684
        %v2698 = vpack.c.bf16 %v2687, %v2686
        %v2699 = vpack.c.bf16 %v2689, %v2688
        %v2700 = vpack.c.bf16 %v2691, %v2690
        %v2701 = vpack.c.bf16 %v2693, %v2692
        %2710 = vrot.lane.b32.xlu0 %v2065, 96
        %v2711 = vpop.permute.xlu0 %2710
        %2712 = vrot.lane.b32.xlu0 %v2066, 96
        %v2713 = vpop.permute.xlu0 %2712
        %2714 = vrot.lane.b32.xlu0 %v2067, 96
        %v2715 = vpop.permute.xlu0 %2714
        %2716 = vrot.lane.b32.xlu0 %v2068, 96
        %v2717 = vpop.permute.xlu0 %2716
        %2718 = vrot.lane.b32.xlu0 %v2069, 96
        %v2719 = vpop.permute.xlu0 %2718
        %2720 = vrot.lane.b32.xlu0 %v2070, 96
        %v2721 = vpop.permute.xlu0 %2720
        %2722 = vrot.lane.b32.xlu0 %v2071, 96
        %v2723 = vpop.permute.xlu0 %2722
        %2724 = vrot.lane.b32.xlu0 %v2072, 96
        %v2725 = vpop.permute.xlu0 %2724
        %2734 = vmatpush.bf16.msra.mxu0 %v2725
        %2735 = vmatpush.bf16.msra.mxu0 %v2723
        %2736 = vmatpush.bf16.msra.mxu0 %v2721
        %2737 = vmatpush.bf16.msra.mxu0 %v2719
        %2738 = vmatpush.bf16.msra.mxu0 %v2717
        %2739 = vmatpush.bf16.msra.mxu0 %v2715
        %2740 = vmatpush.bf16.msra.mxu0 %v2713
        %2741 = vmatpush.bf16.msra.mxu0 %v2711
        %2742 = vmatmul.bf16.gmra.mxu0 %v2694
        %v2743 = vpop.f32.mrf.mxu0
        %v2744 = vadd.f32 0.0, %v2743
        %v2745 = vpop.f32.mrf.mxu0
        %v2746 = vadd.f32 0.0, %v2745
        %2747 = vmatmul.bf16.gmra.mxu0 %v2695
        %v2748 = vpop.f32.mrf.mxu0
        %v2749 = vadd.f32 0.0, %v2748
        %v2750 = vpop.f32.mrf.mxu0
        %v2751 = vadd.f32 0.0, %v2750
        %2752 = vmatmul.bf16.gmra.mxu0 %v2696
        %v2753 = vpop.f32.mrf.mxu0
        %v2754 = vadd.f32 0.0, %v2753
        %v2755 = vpop.f32.mrf.mxu0
        %v2756 = vadd.f32 0.0, %v2755
        %2757 = vmatmul.bf16.gmra.mxu0 %v2697
        %v2758 = vpop.f32.mrf.mxu0
        %v2759 = vadd.f32 0.0, %v2758
        %v2760 = vpop.f32.mrf.mxu0
        %v2761 = vadd.f32 0.0, %v2760
        %2762 = vmatmul.bf16.gmra.mxu0 %v2698
        %v2763 = vpop.f32.mrf.mxu0
        %v2764 = vadd.f32 0.0, %v2763
        %v2765 = vpop.f32.mrf.mxu0
        %v2766 = vadd.f32 0.0, %v2765
        %2767 = vmatmul.bf16.gmra.mxu0 %v2699
        %v2768 = vpop.f32.mrf.mxu0
        %v2769 = vadd.f32 0.0, %v2768
        %v2770 = vpop.f32.mrf.mxu0
        %v2771 = vadd.f32 0.0, %v2770
        %2772 = vmatmul.bf16.gmra.mxu0 %v2700
        %v2773 = vpop.f32.mrf.mxu0
        %v2774 = vadd.f32 0.0, %v2773
        %v2775 = vpop.f32.mrf.mxu0
        %v2776 = vadd.f32 0.0, %v2775
        %2777 = vmatmul.bf16.gmra.mxu0 %v2701
        %v2778 = vpop.f32.mrf.mxu0
        %v2779 = vadd.f32 0.0, %v2778
        %v2780 = vpop.f32.mrf.mxu0
        %v2781 = vadd.f32 0.0, %v2780
        %2782 = vdwg.mxu0
        %v2783 = vpack.c.bf16 %v2744, %v2744
        %v2784 = vpack.c.bf16 %v2746, %v2746
        %v2785 = vpack.c.bf16 %v2749, %v2749
        %v2786 = vpack.c.bf16 %v2751, %v2751
        %v2787 = vpack.c.bf16 %v2754, %v2754
        %v2788 = vpack.c.bf16 %v2756, %v2756
        %v2789 = vpack.c.bf16 %v2759, %v2759
        %v2790 = vpack.c.bf16 %v2761, %v2761
        %v2791 = vpack.c.bf16 %v2764, %v2764
        %v2792 = vpack.c.bf16 %v2766, %v2766
        %v2793 = vpack.c.bf16 %v2769, %v2769
        %v2794 = vpack.c.bf16 %v2771, %v2771
        %v2795 = vpack.c.bf16 %v2774, %v2774
        %v2796 = vpack.c.bf16 %v2776, %v2776
        %v2797 = vpack.c.bf16 %v2779, %v2779
        %v2798 = vpack.c.bf16 %v2781, %v2781
        %2815 = vrot.lane.b32.xlu0 %v2783, 32
        %v2816 = vpop.permute.xlu0 %2815
        %2817 = vrot.lane.b32.xlu0 %v2784, 32
        %v2818 = vpop.permute.xlu0 %2817
        %2819 = vrot.lane.b32.xlu0 %v2785, 32
        %v2820 = vpop.permute.xlu0 %2819
        %2821 = vrot.lane.b32.xlu0 %v2786, 32
        %v2822 = vpop.permute.xlu0 %2821
        %2823 = vrot.lane.b32.xlu0 %v2787, 32
        %v2824 = vpop.permute.xlu0 %2823
        %2825 = vrot.lane.b32.xlu0 %v2788, 32
        %v2826 = vpop.permute.xlu0 %2825
        %2827 = vrot.lane.b32.xlu0 %v2789, 32
        %v2828 = vpop.permute.xlu0 %2827
        %2829 = vrot.lane.b32.xlu0 %v2790, 32
        %v2830 = vpop.permute.xlu0 %2829
        %2831 = vrot.lane.b32.xlu0 %v2791, 32
        %v2832 = vpop.permute.xlu0 %2831
        %2833 = vrot.lane.b32.xlu0 %v2792, 32
        %v2834 = vpop.permute.xlu0 %2833
        %2835 = vrot.lane.b32.xlu0 %v2793, 32
        %v2836 = vpop.permute.xlu0 %2835
        %2837 = vrot.lane.b32.xlu0 %v2794, 32
        %v2838 = vpop.permute.xlu0 %2837
        %2839 = vrot.lane.b32.xlu0 %v2795, 32
        %v2840 = vpop.permute.xlu0 %2839
        %2841 = vrot.lane.b32.xlu0 %v2796, 32
        %v2842 = vpop.permute.xlu0 %2841
        %2843 = vrot.lane.b32.xlu0 %v2797, 32
        %v2844 = vpop.permute.xlu0 %2843
        %2845 = vrot.lane.b32.xlu0 %v2798, 32
        %v2846 = vpop.permute.xlu0 %2845
        %vm2863 = vcmask 519424
        %2864 = vst.msk [vmem:[#allocation3] sm:$0xf] %vm2863, %v2816
        %2865 = vst.msk [vmem:[#allocation3 + $0x4] sm:$0xf] %vm2863, %v2818
        %2866 = vst.msk [vmem:[#allocation3 + $0x8] sm:$0xf] %vm2863, %v2820
        %2867 = vst.msk [vmem:[#allocation3 + $0xc] sm:$0xf] %vm2863, %v2822
        %2868 = vst.msk [vmem:[#allocation3 + $0x10] sm:$0xf] %vm2863, %v2824
        %2869 = vst.msk [vmem:[#allocation3 + $0x14] sm:$0xf] %vm2863, %v2826
        %2870 = vst.msk [vmem:[#allocation3 + $0x18] sm:$0xf] %vm2863, %v2828
        %2871 = vst.msk [vmem:[#allocation3 + $0x1c] sm:$0xf] %vm2863, %v2830
        %2872 = vst.msk [vmem:[#allocation3 + $0x20] sm:$0xf] %vm2863, %v2832
        %2873 = vst.msk [vmem:[#allocation3 + $0x24] sm:$0xf] %vm2863, %v2834
        %2874 = vst.msk [vmem:[#allocation3 + $0x28] sm:$0xf] %vm2863, %v2836
        %2875 = vst.msk [vmem:[#allocation3 + $0x2c] sm:$0xf] %vm2863, %v2838
        %2876 = vst.msk [vmem:[#allocation3 + $0x30] sm:$0xf] %vm2863, %v2840
        %2877 = vst.msk [vmem:[#allocation3 + $0x34] sm:$0xf] %vm2863, %v2842
        %2878 = vst.msk [vmem:[#allocation3 + $0x38] sm:$0xf] %vm2863, %v2844
        %2879 = vst.msk [vmem:[#allocation3 + $0x3c] sm:$0xf] %vm2863, %v2846
        %2880 = vrot.lane.b32.xlu0 %v2049, 64
        %v2881 = vpop.permute.xlu0 %2880
        %2882 = vrot.lane.b32.xlu0 %v2050, 64
        %v2883 = vpop.permute.xlu0 %2882
        %2884 = vrot.lane.b32.xlu0 %v2051, 64
        %v2885 = vpop.permute.xlu0 %2884
        %2886 = vrot.lane.b32.xlu0 %v2052, 64
        %v2887 = vpop.permute.xlu0 %2886
        %2888 = vrot.lane.b32.xlu0 %v2053, 64
        %v2889 = vpop.permute.xlu0 %2888
        %2890 = vrot.lane.b32.xlu0 %v2054, 64
        %v2891 = vpop.permute.xlu0 %2890
        %2892 = vrot.lane.b32.xlu0 %v2055, 64
        %v2893 = vpop.permute.xlu0 %2892
        %2894 = vrot.lane.b32.xlu0 %v2056, 64
        %v2895 = vpop.permute.xlu0 %2894
        %2896 = vrot.lane.b32.xlu0 %v2057, 64
        %v2897 = vpop.permute.xlu0 %2896
        %2898 = vrot.lane.b32.xlu0 %v2058, 64
        %v2899 = vpop.permute.xlu0 %2898
        %2900 = vrot.lane.b32.xlu0 %v2059, 64
        %v2901 = vpop.permute.xlu0 %2900
        %2902 = vrot.lane.b32.xlu0 %v2060, 64
        %v2903 = vpop.permute.xlu0 %2902
        %2904 = vrot.lane.b32.xlu0 %v2061, 64
        %v2905 = vpop.permute.xlu0 %2904
        %2906 = vrot.lane.b32.xlu0 %v2062, 64
        %v2907 = vpop.permute.xlu0 %2906
        %2908 = vrot.lane.b32.xlu0 %v2063, 64
        %v2909 = vpop.permute.xlu0 %2908
        %2910 = vrot.lane.b32.xlu0 %v2064, 64
        %v2911 = vpop.permute.xlu0 %2910
        %v2913 = vsel %vm2073, %v2881, 0
        %v2916 = vsel %vm2073, %v2883, 0
        %v2919 = vsel %vm2073, %v2885, 0
        %v2922 = vsel %vm2073, %v2887, 0
        %v2925 = vsel %vm2073, %v2889, 0
        %v2928 = vsel %vm2073, %v2891, 0
        %v2931 = vsel %vm2073, %v2893, 0
        %v2934 = vsel %vm2073, %v2895, 0
        %v2937 = vsel %vm2073, %v2897, 0
        %v2940 = vsel %vm2073, %v2899, 0
        %v2943 = vsel %vm2073, %v2901, 0
        %v2946 = vsel %vm2073, %v2903, 0
        %v2949 = vsel %vm2073, %v2905, 0
        %v2952 = vsel %vm2073, %v2907, 0
        %v2955 = vsel %vm2073, %v2909, 0
        %v2958 = vsel %vm2073, %v2911, 0
        %2960 = vmatpush.bf16.xpose.msra.mxu0 %v2958
        %2961 = vmatpush.bf16.xpose.msra.mxu0 %v2955
        %2962 = vmatpush.bf16.xpose.msra.mxu0 %v2952
        %2963 = vmatpush.bf16.xpose.msra.mxu0 %v2949
        %2964 = vmatpush.bf16.xpose.msra.mxu0 %v2946
        %2965 = vmatpush.bf16.xpose.msra.mxu0 %v2943
        %2966 = vmatpush.bf16.xpose.msra.mxu0 %v2940
        %2967 = vmatpush.bf16.xpose.msra.mxu0 %v2937
        %2968 = vmatmul.bf16.gmra.mxu0 %v2913
        %v2969 = vpop.f32.mrf.mxu0
        %v2970 = vadd.f32 %v1718, %v2969
        %v2971 = vpop.f32.mrf.mxu0
        %v2972 = vadd.f32 %v1719, %v2971
        %2973 = vmatmul.bf16.gmra.mxu0 %v2916
        %v2974 = vpop.f32.mrf.mxu0
        %v2975 = vadd.f32 %v1720, %v2974
        %v2976 = vpop.f32.mrf.mxu0
        %v2977 = vadd.f32 %v1721, %v2976
        %2978 = vmatmul.bf16.gmra.mxu0 %v2919
        %v2979 = vpop.f32.mrf.mxu0
        %v2980 = vadd.f32 %v1722, %v2979
        %v2981 = vpop.f32.mrf.mxu0
        %v2982 = vadd.f32 %v1723, %v2981
        %2983 = vmatmul.bf16.gmra.mxu0 %v2922
        %v2984 = vpop.f32.mrf.mxu0
        %v2985 = vadd.f32 %v1724, %v2984
        %v2986 = vpop.f32.mrf.mxu0
        %v2987 = vadd.f32 %v1725, %v2986
        %2988 = vmatmul.bf16.gmra.mxu0 %v2925
        %v2989 = vpop.f32.mrf.mxu0
        %v2990 = vadd.f32 %v1726, %v2989
        %v2991 = vpop.f32.mrf.mxu0
        %v2992 = vadd.f32 %v1727, %v2991
        %2993 = vmatmul.bf16.gmra.mxu0 %v2928
        %v2994 = vpop.f32.mrf.mxu0
        %v2995 = vadd.f32 %v1728, %v2994
        %v2996 = vpop.f32.mrf.mxu0
        %v2997 = vadd.f32 %v1729, %v2996
        %2998 = vmatmul.bf16.gmra.mxu0 %v2931
        %v2999 = vpop.f32.mrf.mxu0
        %v3000 = vadd.f32 %v1730, %v2999
        %v3001 = vpop.f32.mrf.mxu0
        %v3002 = vadd.f32 %v1731, %v3001
        %3003 = vmatmul.bf16.gmra.mxu0 %v2934
        %v3004 = vpop.f32.mrf.mxu0
        %v3005 = vadd.f32 %v1732, %v3004
        %v3006 = vpop.f32.mrf.mxu0
        %v3007 = vadd.f32 %v1733, %v3006
        %3008 = vdwg.mxu0
        %3009 = vmax.xlane.f32.xlu0 %v2970
        %v3010 = vpop.xlane.xlu0 %3009
        %3011 = vmax.xlane.f32.xlu0 %v2972
        %v3012 = vpop.xlane.xlu0 %3011
        %3013 = vmax.xlane.f32.xlu0 %v2975
        %v3014 = vpop.xlane.xlu0 %3013
        %3015 = vmax.xlane.f32.xlu0 %v2977
        %v3016 = vpop.xlane.xlu0 %3015
        %3017 = vmax.xlane.f32.xlu0 %v2980
        %v3018 = vpop.xlane.xlu0 %3017
        %3019 = vmax.xlane.f32.xlu0 %v2982
        %v3020 = vpop.xlane.xlu0 %3019
        %3021 = vmax.xlane.f32.xlu0 %v2985
        %v3022 = vpop.xlane.xlu0 %3021
        %3023 = vmax.xlane.f32.xlu0 %v2987
        %v3024 = vpop.xlane.xlu0 %3023
        %3025 = vmax.xlane.f32.xlu0 %v2990
        %v3026 = vpop.xlane.xlu0 %3025
        %3027 = vmax.xlane.f32.xlu0 %v2992
        %v3028 = vpop.xlane.xlu0 %3027
        %3029 = vmax.xlane.f32.xlu0 %v2995
        %v3030 = vpop.xlane.xlu0 %3029
        %3031 = vmax.xlane.f32.xlu0 %v2997
        %v3032 = vpop.xlane.xlu0 %3031
        %3033 = vmax.xlane.f32.xlu0 %v3000
        %v3034 = vpop.xlane.xlu0 %3033
        %3035 = vmax.xlane.f32.xlu0 %v3002
        %v3036 = vpop.xlane.xlu0 %3035
        %3037 = vmax.xlane.f32.xlu0 %v3005
        %v3038 = vpop.xlane.xlu0 %3037
        %3039 = vmax.xlane.f32.xlu0 %v3007
        %v3040 = vpop.xlane.xlu0 %3039
        %v3041 = vsub.f32 %v2970, %v3010
        %v3042 = vsub.f32 %v2972, %v3012
        %v3043 = vsub.f32 %v2975, %v3014
        %v3044 = vsub.f32 %v2977, %v3016
        %v3045 = vsub.f32 %v2980, %v3018
        %v3046 = vsub.f32 %v2982, %v3020
        %v3047 = vsub.f32 %v2985, %v3022
        %v3048 = vsub.f32 %v2987, %v3024
        %v3049 = vsub.f32 %v2990, %v3026
        %v3050 = vsub.f32 %v2992, %v3028
        %v3051 = vsub.f32 %v2995, %v3030
        %v3052 = vsub.f32 %v2997, %v3032
        %v3053 = vsub.f32 %v3000, %v3034
        %v3054 = vsub.f32 %v3002, %v3036
        %v3055 = vsub.f32 %v3005, %v3038
        %v3056 = vsub.f32 %v3007, %v3040
        %v3057 = vmul.f32 %v3041, 1.442695
        %v3058 = vpow.pop %v3057
        %v3059 = vmul.f32 %v3042, 1.442695
        %v3060 = vpow.pop %v3059
        %v3061 = vmul.f32 %v3043, 1.442695
        %v3062 = vpow.pop %v3061
        %v3063 = vmul.f32 %v3044, 1.442695
        %v3064 = vpow.pop %v3063
        %v3065 = vmul.f32 %v3045, 1.442695
        %v3066 = vpow.pop %v3065
        %v3067 = vmul.f32 %v3046, 1.442695
        %v3068 = vpow.pop %v3067
        %v3069 = vmul.f32 %v3047, 1.442695
        %v3070 = vpow.pop %v3069
        %v3071 = vmul.f32 %v3048, 1.442695
        %v3072 = vpow.pop %v3071
        %v3073 = vmul.f32 %v3049, 1.442695
        %v3074 = vpow.pop %v3073
        %v3075 = vmul.f32 %v3050, 1.442695
        %v3076 = vpow.pop %v3075
        %v3077 = vmul.f32 %v3051, 1.442695
        %v3078 = vpow.pop %v3077
        %v3079 = vmul.f32 %v3052, 1.442695
        %v3080 = vpow.pop %v3079
        %v3081 = vmul.f32 %v3053, 1.442695
        %v3082 = vpow.pop %v3081
        %v3083 = vmul.f32 %v3054, 1.442695
        %v3084 = vpow.pop %v3083
        %v3085 = vmul.f32 %v3055, 1.442695
        %v3086 = vpow.pop %v3085
        %v3087 = vmul.f32 %v3056, 1.442695
        %v3088 = vpow.pop %v3087
        %3089 = vadd.xlane.f32.xlu0 %v3058
        %v3090 = vpop.xlane.xlu0 %3089
        %3091 = vadd.xlane.f32.xlu0 %v3060
        %v3092 = vpop.xlane.xlu0 %3091
        %3093 = vadd.xlane.f32.xlu0 %v3062
        %v3094 = vpop.xlane.xlu0 %3093
        %3095 = vadd.xlane.f32.xlu0 %v3064
        %v3096 = vpop.xlane.xlu0 %3095
        %3097 = vadd.xlane.f32.xlu0 %v3066
        %v3098 = vpop.xlane.xlu0 %3097
        %3099 = vadd.xlane.f32.xlu0 %v3068
        %v3100 = vpop.xlane.xlu0 %3099
        %3101 = vadd.xlane.f32.xlu0 %v3070
        %v3102 = vpop.xlane.xlu0 %3101
        %3103 = vadd.xlane.f32.xlu0 %v3072
        %v3104 = vpop.xlane.xlu0 %3103
        %3105 = vadd.xlane.f32.xlu0 %v3074
        %v3106 = vpop.xlane.xlu0 %3105
        %3107 = vadd.xlane.f32.xlu0 %v3076
        %v3108 = vpop.xlane.xlu0 %3107
        %3109 = vadd.xlane.f32.xlu0 %v3078
        %v3110 = vpop.xlane.xlu0 %3109
        %3111 = vadd.xlane.f32.xlu0 %v3080
        %v3112 = vpop.xlane.xlu0 %3111
        %3113 = vadd.xlane.f32.xlu0 %v3082
        %v3114 = vpop.xlane.xlu0 %3113
        %3115 = vadd.xlane.f32.xlu0 %v3084
        %v3116 = vpop.xlane.xlu0 %3115
        %3117 = vadd.xlane.f32.xlu0 %v3086
        %v3118 = vpop.xlane.xlu0 %3117
        %3119 = vadd.xlane.f32.xlu0 %v3088
        %v3120 = vpop.xlane.xlu0 %3119
        %v3121 = vrcp.pop %v3090
        %v3122 = vrcp.pop %v3092
        %v3123 = vrcp.pop %v3094
        %v3124 = vrcp.pop %v3096
        %v3125 = vrcp.pop %v3098
        %v3126 = vrcp.pop %v3100
        %v3127 = vrcp.pop %v3102
        %v3128 = vrcp.pop %v3104
        %v3129 = vrcp.pop %v3106
        %v3130 = vrcp.pop %v3108
        %v3131 = vrcp.pop %v3110
        %v3132 = vrcp.pop %v3112
        %v3133 = vrcp.pop %v3114
        %v3134 = vrcp.pop %v3116
        %v3135 = vrcp.pop %v3118
        %v3136 = vrcp.pop %v3120
        %v3137 = vmul.f32 %v3058, %v3121
        %v3138 = vmul.f32 %v3060, %v3122
        %v3139 = vmul.f32 %v3062, %v3123
        %v3140 = vmul.f32 %v3064, %v3124
        %v3141 = vmul.f32 %v3066, %v3125
        %v3142 = vmul.f32 %v3068, %v3126
        %v3143 = vmul.f32 %v3070, %v3127
        %v3144 = vmul.f32 %v3072, %v3128
        %v3145 = vmul.f32 %v3074, %v3129
        %v3146 = vmul.f32 %v3076, %v3130
        %v3147 = vmul.f32 %v3078, %v3131
        %v3148 = vmul.f32 %v3080, %v3132
        %v3149 = vmul.f32 %v3082, %v3133
        %v3150 = vmul.f32 %v3084, %v3134
        %v3151 = vmul.f32 %v3086, %v3135
        %v3152 = vmul.f32 %v3088, %v3136
        %v3153 = vpack.c.bf16 %v3138, %v3137
        %v3154 = vpack.c.bf16 %v3140, %v3139
        %v3155 = vpack.c.bf16 %v3142, %v3141
        %v3156 = vpack.c.bf16 %v3144, %v3143
        %v3157 = vpack.c.bf16 %v3146, %v3145
        %v3158 = vpack.c.bf16 %v3148, %v3147
        %v3159 = vpack.c.bf16 %v3150, %v3149
        %v3160 = vpack.c.bf16 %v3152, %v3151
        %3161 = vrot.lane.b32.xlu0 %v2065, 64
        %v3162 = vpop.permute.xlu0 %3161
        %3163 = vrot.lane.b32.xlu0 %v2066, 64
        %v3164 = vpop.permute.xlu0 %3163
        %3165 = vrot.lane.b32.xlu0 %v2067, 64
        %v3166 = vpop.permute.xlu0 %3165
        %3167 = vrot.lane.b32.xlu0 %v2068, 64
        %v3168 = vpop.permute.xlu0 %3167
        %3169 = vrot.lane.b32.xlu0 %v2069, 64
        %v3170 = vpop.permute.xlu0 %3169
        %3171 = vrot.lane.b32.xlu0 %v2070, 64
        %v3172 = vpop.permute.xlu0 %3171
        %3173 = vrot.lane.b32.xlu0 %v2071, 64
        %v3174 = vpop.permute.xlu0 %3173
        %3175 = vrot.lane.b32.xlu0 %v2072, 64
        %v3176 = vpop.permute.xlu0 %3175
        %3185 = vmatpush.bf16.msra.mxu0 %v3176
        %3186 = vmatpush.bf16.msra.mxu0 %v3174
        %3187 = vmatpush.bf16.msra.mxu0 %v3172
        %3188 = vmatpush.bf16.msra.mxu0 %v3170
        %3189 = vmatpush.bf16.msra.mxu0 %v3168
        %3190 = vmatpush.bf16.msra.mxu0 %v3166
        %3191 = vmatpush.bf16.msra.mxu0 %v3164
        %3192 = vmatpush.bf16.msra.mxu0 %v3162
        %3193 = vmatmul.bf16.gmra.mxu0 %v3153
        %v3194 = vpop.f32.mrf.mxu0
        %v3195 = vadd.f32 0.0, %v3194
        %v3196 = vpop.f32.mrf.mxu0
        %v3197 = vadd.f32 0.0, %v3196
        %3198 = vmatmul.bf16.gmra.mxu0 %v3154
        %v3199 = vpop.f32.mrf.mxu0
        %v3200 = vadd.f32 0.0, %v3199
        %v3201 = vpop.f32.mrf.mxu0
        %v3202 = vadd.f32 0.0, %v3201
        %3203 = vmatmul.bf16.gmra.mxu0 %v3155
        %v3204 = vpop.f32.mrf.mxu0
        %v3205 = vadd.f32 0.0, %v3204
        %v3206 = vpop.f32.mrf.mxu0
        %v3207 = vadd.f32 0.0, %v3206
        %3208 = vmatmul.bf16.gmra.mxu0 %v3156
        %v3209 = vpop.f32.mrf.mxu0
        %v3210 = vadd.f32 0.0, %v3209
        %v3211 = vpop.f32.mrf.mxu0
        %v3212 = vadd.f32 0.0, %v3211
        %3213 = vmatmul.bf16.gmra.mxu0 %v3157
        %v3214 = vpop.f32.mrf.mxu0
        %v3215 = vadd.f32 0.0, %v3214
        %v3216 = vpop.f32.mrf.mxu0
        %v3217 = vadd.f32 0.0, %v3216
        %3218 = vmatmul.bf16.gmra.mxu0 %v3158
        %v3219 = vpop.f32.mrf.mxu0
        %v3220 = vadd.f32 0.0, %v3219
        %v3221 = vpop.f32.mrf.mxu0
        %v3222 = vadd.f32 0.0, %v3221
        %3223 = vmatmul.bf16.gmra.mxu0 %v3159
        %v3224 = vpop.f32.mrf.mxu0
        %v3225 = vadd.f32 0.0, %v3224
        %v3226 = vpop.f32.mrf.mxu0
        %v3227 = vadd.f32 0.0, %v3226
        %3228 = vmatmul.bf16.gmra.mxu0 %v3160
        %v3229 = vpop.f32.mrf.mxu0
        %v3230 = vadd.f32 0.0, %v3229
        %v3231 = vpop.f32.mrf.mxu0
        %v3232 = vadd.f32 0.0, %v3231
        %3233 = vdwg.mxu0
        %v3234 = vpack.c.bf16 %v3195, %v3195
        %v3235 = vpack.c.bf16 %v3197, %v3197
        %v3236 = vpack.c.bf16 %v3200, %v3200
        %v3237 = vpack.c.bf16 %v3202, %v3202
        %v3238 = vpack.c.bf16 %v3205, %v3205
        %v3239 = vpack.c.bf16 %v3207, %v3207
        %v3240 = vpack.c.bf16 %v3210, %v3210
        %v3241 = vpack.c.bf16 %v3212, %v3212
        %v3242 = vpack.c.bf16 %v3215, %v3215
        %v3243 = vpack.c.bf16 %v3217, %v3217
        %v3244 = vpack.c.bf16 %v3220, %v3220
        %v3245 = vpack.c.bf16 %v3222, %v3222
        %v3246 = vpack.c.bf16 %v3225, %v3225
        %v3247 = vpack.c.bf16 %v3227, %v3227
        %v3248 = vpack.c.bf16 %v3230, %v3230
        %v3249 = vpack.c.bf16 %v3232, %v3232
        %3266 = vrot.lane.b32.xlu0 %v3234, 64
        %v3267 = vpop.permute.xlu0 %3266
        %3268 = vrot.lane.b32.xlu0 %v3235, 64
        %v3269 = vpop.permute.xlu0 %3268
        %3270 = vrot.lane.b32.xlu0 %v3236, 64
        %v3271 = vpop.permute.xlu0 %3270
        %3272 = vrot.lane.b32.xlu0 %v3237, 64
        %v3273 = vpop.permute.xlu0 %3272
        %3274 = vrot.lane.b32.xlu0 %v3238, 64
        %v3275 = vpop.permute.xlu0 %3274
        %3276 = vrot.lane.b32.xlu0 %v3239, 64
        %v3277 = vpop.permute.xlu0 %3276
        %3278 = vrot.lane.b32.xlu0 %v3240, 64
        %v3279 = vpop.permute.xlu0 %3278
        %3280 = vrot.lane.b32.xlu0 %v3241, 64
        %v3281 = vpop.permute.xlu0 %3280
        %3282 = vrot.lane.b32.xlu0 %v3242, 64
        %v3283 = vpop.permute.xlu0 %3282
        %3284 = vrot.lane.b32.xlu0 %v3243, 64
        %v3285 = vpop.permute.xlu0 %3284
        %3286 = vrot.lane.b32.xlu0 %v3244, 64
        %v3287 = vpop.permute.xlu0 %3286
        %3288 = vrot.lane.b32.xlu0 %v3245, 64
        %v3289 = vpop.permute.xlu0 %3288
        %3290 = vrot.lane.b32.xlu0 %v3246, 64
        %v3291 = vpop.permute.xlu0 %3290
        %3292 = vrot.lane.b32.xlu0 %v3247, 64
        %v3293 = vpop.permute.xlu0 %3292
        %3294 = vrot.lane.b32.xlu0 %v3248, 64
        %v3295 = vpop.permute.xlu0 %3294
        %3296 = vrot.lane.b32.xlu0 %v3249, 64
        %v3297 = vpop.permute.xlu0 %3296
        %vm3314 = vcmask 781824
        %3315 = vst.msk [vmem:[#allocation3] sm:$0xf] %vm3314, %v3267
        %3316 = vst.msk [vmem:[#allocation3 + $0x4] sm:$0xf] %vm3314, %v3269
        %3317 = vst.msk [vmem:[#allocation3 + $0x8] sm:$0xf] %vm3314, %v3271
        %3318 = vst.msk [vmem:[#allocation3 + $0xc] sm:$0xf] %vm3314, %v3273
        %3319 = vst.msk [vmem:[#allocation3 + $0x10] sm:$0xf] %vm3314, %v3275
        %3320 = vst.msk [vmem:[#allocation3 + $0x14] sm:$0xf] %vm3314, %v3277
        %3321 = vst.msk [vmem:[#allocation3 + $0x18] sm:$0xf] %vm3314, %v3279
        %3322 = vst.msk [vmem:[#allocation3 + $0x1c] sm:$0xf] %vm3314, %v3281
        %3323 = vst.msk [vmem:[#allocation3 + $0x20] sm:$0xf] %vm3314, %v3283
        %3324 = vst.msk [vmem:[#allocation3 + $0x24] sm:$0xf] %vm3314, %v3285
        %3325 = vst.msk [vmem:[#allocation3 + $0x28] sm:$0xf] %vm3314, %v3287
        %3326 = vst.msk [vmem:[#allocation3 + $0x2c] sm:$0xf] %vm3314, %v3289
        %3327 = vst.msk [vmem:[#allocation3 + $0x30] sm:$0xf] %vm3314, %v3291
        %3328 = vst.msk [vmem:[#allocation3 + $0x34] sm:$0xf] %vm3314, %v3293
        %3329 = vst.msk [vmem:[#allocation3 + $0x38] sm:$0xf] %vm3314, %v3295
        %3330 = vst.msk [vmem:[#allocation3 + $0x3c] sm:$0xf] %vm3314, %v3297
        %3331 = vrot.lane.b32.xlu0 %v2049, 32
        %v3332 = vpop.permute.xlu0 %3331
        %3333 = vrot.lane.b32.xlu0 %v2050, 32
        %v3334 = vpop.permute.xlu0 %3333
        %3335 = vrot.lane.b32.xlu0 %v2051, 32
        %v3336 = vpop.permute.xlu0 %3335
        %3337 = vrot.lane.b32.xlu0 %v2052, 32
        %v3338 = vpop.permute.xlu0 %3337
        %3339 = vrot.lane.b32.xlu0 %v2053, 32
        %v3340 = vpop.permute.xlu0 %3339
        %3341 = vrot.lane.b32.xlu0 %v2054, 32
        %v3342 = vpop.permute.xlu0 %3341
        %3343 = vrot.lane.b32.xlu0 %v2055, 32
        %v3344 = vpop.permute.xlu0 %3343
        %3345 = vrot.lane.b32.xlu0 %v2056, 32
        %v3346 = vpop.permute.xlu0 %3345
        %3347 = vrot.lane.b32.xlu0 %v2057, 32
        %v3348 = vpop.permute.xlu0 %3347
        %3349 = vrot.lane.b32.xlu0 %v2058, 32
        %v3350 = vpop.permute.xlu0 %3349
        %3351 = vrot.lane.b32.xlu0 %v2059, 32
        %v3352 = vpop.permute.xlu0 %3351
        %3353 = vrot.lane.b32.xlu0 %v2060, 32
        %v3354 = vpop.permute.xlu0 %3353
        %3355 = vrot.lane.b32.xlu0 %v2061, 32
        %v3356 = vpop.permute.xlu0 %3355
        %3357 = vrot.lane.b32.xlu0 %v2062, 32
        %v3358 = vpop.permute.xlu0 %3357
        %3359 = vrot.lane.b32.xlu0 %v2063, 32
        %v3360 = vpop.permute.xlu0 %3359
        %3361 = vrot.lane.b32.xlu0 %v2064, 32
        %v3362 = vpop.permute.xlu0 %3361
        %v3364 = vsel %vm2073, %v3332, 0
        %v3367 = vsel %vm2073, %v3334, 0
        %v3370 = vsel %vm2073, %v3336, 0
        %v3373 = vsel %vm2073, %v3338, 0
        %v3376 = vsel %vm2073, %v3340, 0
        %v3379 = vsel %vm2073, %v3342, 0
        %v3382 = vsel %vm2073, %v3344, 0
        %v3385 = vsel %vm2073, %v3346, 0
        %v3388 = vsel %vm2073, %v3348, 0
        %v3391 = vsel %vm2073, %v3350, 0
        %v3394 = vsel %vm2073, %v3352, 0
        %v3397 = vsel %vm2073, %v3354, 0
        %v3400 = vsel %vm2073, %v3356, 0
        %v3403 = vsel %vm2073, %v3358, 0
        %v3406 = vsel %vm2073, %v3360, 0
        %v3409 = vsel %vm2073, %v3362, 0
        %3411 = vmatpush.bf16.xpose.msra.mxu0 %v3409
        %3412 = vmatpush.bf16.xpose.msra.mxu0 %v3406
        %3413 = vmatpush.bf16.xpose.msra.mxu0 %v3403
        %3414 = vmatpush.bf16.xpose.msra.mxu0 %v3400
        %3415 = vmatpush.bf16.xpose.msra.mxu0 %v3397
        %3416 = vmatpush.bf16.xpose.msra.mxu0 %v3394
        %3417 = vmatpush.bf16.xpose.msra.mxu0 %v3391
        %3418 = vmatpush.bf16.xpose.msra.mxu0 %v3388
        %3419 = vmatmul.bf16.gmra.mxu0 %v3364
        %v3420 = vpop.f32.mrf.mxu0
        %v3421 = vadd.f32 %v1718, %v3420
        %v3422 = vpop.f32.mrf.mxu0
        %v3423 = vadd.f32 %v1719, %v3422
        %3424 = vmatmul.bf16.gmra.mxu0 %v3367
        %v3425 = vpop.f32.mrf.mxu0
        %v3426 = vadd.f32 %v1720, %v3425
        %v3427 = vpop.f32.mrf.mxu0
        %v3428 = vadd.f32 %v1721, %v3427
        %3429 = vmatmul.bf16.gmra.mxu0 %v3370
        %v3430 = vpop.f32.mrf.mxu0
        %v3431 = vadd.f32 %v1722, %v3430
        %v3432 = vpop.f32.mrf.mxu0
        %v3433 = vadd.f32 %v1723, %v3432
        %3434 = vmatmul.bf16.gmra.mxu0 %v3373
        %v3435 = vpop.f32.mrf.mxu0
        %v3436 = vadd.f32 %v1724, %v3435
        %v3437 = vpop.f32.mrf.mxu0
        %v3438 = vadd.f32 %v1725, %v3437
        %3439 = vmatmul.bf16.gmra.mxu0 %v3376
        %v3440 = vpop.f32.mrf.mxu0
        %v3441 = vadd.f32 %v1726, %v3440
        %v3442 = vpop.f32.mrf.mxu0
        %v3443 = vadd.f32 %v1727, %v3442
        %3444 = vmatmul.bf16.gmra.mxu0 %v3379
        %v3445 = vpop.f32.mrf.mxu0
        %v3446 = vadd.f32 %v1728, %v3445
        %v3447 = vpop.f32.mrf.mxu0
        %v3448 = vadd.f32 %v1729, %v3447
        %3449 = vmatmul.bf16.gmra.mxu0 %v3382
        %v3450 = vpop.f32.mrf.mxu0
        %v3451 = vadd.f32 %v1730, %v3450
        %v3452 = vpop.f32.mrf.mxu0
        %v3453 = vadd.f32 %v1731, %v3452
        %3454 = vmatmul.bf16.gmra.mxu0 %v3385
        %v3455 = vpop.f32.mrf.mxu0
        %v3456 = vadd.f32 %v1732, %v3455
        %v3457 = vpop.f32.mrf.mxu0
        %v3458 = vadd.f32 %v1733, %v3457
        %3459 = vdwg.mxu0
        %3460 = vmax.xlane.f32.xlu0 %v3421
        %v3461 = vpop.xlane.xlu0 %3460
        %3462 = vmax.xlane.f32.xlu0 %v3423
        %v3463 = vpop.xlane.xlu0 %3462
        %3464 = vmax.xlane.f32.xlu0 %v3426
        %v3465 = vpop.xlane.xlu0 %3464
        %3466 = vmax.xlane.f32.xlu0 %v3428
        %v3467 = vpop.xlane.xlu0 %3466
        %3468 = vmax.xlane.f32.xlu0 %v3431
        %v3469 = vpop.xlane.xlu0 %3468
        %3470 = vmax.xlane.f32.xlu0 %v3433
        %v3471 = vpop.xlane.xlu0 %3470
        %3472 = vmax.xlane.f32.xlu0 %v3436
        %v3473 = vpop.xlane.xlu0 %3472
        %3474 = vmax.xlane.f32.xlu0 %v3438
        %v3475 = vpop.xlane.xlu0 %3474
        %3476 = vmax.xlane.f32.xlu0 %v3441
        %v3477 = vpop.xlane.xlu0 %3476
        %3478 = vmax.xlane.f32.xlu0 %v3443
        %v3479 = vpop.xlane.xlu0 %3478
        %3480 = vmax.xlane.f32.xlu0 %v3446
        %v3481 = vpop.xlane.xlu0 %3480
        %3482 = vmax.xlane.f32.xlu0 %v3448
        %v3483 = vpop.xlane.xlu0 %3482
        %3484 = vmax.xlane.f32.xlu0 %v3451
        %v3485 = vpop.xlane.xlu0 %3484
        %3486 = vmax.xlane.f32.xlu0 %v3453
        %v3487 = vpop.xlane.xlu0 %3486
        %3488 = vmax.xlane.f32.xlu0 %v3456
        %v3489 = vpop.xlane.xlu0 %3488
        %3490 = vmax.xlane.f32.xlu0 %v3458
        %v3491 = vpop.xlane.xlu0 %3490
        %v3492 = vsub.f32 %v3421, %v3461
        %v3493 = vsub.f32 %v3423, %v3463
        %v3494 = vsub.f32 %v3426, %v3465
        %v3495 = vsub.f32 %v3428, %v3467
        %v3496 = vsub.f32 %v3431, %v3469
        %v3497 = vsub.f32 %v3433, %v3471
        %v3498 = vsub.f32 %v3436, %v3473
        %v3499 = vsub.f32 %v3438, %v3475
        %v3500 = vsub.f32 %v3441, %v3477
        %v3501 = vsub.f32 %v3443, %v3479
        %v3502 = vsub.f32 %v3446, %v3481
        %v3503 = vsub.f32 %v3448, %v3483
        %v3504 = vsub.f32 %v3451, %v3485
        %v3505 = vsub.f32 %v3453, %v3487
        %v3506 = vsub.f32 %v3456, %v3489
        %v3507 = vsub.f32 %v3458, %v3491
        %v3508 = vmul.f32 %v3492, 1.442695
        %v3509 = vpow.pop %v3508
        %v3510 = vmul.f32 %v3493, 1.442695
        %v3511 = vpow.pop %v3510
        %v3512 = vmul.f32 %v3494, 1.442695
        %v3513 = vpow.pop %v3512
        %v3514 = vmul.f32 %v3495, 1.442695
        %v3515 = vpow.pop %v3514
        %v3516 = vmul.f32 %v3496, 1.442695
        %v3517 = vpow.pop %v3516
        %v3518 = vmul.f32 %v3497, 1.442695
        %v3519 = vpow.pop %v3518
        %v3520 = vmul.f32 %v3498, 1.442695
        %v3521 = vpow.pop %v3520
        %v3522 = vmul.f32 %v3499, 1.442695
        %v3523 = vpow.pop %v3522
        %v3524 = vmul.f32 %v3500, 1.442695
        %v3525 = vpow.pop %v3524
        %v3526 = vmul.f32 %v3501, 1.442695
        %v3527 = vpow.pop %v3526
        %v3528 = vmul.f32 %v3502, 1.442695
        %v3529 = vpow.pop %v3528
        %v3530 = vmul.f32 %v3503, 1.442695
        %v3531 = vpow.pop %v3530
        %v3532 = vmul.f32 %v3504, 1.442695
        %v3533 = vpow.pop %v3532
        %v3534 = vmul.f32 %v3505, 1.442695
        %v3535 = vpow.pop %v3534
        %v3536 = vmul.f32 %v3506, 1.442695
        %v3537 = vpow.pop %v3536
        %v3538 = vmul.f32 %v3507, 1.442695
        %v3539 = vpow.pop %v3538
        %3540 = vadd.xlane.f32.xlu0 %v3509
        %v3541 = vpop.xlane.xlu0 %3540
        %3542 = vadd.xlane.f32.xlu0 %v3511
        %v3543 = vpop.xlane.xlu0 %3542
        %3544 = vadd.xlane.f32.xlu0 %v3513
        %v3545 = vpop.xlane.xlu0 %3544
        %3546 = vadd.xlane.f32.xlu0 %v3515
        %v3547 = vpop.xlane.xlu0 %3546
        %3548 = vadd.xlane.f32.xlu0 %v3517
        %v3549 = vpop.xlane.xlu0 %3548
        %3550 = vadd.xlane.f32.xlu0 %v3519
        %v3551 = vpop.xlane.xlu0 %3550
        %3552 = vadd.xlane.f32.xlu0 %v3521
        %v3553 = vpop.xlane.xlu0 %3552
        %3554 = vadd.xlane.f32.xlu0 %v3523
        %v3555 = vpop.xlane.xlu0 %3554
        %3556 = vadd.xlane.f32.xlu0 %v3525
        %v3557 = vpop.xlane.xlu0 %3556
        %3558 = vadd.xlane.f32.xlu0 %v3527
        %v3559 = vpop.xlane.xlu0 %3558
        %3560 = vadd.xlane.f32.xlu0 %v3529
        %v3561 = vpop.xlane.xlu0 %3560
        %3562 = vadd.xlane.f32.xlu0 %v3531
        %v3563 = vpop.xlane.xlu0 %3562
        %3564 = vadd.xlane.f32.xlu0 %v3533
        %v3565 = vpop.xlane.xlu0 %3564
        %3566 = vadd.xlane.f32.xlu0 %v3535
        %v3567 = vpop.xlane.xlu0 %3566
        %3568 = vadd.xlane.f32.xlu0 %v3537
        %v3569 = vpop.xlane.xlu0 %3568
        %3570 = vadd.xlane.f32.xlu0 %v3539
        %v3571 = vpop.xlane.xlu0 %3570
        %v3572 = vrcp.pop %v3541
        %v3573 = vrcp.pop %v3543
        %v3574 = vrcp.pop %v3545
        %v3575 = vrcp.pop %v3547
        %v3576 = vrcp.pop %v3549
        %v3577 = vrcp.pop %v3551
        %v3578 = vrcp.pop %v3553
        %v3579 = vrcp.pop %v3555
        %v3580 = vrcp.pop %v3557
        %v3581 = vrcp.pop %v3559
        %v3582 = vrcp.pop %v3561
        %v3583 = vrcp.pop %v3563
        %v3584 = vrcp.pop %v3565
        %v3585 = vrcp.pop %v3567
        %v3586 = vrcp.pop %v3569
        %v3587 = vrcp.pop %v3571
        %v3588 = vmul.f32 %v3509, %v3572
        %v3589 = vmul.f32 %v3511, %v3573
        %v3590 = vmul.f32 %v3513, %v3574
        %v3591 = vmul.f32 %v3515, %v3575
        %v3592 = vmul.f32 %v3517, %v3576
        %v3593 = vmul.f32 %v3519, %v3577
        %v3594 = vmul.f32 %v3521, %v3578
        %v3595 = vmul.f32 %v3523, %v3579
        %v3596 = vmul.f32 %v3525, %v3580
        %v3597 = vmul.f32 %v3527, %v3581
        %v3598 = vmul.f32 %v3529, %v3582
        %v3599 = vmul.f32 %v3531, %v3583
        %v3600 = vmul.f32 %v3533, %v3584
        %v3601 = vmul.f32 %v3535, %v3585
        %v3602 = vmul.f32 %v3537, %v3586
        %v3603 = vmul.f32 %v3539, %v3587
        %v3604 = vpack.c.bf16 %v3589, %v3588
        %v3605 = vpack.c.bf16 %v3591, %v3590
        %v3606 = vpack.c.bf16 %v3593, %v3592
        %v3607 = vpack.c.bf16 %v3595, %v3594
        %v3608 = vpack.c.bf16 %v3597, %v3596
        %v3609 = vpack.c.bf16 %v3599, %v3598
        %v3610 = vpack.c.bf16 %v3601, %v3600
        %v3611 = vpack.c.bf16 %v3603, %v3602
        %3612 = vrot.lane.b32.xlu0 %v2065, 32
        %v3613 = vpop.permute.xlu0 %3612
        %3614 = vrot.lane.b32.xlu0 %v2066, 32
        %v3615 = vpop.permute.xlu0 %3614
        %3616 = vrot.lane.b32.xlu0 %v2067, 32
        %v3617 = vpop.permute.xlu0 %3616
        %3618 = vrot.lane.b32.xlu0 %v2068, 32
        %v3619 = vpop.permute.xlu0 %3618
        %3620 = vrot.lane.b32.xlu0 %v2069, 32
        %v3621 = vpop.permute.xlu0 %3620
        %3622 = vrot.lane.b32.xlu0 %v2070, 32
        %v3623 = vpop.permute.xlu0 %3622
        %3624 = vrot.lane.b32.xlu0 %v2071, 32
        %v3625 = vpop.permute.xlu0 %3624
        %3626 = vrot.lane.b32.xlu0 %v2072, 32
        %v3627 = vpop.permute.xlu0 %3626
        %3636 = vmatpush.bf16.msra.mxu0 %v3627
        %3637 = vmatpush.bf16.msra.mxu0 %v3625
        %3638 = vmatpush.bf16.msra.mxu0 %v3623
        %3639 = vmatpush.bf16.msra.mxu0 %v3621
        %3640 = vmatpush.bf16.msra.mxu0 %v3619
        %3641 = vmatpush.bf16.msra.mxu0 %v3617
        %3642 = vmatpush.bf16.msra.mxu0 %v3615
        %3643 = vmatpush.bf16.msra.mxu0 %v3613
        %3644 = vmatmul.bf16.gmra.mxu0 %v3604
        %v3645 = vpop.f32.mrf.mxu0
        %v3646 = vadd.f32 0.0, %v3645
        %v3647 = vpop.f32.mrf.mxu0
        %v3648 = vadd.f32 0.0, %v3647
        %3649 = vmatmul.bf16.gmra.mxu0 %v3605
        %v3650 = vpop.f32.mrf.mxu0
        %v3651 = vadd.f32 0.0, %v3650
        %v3652 = vpop.f32.mrf.mxu0
        %v3653 = vadd.f32 0.0, %v3652
        %3654 = vmatmul.bf16.gmra.mxu0 %v3606
        %v3655 = vpop.f32.mrf.mxu0
        %v3656 = vadd.f32 0.0, %v3655
        %v3657 = vpop.f32.mrf.mxu0
        %v3658 = vadd.f32 0.0, %v3657
        %3659 = vmatmul.bf16.gmra.mxu0 %v3607
        %v3660 = vpop.f32.mrf.mxu0
        %v3661 = vadd.f32 0.0, %v3660
        %v3662 = vpop.f32.mrf.mxu0
        %v3663 = vadd.f32 0.0, %v3662
        %3664 = vmatmul.bf16.gmra.mxu0 %v3608
        %v3665 = vpop.f32.mrf.mxu0
        %v3666 = vadd.f32 0.0, %v3665
        %v3667 = vpop.f32.mrf.mxu0
        %v3668 = vadd.f32 0.0, %v3667
        %3669 = vmatmul.bf16.gmra.mxu0 %v3609
        %v3670 = vpop.f32.mrf.mxu0
        %v3671 = vadd.f32 0.0, %v3670
        %v3672 = vpop.f32.mrf.mxu0
        %v3673 = vadd.f32 0.0, %v3672
        %3674 = vmatmul.bf16.gmra.mxu0 %v3610
        %v3675 = vpop.f32.mrf.mxu0
        %v3676 = vadd.f32 0.0, %v3675
        %v3677 = vpop.f32.mrf.mxu0
        %v3678 = vadd.f32 0.0, %v3677
        %3679 = vmatmul.bf16.gmra.mxu0 %v3611
        %v3680 = vpop.f32.mrf.mxu0
        %v3681 = vadd.f32 0.0, %v3680
        %v3682 = vpop.f32.mrf.mxu0
        %v3683 = vadd.f32 0.0, %v3682
        %3684 = vdwg.mxu0
        %v3685 = vpack.c.bf16 %v3646, %v3646
        %v3686 = vpack.c.bf16 %v3648, %v3648
        %v3687 = vpack.c.bf16 %v3651, %v3651
        %v3688 = vpack.c.bf16 %v3653, %v3653
        %v3689 = vpack.c.bf16 %v3656, %v3656
        %v3690 = vpack.c.bf16 %v3658, %v3658
        %v3691 = vpack.c.bf16 %v3661, %v3661
        %v3692 = vpack.c.bf16 %v3663, %v3663
        %v3693 = vpack.c.bf16 %v3666, %v3666
        %v3694 = vpack.c.bf16 %v3668, %v3668
        %v3695 = vpack.c.bf16 %v3671, %v3671
        %v3696 = vpack.c.bf16 %v3673, %v3673
        %v3697 = vpack.c.bf16 %v3676, %v3676
        %v3698 = vpack.c.bf16 %v3678, %v3678
        %v3699 = vpack.c.bf16 %v3681, %v3681
        %v3700 = vpack.c.bf16 %v3683, %v3683
        %3717 = vrot.lane.b32.xlu0 %v3685, 96
        %v3718 = vpop.permute.xlu0 %3717
        %3719 = vrot.lane.b32.xlu0 %v3686, 96
        %v3720 = vpop.permute.xlu0 %3719
        %3721 = vrot.lane.b32.xlu0 %v3687, 96
        %v3722 = vpop.permute.xlu0 %3721
        %3723 = vrot.lane.b32.xlu0 %v3688, 96
        %v3724 = vpop.permute.xlu0 %3723
        %3725 = vrot.lane.b32.xlu0 %v3689, 96
        %v3726 = vpop.permute.xlu0 %3725
        %3727 = vrot.lane.b32.xlu0 %v3690, 96
        %v3728 = vpop.permute.xlu0 %3727
        %3729 = vrot.lane.b32.xlu0 %v3691, 96
        %v3730 = vpop.permute.xlu0 %3729
        %3731 = vrot.lane.b32.xlu0 %v3692, 96
        %v3732 = vpop.permute.xlu0 %3731
        %3733 = vrot.lane.b32.xlu0 %v3693, 96
        %v3734 = vpop.permute.xlu0 %3733
        %3735 = vrot.lane.b32.xlu0 %v3694, 96
        %v3736 = vpop.permute.xlu0 %3735
        %3737 = vrot.lane.b32.xlu0 %v3695, 96
        %v3738 = vpop.permute.xlu0 %3737
        %3739 = vrot.lane.b32.xlu0 %v3696, 96
        %v3740 = vpop.permute.xlu0 %3739
        %3741 = vrot.lane.b32.xlu0 %v3697, 96
        %v3742 = vpop.permute.xlu0 %3741
        %3743 = vrot.lane.b32.xlu0 %v3698, 96
        %v3744 = vpop.permute.xlu0 %3743
        %3745 = vrot.lane.b32.xlu0 %v3699, 96
        %v3746 = vpop.permute.xlu0 %3745
        %3747 = vrot.lane.b32.xlu0 %v3700, 96
        %v3748 = vpop.permute.xlu0 %3747
        %vm3765 = vcmask 1044224
        %3766 = vst.msk [vmem:[#allocation3] sm:$0xf] %vm3765, %v3718
        %3767 = vst.msk [vmem:[#allocation3 + $0x4] sm:$0xf] %vm3765, %v3720
        %3768 = vst.msk [vmem:[#allocation3 + $0x8] sm:$0xf] %vm3765, %v3722
        %3769 = vst.msk [vmem:[#allocation3 + $0xc] sm:$0xf] %vm3765, %v3724
        %3770 = vst.msk [vmem:[#allocation3 + $0x10] sm:$0xf] %vm3765, %v3726
        %3771 = vst.msk [vmem:[#allocation3 + $0x14] sm:$0xf] %vm3765, %v3728
        %3772 = vst.msk [vmem:[#allocation3 + $0x18] sm:$0xf] %vm3765, %v3730
        %3773 = vst.msk [vmem:[#allocation3 + $0x1c] sm:$0xf] %vm3765, %v3732
        %3774 = vst.msk [vmem:[#allocation3 + $0x20] sm:$0xf] %vm3765, %v3734
        %3775 = vst.msk [vmem:[#allocation3 + $0x24] sm:$0xf] %vm3765, %v3736
        %3776 = vst.msk [vmem:[#allocation3 + $0x28] sm:$0xf] %vm3765, %v3738
        %3777 = vst.msk [vmem:[#allocation3 + $0x2c] sm:$0xf] %vm3765, %v3740
        %3778 = vst.msk [vmem:[#allocation3 + $0x30] sm:$0xf] %vm3765, %v3742
        %3779 = vst.msk [vmem:[#allocation3 + $0x34] sm:$0xf] %vm3765, %v3744
        %3780 = vst.msk [vmem:[#allocation3 + $0x38] sm:$0xf] %vm3765, %v3746
        %3781 = vst.msk [vmem:[#allocation3 + $0x3c] sm:$0xf] %vm3765, %v3748
        %v3782 = vld [vmem:[#allocation3] sm:$0xf]
        %v3783 = vld [vmem:[#allocation3 + $0x4] sm:$0xf]
        %v3784 = vld [vmem:[#allocation3 + $0x8] sm:$0xf]
        %v3785 = vld [vmem:[#allocation3 + $0xc] sm:$0xf]
        %v3786 = vld [vmem:[#allocation3 + $0x10] sm:$0xf]
        %v3787 = vld [vmem:[#allocation3 + $0x14] sm:$0xf]
        %v3788 = vld [vmem:[#allocation3 + $0x18] sm:$0xf]
        %v3789 = vld [vmem:[#allocation3 + $0x1c] sm:$0xf]
        %v3790 = vld [vmem:[#allocation3 + $0x20] sm:$0xf]
        %v3791 = vld [vmem:[#allocation3 + $0x24] sm:$0xf]
        %v3792 = vld [vmem:[#allocation3 + $0x28] sm:$0xf]
        %v3793 = vld [vmem:[#allocation3 + $0x2c] sm:$0xf]
        %v3794 = vld [vmem:[#allocation3 + $0x30] sm:$0xf]
        %v3795 = vld [vmem:[#allocation3 + $0x34] sm:$0xf]
        %v3796 = vld [vmem:[#allocation3 + $0x38] sm:$0xf]
        %v3797 = vld [vmem:[#allocation3 + $0x3c] sm:$0xf]
        %v3798 = vld [vmem:[%s863] sm:$0xf]
        %v3799 = vld [vmem:[%s863 + $0x4] sm:$0xf]
        %v3800 = vld [vmem:[%s863 + $0x8] sm:$0xf]
        %v3801 = vld [vmem:[%s863 + $0xc] sm:$0xf]
        %v3802 = vld [vmem:[%s863 + $0x10] sm:$0xf]
        %v3803 = vld [vmem:[%s863 + $0x14] sm:$0xf]
        %v3804 = vld [vmem:[%s863 + $0x18] sm:$0xf]
        %v3805 = vld [vmem:[%s863 + $0x1c] sm:$0xf]
        %v3806 = vld [vmem:[%s863 + $0x20] sm:$0xf]
        %v3807 = vld [vmem:[%s863 + $0x24] sm:$0xf]
        %v3808 = vld [vmem:[%s863 + $0x28] sm:$0xf]
        %v3809 = vld [vmem:[%s863 + $0x2c] sm:$0xf]
        %v3810 = vld [vmem:[%s863 + $0x30] sm:$0xf]
        %v3811 = vld [vmem:[%s863 + $0x34] sm:$0xf]
        %v3812 = vld [vmem:[%s863 + $0x38] sm:$0xf]
        %v3813 = vld [vmem:[%s863 + $0x3c] sm:$0xf]
        %v3814 = vld [vmem:[%s866] sm:$0x1]
        %v3816 = vperm.slane %v3814, 0
        %v3834 = vunpack.c.l.b16 %v3782
        %v3835 = vunpack.c.l.b16 %v3783
        %v3836 = vunpack.c.l.b16 %v3784
        %v3837 = vunpack.c.l.b16 %v3785
        %v3838 = vunpack.c.l.b16 %v3786
        %v3839 = vunpack.c.l.b16 %v3787
        %v3840 = vunpack.c.l.b16 %v3788
        %v3841 = vunpack.c.l.b16 %v3789
        %v3842 = vunpack.c.l.b16 %v3790
        %v3843 = vunpack.c.l.b16 %v3791
        %v3844 = vunpack.c.l.b16 %v3792
        %v3845 = vunpack.c.l.b16 %v3793
        %v3846 = vunpack.c.l.b16 %v3794
        %v3847 = vunpack.c.l.b16 %v3795
        %v3848 = vunpack.c.l.b16 %v3796
        %v3849 = vunpack.c.l.b16 %v3797
        %v3850 = vpack.c.b16 %v3835, %v3834
        %v3851 = vpack.c.b16 %v3837, %v3836
        %v3852 = vpack.c.b16 %v3839, %v3838
        %v3853 = vpack.c.b16 %v3841, %v3840
        %v3854 = vpack.c.b16 %v3843, %v3842
        %v3855 = vpack.c.b16 %v3845, %v3844
        %v3856 = vpack.c.b16 %v3847, %v3846
        %v3857 = vpack.c.b16 %v3849, %v3848
        %v3882 = vunpack.c.l.b16 %v3798
        %v3883 = vunpack.c.l.b16 %v3799
        %v3884 = vunpack.c.l.b16 %v3800
        %v3885 = vunpack.c.l.b16 %v3801
        %v3886 = vunpack.c.l.b16 %v3802
        %v3887 = vunpack.c.l.b16 %v3803
        %v3888 = vunpack.c.l.b16 %v3804
        %v3889 = vunpack.c.l.b16 %v3805
        %v3890 = vunpack.c.l.b16 %v3806
        %v3891 = vunpack.c.l.b16 %v3807
        %v3892 = vunpack.c.l.b16 %v3808
        %v3893 = vunpack.c.l.b16 %v3809
        %v3894 = vunpack.c.l.b16 %v3810
        %v3895 = vunpack.c.l.b16 %v3811
        %v3896 = vunpack.c.l.b16 %v3812
        %v3897 = vunpack.c.l.b16 %v3813
        %v3898 = vpack.c.b16 %v3883, %v3882
        %v3899 = vpack.c.b16 %v3885, %v3884
        %v3900 = vpack.c.b16 %v3887, %v3886
        %v3901 = vpack.c.b16 %v3889, %v3888
        %v3902 = vpack.c.b16 %v3891, %v3890
        %v3903 = vpack.c.b16 %v3893, %v3892
        %v3904 = vpack.c.b16 %v3895, %v3894
        %v3905 = vpack.c.b16 %v3897, %v3896
        %3914 = vmatpush.bf16.msra.mxu0 %v3905
        %3915 = vmatpush.bf16.msra.mxu0 %v3904
        %3916 = vmatpush.bf16.msra.mxu0 %v3903
        %3917 = vmatpush.bf16.msra.mxu0 %v3902
        %3918 = vmatpush.bf16.msra.mxu0 %v3901
        %3919 = vmatpush.bf16.msra.mxu0 %v3900
        %3920 = vmatpush.bf16.msra.mxu0 %v3899
        %3921 = vmatpush.bf16.msra.mxu0 %v3898
        %3922 = vmatmul.bf16.gmra.mxu0 %v3850
        %v3923 = vpop.f32.mrf.mxu0
        %v3924 = vadd.f32 %v3816, %v3923
        %v3925 = vpop.f32.mrf.mxu0
        %v3926 = vadd.f32 %v3816, %v3925
        %3927 = vmatmul.bf16.gmra.mxu0 %v3851
        %v3928 = vpop.f32.mrf.mxu0
        %v3929 = vadd.f32 %v3816, %v3928
        %v3930 = vpop.f32.mrf.mxu0
        %v3931 = vadd.f32 %v3816, %v3930
        %3932 = vmatmul.bf16.gmra.mxu0 %v3852
        %v3933 = vpop.f32.mrf.mxu0
        %v3934 = vadd.f32 %v3816, %v3933
        %v3935 = vpop.f32.mrf.mxu0
        %v3936 = vadd.f32 %v3816, %v3935
        %3937 = vmatmul.bf16.gmra.mxu0 %v3853
        %v3938 = vpop.f32.mrf.mxu0
        %v3939 = vadd.f32 %v3816, %v3938
        %v3940 = vpop.f32.mrf.mxu0
        %v3941 = vadd.f32 %v3816, %v3940
        %3942 = vmatmul.bf16.gmra.mxu0 %v3854
        %v3943 = vpop.f32.mrf.mxu0
        %v3944 = vadd.f32 %v3816, %v3943
        %v3945 = vpop.f32.mrf.mxu0
        %v3946 = vadd.f32 %v3816, %v3945
        %3947 = vmatmul.bf16.gmra.mxu0 %v3855
        %v3948 = vpop.f32.mrf.mxu0
        %v3949 = vadd.f32 %v3816, %v3948
        %v3950 = vpop.f32.mrf.mxu0
        %v3951 = vadd.f32 %v3816, %v3950
        %3952 = vmatmul.bf16.gmra.mxu0 %v3856
        %v3953 = vpop.f32.mrf.mxu0
        %v3954 = vadd.f32 %v3816, %v3953
        %v3955 = vpop.f32.mrf.mxu0
        %v3956 = vadd.f32 %v3816, %v3955
        %3957 = vmatmul.bf16.gmra.mxu0 %v3857
        %v3958 = vpop.f32.mrf.mxu0
        %v3959 = vadd.f32 %v3816, %v3958
        %v3960 = vpop.f32.mrf.mxu0
        %v3961 = vadd.f32 %v3816, %v3960
        %3962 = vdwg.mxu0
        %v3963 = vadd.f32 %v1694, %v3924
        %v3964 = vadd.f32 %v1695, %v3926
        %v3965 = vadd.f32 %v1696, %v3929
        %v3966 = vadd.f32 %v1697, %v3931
        %v3967 = vadd.f32 %v1698, %v3934
        %v3968 = vadd.f32 %v1699, %v3936
        %v3969 = vadd.f32 %v1700, %v3939
        %v3970 = vadd.f32 %v1701, %v3941
        %v3971 = vadd.f32 %v1702, %v3944
        %v3972 = vadd.f32 %v1703, %v3946
        %v3973 = vadd.f32 %v1704, %v3949
        %v3974 = vadd.f32 %v1705, %v3951
        %v3975 = vadd.f32 %v1706, %v3954
        %v3976 = vadd.f32 %v1707, %v3956
        %v3977 = vadd.f32 %v1708, %v3959
        %v3978 = vadd.f32 %v1709, %v3961
        %v3979 = vld [vmem:[%s869] sm:$0x1]
        %v3980 = vld [vmem:[%s872] sm:$0x1]
        %3981 = vadd.xlane.f32.xlu0 %v3963
        %v3982 = vpop.xlane.xlu0 %3981
        %3983 = vadd.xlane.f32.xlu0 %v3964
        %v3984 = vpop.xlane.xlu0 %3983
        %3985 = vadd.xlane.f32.xlu0 %v3965
        %v3986 = vpop.xlane.xlu0 %3985
        %3987 = vadd.xlane.f32.xlu0 %v3966
        %v3988 = vpop.xlane.xlu0 %3987
        %3989 = vadd.xlane.f32.xlu0 %v3967
        %v3990 = vpop.xlane.xlu0 %3989
        %3991 = vadd.xlane.f32.xlu0 %v3968
        %v3992 = vpop.xlane.xlu0 %3991
        %3993 = vadd.xlane.f32.xlu0 %v3969
        %v3994 = vpop.xlane.xlu0 %3993
        %3995 = vadd.xlane.f32.xlu0 %v3970
        %v3996 = vpop.xlane.xlu0 %3995
        %3997 = vadd.xlane.f32.xlu0 %v3971
        %v3998 = vpop.xlane.xlu0 %3997
        %3999 = vadd.xlane.f32.xlu0 %v3972
        %v4000 = vpop.xlane.xlu0 %3999
        %4001 = vadd.xlane.f32.xlu0 %v3973
        %v4002 = vpop.xlane.xlu0 %4001
        %4003 = vadd.xlane.f32.xlu0 %v3974
        %v4004 = vpop.xlane.xlu0 %4003
        %4005 = vadd.xlane.f32.xlu0 %v3975
        %v4006 = vpop.xlane.xlu0 %4005
        %4007 = vadd.xlane.f32.xlu0 %v3976
        %v4008 = vpop.xlane.xlu0 %4007
        %4009 = vadd.xlane.f32.xlu0 %v3977
        %v4010 = vpop.xlane.xlu0 %4009
        %4011 = vadd.xlane.f32.xlu0 %v3978
        %v4012 = vpop.xlane.xlu0 %4011
        %v4013 = vrcp.pop 128.0
        %v4014 = vmul.f32 128.0, %v4013
        %v4015 = vsub.f32 1.0, %v4014
        %v4016 = vmul.f32 %v4013, %v4015
        %v4017 = vadd.f32 %v4013, %v4016
        %vm4018 = vweird.f32 %v4013
        %v4019 = vsel %vm4018, %v4013, %v4017
        %v4020 = vmul.f32 %v3982, %v4019
        %v4021 = vmul.f32 %v3984, %v4019
        %v4022 = vmul.f32 %v3986, %v4019
        %v4023 = vmul.f32 %v3988, %v4019
        %v4024 = vmul.f32 %v3990, %v4019
        %v4025 = vmul.f32 %v3992, %v4019
        %v4026 = vmul.f32 %v3994, %v4019
        %v4027 = vmul.f32 %v3996, %v4019
        %v4028 = vmul.f32 %v3998, %v4019
        %v4029 = vmul.f32 %v4000, %v4019
        %v4030 = vmul.f32 %v4002, %v4019
        %v4031 = vmul.f32 %v4004, %v4019
        %v4032 = vmul.f32 %v4006, %v4019
        %v4033 = vmul.f32 %v4008, %v4019
        %v4034 = vmul.f32 %v4010, %v4019
        %v4035 = vmul.f32 %v4012, %v4019
        %v4036 = vsub.f32 %v3963, %v4020
        %v4037 = vsub.f32 %v3964, %v4021
        %v4038 = vsub.f32 %v3965, %v4022
        %v4039 = vsub.f32 %v3966, %v4023
        %v4040 = vsub.f32 %v3967, %v4024
        %v4041 = vsub.f32 %v3968, %v4025
        %v4042 = vsub.f32 %v3969, %v4026
        %v4043 = vsub.f32 %v3970, %v4027
        %v4044 = vsub.f32 %v3971, %v4028
        %v4045 = vsub.f32 %v3972, %v4029
        %v4046 = vsub.f32 %v3973, %v4030
        %v4047 = vsub.f32 %v3974, %v4031
        %v4048 = vsub.f32 %v3975, %v4032
        %v4049 = vsub.f32 %v3976, %v4033
        %v4050 = vsub.f32 %v3977, %v4034
        %v4051 = vsub.f32 %v3978, %v4035
        %v4052 = vmul.f32 %v4036, %v4036
        %v4053 = vmul.f32 %v4037, %v4037
        %v4054 = vmul.f32 %v4038, %v4038
        %v4055 = vmul.f32 %v4039, %v4039
        %v4056 = vmul.f32 %v4040, %v4040
        %v4057 = vmul.f32 %v4041, %v4041
        %v4058 = vmul.f32 %v4042, %v4042
        %v4059 = vmul.f32 %v4043, %v4043
        %v4060 = vmul.f32 %v4044, %v4044
        %v4061 = vmul.f32 %v4045, %v4045
        %v4062 = vmul.f32 %v4046, %v4046
        %v4063 = vmul.f32 %v4047, %v4047
        %v4064 = vmul.f32 %v4048, %v4048
        %v4065 = vmul.f32 %v4049, %v4049
        %v4066 = vmul.f32 %v4050, %v4050
        %v4067 = vmul.f32 %v4051, %v4051
        %4068 = vadd.xlane.f32.xlu0 %v4052
        %v4069 = vpop.xlane.xlu0 %4068
        %4070 = vadd.xlane.f32.xlu0 %v4053
        %v4071 = vpop.xlane.xlu0 %4070
        %4072 = vadd.xlane.f32.xlu0 %v4054
        %v4073 = vpop.xlane.xlu0 %4072
        %4074 = vadd.xlane.f32.xlu0 %v4055
        %v4075 = vpop.xlane.xlu0 %4074
        %4076 = vadd.xlane.f32.xlu0 %v4056
        %v4077 = vpop.xlane.xlu0 %4076
        %4078 = vadd.xlane.f32.xlu0 %v4057
        %v4079 = vpop.xlane.xlu0 %4078
        %4080 = vadd.xlane.f32.xlu0 %v4058
        %v4081 = vpop.xlane.xlu0 %4080
        %4082 = vadd.xlane.f32.xlu0 %v4059
        %v4083 = vpop.xlane.xlu0 %4082
        %4084 = vadd.xlane.f32.xlu0 %v4060
        %v4085 = vpop.xlane.xlu0 %4084
        %4086 = vadd.xlane.f32.xlu0 %v4061
        %v4087 = vpop.xlane.xlu0 %4086
        %4088 = vadd.xlane.f32.xlu0 %v4062
        %v4089 = vpop.xlane.xlu0 %4088
        %4090 = vadd.xlane.f32.xlu0 %v4063
        %v4091 = vpop.xlane.xlu0 %4090
        %4092 = vadd.xlane.f32.xlu0 %v4064
        %v4093 = vpop.xlane.xlu0 %4092
        %4094 = vadd.xlane.f32.xlu0 %v4065
        %v4095 = vpop.xlane.xlu0 %4094
        %4096 = vadd.xlane.f32.xlu0 %v4066
        %v4097 = vpop.xlane.xlu0 %4096
        %4098 = vadd.xlane.f32.xlu0 %v4067
        %v4099 = vpop.xlane.xlu0 %4098
        %v4100 = vmul.f32 %v4069, %v4019
        %v4101 = vmul.f32 %v4071, %v4019
        %v4102 = vmul.f32 %v4073, %v4019
        %v4103 = vmul.f32 %v4075, %v4019
        %v4104 = vmul.f32 %v4077, %v4019
        %v4105 = vmul.f32 %v4079, %v4019
        %v4106 = vmul.f32 %v4081, %v4019
        %v4107 = vmul.f32 %v4083, %v4019
        %v4108 = vmul.f32 %v4085, %v4019
        %v4109 = vmul.f32 %v4087, %v4019
        %v4110 = vmul.f32 %v4089, %v4019
        %v4111 = vmul.f32 %v4091, %v4019
        %v4112 = vmul.f32 %v4093, %v4019
        %v4113 = vmul.f32 %v4095, %v4019
        %v4114 = vmul.f32 %v4097, %v4019
        %v4115 = vmul.f32 %v4099, %v4019
        %v4116 = vadd.f32 %v4100, 1e-12
        %v4117 = vadd.f32 %v4101, 1e-12
        %v4118 = vadd.f32 %v4102, 1e-12
        %v4119 = vadd.f32 %v4103, 1e-12
        %v4120 = vadd.f32 %v4104, 1e-12
        %v4121 = vadd.f32 %v4105, 1e-12
        %v4122 = vadd.f32 %v4106, 1e-12
        %v4123 = vadd.f32 %v4107, 1e-12
        %v4124 = vadd.f32 %v4108, 1e-12
        %v4125 = vadd.f32 %v4109, 1e-12
        %v4126 = vadd.f32 %v4110, 1e-12
        %v4127 = vadd.f32 %v4111, 1e-12
        %v4128 = vadd.f32 %v4112, 1e-12
        %v4129 = vadd.f32 %v4113, 1e-12
        %v4130 = vadd.f32 %v4114, 1e-12
        %v4131 = vadd.f32 %v4115, 1e-12
        %v4132 = vrsqrt.pop %v4116
        %v4133 = vmul.f32 %v4132, %v4116
        %v4134 = vmul.f32 %v4133, %v4132
        %v4135 = vmul.f32 0.5, %v4134
        %v4136 = vsub.f32 1.5, %v4135
        %v4137 = vmul.f32 %v4132, %v4136
        %vm4138 = vweird.f32 %v4116
        %vm4139 = vweird.f32 %v4132
        %vm4140 = vmor %vm4138, %vm4139
        %v4141 = vsel %vm4140, %v4132, %v4137
        %v4142 = vrsqrt.pop %v4117
        %v4143 = vmul.f32 %v4142, %v4117
        %v4144 = vmul.f32 %v4143, %v4142
        %v4145 = vmul.f32 0.5, %v4144
        %v4146 = vsub.f32 1.5, %v4145
        %v4147 = vmul.f32 %v4142, %v4146
        %vm4148 = vweird.f32 %v4117
        %vm4149 = vweird.f32 %v4142
        %vm4150 = vmor %vm4148, %vm4149
        %v4151 = vsel %vm4150, %v4142, %v4147
        %v4152 = vrsqrt.pop %v4118
        %v4153 = vmul.f32 %v4152, %v4118
        %v4154 = vmul.f32 %v4153, %v4152
        %v4155 = vmul.f32 0.5, %v4154
        %v4156 = vsub.f32 1.5, %v4155
        %v4157 = vmul.f32 %v4152, %v4156
        %vm4158 = vweird.f32 %v4118
        %vm4159 = vweird.f32 %v4152
        %vm4160 = vmor %vm4158, %vm4159
        %v4161 = vsel %vm4160, %v4152, %v4157
        %v4162 = vrsqrt.pop %v4119
        %v4163 = vmul.f32 %v4162, %v4119
        %v4164 = vmul.f32 %v4163, %v4162
        %v4165 = vmul.f32 0.5, %v4164
        %v4166 = vsub.f32 1.5, %v4165
        %v4167 = vmul.f32 %v4162, %v4166
        %vm4168 = vweird.f32 %v4119
        %vm4169 = vweird.f32 %v4162
        %vm4170 = vmor %vm4168, %vm4169
        %v4171 = vsel %vm4170, %v4162, %v4167
        %v4172 = vrsqrt.pop %v4120
        %v4173 = vmul.f32 %v4172, %v4120
        %v4174 = vmul.f32 %v4173, %v4172
        %v4175 = vmul.f32 0.5, %v4174
        %v4176 = vsub.f32 1.5, %v4175
        %v4177 = vmul.f32 %v4172, %v4176
        %vm4178 = vweird.f32 %v4120
        %vm4179 = vweird.f32 %v4172
        %vm4180 = vmor %vm4178, %vm4179
        %v4181 = vsel %vm4180, %v4172, %v4177
        %v4182 = vrsqrt.pop %v4121
        %v4183 = vmul.f32 %v4182, %v4121
        %v4184 = vmul.f32 %v4183, %v4182
        %v4185 = vmul.f32 0.5, %v4184
        %v4186 = vsub.f32 1.5, %v4185
        %v4187 = vmul.f32 %v4182, %v4186
        %vm4188 = vweird.f32 %v4121
        %vm4189 = vweird.f32 %v4182
        %vm4190 = vmor %vm4188, %vm4189
        %v4191 = vsel %vm4190, %v4182, %v4187
        %v4192 = vrsqrt.pop %v4122
        %v4193 = vmul.f32 %v4192, %v4122
        %v4194 = vmul.f32 %v4193, %v4192
        %v4195 = vmul.f32 0.5, %v4194
        %v4196 = vsub.f32 1.5, %v4195
        %v4197 = vmul.f32 %v4192, %v4196
        %vm4198 = vweird.f32 %v4122
        %vm4199 = vweird.f32 %v4192
        %vm4200 = vmor %vm4198, %vm4199
        %v4201 = vsel %vm4200, %v4192, %v4197
        %v4202 = vrsqrt.pop %v4123
        %v4203 = vmul.f32 %v4202, %v4123
        %v4204 = vmul.f32 %v4203, %v4202
        %v4205 = vmul.f32 0.5, %v4204
        %v4206 = vsub.f32 1.5, %v4205
        %v4207 = vmul.f32 %v4202, %v4206
        %vm4208 = vweird.f32 %v4123
        %vm4209 = vweird.f32 %v4202
        %vm4210 = vmor %vm4208, %vm4209
        %v4211 = vsel %vm4210, %v4202, %v4207
        %v4212 = vrsqrt.pop %v4124
        %v4213 = vmul.f32 %v4212, %v4124
        %v4214 = vmul.f32 %v4213, %v4212
        %v4215 = vmul.f32 0.5, %v4214
        %v4216 = vsub.f32 1.5, %v4215
        %v4217 = vmul.f32 %v4212, %v4216
        %vm4218 = vweird.f32 %v4124
        %vm4219 = vweird.f32 %v4212
        %vm4220 = vmor %vm4218, %vm4219
        %v4221 = vsel %vm4220, %v4212, %v4217
        %v4222 = vrsqrt.pop %v4125
        %v4223 = vmul.f32 %v4222, %v4125
        %v4224 = vmul.f32 %v4223, %v4222
        %v4225 = vmul.f32 0.5, %v4224
        %v4226 = vsub.f32 1.5, %v4225
        %v4227 = vmul.f32 %v4222, %v4226
        %vm4228 = vweird.f32 %v4125
        %vm4229 = vweird.f32 %v4222
        %vm4230 = vmor %vm4228, %vm4229
        %v4231 = vsel %vm4230, %v4222, %v4227
        %v4232 = vrsqrt.pop %v4126
        %v4233 = vmul.f32 %v4232, %v4126
        %v4234 = vmul.f32 %v4233, %v4232
        %v4235 = vmul.f32 0.5, %v4234
        %v4236 = vsub.f32 1.5, %v4235
        %v4237 = vmul.f32 %v4232, %v4236
        %vm4238 = vweird.f32 %v4126
        %vm4239 = vweird.f32 %v4232
        %vm4240 = vmor %vm4238, %vm4239
        %v4241 = vsel %vm4240, %v4232, %v4237
        %v4242 = vrsqrt.pop %v4127
        %v4243 = vmul.f32 %v4242, %v4127
        %v4244 = vmul.f32 %v4243, %v4242
        %v4245 = vmul.f32 0.5, %v4244
        %v4246 = vsub.f32 1.5, %v4245
        %v4247 = vmul.f32 %v4242, %v4246
        %vm4248 = vweird.f32 %v4127
        %vm4249 = vweird.f32 %v4242
        %vm4250 = vmor %vm4248, %vm4249
        %v4251 = vsel %vm4250, %v4242, %v4247
        %v4252 = vrsqrt.pop %v4128
        %v4253 = vmul.f32 %v4252, %v4128
        %v4254 = vmul.f32 %v4253, %v4252
        %v4255 = vmul.f32 0.5, %v4254
        %v4256 = vsub.f32 1.5, %v4255
        %v4257 = vmul.f32 %v4252, %v4256
        %vm4258 = vweird.f32 %v4128
        %vm4259 = vweird.f32 %v4252
        %vm4260 = vmor %vm4258, %vm4259
        %v4261 = vsel %vm4260, %v4252, %v4257
        %v4262 = vrsqrt.pop %v4129
        %v4263 = vmul.f32 %v4262, %v4129
        %v4264 = vmul.f32 %v4263, %v4262
        %v4265 = vmul.f32 0.5, %v4264
        %v4266 = vsub.f32 1.5, %v4265
        %v4267 = vmul.f32 %v4262, %v4266
        %vm4268 = vweird.f32 %v4129
        %vm4269 = vweird.f32 %v4262
        %vm4270 = vmor %vm4268, %vm4269
        %v4271 = vsel %vm4270, %v4262, %v4267
        %v4272 = vrsqrt.pop %v4130
        %v4273 = vmul.f32 %v4272, %v4130
        %v4274 = vmul.f32 %v4273, %v4272
        %v4275 = vmul.f32 0.5, %v4274
        %v4276 = vsub.f32 1.5, %v4275
        %v4277 = vmul.f32 %v4272, %v4276
        %vm4278 = vweird.f32 %v4130
        %vm4279 = vweird.f32 %v4272
        %vm4280 = vmor %vm4278, %vm4279
        %v4281 = vsel %vm4280, %v4272, %v4277
        %v4282 = vrsqrt.pop %v4131
        %v4283 = vmul.f32 %v4282, %v4131
        %v4284 = vmul.f32 %v4283, %v4282
        %v4285 = vmul.f32 0.5, %v4284
        %v4286 = vsub.f32 1.5, %v4285
        %v4287 = vmul.f32 %v4282, %v4286
        %vm4288 = vweird.f32 %v4131
        %vm4289 = vweird.f32 %v4282
        %vm4290 = vmor %vm4288, %vm4289
        %v4291 = vsel %vm4290, %v4282, %v4287
        %v4292 = vmul.f32 %v4036, %v4141
        %v4293 = vmul.f32 %v4037, %v4151
        %v4294 = vmul.f32 %v4038, %v4161
        %v4295 = vmul.f32 %v4039, %v4171
        %v4296 = vmul.f32 %v4040, %v4181
        %v4297 = vmul.f32 %v4041, %v4191
        %v4298 = vmul.f32 %v4042, %v4201
        %v4299 = vmul.f32 %v4043, %v4211
        %v4300 = vmul.f32 %v4044, %v4221
        %v4301 = vmul.f32 %v4045, %v4231
        %v4302 = vmul.f32 %v4046, %v4241
        %v4303 = vmul.f32 %v4047, %v4251
        %v4304 = vmul.f32 %v4048, %v4261
        %v4305 = vmul.f32 %v4049, %v4271
        %v4306 = vmul.f32 %v4050, %v4281
        %v4307 = vmul.f32 %v4051, %v4291
        %v4309 = vperm.slane %v3979, 0
        %v4311 = vmul.f32 %v4292, %v4309
        %v4312 = vmul.f32 %v4293, %v4309
        %v4313 = vmul.f32 %v4294, %v4309
        %v4314 = vmul.f32 %v4295, %v4309
        %v4315 = vmul.f32 %v4296, %v4309
        %v4316 = vmul.f32 %v4297, %v4309
        %v4317 = vmul.f32 %v4298, %v4309
        %v4318 = vmul.f32 %v4299, %v4309
        %v4319 = vmul.f32 %v4300, %v4309
        %v4320 = vmul.f32 %v4301, %v4309
        %v4321 = vmul.f32 %v4302, %v4309
        %v4322 = vmul.f32 %v4303, %v4309
        %v4323 = vmul.f32 %v4304, %v4309
        %v4324 = vmul.f32 %v4305, %v4309
        %v4325 = vmul.f32 %v4306, %v4309
        %v4326 = vmul.f32 %v4307, %v4309
        %v4328 = vperm.slane %v3980, 0
        %v4330 = vadd.f32 %v4311, %v4328
        %v4331 = vadd.f32 %v4312, %v4328
        %v4332 = vadd.f32 %v4313, %v4328
        %v4333 = vadd.f32 %v4314, %v4328
        %v4334 = vadd.f32 %v4315, %v4328
        %v4335 = vadd.f32 %v4316, %v4328
        %v4336 = vadd.f32 %v4317, %v4328
        %v4337 = vadd.f32 %v4318, %v4328
        %v4338 = vadd.f32 %v4319, %v4328
        %v4339 = vadd.f32 %v4320, %v4328
        %v4340 = vadd.f32 %v4321, %v4328
        %v4341 = vadd.f32 %v4322, %v4328
        %v4342 = vadd.f32 %v4323, %v4328
        %v4343 = vadd.f32 %v4324, %v4328
        %v4344 = vadd.f32 %v4325, %v4328
        %v4345 = vadd.f32 %v4326, %v4328
        %v4346 = vpack.c.bf16 %v4331, %v4330
        %v4347 = vpack.c.bf16 %v4333, %v4332
        %v4348 = vpack.c.bf16 %v4335, %v4334
        %v4349 = vpack.c.bf16 %v4337, %v4336
        %v4350 = vpack.c.bf16 %v4339, %v4338
        %v4351 = vpack.c.bf16 %v4341, %v4340
        %v4352 = vpack.c.bf16 %v4343, %v4342
        %v4353 = vpack.c.bf16 %v4345, %v4344
        %v4354 = vld [vmem:[%s751] sm:$0xff]
        %v4355 = vld [vmem:[%s751 + $0x8] sm:$0xff]
        %v4356 = vld [vmem:[%s751 + $0x10] sm:$0xff]
        %v4357 = vld [vmem:[%s751 + $0x18] sm:$0xff]
        %v4358 = vld [vmem:[%s751 + $0x20] sm:$0xff]
        %v4359 = vld [vmem:[%s751 + $0x28] sm:$0xff]
        %v4360 = vld [vmem:[%s751 + $0x30] sm:$0xff]
        %v4361 = vld [vmem:[%s751 + $0x38] sm:$0xff]
        %v4362 = vld [vmem:[%s751 + $0x40] sm:$0xff]
        %v4363 = vld [vmem:[%s751 + $0x48] sm:$0xff]
        %v4364 = vld [vmem:[%s751 + $0x50] sm:$0xff]
        %v4365 = vld [vmem:[%s751 + $0x58] sm:$0xff]
        %v4366 = vld [vmem:[%s751 + $0x60] sm:$0xff]
        %v4367 = vld [vmem:[%s751 + $0x68] sm:$0xff]
        %v4368 = vld [vmem:[%s751 + $0x70] sm:$0xff]
        %v4369 = vld [vmem:[%s751 + $0x78] sm:$0xff]
        %v4370 = vld [vmem:[%s751 + $0x80] sm:$0xff]
        %v4371 = vld [vmem:[%s751 + $0x88] sm:$0xff]
        %v4372 = vld [vmem:[%s751 + $0x90] sm:$0xff]
        %v4373 = vld [vmem:[%s751 + $0x98] sm:$0xff]
        %v4374 = vld [vmem:[%s751 + $0xa0] sm:$0xff]
        %v4375 = vld [vmem:[%s751 + $0xa8] sm:$0xff]
        %v4376 = vld [vmem:[%s751 + $0xb0] sm:$0xff]
        %v4377 = vld [vmem:[%s751 + $0xb8] sm:$0xff]
        %v4378 = vld [vmem:[%s751 + $0xc0] sm:$0xff]
        %v4379 = vld [vmem:[%s751 + $0xc8] sm:$0xff]
        %v4380 = vld [vmem:[%s751 + $0xd0] sm:$0xff]
        %v4381 = vld [vmem:[%s751 + $0xd8] sm:$0xff]
        %v4382 = vld [vmem:[%s751 + $0xe0] sm:$0xff]
        %v4383 = vld [vmem:[%s751 + $0xe8] sm:$0xff]
        %v4384 = vld [vmem:[%s751 + $0xf0] sm:$0xff]
        %v4385 = vld [vmem:[%s751 + $0xf8] sm:$0xff]
        %v4386 = vld [vmem:[%s876] sm:$0xf]
        %v4388 = vperm.slane %v4386, 0
        %v4389 = vperm.slane %v4386, 1
        %v4390 = vperm.slane %v4386, 2
        %v4391 = vperm.slane %v4386, 3
        %v4428 = vunpack.c.l.b16 %v4354
        %v4429 = vunpack.c.h.b16 %v4354
        %v4430 = vunpack.c.l.b16 %v4355
        %v4431 = vunpack.c.h.b16 %v4355
        %v4432 = vunpack.c.l.b16 %v4356
        %v4433 = vunpack.c.h.b16 %v4356
        %v4434 = vunpack.c.l.b16 %v4357
        %v4435 = vunpack.c.h.b16 %v4357
        %v4436 = vunpack.c.l.b16 %v4358
        %v4437 = vunpack.c.h.b16 %v4358
        %v4438 = vunpack.c.l.b16 %v4359
        %v4439 = vunpack.c.h.b16 %v4359
        %v4440 = vunpack.c.l.b16 %v4360
        %v4441 = vunpack.c.h.b16 %v4360
        %v4442 = vunpack.c.l.b16 %v4361
        %v4443 = vunpack.c.h.b16 %v4361
        %v4444 = vunpack.c.l.b16 %v4362
        %v4445 = vunpack.c.h.b16 %v4362
        %v4446 = vunpack.c.l.b16 %v4363
        %v4447 = vunpack.c.h.b16 %v4363
        %v4448 = vunpack.c.l.b16 %v4364
        %v4449 = vunpack.c.h.b16 %v4364
        %v4450 = vunpack.c.l.b16 %v4365
        %v4451 = vunpack.c.h.b16 %v4365
        %v4452 = vunpack.c.l.b16 %v4366
        %v4453 = vunpack.c.h.b16 %v4366
        %v4454 = vunpack.c.l.b16 %v4367
        %v4455 = vunpack.c.h.b16 %v4367
        %v4456 = vunpack.c.l.b16 %v4368
        %v4457 = vunpack.c.h.b16 %v4368
        %v4458 = vunpack.c.l.b16 %v4369
        %v4459 = vunpack.c.h.b16 %v4369
        %v4460 = vunpack.c.l.b16 %v4370
        %v4461 = vunpack.c.h.b16 %v4370
        %v4462 = vunpack.c.l.b16 %v4371
        %v4463 = vunpack.c.h.b16 %v4371
        %v4464 = vunpack.c.l.b16 %v4372
        %v4465 = vunpack.c.h.b16 %v4372
        %v4466 = vunpack.c.l.b16 %v4373
        %v4467 = vunpack.c.h.b16 %v4373
        %v4468 = vunpack.c.l.b16 %v4374
        %v4469 = vunpack.c.h.b16 %v4374
        %v4470 = vunpack.c.l.b16 %v4375
        %v4471 = vunpack.c.h.b16 %v4375
        %v4472 = vunpack.c.l.b16 %v4376
        %v4473 = vunpack.c.h.b16 %v4376
        %v4474 = vunpack.c.l.b16 %v4377
        %v4475 = vunpack.c.h.b16 %v4377
        %v4476 = vunpack.c.l.b16 %v4378
        %v4477 = vunpack.c.h.b16 %v4378
        %v4478 = vunpack.c.l.b16 %v4379
        %v4479 = vunpack.c.h.b16 %v4379
        %v4480 = vunpack.c.l.b16 %v4380
        %v4481 = vunpack.c.h.b16 %v4380
        %v4482 = vunpack.c.l.b16 %v4381
        %v4483 = vunpack.c.h.b16 %v4381
        %v4484 = vunpack.c.l.b16 %v4382
        %v4485 = vunpack.c.h.b16 %v4382
        %v4486 = vunpack.c.l.b16 %v4383
        %v4487 = vunpack.c.h.b16 %v4383
        %v4488 = vunpack.c.l.b16 %v4384
        %v4489 = vunpack.c.h.b16 %v4384
        %v4490 = vunpack.c.l.b16 %v4385
        %v4491 = vunpack.c.h.b16 %v4385
        %v4492 = vpack.c.b16 %v4432, %v4428
        %v4493 = vpack.c.b16 %v4433, %v4429
        %v4494 = vpack.c.b16 %v4434, %v4430
        %v4495 = vpack.c.b16 %v4435, %v4431
        %v4496 = vpack.c.b16 %v4440, %v4436
        %v4497 = vpack.c.b16 %v4441, %v4437
        %v4498 = vpack.c.b16 %v4442, %v4438
        %v4499 = vpack.c.b16 %v4443, %v4439
        %v4500 = vpack.c.b16 %v4448, %v4444
        %v4501 = vpack.c.b16 %v4449, %v4445
        %v4502 = vpack.c.b16 %v4450, %v4446
        %v4503 = vpack.c.b16 %v4451, %v4447
        %v4504 = vpack.c.b16 %v4456, %v4452
        %v4505 = vpack.c.b16 %v4457, %v4453
        %v4506 = vpack.c.b16 %v4458, %v4454
        %v4507 = vpack.c.b16 %v4459, %v4455
        %v4508 = vpack.c.b16 %v4464, %v4460
        %v4509 = vpack.c.b16 %v4465, %v4461
        %v4510 = vpack.c.b16 %v4466, %v4462
        %v4511 = vpack.c.b16 %v4467, %v4463
        %v4512 = vpack.c.b16 %v4472, %v4468
        %v4513 = vpack.c.b16 %v4473, %v4469
        %v4514 = vpack.c.b16 %v4474, %v4470
        %v4515 = vpack.c.b16 %v4475, %v4471
        %v4516 = vpack.c.b16 %v4480, %v4476
        %v4517 = vpack.c.b16 %v4481, %v4477
        %v4518 = vpack.c.b16 %v4482, %v4478
        %v4519 = vpack.c.b16 %v4483, %v4479
        %v4520 = vpack.c.b16 %v4488, %v4484
        %v4521 = vpack.c.b16 %v4489, %v4485
        %v4522 = vpack.c.b16 %v4490, %v4486
        %v4523 = vpack.c.b16 %v4491, %v4487
        %4556 = vmatpush.bf16.msra.mxu0 %v4520
        %4557 = vmatpush.bf16.msra.mxu0 %v4516
        %4558 = vmatpush.bf16.msra.mxu0 %v4512
        %4559 = vmatpush.bf16.msra.mxu0 %v4508
        %4560 = vmatpush.bf16.msra.mxu0 %v4504
        %4561 = vmatpush.bf16.msra.mxu0 %v4500
        %4562 = vmatpush.bf16.msra.mxu0 %v4496
        %4563 = vmatpush.bf16.msra.mxu0 %v4492
        %4564 = vmatmul.bf16.gmra.mxu0 %v4346
        %v4565 = vpop.f32.mrf.mxu0
        %v4566 = vadd.f32 %v4388, %v4565
        %v4567 = vpop.f32.mrf.mxu0
        %v4568 = vadd.f32 %v4388, %v4567
        %4569 = vmatmul.bf16.gmra.mxu0 %v4347
        %v4570 = vpop.f32.mrf.mxu0
        %v4571 = vadd.f32 %v4388, %v4570
        %v4572 = vpop.f32.mrf.mxu0
        %v4573 = vadd.f32 %v4388, %v4572
        %4574 = vmatmul.bf16.gmra.mxu0 %v4348
        %v4575 = vpop.f32.mrf.mxu0
        %v4576 = vadd.f32 %v4388, %v4575
        %v4577 = vpop.f32.mrf.mxu0
        %v4578 = vadd.f32 %v4388, %v4577
        %4579 = vmatmul.bf16.gmra.mxu0 %v4349
        %v4580 = vpop.f32.mrf.mxu0
        %v4581 = vadd.f32 %v4388, %v4580
        %v4582 = vpop.f32.mrf.mxu0
        %v4583 = vadd.f32 %v4388, %v4582
        %4584 = vmatmul.bf16.gmra.mxu0 %v4350
        %v4585 = vpop.f32.mrf.mxu0
        %v4586 = vadd.f32 %v4388, %v4585
        %v4587 = vpop.f32.mrf.mxu0
        %v4588 = vadd.f32 %v4388, %v4587
        %4589 = vmatmul.bf16.gmra.mxu0 %v4351
        %v4590 = vpop.f32.mrf.mxu0
        %v4591 = vadd.f32 %v4388, %v4590
        %v4592 = vpop.f32.mrf.mxu0
        %v4593 = vadd.f32 %v4388, %v4592
        %4594 = vmatmul.bf16.gmra.mxu0 %v4352
        %v4595 = vpop.f32.mrf.mxu0
        %v4596 = vadd.f32 %v4388, %v4595
        %v4597 = vpop.f32.mrf.mxu0
        %v4598 = vadd.f32 %v4388, %v4597
        %4599 = vmatmul.bf16.gmra.mxu0 %v4353
        %v4600 = vpop.f32.mrf.mxu0
        %v4601 = vadd.f32 %v4388, %v4600
        %v4602 = vpop.f32.mrf.mxu0
        %v4603 = vadd.f32 %v4388, %v4602
        %4604 = vdwg.mxu0
        %4605 = vmatpush.bf16.msra.mxu0 %v4521
        %4606 = vmatpush.bf16.msra.mxu0 %v4517
        %4607 = vmatpush.bf16.msra.mxu0 %v4513
        %4608 = vmatpush.bf16.msra.mxu0 %v4509
        %4609 = vmatpush.bf16.msra.mxu0 %v4505
        %4610 = vmatpush.bf16.msra.mxu0 %v4501
        %4611 = vmatpush.bf16.msra.mxu0 %v4497
        %4612 = vmatpush.bf16.msra.mxu0 %v4493
        %4613 = vmatmul.bf16.gmra.mxu0 %v4346
        %v4614 = vpop.f32.mrf.mxu0
        %v4615 = vadd.f32 %v4389, %v4614
        %v4616 = vpop.f32.mrf.mxu0
        %v4617 = vadd.f32 %v4389, %v4616
        %4618 = vmatmul.bf16.gmra.mxu0 %v4347
        %v4619 = vpop.f32.mrf.mxu0
        %v4620 = vadd.f32 %v4389, %v4619
        %v4621 = vpop.f32.mrf.mxu0
        %v4622 = vadd.f32 %v4389, %v4621
        %4623 = vmatmul.bf16.gmra.mxu0 %v4348
        %v4624 = vpop.f32.mrf.mxu0
        %v4625 = vadd.f32 %v4389, %v4624
        %v4626 = vpop.f32.mrf.mxu0
        %v4627 = vadd.f32 %v4389, %v4626
        %4628 = vmatmul.bf16.gmra.mxu0 %v4349
        %v4629 = vpop.f32.mrf.mxu0
        %v4630 = vadd.f32 %v4389, %v4629
        %v4631 = vpop.f32.mrf.mxu0
        %v4632 = vadd.f32 %v4389, %v4631
        %4633 = vmatmul.bf16.gmra.mxu0 %v4350
        %v4634 = vpop.f32.mrf.mxu0
        %v4635 = vadd.f32 %v4389, %v4634
        %v4636 = vpop.f32.mrf.mxu0
        %v4637 = vadd.f32 %v4389, %v4636
        %4638 = vmatmul.bf16.gmra.mxu0 %v4351
        %v4639 = vpop.f32.mrf.mxu0
        %v4640 = vadd.f32 %v4389, %v4639
        %v4641 = vpop.f32.mrf.mxu0
        %v4642 = vadd.f32 %v4389, %v4641
        %4643 = vmatmul.bf16.gmra.mxu0 %v4352
        %v4644 = vpop.f32.mrf.mxu0
        %v4645 = vadd.f32 %v4389, %v4644
        %v4646 = vpop.f32.mrf.mxu0
        %v4647 = vadd.f32 %v4389, %v4646
        %4648 = vmatmul.bf16.gmra.mxu0 %v4353
        %v4649 = vpop.f32.mrf.mxu0
        %v4650 = vadd.f32 %v4389, %v4649
        %v4651 = vpop.f32.mrf.mxu0
        %v4652 = vadd.f32 %v4389, %v4651
        %4653 = vdwg.mxu0
        %4654 = vmatpush.bf16.msra.mxu0 %v4522
        %4655 = vmatpush.bf16.msra.mxu0 %v4518
        %4656 = vmatpush.bf16.msra.mxu0 %v4514
        %4657 = vmatpush.bf16.msra.mxu0 %v4510
        %4658 = vmatpush.bf16.msra.mxu0 %v4506
        %4659 = vmatpush.bf16.msra.mxu0 %v4502
        %4660 = vmatpush.bf16.msra.mxu0 %v4498
        %4661 = vmatpush.bf16.msra.mxu0 %v4494
        %4662 = vmatmul.bf16.gmra.mxu0 %v4346
        %v4663 = vpop.f32.mrf.mxu0
        %v4664 = vadd.f32 %v4390, %v4663
        %v4665 = vpop.f32.mrf.mxu0
        %v4666 = vadd.f32 %v4390, %v4665
        %4667 = vmatmul.bf16.gmra.mxu0 %v4347
        %v4668 = vpop.f32.mrf.mxu0
        %v4669 = vadd.f32 %v4390, %v4668
        %v4670 = vpop.f32.mrf.mxu0
        %v4671 = vadd.f32 %v4390, %v4670
        %4672 = vmatmul.bf16.gmra.mxu0 %v4348
        %v4673 = vpop.f32.mrf.mxu0
        %v4674 = vadd.f32 %v4390, %v4673
        %v4675 = vpop.f32.mrf.mxu0
        %v4676 = vadd.f32 %v4390, %v4675
        %4677 = vmatmul.bf16.gmra.mxu0 %v4349
        %v4678 = vpop.f32.mrf.mxu0
        %v4679 = vadd.f32 %v4390, %v4678
        %v4680 = vpop.f32.mrf.mxu0
        %v4681 = vadd.f32 %v4390, %v4680
        %4682 = vmatmul.bf16.gmra.mxu0 %v4350
        %v4683 = vpop.f32.mrf.mxu0
        %v4684 = vadd.f32 %v4390, %v4683
        %v4685 = vpop.f32.mrf.mxu0
        %v4686 = vadd.f32 %v4390, %v4685
        %4687 = vmatmul.bf16.gmra.mxu0 %v4351
        %v4688 = vpop.f32.mrf.mxu0
        %v4689 = vadd.f32 %v4390, %v4688
        %v4690 = vpop.f32.mrf.mxu0
        %v4691 = vadd.f32 %v4390, %v4690
        %4692 = vmatmul.bf16.gmra.mxu0 %v4352
        %v4693 = vpop.f32.mrf.mxu0
        %v4694 = vadd.f32 %v4390, %v4693
        %v4695 = vpop.f32.mrf.mxu0
        %v4696 = vadd.f32 %v4390, %v4695
        %4697 = vmatmul.bf16.gmra.mxu0 %v4353
        %v4698 = vpop.f32.mrf.mxu0
        %v4699 = vadd.f32 %v4390, %v4698
        %v4700 = vpop.f32.mrf.mxu0
        %v4701 = vadd.f32 %v4390, %v4700
        %4702 = vdwg.mxu0
        %4703 = vmatpush.bf16.msra.mxu0 %v4523
        %4704 = vmatpush.bf16.msra.mxu0 %v4519
        %4705 = vmatpush.bf16.msra.mxu0 %v4515
        %4706 = vmatpush.bf16.msra.mxu0 %v4511
        %4707 = vmatpush.bf16.msra.mxu0 %v4507
        %4708 = vmatpush.bf16.msra.mxu0 %v4503
        %4709 = vmatpush.bf16.msra.mxu0 %v4499
        %4710 = vmatpush.bf16.msra.mxu0 %v4495
        %4711 = vmatmul.bf16.gmra.mxu0 %v4346
        %v4712 = vpop.f32.mrf.mxu0
        %v4713 = vadd.f32 %v4391, %v4712
        %v4714 = vpop.f32.mrf.mxu0
        %v4715 = vadd.f32 %v4391, %v4714
        %4716 = vmatmul.bf16.gmra.mxu0 %v4347
        %v4717 = vpop.f32.mrf.mxu0
        %v4718 = vadd.f32 %v4391, %v4717
        %v4719 = vpop.f32.mrf.mxu0
        %v4720 = vadd.f32 %v4391, %v4719
        %4721 = vmatmul.bf16.gmra.mxu0 %v4348
        %v4722 = vpop.f32.mrf.mxu0
        %v4723 = vadd.f32 %v4391, %v4722
        %v4724 = vpop.f32.mrf.mxu0
        %v4725 = vadd.f32 %v4391, %v4724
        %4726 = vmatmul.bf16.gmra.mxu0 %v4349
        %v4727 = vpop.f32.mrf.mxu0
        %v4728 = vadd.f32 %v4391, %v4727
        %v4729 = vpop.f32.mrf.mxu0
        %v4730 = vadd.f32 %v4391, %v4729
        %4731 = vmatmul.bf16.gmra.mxu0 %v4350
        %v4732 = vpop.f32.mrf.mxu0
        %v4733 = vadd.f32 %v4391, %v4732
        %v4734 = vpop.f32.mrf.mxu0
        %v4735 = vadd.f32 %v4391, %v4734
        %4736 = vmatmul.bf16.gmra.mxu0 %v4351
        %v4737 = vpop.f32.mrf.mxu0
        %v4738 = vadd.f32 %v4391, %v4737
        %v4739 = vpop.f32.mrf.mxu0
        %v4740 = vadd.f32 %v4391, %v4739
        %4741 = vmatmul.bf16.gmra.mxu0 %v4352
        %v4742 = vpop.f32.mrf.mxu0
        %v4743 = vadd.f32 %v4391, %v4742
        %v4744 = vpop.f32.mrf.mxu0
        %v4745 = vadd.f32 %v4391, %v4744
        %4746 = vmatmul.bf16.gmra.mxu0 %v4353
        %v4747 = vpop.f32.mrf.mxu0
        %v4748 = vadd.f32 %v4391, %v4747
        %v4749 = vpop.f32.mrf.mxu0
        %v4750 = vadd.f32 %v4391, %v4749
        %4751 = vdwg.mxu0
        %v4752 = vmul.f32 %v4566, %v4566
        %v4753 = vmul.f32 %v4615, %v4615
        %v4754 = vmul.f32 %v4664, %v4664
        %v4755 = vmul.f32 %v4713, %v4713
        %v4756 = vmul.f32 %v4568, %v4568
        %v4757 = vmul.f32 %v4617, %v4617
        %v4758 = vmul.f32 %v4666, %v4666
        %v4759 = vmul.f32 %v4715, %v4715
        %v4760 = vmul.f32 %v4571, %v4571
        %v4761 = vmul.f32 %v4620, %v4620
        %v4762 = vmul.f32 %v4669, %v4669
        %v4763 = vmul.f32 %v4718, %v4718
        %v4764 = vmul.f32 %v4573, %v4573
        %v4765 = vmul.f32 %v4622, %v4622
        %v4766 = vmul.f32 %v4671, %v4671
        %v4767 = vmul.f32 %v4720, %v4720
        %v4768 = vmul.f32 %v4576, %v4576
        %v4769 = vmul.f32 %v4625, %v4625
        %v4770 = vmul.f32 %v4674, %v4674
        %v4771 = vmul.f32 %v4723, %v4723
        %v4772 = vmul.f32 %v4578, %v4578
        %v4773 = vmul.f32 %v4627, %v4627
        %v4774 = vmul.f32 %v4676, %v4676
        %v4775 = vmul.f32 %v4725, %v4725
        %v4776 = vmul.f32 %v4581, %v4581
        %v4777 = vmul.f32 %v4630, %v4630
        %v4778 = vmul.f32 %v4679, %v4679
        %v4779 = vmul.f32 %v4728, %v4728
        %v4780 = vmul.f32 %v4583, %v4583
        %v4781 = vmul.f32 %v4632, %v4632
        %v4782 = vmul.f32 %v4681, %v4681
        %v4783 = vmul.f32 %v4730, %v4730
        %v4784 = vmul.f32 %v4586, %v4586
        %v4785 = vmul.f32 %v4635, %v4635
        %v4786 = vmul.f32 %v4684, %v4684
        %v4787 = vmul.f32 %v4733, %v4733
        %v4788 = vmul.f32 %v4588, %v4588
        %v4789 = vmul.f32 %v4637, %v4637
        %v4790 = vmul.f32 %v4686, %v4686
        %v4791 = vmul.f32 %v4735, %v4735
        %v4792 = vmul.f32 %v4591, %v4591
        %v4793 = vmul.f32 %v4640, %v4640
        %v4794 = vmul.f32 %v4689, %v4689
        %v4795 = vmul.f32 %v4738, %v4738
        %v4796 = vmul.f32 %v4593, %v4593
        %v4797 = vmul.f32 %v4642, %v4642
        %v4798 = vmul.f32 %v4691, %v4691
        %v4799 = vmul.f32 %v4740, %v4740
        %v4800 = vmul.f32 %v4596, %v4596
        %v4801 = vmul.f32 %v4645, %v4645
        %v4802 = vmul.f32 %v4694, %v4694
        %v4803 = vmul.f32 %v4743, %v4743
        %v4804 = vmul.f32 %v4598, %v4598
        %v4805 = vmul.f32 %v4647, %v4647
        %v4806 = vmul.f32 %v4696, %v4696
        %v4807 = vmul.f32 %v4745, %v4745
        %v4808 = vmul.f32 %v4601, %v4601
        %v4809 = vmul.f32 %v4650, %v4650
        %v4810 = vmul.f32 %v4699, %v4699
        %v4811 = vmul.f32 %v4748, %v4748
        %v4812 = vmul.f32 %v4603, %v4603
        %v4813 = vmul.f32 %v4652, %v4652
        %v4814 = vmul.f32 %v4701, %v4701
        %v4815 = vmul.f32 %v4750, %v4750
        %v4816 = vmul.f32 %v4566, %v4752
        %v4817 = vmul.f32 %v4615, %v4753
        %v4818 = vmul.f32 %v4664, %v4754
        %v4819 = vmul.f32 %v4713, %v4755
        %v4820 = vmul.f32 %v4568, %v4756
        %v4821 = vmul.f32 %v4617, %v4757
        %v4822 = vmul.f32 %v4666, %v4758
        %v4823 = vmul.f32 %v4715, %v4759
        %v4824 = vmul.f32 %v4571, %v4760
        %v4825 = vmul.f32 %v4620, %v4761
        %v4826 = vmul.f32 %v4669, %v4762
        %v4827 = vmul.f32 %v4718, %v4763
        %v4828 = vmul.f32 %v4573, %v4764
        %v4829 = vmul.f32 %v4622, %v4765
        %v4830 = vmul.f32 %v4671, %v4766
        %v4831 = vmul.f32 %v4720, %v4767
        %v4832 = vmul.f32 %v4576, %v4768
        %v4833 = vmul.f32 %v4625, %v4769
        %v4834 = vmul.f32 %v4674, %v4770
        %v4835 = vmul.f32 %v4723, %v4771
        %v4836 = vmul.f32 %v4578, %v4772
        %v4837 = vmul.f32 %v4627, %v4773
        %v4838 = vmul.f32 %v4676, %v4774
        %v4839 = vmul.f32 %v4725, %v4775
        %v4840 = vmul.f32 %v4581, %v4776
        %v4841 = vmul.f32 %v4630, %v4777
        %v4842 = vmul.f32 %v4679, %v4778
        %v4843 = vmul.f32 %v4728, %v4779
        %v4844 = vmul.f32 %v4583, %v4780
        %v4845 = vmul.f32 %v4632, %v4781
        %v4846 = vmul.f32 %v4681, %v4782
        %v4847 = vmul.f32 %v4730, %v4783
        %v4848 = vmul.f32 %v4586, %v4784
        %v4849 = vmul.f32 %v4635, %v4785
        %v4850 = vmul.f32 %v4684, %v4786
        %v4851 = vmul.f32 %v4733, %v4787
        %v4852 = vmul.f32 %v4588, %v4788
        %v4853 = vmul.f32 %v4637, %v4789
        %v4854 = vmul.f32 %v4686, %v4790
        %v4855 = vmul.f32 %v4735, %v4791
        %v4856 = vmul.f32 %v4591, %v4792
        %v4857 = vmul.f32 %v4640, %v4793
        %v4858 = vmul.f32 %v4689, %v4794
        %v4859 = vmul.f32 %v4738, %v4795
        %v4860 = vmul.f32 %v4593, %v4796
        %v4861 = vmul.f32 %v4642, %v4797
        %v4862 = vmul.f32 %v4691, %v4798
        %v4863 = vmul.f32 %v4740, %v4799
        %v4864 = vmul.f32 %v4596, %v4800
        %v4865 = vmul.f32 %v4645, %v4801
        %v4866 = vmul.f32 %v4694, %v4802
        %v4867 = vmul.f32 %v4743, %v4803
        %v4868 = vmul.f32 %v4598, %v4804
        %v4869 = vmul.f32 %v4647, %v4805
        %v4870 = vmul.f32 %v4696, %v4806
        %v4871 = vmul.f32 %v4745, %v4807
        %v4872 = vmul.f32 %v4601, %v4808
        %v4873 = vmul.f32 %v4650, %v4809
        %v4874 = vmul.f32 %v4699, %v4810
        %v4875 = vmul.f32 %v4748, %v4811
        %v4876 = vmul.f32 %v4603, %v4812
        %v4877 = vmul.f32 %v4652, %v4813
        %v4878 = vmul.f32 %v4701, %v4814
        %v4879 = vmul.f32 %v4750, %v4815
        %v4880 = vmul.f32 %v4816, 0.044715
        %v4881 = vmul.f32 %v4817, 0.044715
        %v4882 = vmul.f32 %v4818, 0.044715
        %v4883 = vmul.f32 %v4819, 0.044715
        %v4884 = vmul.f32 %v4820, 0.044715
        %v4885 = vmul.f32 %v4821, 0.044715
        %v4886 = vmul.f32 %v4822, 0.044715
        %v4887 = vmul.f32 %v4823, 0.044715
        %v4888 = vmul.f32 %v4824, 0.044715
        %v4889 = vmul.f32 %v4825, 0.044715
        %v4890 = vmul.f32 %v4826, 0.044715
        %v4891 = vmul.f32 %v4827, 0.044715
        %v4892 = vmul.f32 %v4828, 0.044715
        %v4893 = vmul.f32 %v4829, 0.044715
        %v4894 = vmul.f32 %v4830, 0.044715
        %v4895 = vmul.f32 %v4831, 0.044715
        %v4896 = vmul.f32 %v4832, 0.044715
        %v4897 = vmul.f32 %v4833, 0.044715
        %v4898 = vmul.f32 %v4834, 0.044715
        %v4899 = vmul.f32 %v4835, 0.044715
        %v4900 = vmul.f32 %v4836, 0.044715
        %v4901 = vmul.f32 %v4837, 0.044715
        %v4902 = vmul.f32 %v4838, 0.044715
        %v4903 = vmul.f32 %v4839, 0.044715
        %v4904 = vmul.f32 %v4840, 0.044715
        %v4905 = vmul.f32 %v4841, 0.044715
        %v4906 = vmul.f32 %v4842, 0.044715
        %v4907 = vmul.f32 %v4843, 0.044715
        %v4908 = vmul.f32 %v4844, 0.044715
        %v4909 = vmul.f32 %v4845, 0.044715
        %v4910 = vmul.f32 %v4846, 0.044715
        %v4911 = vmul.f32 %v4847, 0.044715
        %v4912 = vmul.f32 %v4848, 0.044715
        %v4913 = vmul.f32 %v4849, 0.044715
        %v4914 = vmul.f32 %v4850, 0.044715
        %v4915 = vmul.f32 %v4851, 0.044715
        %v4916 = vmul.f32 %v4852, 0.044715
        %v4917 = vmul.f32 %v4853, 0.044715
        %v4918 = vmul.f32 %v4854, 0.044715
        %v4919 = vmul.f32 %v4855, 0.044715
        %v4920 = vmul.f32 %v4856, 0.044715
        %v4921 = vmul.f32 %v4857, 0.044715
        %v4922 = vmul.f32 %v4858, 0.044715
        %v4923 = vmul.f32 %v4859, 0.044715
        %v4924 = vmul.f32 %v4860, 0.044715
        %v4925 = vmul.f32 %v4861, 0.044715
        %v4926 = vmul.f32 %v4862, 0.044715
        %v4927 = vmul.f32 %v4863, 0.044715
        %v4928 = vmul.f32 %v4864, 0.044715
        %v4929 = vmul.f32 %v4865, 0.044715
        %v4930 = vmul.f32 %v4866, 0.044715
        %v4931 = vmul.f32 %v4867, 0.044715
        %v4932 = vmul.f32 %v4868, 0.044715
        %v4933 = vmul.f32 %v4869, 0.044715
        %v4934 = vmul.f32 %v4870, 0.044715
        %v4935 = vmul.f32 %v4871, 0.044715
        %v4936 = vmul.f32 %v4872, 0.044715
        %v4937 = vmul.f32 %v4873, 0.044715
        %v4938 = vmul.f32 %v4874, 0.044715
        %v4939 = vmul.f32 %v4875, 0.044715
        %v4940 = vmul.f32 %v4876, 0.044715
        %v4941 = vmul.f32 %v4877, 0.044715
        %v4942 = vmul.f32 %v4878, 0.044715
        %v4943 = vmul.f32 %v4879, 0.044715
        %v4944 = vadd.f32 %v4566, %v4880
        %v4945 = vadd.f32 %v4615, %v4881
        %v4946 = vadd.f32 %v4664, %v4882
        %v4947 = vadd.f32 %v4713, %v4883
        %v4948 = vadd.f32 %v4568, %v4884
        %v4949 = vadd.f32 %v4617, %v4885
        %v4950 = vadd.f32 %v4666, %v4886
        %v4951 = vadd.f32 %v4715, %v4887
        %v4952 = vadd.f32 %v4571, %v4888
        %v4953 = vadd.f32 %v4620, %v4889
        %v4954 = vadd.f32 %v4669, %v4890
        %v4955 = vadd.f32 %v4718, %v4891
        %v4956 = vadd.f32 %v4573, %v4892
        %v4957 = vadd.f32 %v4622, %v4893
        %v4958 = vadd.f32 %v4671, %v4894
        %v4959 = vadd.f32 %v4720, %v4895
        %v4960 = vadd.f32 %v4576, %v4896
        %v4961 = vadd.f32 %v4625, %v4897
        %v4962 = vadd.f32 %v4674, %v4898
        %v4963 = vadd.f32 %v4723, %v4899
        %v4964 = vadd.f32 %v4578, %v4900
        %v4965 = vadd.f32 %v4627, %v4901
        %v4966 = vadd.f32 %v4676, %v4902
        %v4967 = vadd.f32 %v4725, %v4903
        %v4968 = vadd.f32 %v4581, %v4904
        %v4969 = vadd.f32 %v4630, %v4905
        %v4970 = vadd.f32 %v4679, %v4906
        %v4971 = vadd.f32 %v4728, %v4907
        %v4972 = vadd.f32 %v4583, %v4908
        %v4973 = vadd.f32 %v4632, %v4909
        %v4974 = vadd.f32 %v4681, %v4910
        %v4975 = vadd.f32 %v4730, %v4911
        %v4976 = vadd.f32 %v4586, %v4912
        %v4977 = vadd.f32 %v4635, %v4913
        %v4978 = vadd.f32 %v4684, %v4914
        %v4979 = vadd.f32 %v4733, %v4915
        %v4980 = vadd.f32 %v4588, %v4916
        %v4981 = vadd.f32 %v4637, %v4917
        %v4982 = vadd.f32 %v4686, %v4918
        %v4983 = vadd.f32 %v4735, %v4919
        %v4984 = vadd.f32 %v4591, %v4920
        %v4985 = vadd.f32 %v4640, %v4921
        %v4986 = vadd.f32 %v4689, %v4922
        %v4987 = vadd.f32 %v4738, %v4923
        %v4988 = vadd.f32 %v4593, %v4924
        %v4989 = vadd.f32 %v4642, %v4925
        %v4990 = vadd.f32 %v4691, %v4926
        %v4991 = vadd.f32 %v4740, %v4927
        %v4992 = vadd.f32 %v4596, %v4928
        %v4993 = vadd.f32 %v4645, %v4929
        %v4994 = vadd.f32 %v4694, %v4930
        %v4995 = vadd.f32 %v4743, %v4931
        %v4996 = vadd.f32 %v4598, %v4932
        %v4997 = vadd.f32 %v4647, %v4933
        %v4998 = vadd.f32 %v4696, %v4934
        %v4999 = vadd.f32 %v4745, %v4935
        %v5000 = vadd.f32 %v4601, %v4936
        %v5001 = vadd.f32 %v4650, %v4937
        %v5002 = vadd.f32 %v4699, %v4938
        %v5003 = vadd.f32 %v4748, %v4939
        %v5004 = vadd.f32 %v4603, %v4940
        %v5005 = vadd.f32 %v4652, %v4941
        %v5006 = vadd.f32 %v4701, %v4942
        %v5007 = vadd.f32 %v4750, %v4943
        %v5008 = vmul.f32 %v4944, 0.7978846
        %v5009 = vmul.f32 %v4945, 0.7978846
        %v5010 = vmul.f32 %v4946, 0.7978846
        %v5011 = vmul.f32 %v4947, 0.7978846
        %v5012 = vmul.f32 %v4948, 0.7978846
        %v5013 = vmul.f32 %v4949, 0.7978846
        %v5014 = vmul.f32 %v4950, 0.7978846
        %v5015 = vmul.f32 %v4951, 0.7978846
        %v5016 = vmul.f32 %v4952, 0.7978846
        %v5017 = vmul.f32 %v4953, 0.7978846
        %v5018 = vmul.f32 %v4954, 0.7978846
        %v5019 = vmul.f32 %v4955, 0.7978846
        %v5020 = vmul.f32 %v4956, 0.7978846
        %v5021 = vmul.f32 %v4957, 0.7978846
        %v5022 = vmul.f32 %v4958, 0.7978846
        %v5023 = vmul.f32 %v4959, 0.7978846
        %v5024 = vmul.f32 %v4960, 0.7978846
        %v5025 = vmul.f32 %v4961, 0.7978846
        %v5026 = vmul.f32 %v4962, 0.7978846
        %v5027 = vmul.f32 %v4963, 0.7978846
        %v5028 = vmul.f32 %v4964, 0.7978846
        %v5029 = vmul.f32 %v4965, 0.7978846
        %v5030 = vmul.f32 %v4966, 0.7978846
        %v5031 = vmul.f32 %v4967, 0.7978846
        %v5032 = vmul.f32 %v4968, 0.7978846
        %v5033 = vmul.f32 %v4969, 0.7978846
        %v5034 = vmul.f32 %v4970, 0.7978846
        %v5035 = vmul.f32 %v4971, 0.7978846
        %v5036 = vmul.f32 %v4972, 0.7978846
        %v5037 = vmul.f32 %v4973, 0.7978846
        %v5038 = vmul.f32 %v4974, 0.7978846
        %v5039 = vmul.f32 %v4975, 0.7978846
        %v5040 = vmul.f32 %v4976, 0.7978846
        %v5041 = vmul.f32 %v4977, 0.7978846
        %v5042 = vmul.f32 %v4978, 0.7978846
        %v5043 = vmul.f32 %v4979, 0.7978846
        %v5044 = vmul.f32 %v4980, 0.7978846
        %v5045 = vmul.f32 %v4981, 0.7978846
        %v5046 = vmul.f32 %v4982, 0.7978846
        %v5047 = vmul.f32 %v4983, 0.7978846
        %v5048 = vmul.f32 %v4984, 0.7978846
        %v5049 = vmul.f32 %v4985, 0.7978846
        %v5050 = vmul.f32 %v4986, 0.7978846
        %v5051 = vmul.f32 %v4987, 0.7978846
        %v5052 = vmul.f32 %v4988, 0.7978846
        %v5053 = vmul.f32 %v4989, 0.7978846
        %v5054 = vmul.f32 %v4990, 0.7978846
        %v5055 = vmul.f32 %v4991, 0.7978846
        %v5056 = vmul.f32 %v4992, 0.7978846
        %v5057 = vmul.f32 %v4993, 0.7978846
        %v5058 = vmul.f32 %v4994, 0.7978846
        %v5059 = vmul.f32 %v4995, 0.7978846
        %v5060 = vmul.f32 %v4996, 0.7978846
        %v5061 = vmul.f32 %v4997, 0.7978846
        %v5062 = vmul.f32 %v4998, 0.7978846
        %v5063 = vmul.f32 %v4999, 0.7978846
        %v5064 = vmul.f32 %v5000, 0.7978846
        %v5065 = vmul.f32 %v5001, 0.7978846
        %v5066 = vmul.f32 %v5002, 0.7978846
        %v5067 = vmul.f32 %v5003, 0.7978846
        %v5068 = vmul.f32 %v5004, 0.7978846
        %v5069 = vmul.f32 %v5005, 0.7978846
        %v5070 = vmul.f32 %v5006, 0.7978846
        %v5071 = vmul.f32 %v5007, 0.7978846
        %v5072 = vtanh.pop %v5008
        %v5073 = vtanh.pop %v5009
        %v5074 = vtanh.pop %v5010
        %v5075 = vtanh.pop %v5011
        %v5076 = vtanh.pop %v5012
        %v5077 = vtanh.pop %v5013
        %v5078 = vtanh.pop %v5014
        %v5079 = vtanh.pop %v5015
        %v5080 = vtanh.pop %v5016
        %v5081 = vtanh.pop %v5017
        %v5082 = vtanh.pop %v5018
        %v5083 = vtanh.pop %v5019
        %v5084 = vtanh.pop %v5020
        %v5085 = vtanh.pop %v5021
        %v5086 = vtanh.pop %v5022
        %v5087 = vtanh.pop %v5023
        %v5088 = vtanh.pop %v5024
        %v5089 = vtanh.pop %v5025
        %v5090 = vtanh.pop %v5026
        %v5091 = vtanh.pop %v5027
        %v5092 = vtanh.pop %v5028
        %v5093 = vtanh.pop %v5029
        %v5094 = vtanh.pop %v5030
        %v5095 = vtanh.pop %v5031
        %v5096 = vtanh.pop %v5032
        %v5097 = vtanh.pop %v5033
        %v5098 = vtanh.pop %v5034
        %v5099 = vtanh.pop %v5035
        %v5100 = vtanh.pop %v5036
        %v5101 = vtanh.pop %v5037
        %v5102 = vtanh.pop %v5038
        %v5103 = vtanh.pop %v5039
        %v5104 = vtanh.pop %v5040
        %v5105 = vtanh.pop %v5041
        %v5106 = vtanh.pop %v5042
        %v5107 = vtanh.pop %v5043
        %v5108 = vtanh.pop %v5044
        %v5109 = vtanh.pop %v5045
        %v5110 = vtanh.pop %v5046
        %v5111 = vtanh.pop %v5047
        %v5112 = vtanh.pop %v5048
        %v5113 = vtanh.pop %v5049
        %v5114 = vtanh.pop %v5050
        %v5115 = vtanh.pop %v5051
        %v5116 = vtanh.pop %v5052
        %v5117 = vtanh.pop %v5053
        %v5118 = vtanh.pop %v5054
        %v5119 = vtanh.pop %v5055
        %v5120 = vtanh.pop %v5056
        %v5121 = vtanh.pop %v5057
        %v5122 = vtanh.pop %v5058
        %v5123 = vtanh.pop %v5059
        %v5124 = vtanh.pop %v5060
        %v5125 = vtanh.pop %v5061
        %v5126 = vtanh.pop %v5062
        %v5127 = vtanh.pop %v5063
        %v5128 = vtanh.pop %v5064
        %v5129 = vtanh.pop %v5065
        %v5130 = vtanh.pop %v5066
        %v5131 = vtanh.pop %v5067
        %v5132 = vtanh.pop %v5068
        %v5133 = vtanh.pop %v5069
        %v5134 = vtanh.pop %v5070
        %v5135 = vtanh.pop %v5071
        %v5136 = vadd.f32 %v5072, 1.0
        %v5137 = vadd.f32 %v5073, 1.0
        %v5138 = vadd.f32 %v5074, 1.0
        %v5139 = vadd.f32 %v5075, 1.0
        %v5140 = vadd.f32 %v5076, 1.0
        %v5141 = vadd.f32 %v5077, 1.0
        %v5142 = vadd.f32 %v5078, 1.0
        %v5143 = vadd.f32 %v5079, 1.0
        %v5144 = vadd.f32 %v5080, 1.0
        %v5145 = vadd.f32 %v5081, 1.0
        %v5146 = vadd.f32 %v5082, 1.0
        %v5147 = vadd.f32 %v5083, 1.0
        %v5148 = vadd.f32 %v5084, 1.0
        %v5149 = vadd.f32 %v5085, 1.0
        %v5150 = vadd.f32 %v5086, 1.0
        %v5151 = vadd.f32 %v5087, 1.0
        %v5152 = vadd.f32 %v5088, 1.0
        %v5153 = vadd.f32 %v5089, 1.0
        %v5154 = vadd.f32 %v5090, 1.0
        %v5155 = vadd.f32 %v5091, 1.0
        %v5156 = vadd.f32 %v5092, 1.0
        %v5157 = vadd.f32 %v5093, 1.0
        %v5158 = vadd.f32 %v5094, 1.0
        %v5159 = vadd.f32 %v5095, 1.0
        %v5160 = vadd.f32 %v5096, 1.0
        %v5161 = vadd.f32 %v5097, 1.0
        %v5162 = vadd.f32 %v5098, 1.0
        %v5163 = vadd.f32 %v5099, 1.0
        %v5164 = vadd.f32 %v5100, 1.0
        %v5165 = vadd.f32 %v5101, 1.0
        %v5166 = vadd.f32 %v5102, 1.0
        %v5167 = vadd.f32 %v5103, 1.0
        %v5168 = vadd.f32 %v5104, 1.0
        %v5169 = vadd.f32 %v5105, 1.0
        %v5170 = vadd.f32 %v5106, 1.0
        %v5171 = vadd.f32 %v5107, 1.0
        %v5172 = vadd.f32 %v5108, 1.0
        %v5173 = vadd.f32 %v5109, 1.0
        %v5174 = vadd.f32 %v5110, 1.0
        %v5175 = vadd.f32 %v5111, 1.0
        %v5176 = vadd.f32 %v5112, 1.0
        %v5177 = vadd.f32 %v5113, 1.0
        %v5178 = vadd.f32 %v5114, 1.0
        %v5179 = vadd.f32 %v5115, 1.0
        %v5180 = vadd.f32 %v5116, 1.0
        %v5181 = vadd.f32 %v5117, 1.0
        %v5182 = vadd.f32 %v5118, 1.0
        %v5183 = vadd.f32 %v5119, 1.0
        %v5184 = vadd.f32 %v5120, 1.0
        %v5185 = vadd.f32 %v5121, 1.0
        %v5186 = vadd.f32 %v5122, 1.0
        %v5187 = vadd.f32 %v5123, 1.0
        %v5188 = vadd.f32 %v5124, 1.0
        %v5189 = vadd.f32 %v5125, 1.0
        %v5190 = vadd.f32 %v5126, 1.0
        %v5191 = vadd.f32 %v5127, 1.0
        %v5192 = vadd.f32 %v5128, 1.0
        %v5193 = vadd.f32 %v5129, 1.0
        %v5194 = vadd.f32 %v5130, 1.0
        %v5195 = vadd.f32 %v5131, 1.0
        %v5196 = vadd.f32 %v5132, 1.0
        %v5197 = vadd.f32 %v5133, 1.0
        %v5198 = vadd.f32 %v5134, 1.0
        %v5199 = vadd.f32 %v5135, 1.0
        %v5200 = vmul.f32 %v5136, 0.5
        %v5201 = vmul.f32 %v5137, 0.5
        %v5202 = vmul.f32 %v5138, 0.5
        %v5203 = vmul.f32 %v5139, 0.5
        %v5204 = vmul.f32 %v5140, 0.5
        %v5205 = vmul.f32 %v5141, 0.5
        %v5206 = vmul.f32 %v5142, 0.5
        %v5207 = vmul.f32 %v5143, 0.5
        %v5208 = vmul.f32 %v5144, 0.5
        %v5209 = vmul.f32 %v5145, 0.5
        %v5210 = vmul.f32 %v5146, 0.5
        %v5211 = vmul.f32 %v5147, 0.5
        %v5212 = vmul.f32 %v5148, 0.5
        %v5213 = vmul.f32 %v5149, 0.5
        %v5214 = vmul.f32 %v5150, 0.5
        %v5215 = vmul.f32 %v5151, 0.5
        %v5216 = vmul.f32 %v5152, 0.5
        %v5217 = vmul.f32 %v5153, 0.5
        %v5218 = vmul.f32 %v5154, 0.5
        %v5219 = vmul.f32 %v5155, 0.5
        %v5220 = vmul.f32 %v5156, 0.5
        %v5221 = vmul.f32 %v5157, 0.5
        %v5222 = vmul.f32 %v5158, 0.5
        %v5223 = vmul.f32 %v5159, 0.5
        %v5224 = vmul.f32 %v5160, 0.5
        %v5225 = vmul.f32 %v5161, 0.5
        %v5226 = vmul.f32 %v5162, 0.5
        %v5227 = vmul.f32 %v5163, 0.5
        %v5228 = vmul.f32 %v5164, 0.5
        %v5229 = vmul.f32 %v5165, 0.5
        %v5230 = vmul.f32 %v5166, 0.5
        %v5231 = vmul.f32 %v5167, 0.5
        %v5232 = vmul.f32 %v5168, 0.5
        %v5233 = vmul.f32 %v5169, 0.5
        %v5234 = vmul.f32 %v5170, 0.5
        %v5235 = vmul.f32 %v5171, 0.5
        %v5236 = vmul.f32 %v5172, 0.5
        %v5237 = vmul.f32 %v5173, 0.5
        %v5238 = vmul.f32 %v5174, 0.5
        %v5239 = vmul.f32 %v5175, 0.5
        %v5240 = vmul.f32 %v5176, 0.5
        %v5241 = vmul.f32 %v5177, 0.5
        %v5242 = vmul.f32 %v5178, 0.5
        %v5243 = vmul.f32 %v5179, 0.5
        %v5244 = vmul.f32 %v5180, 0.5
        %v5245 = vmul.f32 %v5181, 0.5
        %v5246 = vmul.f32 %v5182, 0.5
        %v5247 = vmul.f32 %v5183, 0.5
        %v5248 = vmul.f32 %v5184, 0.5
        %v5249 = vmul.f32 %v5185, 0.5
        %v5250 = vmul.f32 %v5186, 0.5
        %v5251 = vmul.f32 %v5187, 0.5
        %v5252 = vmul.f32 %v5188, 0.5
        %v5253 = vmul.f32 %v5189, 0.5
        %v5254 = vmul.f32 %v5190, 0.5
        %v5255 = vmul.f32 %v5191, 0.5
        %v5256 = vmul.f32 %v5192, 0.5
        %v5257 = vmul.f32 %v5193, 0.5
        %v5258 = vmul.f32 %v5194, 0.5
        %v5259 = vmul.f32 %v5195, 0.5
        %v5260 = vmul.f32 %v5196, 0.5
        %v5261 = vmul.f32 %v5197, 0.5
        %v5262 = vmul.f32 %v5198, 0.5
        %v5263 = vmul.f32 %v5199, 0.5
        %v5264 = vmul.f32 %v4566, %v5200
        %v5265 = vmul.f32 %v4615, %v5201
        %v5266 = vmul.f32 %v4664, %v5202
        %v5267 = vmul.f32 %v4713, %v5203
        %v5268 = vmul.f32 %v4568, %v5204
        %v5269 = vmul.f32 %v4617, %v5205
        %v5270 = vmul.f32 %v4666, %v5206
        %v5271 = vmul.f32 %v4715, %v5207
        %v5272 = vmul.f32 %v4571, %v5208
        %v5273 = vmul.f32 %v4620, %v5209
        %v5274 = vmul.f32 %v4669, %v5210
        %v5275 = vmul.f32 %v4718, %v5211
        %v5276 = vmul.f32 %v4573, %v5212
        %v5277 = vmul.f32 %v4622, %v5213
        %v5278 = vmul.f32 %v4671, %v5214
        %v5279 = vmul.f32 %v4720, %v5215
        %v5280 = vmul.f32 %v4576, %v5216
        %v5281 = vmul.f32 %v4625, %v5217
        %v5282 = vmul.f32 %v4674, %v5218
        %v5283 = vmul.f32 %v4723, %v5219
        %v5284 = vmul.f32 %v4578, %v5220
        %v5285 = vmul.f32 %v4627, %v5221
        %v5286 = vmul.f32 %v4676, %v5222
        %v5287 = vmul.f32 %v4725, %v5223
        %v5288 = vmul.f32 %v4581, %v5224
        %v5289 = vmul.f32 %v4630, %v5225
        %v5290 = vmul.f32 %v4679, %v5226
        %v5291 = vmul.f32 %v4728, %v5227
        %v5292 = vmul.f32 %v4583, %v5228
        %v5293 = vmul.f32 %v4632, %v5229
        %v5294 = vmul.f32 %v4681, %v5230
        %v5295 = vmul.f32 %v4730, %v5231
        %v5296 = vmul.f32 %v4586, %v5232
        %v5297 = vmul.f32 %v4635, %v5233
        %v5298 = vmul.f32 %v4684, %v5234
        %v5299 = vmul.f32 %v4733, %v5235
        %v5300 = vmul.f32 %v4588, %v5236
        %v5301 = vmul.f32 %v4637, %v5237
        %v5302 = vmul.f32 %v4686, %v5238
        %v5303 = vmul.f32 %v4735, %v5239
        %v5304 = vmul.f32 %v4591, %v5240
        %v5305 = vmul.f32 %v4640, %v5241
        %v5306 = vmul.f32 %v4689, %v5242
        %v5307 = vmul.f32 %v4738, %v5243
        %v5308 = vmul.f32 %v4593, %v5244
        %v5309 = vmul.f32 %v4642, %v5245
        %v5310 = vmul.f32 %v4691, %v5246
        %v5311 = vmul.f32 %v4740, %v5247
        %v5312 = vmul.f32 %v4596, %v5248
        %v5313 = vmul.f32 %v4645, %v5249
        %v5314 = vmul.f32 %v4694, %v5250
        %v5315 = vmul.f32 %v4743, %v5251
        %v5316 = vmul.f32 %v4598, %v5252
        %v5317 = vmul.f32 %v4647, %v5253
        %v5318 = vmul.f32 %v4696, %v5254
        %v5319 = vmul.f32 %v4745, %v5255
        %v5320 = vmul.f32 %v4601, %v5256
        %v5321 = vmul.f32 %v4650, %v5257
        %v5322 = vmul.f32 %v4699, %v5258
        %v5323 = vmul.f32 %v4748, %v5259
        %v5324 = vmul.f32 %v4603, %v5260
        %v5325 = vmul.f32 %v4652, %v5261
        %v5326 = vmul.f32 %v4701, %v5262
        %v5327 = vmul.f32 %v4750, %v5263
        %v5328 = vpack.c.bf16 %v5268, %v5264
        %v5329 = vpack.c.bf16 %v5269, %v5265
        %v5330 = vpack.c.bf16 %v5270, %v5266
        %v5331 = vpack.c.bf16 %v5271, %v5267
        %v5332 = vpack.c.bf16 %v5276, %v5272
        %v5333 = vpack.c.bf16 %v5277, %v5273
        %v5334 = vpack.c.bf16 %v5278, %v5274
        %v5335 = vpack.c.bf16 %v5279, %v5275
        %v5336 = vpack.c.bf16 %v5284, %v5280
        %v5337 = vpack.c.bf16 %v5285, %v5281
        %v5338 = vpack.c.bf16 %v5286, %v5282
        %v5339 = vpack.c.bf16 %v5287, %v5283
        %v5340 = vpack.c.bf16 %v5292, %v5288
        %v5341 = vpack.c.bf16 %v5293, %v5289
        %v5342 = vpack.c.bf16 %v5294, %v5290
        %v5343 = vpack.c.bf16 %v5295, %v5291
        %v5344 = vpack.c.bf16 %v5300, %v5296
        %v5345 = vpack.c.bf16 %v5301, %v5297
        %v5346 = vpack.c.bf16 %v5302, %v5298
        %v5347 = vpack.c.bf16 %v5303, %v5299
        %v5348 = vpack.c.bf16 %v5308, %v5304
        %v5349 = vpack.c.bf16 %v5309, %v5305
        %v5350 = vpack.c.bf16 %v5310, %v5306
        %v5351 = vpack.c.bf16 %v5311, %v5307
        %v5352 = vpack.c.bf16 %v5316, %v5312
        %v5353 = vpack.c.bf16 %v5317, %v5313
        %v5354 = vpack.c.bf16 %v5318, %v5314
        %v5355 = vpack.c.bf16 %v5319, %v5315
        %v5356 = vpack.c.bf16 %v5324, %v5320
        %v5357 = vpack.c.bf16 %v5325, %v5321
        %v5358 = vpack.c.bf16 %v5326, %v5322
        %v5359 = vpack.c.bf16 %v5327, %v5323
        %v5360 = vld [vmem:[%s761] sm:$0xf]
        %v5361 = vld [vmem:[%s761 + $0x4] sm:$0xf]
        %v5362 = vld [vmem:[%s761 + $0x8] sm:$0xf]
        %v5363 = vld [vmem:[%s761 + $0xc] sm:$0xf]
        %v5364 = vld [vmem:[%s761 + $0x10] sm:$0xf]
        %v5365 = vld [vmem:[%s761 + $0x14] sm:$0xf]
        %v5366 = vld [vmem:[%s761 + $0x18] sm:$0xf]
        %v5367 = vld [vmem:[%s761 + $0x1c] sm:$0xf]
        %v5368 = vld [vmem:[%s761 + $0x20] sm:$0xf]
        %v5369 = vld [vmem:[%s761 + $0x24] sm:$0xf]
        %v5370 = vld [vmem:[%s761 + $0x28] sm:$0xf]
        %v5371 = vld [vmem:[%s761 + $0x2c] sm:$0xf]
        %v5372 = vld [vmem:[%s761 + $0x30] sm:$0xf]
        %v5373 = vld [vmem:[%s761 + $0x34] sm:$0xf]
        %v5374 = vld [vmem:[%s761 + $0x38] sm:$0xf]
        %v5375 = vld [vmem:[%s761 + $0x3c] sm:$0xf]
        %v5376 = vld [vmem:[%s761 + $0x40] sm:$0xf]
        %v5377 = vld [vmem:[%s761 + $0x44] sm:$0xf]
        %v5378 = vld [vmem:[%s761 + $0x48] sm:$0xf]
        %v5379 = vld [vmem:[%s761 + $0x4c] sm:$0xf]
        %v5380 = vld [vmem:[%s761 + $0x50] sm:$0xf]
        %v5381 = vld [vmem:[%s761 + $0x54] sm:$0xf]
        %v5382 = vld [vmem:[%s761 + $0x58] sm:$0xf]
        %v5383 = vld [vmem:[%s761 + $0x5c] sm:$0xf]
        %v5384 = vld [vmem:[%s761 + $0x60] sm:$0xf]
        %v5385 = vld [vmem:[%s761 + $0x64] sm:$0xf]
        %v5386 = vld [vmem:[%s761 + $0x68] sm:$0xf]
        %v5387 = vld [vmem:[%s761 + $0x6c] sm:$0xf]
        %v5388 = vld [vmem:[%s761 + $0x70] sm:$0xf]
        %v5389 = vld [vmem:[%s761 + $0x74] sm:$0xf]
        %v5390 = vld [vmem:[%s761 + $0x78] sm:$0xf]
        %v5391 = vld [vmem:[%s761 + $0x7c] sm:$0xf]
        %v5392 = vld [vmem:[%s761 + $0x80] sm:$0xf]
        %v5393 = vld [vmem:[%s761 + $0x84] sm:$0xf]
        %v5394 = vld [vmem:[%s761 + $0x88] sm:$0xf]
        %v5395 = vld [vmem:[%s761 + $0x8c] sm:$0xf]
        %v5396 = vld [vmem:[%s761 + $0x90] sm:$0xf]
        %v5397 = vld [vmem:[%s761 + $0x94] sm:$0xf]
        %v5398 = vld [vmem:[%s761 + $0x98] sm:$0xf]
        %v5399 = vld [vmem:[%s761 + $0x9c] sm:$0xf]
        %v5400 = vld [vmem:[%s761 + $0xa0] sm:$0xf]
        %v5401 = vld [vmem:[%s761 + $0xa4] sm:$0xf]
        %v5402 = vld [vmem:[%s761 + $0xa8] sm:$0xf]
        %v5403 = vld [vmem:[%s761 + $0xac] sm:$0xf]
        %v5404 = vld [vmem:[%s761 + $0xb0] sm:$0xf]
        %v5405 = vld [vmem:[%s761 + $0xb4] sm:$0xf]
        %v5406 = vld [vmem:[%s761 + $0xb8] sm:$0xf]
        %v5407 = vld [vmem:[%s761 + $0xbc] sm:$0xf]
        %v5408 = vld [vmem:[%s761 + $0xc0] sm:$0xf]
        %v5409 = vld [vmem:[%s761 + $0xc4] sm:$0xf]
        %v5410 = vld [vmem:[%s761 + $0xc8] sm:$0xf]
        %v5411 = vld [vmem:[%s761 + $0xcc] sm:$0xf]
        %v5412 = vld [vmem:[%s761 + $0xd0] sm:$0xf]
        %v5413 = vld [vmem:[%s761 + $0xd4] sm:$0xf]
        %v5414 = vld [vmem:[%s761 + $0xd8] sm:$0xf]
        %v5415 = vld [vmem:[%s761 + $0xdc] sm:$0xf]
        %v5416 = vld [vmem:[%s761 + $0xe0] sm:$0xf]
        %v5417 = vld [vmem:[%s761 + $0xe4] sm:$0xf]
        %v5418 = vld [vmem:[%s761 + $0xe8] sm:$0xf]
        %v5419 = vld [vmem:[%s761 + $0xec] sm:$0xf]
        %v5420 = vld [vmem:[%s761 + $0xf0] sm:$0xf]
        %v5421 = vld [vmem:[%s761 + $0xf4] sm:$0xf]
        %v5422 = vld [vmem:[%s761 + $0xf8] sm:$0xf]
        %v5423 = vld [vmem:[%s761 + $0xfc] sm:$0xf]
        %v5424 = vld [vmem:[%s879] sm:$0x1]
        %v5426 = vperm.slane %v5424, 0
        %v5492 = vunpack.c.l.b16 %v5360
        %v5493 = vunpack.c.l.b16 %v5361
        %v5494 = vunpack.c.l.b16 %v5362
        %v5495 = vunpack.c.l.b16 %v5363
        %v5496 = vunpack.c.l.b16 %v5364
        %v5497 = vunpack.c.l.b16 %v5365
        %v5498 = vunpack.c.l.b16 %v5366
        %v5499 = vunpack.c.l.b16 %v5367
        %v5500 = vunpack.c.l.b16 %v5368
        %v5501 = vunpack.c.l.b16 %v5369
        %v5502 = vunpack.c.l.b16 %v5370
        %v5503 = vunpack.c.l.b16 %v5371
        %v5504 = vunpack.c.l.b16 %v5372
        %v5505 = vunpack.c.l.b16 %v5373
        %v5506 = vunpack.c.l.b16 %v5374
        %v5507 = vunpack.c.l.b16 %v5375
        %v5508 = vunpack.c.l.b16 %v5376
        %v5509 = vunpack.c.l.b16 %v5377
        %v5510 = vunpack.c.l.b16 %v5378
        %v5511 = vunpack.c.l.b16 %v5379
        %v5512 = vunpack.c.l.b16 %v5380
        %v5513 = vunpack.c.l.b16 %v5381
        %v5514 = vunpack.c.l.b16 %v5382
        %v5515 = vunpack.c.l.b16 %v5383
        %v5516 = vunpack.c.l.b16 %v5384
        %v5517 = vunpack.c.l.b16 %v5385
        %v5518 = vunpack.c.l.b16 %v5386
        %v5519 = vunpack.c.l.b16 %v5387
        %v5520 = vunpack.c.l.b16 %v5388
        %v5521 = vunpack.c.l.b16 %v5389
        %v5522 = vunpack.c.l.b16 %v5390
        %v5523 = vunpack.c.l.b16 %v5391
        %v5524 = vunpack.c.l.b16 %v5392
        %v5525 = vunpack.c.l.b16 %v5393
        %v5526 = vunpack.c.l.b16 %v5394
        %v5527 = vunpack.c.l.b16 %v5395
        %v5528 = vunpack.c.l.b16 %v5396
        %v5529 = vunpack.c.l.b16 %v5397
        %v5530 = vunpack.c.l.b16 %v5398
        %v5531 = vunpack.c.l.b16 %v5399
        %v5532 = vunpack.c.l.b16 %v5400
        %v5533 = vunpack.c.l.b16 %v5401
        %v5534 = vunpack.c.l.b16 %v5402
        %v5535 = vunpack.c.l.b16 %v5403
        %v5536 = vunpack.c.l.b16 %v5404
        %v5537 = vunpack.c.l.b16 %v5405
        %v5538 = vunpack.c.l.b16 %v5406
        %v5539 = vunpack.c.l.b16 %v5407
        %v5540 = vunpack.c.l.b16 %v5408
        %v5541 = vunpack.c.l.b16 %v5409
        %v5542 = vunpack.c.l.b16 %v5410
        %v5543 = vunpack.c.l.b16 %v5411
        %v5544 = vunpack.c.l.b16 %v5412
        %v5545 = vunpack.c.l.b16 %v5413
        %v5546 = vunpack.c.l.b16 %v5414
        %v5547 = vunpack.c.l.b16 %v5415
        %v5548 = vunpack.c.l.b16 %v5416
        %v5549 = vunpack.c.l.b16 %v5417
        %v5550 = vunpack.c.l.b16 %v5418
        %v5551 = vunpack.c.l.b16 %v5419
        %v5552 = vunpack.c.l.b16 %v5420
        %v5553 = vunpack.c.l.b16 %v5421
        %v5554 = vunpack.c.l.b16 %v5422
        %v5555 = vunpack.c.l.b16 %v5423
        %v5556 = vpack.c.b16 %v5493, %v5492
        %v5557 = vpack.c.b16 %v5495, %v5494
        %v5558 = vpack.c.b16 %v5497, %v5496
        %v5559 = vpack.c.b16 %v5499, %v5498
        %v5560 = vpack.c.b16 %v5501, %v5500
        %v5561 = vpack.c.b16 %v5503, %v5502
        %v5562 = vpack.c.b16 %v5505, %v5504
        %v5563 = vpack.c.b16 %v5507, %v5506
        %v5564 = vpack.c.b16 %v5509, %v5508
        %v5565 = vpack.c.b16 %v5511, %v5510
        %v5566 = vpack.c.b16 %v5513, %v5512
        %v5567 = vpack.c.b16 %v5515, %v5514
        %v5568 = vpack.c.b16 %v5517, %v5516
        %v5569 = vpack.c.b16 %v5519, %v5518
        %v5570 = vpack.c.b16 %v5521, %v5520
        %v5571 = vpack.c.b16 %v5523, %v5522
        %v5572 = vpack.c.b16 %v5525, %v5524
        %v5573 = vpack.c.b16 %v5527, %v5526
        %v5574 = vpack.c.b16 %v5529, %v5528
        %v5575 = vpack.c.b16 %v5531, %v5530
        %v5576 = vpack.c.b16 %v5533, %v5532
        %v5577 = vpack.c.b16 %v5535, %v5534
        %v5578 = vpack.c.b16 %v5537, %v5536
        %v5579 = vpack.c.b16 %v5539, %v5538
        %v5580 = vpack.c.b16 %v5541, %v5540
        %v5581 = vpack.c.b16 %v5543, %v5542
        %v5582 = vpack.c.b16 %v5545, %v5544
        %v5583 = vpack.c.b16 %v5547, %v5546
        %v5584 = vpack.c.b16 %v5549, %v5548
        %v5585 = vpack.c.b16 %v5551, %v5550
        %v5586 = vpack.c.b16 %v5553, %v5552
        %v5587 = vpack.c.b16 %v5555, %v5554
        %5620 = vmatpush.bf16.msra.mxu0 %v5563
        %5621 = vmatpush.bf16.msra.mxu0 %v5562
        %5622 = vmatpush.bf16.msra.mxu0 %v5561
        %5623 = vmatpush.bf16.msra.mxu0 %v5560
        %5624 = vmatpush.bf16.msra.mxu0 %v5559
        %5625 = vmatpush.bf16.msra.mxu0 %v5558
        %5626 = vmatpush.bf16.msra.mxu0 %v5557
        %5627 = vmatpush.bf16.msra.mxu0 %v5556
        %5628 = vmatmul.bf16.gmra.mxu0 %v5328
        %v5629 = vpop.f32.mrf.mxu0
        %v5630 = vadd.f32 %v5426, %v5629
        %v5631 = vpop.f32.mrf.mxu0
        %v5632 = vadd.f32 %v5426, %v5631
        %5633 = vmatmul.bf16.gmra.mxu0 %v5332
        %v5634 = vpop.f32.mrf.mxu0
        %v5635 = vadd.f32 %v5426, %v5634
        %v5636 = vpop.f32.mrf.mxu0
        %v5637 = vadd.f32 %v5426, %v5636
        %5638 = vmatmul.bf16.gmra.mxu0 %v5336
        %v5639 = vpop.f32.mrf.mxu0
        %v5640 = vadd.f32 %v5426, %v5639
        %v5641 = vpop.f32.mrf.mxu0
        %v5642 = vadd.f32 %v5426, %v5641
        %5643 = vmatmul.bf16.gmra.mxu0 %v5340
        %v5644 = vpop.f32.mrf.mxu0
        %v5645 = vadd.f32 %v5426, %v5644
        %v5646 = vpop.f32.mrf.mxu0
        %v5647 = vadd.f32 %v5426, %v5646
        %5648 = vmatmul.bf16.gmra.mxu0 %v5344
        %v5649 = vpop.f32.mrf.mxu0
        %v5650 = vadd.f32 %v5426, %v5649
        %v5651 = vpop.f32.mrf.mxu0
        %v5652 = vadd.f32 %v5426, %v5651
        %5653 = vmatmul.bf16.gmra.mxu0 %v5348
        %v5654 = vpop.f32.mrf.mxu0
        %v5655 = vadd.f32 %v5426, %v5654
        %v5656 = vpop.f32.mrf.mxu0
        %v5657 = vadd.f32 %v5426, %v5656
        %5658 = vmatmul.bf16.gmra.mxu0 %v5352
        %v5659 = vpop.f32.mrf.mxu0
        %v5660 = vadd.f32 %v5426, %v5659
        %v5661 = vpop.f32.mrf.mxu0
        %v5662 = vadd.f32 %v5426, %v5661
        %5663 = vmatmul.bf16.gmra.mxu0 %v5356
        %v5664 = vpop.f32.mrf.mxu0
        %v5665 = vadd.f32 %v5426, %v5664
        %v5666 = vpop.f32.mrf.mxu0
        %v5667 = vadd.f32 %v5426, %v5666
        %5668 = vdwg.mxu0
        %5669 = vmatpush.bf16.msra.mxu0 %v5571
        %5670 = vmatpush.bf16.msra.mxu0 %v5570
        %5671 = vmatpush.bf16.msra.mxu0 %v5569
        %5672 = vmatpush.bf16.msra.mxu0 %v5568
        %5673 = vmatpush.bf16.msra.mxu0 %v5567
        %5674 = vmatpush.bf16.msra.mxu0 %v5566
        %5675 = vmatpush.bf16.msra.mxu0 %v5565
        %5676 = vmatpush.bf16.msra.mxu0 %v5564
        %5677 = vmatmul.bf16.gmra.mxu0 %v5329
        %v5678 = vpop.f32.mrf.mxu0
        %v5679 = vadd.f32 %v5630, %v5678
        %v5680 = vpop.f32.mrf.mxu0
        %v5681 = vadd.f32 %v5632, %v5680
        %5682 = vmatmul.bf16.gmra.mxu0 %v5333
        %v5683 = vpop.f32.mrf.mxu0
        %v5684 = vadd.f32 %v5635, %v5683
        %v5685 = vpop.f32.mrf.mxu0
        %v5686 = vadd.f32 %v5637, %v5685
        %5687 = vmatmul.bf16.gmra.mxu0 %v5337
        %v5688 = vpop.f32.mrf.mxu0
        %v5689 = vadd.f32 %v5640, %v5688
        %v5690 = vpop.f32.mrf.mxu0
        %v5691 = vadd.f32 %v5642, %v5690
        %5692 = vmatmul.bf16.gmra.mxu0 %v5341
        %v5693 = vpop.f32.mrf.mxu0
        %v5694 = vadd.f32 %v5645, %v5693
        %v5695 = vpop.f32.mrf.mxu0
        %v5696 = vadd.f32 %v5647, %v5695
        %5697 = vmatmul.bf16.gmra.mxu0 %v5345
        %v5698 = vpop.f32.mrf.mxu0
        %v5699 = vadd.f32 %v5650, %v5698
        %v5700 = vpop.f32.mrf.mxu0
        %v5701 = vadd.f32 %v5652, %v5700
        %5702 = vmatmul.bf16.gmra.mxu0 %v5349
        %v5703 = vpop.f32.mrf.mxu0
        %v5704 = vadd.f32 %v5655, %v5703
        %v5705 = vpop.f32.mrf.mxu0
        %v5706 = vadd.f32 %v5657, %v5705
        %5707 = vmatmul.bf16.gmra.mxu0 %v5353
        %v5708 = vpop.f32.mrf.mxu0
        %v5709 = vadd.f32 %v5660, %v5708
        %v5710 = vpop.f32.mrf.mxu0
        %v5711 = vadd.f32 %v5662, %v5710
        %5712 = vmatmul.bf16.gmra.mxu0 %v5357
        %v5713 = vpop.f32.mrf.mxu0
        %v5714 = vadd.f32 %v5665, %v5713
        %v5715 = vpop.f32.mrf.mxu0
        %v5716 = vadd.f32 %v5667, %v5715
        %5717 = vdwg.mxu0
        %5718 = vmatpush.bf16.msra.mxu0 %v5579
        %5719 = vmatpush.bf16.msra.mxu0 %v5578
        %5720 = vmatpush.bf16.msra.mxu0 %v5577
        %5721 = vmatpush.bf16.msra.mxu0 %v5576
        %5722 = vmatpush.bf16.msra.mxu0 %v5575
        %5723 = vmatpush.bf16.msra.mxu0 %v5574
        %5724 = vmatpush.bf16.msra.mxu0 %v5573
        %5725 = vmatpush.bf16.msra.mxu0 %v5572
        %5726 = vmatmul.bf16.gmra.mxu0 %v5330
        %v5727 = vpop.f32.mrf.mxu0
        %v5728 = vadd.f32 %v5679, %v5727
        %v5729 = vpop.f32.mrf.mxu0
        %v5730 = vadd.f32 %v5681, %v5729
        %5731 = vmatmul.bf16.gmra.mxu0 %v5334
        %v5732 = vpop.f32.mrf.mxu0
        %v5733 = vadd.f32 %v5684, %v5732
        %v5734 = vpop.f32.mrf.mxu0
        %v5735 = vadd.f32 %v5686, %v5734
        %5736 = vmatmul.bf16.gmra.mxu0 %v5338
        %v5737 = vpop.f32.mrf.mxu0
        %v5738 = vadd.f32 %v5689, %v5737
        %v5739 = vpop.f32.mrf.mxu0
        %v5740 = vadd.f32 %v5691, %v5739
        %5741 = vmatmul.bf16.gmra.mxu0 %v5342
        %v5742 = vpop.f32.mrf.mxu0
        %v5743 = vadd.f32 %v5694, %v5742
        %v5744 = vpop.f32.mrf.mxu0
        %v5745 = vadd.f32 %v5696, %v5744
        %5746 = vmatmul.bf16.gmra.mxu0 %v5346
        %v5747 = vpop.f32.mrf.mxu0
        %v5748 = vadd.f32 %v5699, %v5747
        %v5749 = vpop.f32.mrf.mxu0
        %v5750 = vadd.f32 %v5701, %v5749
        %5751 = vmatmul.bf16.gmra.mxu0 %v5350
        %v5752 = vpop.f32.mrf.mxu0
        %v5753 = vadd.f32 %v5704, %v5752
        %v5754 = vpop.f32.mrf.mxu0
        %v5755 = vadd.f32 %v5706, %v5754
        %5756 = vmatmul.bf16.gmra.mxu0 %v5354
        %v5757 = vpop.f32.mrf.mxu0
        %v5758 = vadd.f32 %v5709, %v5757
        %v5759 = vpop.f32.mrf.mxu0
        %v5760 = vadd.f32 %v5711, %v5759
        %5761 = vmatmul.bf16.gmra.mxu0 %v5358
        %v5762 = vpop.f32.mrf.mxu0
        %v5763 = vadd.f32 %v5714, %v5762
        %v5764 = vpop.f32.mrf.mxu0
        %v5765 = vadd.f32 %v5716, %v5764
        %5766 = vdwg.mxu0
        %5767 = vmatpush.bf16.msra.mxu0 %v5587
        %5768 = vmatpush.bf16.msra.mxu0 %v5586
        %5769 = vmatpush.bf16.msra.mxu0 %v5585
        %5770 = vmatpush.bf16.msra.mxu0 %v5584
        %5771 = vmatpush.bf16.msra.mxu0 %v5583
        %5772 = vmatpush.bf16.msra.mxu0 %v5582
        %5773 = vmatpush.bf16.msra.mxu0 %v5581
        %5774 = vmatpush.bf16.msra.mxu0 %v5580
        %5775 = vmatmul.bf16.gmra.mxu0 %v5331
        %v5776 = vpop.f32.mrf.mxu0
        %v5777 = vadd.f32 %v5728, %v5776
        %v5778 = vpop.f32.mrf.mxu0
        %v5779 = vadd.f32 %v5730, %v5778
        %5780 = vmatmul.bf16.gmra.mxu0 %v5335
        %v5781 = vpop.f32.mrf.mxu0
        %v5782 = vadd.f32 %v5733, %v5781
        %v5783 = vpop.f32.mrf.mxu0
        %v5784 = vadd.f32 %v5735, %v5783
        %5785 = vmatmul.bf16.gmra.mxu0 %v5339
        %v5786 = vpop.f32.mrf.mxu0
        %v5787 = vadd.f32 %v5738, %v5786
        %v5788 = vpop.f32.mrf.mxu0
        %v5789 = vadd.f32 %v5740, %v5788
        %5790 = vmatmul.bf16.gmra.mxu0 %v5343
        %v5791 = vpop.f32.mrf.mxu0
        %v5792 = vadd.f32 %v5743, %v5791
        %v5793 = vpop.f32.mrf.mxu0
        %v5794 = vadd.f32 %v5745, %v5793
        %5795 = vmatmul.bf16.gmra.mxu0 %v5347
        %v5796 = vpop.f32.mrf.mxu0
        %v5797 = vadd.f32 %v5748, %v5796
        %v5798 = vpop.f32.mrf.mxu0
        %v5799 = vadd.f32 %v5750, %v5798
        %5800 = vmatmul.bf16.gmra.mxu0 %v5351
        %v5801 = vpop.f32.mrf.mxu0
        %v5802 = vadd.f32 %v5753, %v5801
        %v5803 = vpop.f32.mrf.mxu0
        %v5804 = vadd.f32 %v5755, %v5803
        %5805 = vmatmul.bf16.gmra.mxu0 %v5355
        %v5806 = vpop.f32.mrf.mxu0
        %v5807 = vadd.f32 %v5758, %v5806
        %v5808 = vpop.f32.mrf.mxu0
        %v5809 = vadd.f32 %v5760, %v5808
        %5810 = vmatmul.bf16.gmra.mxu0 %v5359
        %v5811 = vpop.f32.mrf.mxu0
        %v5812 = vadd.f32 %v5763, %v5811
        %v5813 = vpop.f32.mrf.mxu0
        %v5814 = vadd.f32 %v5765, %v5813
        %5815 = vdwg.mxu0
        %v5816 = vadd.f32 %v4330, %v5777
        %v5817 = vadd.f32 %v4331, %v5779
        %v5818 = vadd.f32 %v4332, %v5782
        %v5819 = vadd.f32 %v4333, %v5784
        %v5820 = vadd.f32 %v4334, %v5787
        %v5821 = vadd.f32 %v4335, %v5789
        %v5822 = vadd.f32 %v4336, %v5792
        %v5823 = vadd.f32 %v4337, %v5794
        %v5824 = vadd.f32 %v4338, %v5797
        %v5825 = vadd.f32 %v4339, %v5799
        %v5826 = vadd.f32 %v4340, %v5802
        %v5827 = vadd.f32 %v4341, %v5804
        %v5828 = vadd.f32 %v4342, %v5807
        %v5829 = vadd.f32 %v4343, %v5809
        %v5830 = vadd.f32 %v4344, %v5812
        %v5831 = vadd.f32 %v4345, %v5814
        %v5832 = vld [vmem:[%s882] sm:$0x1]
        %v5833 = vld [vmem:[%s885] sm:$0x1]
        %5834 = vadd.xlane.f32.xlu0 %v5816
        %v5835 = vpop.xlane.xlu0 %5834
        %5836 = vadd.xlane.f32.xlu0 %v5817
        %v5837 = vpop.xlane.xlu0 %5836
        %5838 = vadd.xlane.f32.xlu0 %v5818
        %v5839 = vpop.xlane.xlu0 %5838
        %5840 = vadd.xlane.f32.xlu0 %v5819
        %v5841 = vpop.xlane.xlu0 %5840
        %5842 = vadd.xlane.f32.xlu0 %v5820
        %v5843 = vpop.xlane.xlu0 %5842
        %5844 = vadd.xlane.f32.xlu0 %v5821
        %v5845 = vpop.xlane.xlu0 %5844
        %5846 = vadd.xlane.f32.xlu0 %v5822
        %v5847 = vpop.xlane.xlu0 %5846
        %5848 = vadd.xlane.f32.xlu0 %v5823
        %v5849 = vpop.xlane.xlu0 %5848
        %5850 = vadd.xlane.f32.xlu0 %v5824
        %v5851 = vpop.xlane.xlu0 %5850
        %5852 = vadd.xlane.f32.xlu0 %v5825
        %v5853 = vpop.xlane.xlu0 %5852
        %5854 = vadd.xlane.f32.xlu0 %v5826
        %v5855 = vpop.xlane.xlu0 %5854
        %5856 = vadd.xlane.f32.xlu0 %v5827
        %v5857 = vpop.xlane.xlu0 %5856
        %5858 = vadd.xlane.f32.xlu0 %v5828
        %v5859 = vpop.xlane.xlu0 %5858
        %5860 = vadd.xlane.f32.xlu0 %v5829
        %v5861 = vpop.xlane.xlu0 %5860
        %5862 = vadd.xlane.f32.xlu0 %v5830
        %v5863 = vpop.xlane.xlu0 %5862
        %5864 = vadd.xlane.f32.xlu0 %v5831
        %v5865 = vpop.xlane.xlu0 %5864
        %v5866 = vmul.f32 %v5835, %v4019
        %v5867 = vmul.f32 %v5837, %v4019
        %v5868 = vmul.f32 %v5839, %v4019
        %v5869 = vmul.f32 %v5841, %v4019
        %v5870 = vmul.f32 %v5843, %v4019
        %v5871 = vmul.f32 %v5845, %v4019
        %v5872 = vmul.f32 %v5847, %v4019
        %v5873 = vmul.f32 %v5849, %v4019
        %v5874 = vmul.f32 %v5851, %v4019
        %v5875 = vmul.f32 %v5853, %v4019
        %v5876 = vmul.f32 %v5855, %v4019
        %v5877 = vmul.f32 %v5857, %v4019
        %v5878 = vmul.f32 %v5859, %v4019
        %v5879 = vmul.f32 %v5861, %v4019
        %v5880 = vmul.f32 %v5863, %v4019
        %v5881 = vmul.f32 %v5865, %v4019
        %v5882 = vsub.f32 %v5816, %v5866
        %v5883 = vsub.f32 %v5817, %v5867
        %v5884 = vsub.f32 %v5818, %v5868
        %v5885 = vsub.f32 %v5819, %v5869
        %v5886 = vsub.f32 %v5820, %v5870
        %v5887 = vsub.f32 %v5821, %v5871
        %v5888 = vsub.f32 %v5822, %v5872
        %v5889 = vsub.f32 %v5823, %v5873
        %v5890 = vsub.f32 %v5824, %v5874
        %v5891 = vsub.f32 %v5825, %v5875
        %v5892 = vsub.f32 %v5826, %v5876
        %v5893 = vsub.f32 %v5827, %v5877
        %v5894 = vsub.f32 %v5828, %v5878
        %v5895 = vsub.f32 %v5829, %v5879
        %v5896 = vsub.f32 %v5830, %v5880
        %v5897 = vsub.f32 %v5831, %v5881
        %v5898 = vmul.f32 %v5882, %v5882
        %v5899 = vmul.f32 %v5883, %v5883
        %v5900 = vmul.f32 %v5884, %v5884
        %v5901 = vmul.f32 %v5885, %v5885
        %v5902 = vmul.f32 %v5886, %v5886
        %v5903 = vmul.f32 %v5887, %v5887
        %v5904 = vmul.f32 %v5888, %v5888
        %v5905 = vmul.f32 %v5889, %v5889
        %v5906 = vmul.f32 %v5890, %v5890
        %v5907 = vmul.f32 %v5891, %v5891
        %v5908 = vmul.f32 %v5892, %v5892
        %v5909 = vmul.f32 %v5893, %v5893
        %v5910 = vmul.f32 %v5894, %v5894
        %v5911 = vmul.f32 %v5895, %v5895
        %v5912 = vmul.f32 %v5896, %v5896
        %v5913 = vmul.f32 %v5897, %v5897
        %5914 = vadd.xlane.f32.xlu0 %v5898
        %v5915 = vpop.xlane.xlu0 %5914
        %5916 = vadd.xlane.f32.xlu0 %v5899
        %v5917 = vpop.xlane.xlu0 %5916
        %5918 = vadd.xlane.f32.xlu0 %v5900
        %v5919 = vpop.xlane.xlu0 %5918
        %5920 = vadd.xlane.f32.xlu0 %v5901
        %v5921 = vpop.xlane.xlu0 %5920
        %5922 = vadd.xlane.f32.xlu0 %v5902
        %v5923 = vpop.xlane.xlu0 %5922
        %5924 = vadd.xlane.f32.xlu0 %v5903
        %v5925 = vpop.xlane.xlu0 %5924
        %5926 = vadd.xlane.f32.xlu0 %v5904
        %v5927 = vpop.xlane.xlu0 %5926
        %5928 = vadd.xlane.f32.xlu0 %v5905
        %v5929 = vpop.xlane.xlu0 %5928
        %5930 = vadd.xlane.f32.xlu0 %v5906
        %v5931 = vpop.xlane.xlu0 %5930
        %5932 = vadd.xlane.f32.xlu0 %v5907
        %v5933 = vpop.xlane.xlu0 %5932
        %5934 = vadd.xlane.f32.xlu0 %v5908
        %v5935 = vpop.xlane.xlu0 %5934
        %5936 = vadd.xlane.f32.xlu0 %v5909
        %v5937 = vpop.xlane.xlu0 %5936
        %5938 = vadd.xlane.f32.xlu0 %v5910
        %v5939 = vpop.xlane.xlu0 %5938
        %5940 = vadd.xlane.f32.xlu0 %v5911
        %v5941 = vpop.xlane.xlu0 %5940
        %5942 = vadd.xlane.f32.xlu0 %v5912
        %v5943 = vpop.xlane.xlu0 %5942
        %5944 = vadd.xlane.f32.xlu0 %v5913
        %v5945 = vpop.xlane.xlu0 %5944
        %v5946 = vmul.f32 %v5915, %v4019
        %v5947 = vmul.f32 %v5917, %v4019
        %v5948 = vmul.f32 %v5919, %v4019
        %v5949 = vmul.f32 %v5921, %v4019
        %v5950 = vmul.f32 %v5923, %v4019
        %v5951 = vmul.f32 %v5925, %v4019
        %v5952 = vmul.f32 %v5927, %v4019
        %v5953 = vmul.f32 %v5929, %v4019
        %v5954 = vmul.f32 %v5931, %v4019
        %v5955 = vmul.f32 %v5933, %v4019
        %v5956 = vmul.f32 %v5935, %v4019
        %v5957 = vmul.f32 %v5937, %v4019
        %v5958 = vmul.f32 %v5939, %v4019
        %v5959 = vmul.f32 %v5941, %v4019
        %v5960 = vmul.f32 %v5943, %v4019
        %v5961 = vmul.f32 %v5945, %v4019
        %v5962 = vadd.f32 %v5946, 1e-12
        %v5963 = vadd.f32 %v5947, 1e-12
        %v5964 = vadd.f32 %v5948, 1e-12
        %v5965 = vadd.f32 %v5949, 1e-12
        %v5966 = vadd.f32 %v5950, 1e-12
        %v5967 = vadd.f32 %v5951, 1e-12
        %v5968 = vadd.f32 %v5952, 1e-12
        %v5969 = vadd.f32 %v5953, 1e-12
        %v5970 = vadd.f32 %v5954, 1e-12
        %v5971 = vadd.f32 %v5955, 1e-12
        %v5972 = vadd.f32 %v5956, 1e-12
        %v5973 = vadd.f32 %v5957, 1e-12
        %v5974 = vadd.f32 %v5958, 1e-12
        %v5975 = vadd.f32 %v5959, 1e-12
        %v5976 = vadd.f32 %v5960, 1e-12
        %v5977 = vadd.f32 %v5961, 1e-12
        %v5978 = vrsqrt.pop %v5962
        %v5979 = vmul.f32 %v5978, %v5962
        %v5980 = vmul.f32 %v5979, %v5978
        %v5981 = vmul.f32 0.5, %v5980
        %v5982 = vsub.f32 1.5, %v5981
        %v5983 = vmul.f32 %v5978, %v5982
        %vm5984 = vweird.f32 %v5962
        %vm5985 = vweird.f32 %v5978
        %vm5986 = vmor %vm5984, %vm5985
        %v5987 = vsel %vm5986, %v5978, %v5983
        %v5988 = vrsqrt.pop %v5963
        %v5989 = vmul.f32 %v5988, %v5963
        %v5990 = vmul.f32 %v5989, %v5988
        %v5991 = vmul.f32 0.5, %v5990
        %v5992 = vsub.f32 1.5, %v5991
        %v5993 = vmul.f32 %v5988, %v5992
        %vm5994 = vweird.f32 %v5963
        %vm5995 = vweird.f32 %v5988
        %vm5996 = vmor %vm5994, %vm5995
        %v5997 = vsel %vm5996, %v5988, %v5993
        %v5998 = vrsqrt.pop %v5964
        %v5999 = vmul.f32 %v5998, %v5964
        %v6000 = vmul.f32 %v5999, %v5998
        %v6001 = vmul.f32 0.5, %v6000
        %v6002 = vsub.f32 1.5, %v6001
        %v6003 = vmul.f32 %v5998, %v6002
        %vm6004 = vweird.f32 %v5964
        %vm6005 = vweird.f32 %v5998
        %vm6006 = vmor %vm6004, %vm6005
        %v6007 = vsel %vm6006, %v5998, %v6003
        %v6008 = vrsqrt.pop %v5965
        %v6009 = vmul.f32 %v6008, %v5965
        %v6010 = vmul.f32 %v6009, %v6008
        %v6011 = vmul.f32 0.5, %v6010
        %v6012 = vsub.f32 1.5, %v6011
        %v6013 = vmul.f32 %v6008, %v6012
        %vm6014 = vweird.f32 %v5965
        %vm6015 = vweird.f32 %v6008
        %vm6016 = vmor %vm6014, %vm6015
        %v6017 = vsel %vm6016, %v6008, %v6013
        %v6018 = vrsqrt.pop %v5966
        %v6019 = vmul.f32 %v6018, %v5966
        %v6020 = vmul.f32 %v6019, %v6018
        %v6021 = vmul.f32 0.5, %v6020
        %v6022 = vsub.f32 1.5, %v6021
        %v6023 = vmul.f32 %v6018, %v6022
        %vm6024 = vweird.f32 %v5966
        %vm6025 = vweird.f32 %v6018
        %vm6026 = vmor %vm6024, %vm6025
        %v6027 = vsel %vm6026, %v6018, %v6023
        %v6028 = vrsqrt.pop %v5967
        %v6029 = vmul.f32 %v6028, %v5967
        %v6030 = vmul.f32 %v6029, %v6028
        %v6031 = vmul.f32 0.5, %v6030
        %v6032 = vsub.f32 1.5, %v6031
        %v6033 = vmul.f32 %v6028, %v6032
        %vm6034 = vweird.f32 %v5967
        %vm6035 = vweird.f32 %v6028
        %vm6036 = vmor %vm6034, %vm6035
        %v6037 = vsel %vm6036, %v6028, %v6033
        %v6038 = vrsqrt.pop %v5968
        %v6039 = vmul.f32 %v6038, %v5968
        %v6040 = vmul.f32 %v6039, %v6038
        %v6041 = vmul.f32 0.5, %v6040
        %v6042 = vsub.f32 1.5, %v6041
        %v6043 = vmul.f32 %v6038, %v6042
        %vm6044 = vweird.f32 %v5968
        %vm6045 = vweird.f32 %v6038
        %vm6046 = vmor %vm6044, %vm6045
        %v6047 = vsel %vm6046, %v6038, %v6043
        %v6048 = vrsqrt.pop %v5969
        %v6049 = vmul.f32 %v6048, %v5969
        %v6050 = vmul.f32 %v6049, %v6048
        %v6051 = vmul.f32 0.5, %v6050
        %v6052 = vsub.f32 1.5, %v6051
        %v6053 = vmul.f32 %v6048, %v6052
        %vm6054 = vweird.f32 %v5969
        %vm6055 = vweird.f32 %v6048
        %vm6056 = vmor %vm6054, %vm6055
        %v6057 = vsel %vm6056, %v6048, %v6053
        %v6058 = vrsqrt.pop %v5970
        %v6059 = vmul.f32 %v6058, %v5970
        %v6060 = vmul.f32 %v6059, %v6058
        %v6061 = vmul.f32 0.5, %v6060
        %v6062 = vsub.f32 1.5, %v6061
        %v6063 = vmul.f32 %v6058, %v6062
        %vm6064 = vweird.f32 %v5970
        %vm6065 = vweird.f32 %v6058
        %vm6066 = vmor %vm6064, %vm6065
        %v6067 = vsel %vm6066, %v6058, %v6063
        %v6068 = vrsqrt.pop %v5971
        %v6069 = vmul.f32 %v6068, %v5971
        %v6070 = vmul.f32 %v6069, %v6068
        %v6071 = vmul.f32 0.5, %v6070
        %v6072 = vsub.f32 1.5, %v6071
        %v6073 = vmul.f32 %v6068, %v6072
        %vm6074 = vweird.f32 %v5971
        %vm6075 = vweird.f32 %v6068
        %vm6076 = vmor %vm6074, %vm6075
        %v6077 = vsel %vm6076, %v6068, %v6073
        %v6078 = vrsqrt.pop %v5972
        %v6079 = vmul.f32 %v6078, %v5972
        %v6080 = vmul.f32 %v6079, %v6078
        %v6081 = vmul.f32 0.5, %v6080
        %v6082 = vsub.f32 1.5, %v6081
        %v6083 = vmul.f32 %v6078, %v6082
        %vm6084 = vweird.f32 %v5972
        %vm6085 = vweird.f32 %v6078
        %vm6086 = vmor %vm6084, %vm6085
        %v6087 = vsel %vm6086, %v6078, %v6083
        %v6088 = vrsqrt.pop %v5973
        %v6089 = vmul.f32 %v6088, %v5973
        %v6090 = vmul.f32 %v6089, %v6088
        %v6091 = vmul.f32 0.5, %v6090
        %v6092 = vsub.f32 1.5, %v6091
        %v6093 = vmul.f32 %v6088, %v6092
        %vm6094 = vweird.f32 %v5973
        %vm6095 = vweird.f32 %v6088
        %vm6096 = vmor %vm6094, %vm6095
        %v6097 = vsel %vm6096, %v6088, %v6093
        %v6098 = vrsqrt.pop %v5974
        %v6099 = vmul.f32 %v6098, %v5974
        %v6100 = vmul.f32 %v6099, %v6098
        %v6101 = vmul.f32 0.5, %v6100
        %v6102 = vsub.f32 1.5, %v6101
        %v6103 = vmul.f32 %v6098, %v6102
        %vm6104 = vweird.f32 %v5974
        %vm6105 = vweird.f32 %v6098
        %vm6106 = vmor %vm6104, %vm6105
        %v6107 = vsel %vm6106, %v6098, %v6103
        %v6108 = vrsqrt.pop %v5975
        %v6109 = vmul.f32 %v6108, %v5975
        %v6110 = vmul.f32 %v6109, %v6108
        %v6111 = vmul.f32 0.5, %v6110
        %v6112 = vsub.f32 1.5, %v6111
        %v6113 = vmul.f32 %v6108, %v6112
        %vm6114 = vweird.f32 %v5975
        %vm6115 = vweird.f32 %v6108
        %vm6116 = vmor %vm6114, %vm6115
        %v6117 = vsel %vm6116, %v6108, %v6113
        %v6118 = vrsqrt.pop %v5976
        %v6119 = vmul.f32 %v6118, %v5976
        %v6120 = vmul.f32 %v6119, %v6118
        %v6121 = vmul.f32 0.5, %v6120
        %v6122 = vsub.f32 1.5, %v6121
        %v6123 = vmul.f32 %v6118, %v6122
        %vm6124 = vweird.f32 %v5976
        %vm6125 = vweird.f32 %v6118
        %vm6126 = vmor %vm6124, %vm6125
        %v6127 = vsel %vm6126, %v6118, %v6123
        %v6128 = vrsqrt.pop %v5977
        %v6129 = vmul.f32 %v6128, %v5977
        %v6130 = vmul.f32 %v6129, %v6128
        %v6131 = vmul.f32 0.5, %v6130
        %v6132 = vsub.f32 1.5, %v6131
        %v6133 = vmul.f32 %v6128, %v6132
        %vm6134 = vweird.f32 %v5977
        %vm6135 = vweird.f32 %v6128
        %vm6136 = vmor %vm6134, %vm6135
        %v6137 = vsel %vm6136, %v6128, %v6133
        %v6138 = vmul.f32 %v5882, %v5987
        %v6139 = vmul.f32 %v5883, %v5997
        %v6140 = vmul.f32 %v5884, %v6007
        %v6141 = vmul.f32 %v5885, %v6017
        %v6142 = vmul.f32 %v5886, %v6027
        %v6143 = vmul.f32 %v5887, %v6037
        %v6144 = vmul.f32 %v5888, %v6047
        %v6145 = vmul.f32 %v5889, %v6057
        %v6146 = vmul.f32 %v5890, %v6067
        %v6147 = vmul.f32 %v5891, %v6077
        %v6148 = vmul.f32 %v5892, %v6087
        %v6149 = vmul.f32 %v5893, %v6097
        %v6150 = vmul.f32 %v5894, %v6107
        %v6151 = vmul.f32 %v5895, %v6117
        %v6152 = vmul.f32 %v5896, %v6127
        %v6153 = vmul.f32 %v5897, %v6137
        %v6155 = vperm.slane %v5832, 0
        %v6157 = vmul.f32 %v6138, %v6155
        %v6158 = vmul.f32 %v6139, %v6155
        %v6159 = vmul.f32 %v6140, %v6155
        %v6160 = vmul.f32 %v6141, %v6155
        %v6161 = vmul.f32 %v6142, %v6155
        %v6162 = vmul.f32 %v6143, %v6155
        %v6163 = vmul.f32 %v6144, %v6155
        %v6164 = vmul.f32 %v6145, %v6155
        %v6165 = vmul.f32 %v6146, %v6155
        %v6166 = vmul.f32 %v6147, %v6155
        %v6167 = vmul.f32 %v6148, %v6155
        %v6168 = vmul.f32 %v6149, %v6155
        %v6169 = vmul.f32 %v6150, %v6155
        %v6170 = vmul.f32 %v6151, %v6155
        %v6171 = vmul.f32 %v6152, %v6155
        %v6172 = vmul.f32 %v6153, %v6155
        %v6174 = vperm.slane %v5833, 0
        %v6176 = vadd.f32 %v6157, %v6174
        %v6177 = vadd.f32 %v6158, %v6174
        %v6178 = vadd.f32 %v6159, %v6174
        %v6179 = vadd.f32 %v6160, %v6174
        %v6180 = vadd.f32 %v6161, %v6174
        %v6181 = vadd.f32 %v6162, %v6174
        %v6182 = vadd.f32 %v6163, %v6174
        %v6183 = vadd.f32 %v6164, %v6174
        %v6184 = vadd.f32 %v6165, %v6174
        %v6185 = vadd.f32 %v6166, %v6174
        %v6186 = vadd.f32 %v6167, %v6174
        %v6187 = vadd.f32 %v6168, %v6174
        %v6188 = vadd.f32 %v6169, %v6174
        %v6189 = vadd.f32 %v6170, %v6174
        %v6190 = vadd.f32 %v6171, %v6174
        %v6191 = vadd.f32 %v6172, %v6174
        %6192 = vst [vmem:[#allocation2] sm:$0xff] %v6176
        %6193 = vst [vmem:[#allocation2 + $0x8] sm:$0xff] %v6177
        %6194 = vst [vmem:[#allocation2 + $0x10] sm:$0xff] %v6178
        %6195 = vst [vmem:[#allocation2 + $0x18] sm:$0xff] %v6179
        %6196 = vst [vmem:[#allocation2 + $0x20] sm:$0xff] %v6180
        %6197 = vst [vmem:[#allocation2 + $0x28] sm:$0xff] %v6181
        %6198 = vst [vmem:[#allocation2 + $0x30] sm:$0xff] %v6182
        %6199 = vst [vmem:[#allocation2 + $0x38] sm:$0xff] %v6183
        %6200 = vst [vmem:[#allocation2 + $0x40] sm:$0xff] %v6184
        %6201 = vst [vmem:[#allocation2 + $0x48] sm:$0xff] %v6185
        %6202 = vst [vmem:[#allocation2 + $0x50] sm:$0xff] %v6186
        %6203 = vst [vmem:[#allocation2 + $0x58] sm:$0xff] %v6187
        %6204 = vst [vmem:[#allocation2 + $0x60] sm:$0xff] %v6188
        %6205 = vst [vmem:[#allocation2 + $0x68] sm:$0xff] %v6189
        %6206 = vst [vmem:[#allocation2 + $0x70] sm:$0xff] %v6190
        %6207 = vst [vmem:[#allocation2 + $0x78] sm:$0xff] %v6191
        %p6208 = scmp.eq.s32.totalorder %s35, 1
        // Predicated region
        $region125: #{_lambda_.1} parent=99 // pred_check
          %p6209 = pneg %p6208
        $region126: #{_lambda_.1} parent=99 // pred_check_branch
          %6211 = sbr.rel (%p6209) target = $region128
        $region127: #{_lambda_.1} parent=99 // pred_region
          %v6212 = vld [vmem:[%s18] sm:$0xff]
          %v6213 = vld [vmem:[%s18 + $0x8] sm:$0xff]
          %v6214 = vld [vmem:[%s18 + $0x10] sm:$0xff]
          %v6215 = vld [vmem:[%s18 + $0x18] sm:$0xff]
          %v6216 = vld [vmem:[%s18 + $0x20] sm:$0xff]
          %v6217 = vld [vmem:[%s18 + $0x28] sm:$0xff]
          %v6218 = vld [vmem:[%s18 + $0x30] sm:$0xff]
          %v6219 = vld [vmem:[%s18 + $0x38] sm:$0xff]
          %v6220 = vld [vmem:[%s18 + $0x40] sm:$0xff]
          %v6221 = vld [vmem:[%s18 + $0x48] sm:$0xff]
          %v6222 = vld [vmem:[%s18 + $0x50] sm:$0xff]
          %v6223 = vld [vmem:[%s18 + $0x58] sm:$0xff]
          %v6224 = vld [vmem:[%s18 + $0x60] sm:$0xff]
          %v6225 = vld [vmem:[%s18 + $0x68] sm:$0xff]
          %v6226 = vld [vmem:[%s18 + $0x70] sm:$0xff]
          %v6227 = vld [vmem:[%s18 + $0x78] sm:$0xff]
          %v6228 = vld [vmem:[#allocation4] sm:$0x1]
          %6229 = vmatpush.msra.mxu0 %v6227
          %6230 = vmatpush.msra.mxu0 %v6226
          %6231 = vmatpush.msra.mxu0 %v6225
          %6232 = vmatpush.msra.mxu0 %v6224
          %6233 = vmatpush.msra.mxu0 %v6223
          %6234 = vmatpush.msra.mxu0 %v6222
          %6235 = vmatpush.msra.mxu0 %v6221
          %6236 = vmatpush.msra.mxu0 %v6220
          %6237 = vmatpush.msra.mxu0 %v6219
          %6238 = vmatpush.msra.mxu0 %v6218
          %6239 = vmatpush.msra.mxu0 %v6217
          %6240 = vmatpush.msra.mxu0 %v6216
          %6241 = vmatpush.msra.mxu0 %v6215
          %6242 = vmatpush.msra.mxu0 %v6214
          %6243 = vmatpush.msra.mxu0 %v6213
          %6244 = vmatpush.msra.mxu0 %v6212
          %6245 = vmatmul.f32.gmra.mxu0 %v6176
          %v6246 = vpop.f32.mrf.mxu0
          %v6247 = vadd.f32 %v6228, %v6246
          %6248 = vdwg.mxu0
          %v6249 = vxor.u32 %v6247, 2147483648
          %v6250 = vmul.f32 %v6249, 1.442695
          %v6251 = vpow.pop %v6250
          %v6252 = vadd.f32 %v6251, 1.0
          %v6253 = vrcp.pop %v6252
          %v6254 = vmul.f32 %v6252, %v6253
          %v6255 = vsub.f32 1.0, %v6254
          %v6256 = vmul.f32 %v6253, %v6255
          %v6257 = vadd.f32 %v6253, %v6256
          %vm6258 = vweird.f32 %v6252
          %vm6259 = vweird.f32 %v6253
          %vm6260 = vmor %vm6258, %vm6259
          %v6261 = vsel %vm6260, %v6253, %v6257
          %v6262 = vand.u32 2147483647, %v6252
          %vm6263 = vcmp.eq.f32.partialorder %v6262, 8.507059e+37
          %v6264 = vand.u32 %v6252, 2147483648
          %v6265 = vor.u32 1.1754944e-38, %v6264
          %v6266 = vsel %vm6263, %v6265, %v6261
          %v6267 = vmul.f32 1.0, %v6266
          %vm6268 = vcmask 0
          %6269 = vst.msk [vmem:[%s20] sm:$0x1] %vm6268, %v6267
          %6270 = vmatpush.msra.mxu0 %v6227
          %6271 = vmatpush.msra.mxu0 %v6226
          %6272 = vmatpush.msra.mxu0 %v6225
          %6273 = vmatpush.msra.mxu0 %v6224
          %6274 = vmatpush.msra.mxu0 %v6223
          %6275 = vmatpush.msra.mxu0 %v6222
          %6276 = vmatpush.msra.mxu0 %v6221
          %6277 = vmatpush.msra.mxu0 %v6220
          %6278 = vmatpush.msra.mxu0 %v6219
          %6279 = vmatpush.msra.mxu0 %v6218
          %6280 = vmatpush.msra.mxu0 %v6217
          %6281 = vmatpush.msra.mxu0 %v6216
          %6282 = vmatpush.msra.mxu0 %v6215
          %6283 = vmatpush.msra.mxu0 %v6214
          %6284 = vmatpush.msra.mxu0 %v6213
          %6285 = vmatpush.msra.mxu0 %v6212
          %6286 = vmatmul.f32.gmra.mxu0 %v6184
          %v6287 = vpop.f32.mrf.mxu0
          %v6288 = vadd.f32 %v6228, %v6287
          %6289 = vdwg.mxu0
          %v6290 = vxor.u32 %v6288, 2147483648
          %v6291 = vmul.f32 %v6290, 1.442695
          %v6292 = vpow.pop %v6291
          %v6293 = vadd.f32 %v6292, 1.0
          %v6294 = vrcp.pop %v6293
          %v6295 = vmul.f32 %v6293, %v6294
          %v6296 = vsub.f32 1.0, %v6295
          %v6297 = vmul.f32 %v6294, %v6296
          %v6298 = vadd.f32 %v6294, %v6297
          %vm6299 = vweird.f32 %v6293
          %vm6300 = vweird.f32 %v6294
          %vm6301 = vmor %vm6299, %vm6300
          %v6302 = vsel %vm6301, %v6294, %v6298
          %v6303 = vand.u32 2147483647, %v6293
          %vm6304 = vcmp.eq.f32.partialorder %v6303, 8.507059e+37
          %v6305 = vand.u32 %v6293, 2147483648
          %v6306 = vor.u32 1.1754944e-38, %v6305
          %v6307 = vsel %vm6304, %v6306, %v6302
          %v6308 = vmul.f32 1.0, %v6307
          %6309 = vst.msk [vmem:[%s20 + $0x1] sm:$0x1] %vm6268, %v6308
        $region128: #{_lambda_.1} parent=99 // pred_fallthru
          _
        // Predicated region
        $region129: #{_lambda_.1} parent=99 // pred_check
          %p6310 = pneg %p528
        $region130: #{_lambda_.1} parent=99 // pred_check_branch
          %6312 = sbr.rel (%p6310) target = $region132
        $region131: #{_lambda_.1} parent=99 // pred_region
          _
        $region132: #{_lambda_.1} parent=99 // pred_fallthru
          _
        // Predicated region
        $region133: #{_lambda_.1} parent=99 // pred_check
          %p6313 = pneg %p528
        $region134: #{_lambda_.1} parent=99 // pred_check_branch
          %6315 = sbr.rel (%p6313) target = $region136
        $region135: #{_lambda_.1} parent=99 // pred_region
          _
        $region136: #{_lambda_.1} parent=99 // pred_fallthru
          _
      $region100: #{_lambda_.1} parent=5 // pred_fallthru
        _
      %p6316 = scmp.le.s32.totalorder 2, %s30
      // Predicated region
      $region137: #{_lambda_.1} parent=5 // pred_check
        %p6317 = pneg %p6316
      $region138: #{_lambda_.1} parent=5 // pred_check_branch
        %6319 = sbr.rel (%p6317) target = $region140
      $region139: #{_lambda_.1} parent=5 // pred_region
        %s6320 = ssub.s32 %s30, 2
      $region140: #{_lambda_.1} parent=5 // pred_fallthru
        _
    $region6: #{_lambda_.1} parent=1 // loop_footer
      %s34 = sadd.s32 1, %s30
    $region7: #{_lambda_.1} parent=1 // loop_footer_branch
      %29 = sbr.rel target = $region3
    $region8: #{_lambda_.1} parent=1 // loop_exit
      _
    %6321 = vsyncpa [#allocation6], 1
    %s6322 = scalar_lea.sflag [#allocation6], 1
    %6323 = vsyncpa %s6322, 1
    %6324 = vsyncpa [#allocation8], 1

</llo_original>
